<compile_context>
chip_gen: v7x
topology: tpu7x:2x2x1
jax: 0.10.0
libtpu: 0.0.40
codegen_flags: <defaults>
</compile_context>

<pallas_src>
import jax
import jax.numpy as jnp
from jax.experimental import pallas as pl
from jax.experimental.pallas import tpu as pltpu

LRELU_SLOPE = 0.01
BN_EPS = 1e-5
N_TIME_FILTERS = 4      # time_conv2d output channels
BAND_CH = 32            # out_band_channels of every BandSpaceLayer
SPACE_CH = 32           # out_space_channels of every BandSpaceLayer


def _leaky(z):
    return jnp.where(z >= 0, z, LRELU_SLOPE * z)


def _vmem_spec():
    return pl.BlockSpec(memory_space=pltpu.MemorySpace.VMEM)


# ----------------------------------------------------------------------------
# The fused kernel.  All static dims are closed over; refs arrive flat.
# ----------------------------------------------------------------------------
def _make_fused_kernel(*, B, C, F, K0, T, layer_meta, n_class):
    R0 = C * F                     # rows after the time stage (c-major: c*F+f)
    R_out = C * BAND_CH            # rows inside the band layers (c*32+ch)
    S = SPACE_CH
    n_layers = len(layer_meta)
    BT = B * T

    def group_stats_2d(z, ch, count):
        # z: (C*ch, N). Training-mode BN stats per channel `ch`, pooled over
        # the C spatial groups and all N columns.  Two-pass (centered) var.
        s = jnp.sum(z, axis=1, keepdims=True)              # (C*ch, 1)
        gs = s[0:ch]
        for c in range(1, C):
            gs = gs + s[c * ch:(c + 1) * ch]
        mean = gs / float(count)                           # (ch, 1)
        mean_r = jnp.concatenate([mean] * C, axis=0)       # (C*ch, 1)
        d = z - mean_r
        q = jnp.sum(d * d, axis=1, keepdims=True)
        gq = q[0:ch]
        for c in range(1, C):
            gq = gq + q[c * ch:(c + 1) * ch]
        var = gq / float(count)
        return mean, var

    def kernel(*refs):
        it = iter(refs)
        x_ref, tw_ref, tb_ref, tg_ref, tbt_ref = (next(it) for _ in range(5))
        layer_refs = [tuple(next(it) for _ in range(10)) for _ in range(n_layers)]
        fcw_ref, fcb_ref = next(it), next(it)
        out_ref = next(it)

        # ---------- time conv (valid) + LeakyReLU + BN  (3-D, time on lanes) --
        x = x_ref[...]                                     # (B, R0, Tin) f32
        tw = tw_ref[...]                                   # (K0, R0, 1)
        acc = jnp.zeros((B, R0, T), jnp.float32)
        for k in range(K0):                                # static tap unroll
            acc = acc + tw[k][None] * x[:, :, k:k + T]
        z = _leaky(acc + tb_ref[...])
        # train-mode BN per time filter f (rows are c*F + f); two-pass var
        s = jnp.sum(jnp.sum(z, axis=2, keepdims=True), axis=0, keepdims=True)
        gs = s[:, 0:F, :]
        for c in range(1, C):
            gs = gs + s[:, c * F:(c + 1) * F, :]
        cnt0 = float(B * C * T)
        mean0 = gs / cnt0                                  # (1, F, 1)
        mean0_r = jnp.concatenate([mean0] * C, axis=1)     # (1, R0, 1)
        d = z - mean0_r
        q = jnp.sum(jnp.sum(d * d, axis=2, keepdims=True), axis=0, keepdims=True)
        gq = q[:, 0:F, :]
        for c in range(1, C):
            gq = gq + q[:, c * F:(c + 1) * F, :]
        var0 = gq / cnt0
        scale0 = tg_ref[...] * jax.lax.rsqrt(var0 + BN_EPS)
        shift0 = tbt_ref[...] - mean0 * scale0
        h = (z * jnp.concatenate([scale0] * C, axis=1)
             + jnp.concatenate([shift0] * C, axis=1))      # (B, R0, T)

        # ---------------------- three fused BandSpaceLayers -------------------
        feat_cols = [[] for _ in range(B)]                 # per batch: [(S,1)]*3
        for li, (kb, R_in) in enumerate(layer_meta):
            (dww_ref, dwb_ref, pww_ref, pwb_ref, g1_ref, b1_ref,
             spw_ref, spb_ref, g2_ref, b2_ref) = layer_refs[li]
            pad = (kb - 1) // 2

            # depthwise band conv, 'same' time padding built in VMEM (VPU)
            zpad = jnp.zeros((B, R_in, pad), jnp.float32)
            xp = jnp.concatenate([zpad, h, zpad], axis=2)  # (B, R_in, T+2*pad)
            w = dww_ref[...]                               # (kb, R_in, 1)
            acc = jnp.zeros((B, R_in, T), jnp.float32)
            for k in range(kb):                            # static tap unroll
                acc = acc + w[k][None] * xp[:, :, k:k + T]
            dw3 = acc + dwb_ref[...]                       # (B, R_in, T)

            # fold batch onto lanes -> one MXU push per conv, denser vregs
            dw2 = jnp.concatenate([dw3[b] for b in range(B)], axis=-1)  # (R_in, B*T)

            # pointwise 1x1 conv as block-diag (I_C kron W) matmul, bf16 in f32 acc
            z1 = jnp.dot(pww_ref[...], dw2.astype(jnp.bfloat16),
                         preferred_element_type=jnp.float32)            # (R_out, B*T)
            z1 = _leaky(z1 + pwb_ref[...])

            # BN1 per band channel (rows are c*BAND_CH + ch)
            mean1, var1 = group_stats_2d(z1, BAND_CH, B * C * T)
            scale1 = g1_ref[...] * jax.lax.rsqrt(var1 + BN_EPS)
            shift1 = b1_ref[...] - mean1 * scale1
            h1 = (z1 * jnp.concatenate([scale1] * C, axis=0)
                  + jnp.concatenate([shift1] * C, axis=0))              # (R_out, B*T)

            # space conv contracts the whole (band-ch x spatial-ch) axis (MXU)
            z2 = jnp.dot(spw_ref[...], h1.astype(jnp.bfloat16),
                         preferred_element_type=jnp.float32)            # (S, B*T)
            z2 = _leaky(z2 + spb_ref[...])

            # BN2 (batch stats over all B*T columns) fused with the per-batch
            # time mean: BN is a per-channel affine map, so it commutes.
            s2 = jnp.sum(z2, axis=1, keepdims=True)
            mean2 = s2 / float(BT)
            d2 = z2 - mean2
            var2 = jnp.sum(d2 * d2, axis=1, keepdims=True) / float(BT)
            scale2 = g2_ref[...] * jax.lax.rsqrt(var2 + BN_EPS)
            shift2 = b2_ref[...] - mean2 * scale2
            for b in range(B):
                st = jnp.sum(z2[:, b * T:(b + 1) * T], axis=1, keepdims=True)
                feat_cols[b].append((st / float(T)) * scale2 + shift2)  # (S, 1)

            # unfold back to (B, R_out, T) only if another depthwise conv follows
            if li + 1 < n_layers:
                h = jnp.stack([h1[:, b * T:(b + 1) * T] for b in range(B)], axis=0)

        # ---------------- final FC on the pooled 3*S features -----------------
        cols = [jnp.concatenate(feat_cols[b], axis=0) for b in range(B)]  # (3S, 1)
        fmat = jnp.concatenate(cols, axis=1)                              # (3S, B)
        out_ref[...] = jnp.dot(fcw_ref[...], fmat,
                               preferred_element_type=jnp.float32) + fcb_ref[...]

    return kernel


# ----------------------------------------------------------------------------
# Parameters: PyTorch-native init + one-time kernel-layout preparation.
# ----------------------------------------------------------------------------
def init_params(key, n_chan, n_class, fs):
    K0 = fs // 2
    keys = iter(jax.random.split(key, 40))

    def nrm(shape, scale=0.1):
        return (scale * jax.random.normal(next(keys), shape)).astype(jnp.float32)

    params = {
        "time_w": nrm((N_TIME_FILTERS, 1, 1, K0)),   # Conv2d(1, 4, (1, fs//2))
        "time_b": nrm((N_TIME_FILTERS,)),
        "time_bn_g": jnp.ones((N_TIME_FILTERS,), jnp.float32),
        "time_bn_b": jnp.zeros((N_TIME_FILTERS,), jnp.float32),
        "bs": [],
        "fc_w": nrm((n_class, 32 * 3)),              # nn.Linear(96, n_class)
        "fc_b": nrm((n_class,)),
    }
    for cin, kb in [(4, 15), (32, 11), (32, 5)]:
        params["bs"].append({
            "dw_w": nrm((cin, 1, 1, kb)),            # depthwise Conv2d, groups=cin
            "dw_b": nrm((cin,)),
            "pw_w": nrm((32, cin, 1, 1)),            # pointwise Conv2d(cin, 32, 1)
            "pw_b": nrm((32,)),
            "bn1_g": jnp.ones((32,), jnp.float32),
            "bn1_b": jnp.zeros((32,), jnp.float32),
            "sp_w": nrm((32, 32, n_chan, 1)),        # space Conv2d(32, 32, (C, 1))
            "sp_b": nrm((32,)),
            "bn2_g": jnp.ones((32,), jnp.float32),
            "bn2_b": jnp.zeros((32,), jnp.float32),
        })
    return params


def prepare_params(params, n_chan):
    """One-time transform of PyTorch-native weights into kernel-ready layouts.
    (All kron / tile / transpose / casts hoisted out of the hot forward path.)"""
    C = n_chan
    tw = params["time_w"][:, 0, 0, :]                        # (F, K0)
    prep = {
        "t_taps": jnp.tile(tw.T, (1, C))[:, :, None],        # (K0, C*F, 1)
        "t_bias": jnp.tile(params["time_b"], (C,))[None, :, None],
        "t_gamma": params["time_bn_g"][None, :, None],       # (1, F, 1)
        "t_beta": params["time_bn_b"][None, :, None],
        "layers": [],
        "fc_w": params["fc_w"].astype(jnp.float32),          # (n_class, 3*32)
        "fc_b": params["fc_b"][:, None],                     # (n_class, 1)
    }
    eye_c = jnp.eye(C, dtype=jnp.float32)
    for p in params["bs"]:
        dw2 = p["dw_w"][:, 0, 0, :]                          # (ch_in, kb)
        sp3 = p["sp_w"][:, :, :, 0]                          # (32, 32, C)
        prep["layers"].append({
            "dw_taps": jnp.tile(dw2.T, (1, C))[:, :, None],          # (kb, C*ch_in, 1)
            "dw_bias": jnp.tile(p["dw_b"], (C,))[None, :, None],     # (1, C*ch_in, 1)
            "pw_w": jnp.kron(eye_c, p["pw_w"][:, :, 0, 0]).astype(jnp.bfloat16),
            "pw_b": jnp.tile(p["pw_b"], (C,))[:, None],              # (C*32, 1)
            "bn1_g": p["bn1_g"][:, None],
            "bn1_b": p["bn1_b"][:, None],
            "sp_w": jnp.transpose(sp3, (0, 2, 1)).reshape(
                SPACE_CH, C * BAND_CH).astype(jnp.bfloat16),         # (32, C*32)
            "sp_b": p["sp_b"][:, None],
            "bn2_g": p["bn2_g"][:, None],
            "bn2_b": p["bn2_b"][:, None],
        })
    return prep


# ----------------------------------------------------------------------------
# Forward: one fused pallas_call; only the logits ever reach HBM.
# ----------------------------------------------------------------------------
def msnn_forward(x, prep):
    """x: (B, 1, n_chan, n_sample), NCHW like the PyTorch module."""
    B, _, C, Tin = x.shape
    F = N_TIME_FILTERS
    K0 = prep["t_taps"].shape[0]
    T0 = Tin - K0 + 1
    n_class = prep["fc_w"].shape[0]
    R_out = C * BAND_CH

    # The only per-call XLA prep: repeat input channels into the c-major row
    # layout used by the time conv (tiny: B*C*F*Tin floats).
    x_rep = jnp.repeat(x[:, 0, :, :], F, axis=1)             # (B, C*F, Tin)

    inputs = [x_rep, prep["t_taps"], prep["t_bias"], prep["t_gamma"], prep["t_beta"]]
    layer_meta = []
    for L in prep["layers"]:
        inputs += [L["dw_taps"], L["dw_bias"], L["pw_w"], L["pw_b"],
                   L["bn1_g"], L["bn1_b"], L["sp_w"], L["sp_b"],
                   L["bn2_g"], L["bn2_b"]]
        layer_meta.append((int(L["dw_taps"].shape[0]),       # kb
                           int(L["dw_taps"].shape[1])))      # R_in
    inputs += [prep["fc_w"], prep["fc_b"]]

    kernel = _make_fused_kernel(B=B, C=C, F=F, K0=K0, T=T0,
                                layer_meta=layer_meta, n_class=n_class)

    flops = 2 * B * (C * F) * T0 * K0 + 10 * B * (C * F) * T0
    for kb, r_in in layer_meta:
        flops += 2 * B * T0 * (r_in * kb + R_out * r_in + SPACE_CH * R_out)
        flops += 16 * B * T0 * R_out
    flops += 2 * n_class * (3 * SPACE_CH) * B
    bytes_accessed = sum(int(a.size) * a.dtype.itemsize for a in inputs) \
        + n_class * B * 4
    transcendentals = F + len(layer_meta) * (BAND_CH + SPACE_CH)

    logits_t = pl.pallas_call(
        kernel,
        out_shape=jax.ShapeDtypeStruct((n_class, B), jnp.float32),
        in_specs=[_vmem_spec() for _ in inputs],
        out_specs=_vmem_spec(),
        compiler_params=pltpu.CompilerParams(vmem_limit_bytes=32 * 1024 * 1024),
        cost_estimate=pl.CostEstimate(flops=int(flops),
                                      transcendentals=int(transcendentals),
                                      bytes_accessed=int(bytes_accessed)),
    )(*inputs)
    return logits_t.T                                        # (B, n_class)


if __name__ == "__main__":
    B, n_chan, n_sample, n_class, fs = 2, 4, 64, 3, 16
    key = jax.random.PRNGKey(0)
    kx, kp = jax.random.split(key)

    x = jax.random.normal(kx, (B, 1, n_chan, n_sample), jnp.float32)
    params = init_params(kp, n_chan, n_class, fs)
    prep = jax.block_until_ready(prepare_params(params, n_chan))  # one-time prep

    fwd = jax.jit(msnn_forward)
    logits = fwd(x, prep)
    logits = jax.block_until_ready(logits)
    assert logits.shape == (B, n_class), logits.shape
    assert bool(jnp.all(jnp.isfinite(logits)))
    print("KERNEL_OK")
</pallas_src>

<mosaic_0001>
module attributes {stable_mosaic.version = 11 : i64} {
  func.func @kernel(%arg0: memref<2x16x64xf32, #tpu.memory_space<vmem>>, %arg1: memref<8x16x1xf32, #tpu.memory_space<vmem>>, %arg2: memref<1x16x1xf32, #tpu.memory_space<vmem>>, %arg3: memref<1x4x1xf32, #tpu.memory_space<vmem>>, %arg4: memref<1x4x1xf32, #tpu.memory_space<vmem>>, %arg5: memref<15x16x1xf32, #tpu.memory_space<vmem>>, %arg6: memref<1x16x1xf32, #tpu.memory_space<vmem>>, %arg7: memref<128x16xbf16, #tpu.memory_space<vmem>>, %arg8: memref<128x1xf32, #tpu.memory_space<vmem>>, %arg9: memref<32x1xf32, #tpu.memory_space<vmem>>, %arg10: memref<32x1xf32, #tpu.memory_space<vmem>>, %arg11: memref<32x128xbf16, #tpu.memory_space<vmem>>, %arg12: memref<32x1xf32, #tpu.memory_space<vmem>>, %arg13: memref<32x1xf32, #tpu.memory_space<vmem>>, %arg14: memref<32x1xf32, #tpu.memory_space<vmem>>, %arg15: memref<11x128x1xf32, #tpu.memory_space<vmem>>, %arg16: memref<1x128x1xf32, #tpu.memory_space<vmem>>, %arg17: memref<128x128xbf16, #tpu.memory_space<vmem>>, %arg18: memref<128x1xf32, #tpu.memory_space<vmem>>, %arg19: memref<32x1xf32, #tpu.memory_space<vmem>>, %arg20: memref<32x1xf32, #tpu.memory_space<vmem>>, %arg21: memref<32x128xbf16, #tpu.memory_space<vmem>>, %arg22: memref<32x1xf32, #tpu.memory_space<vmem>>, %arg23: memref<32x1xf32, #tpu.memory_space<vmem>>, %arg24: memref<32x1xf32, #tpu.memory_space<vmem>>, %arg25: memref<5x128x1xf32, #tpu.memory_space<vmem>>, %arg26: memref<1x128x1xf32, #tpu.memory_space<vmem>>, %arg27: memref<128x128xbf16, #tpu.memory_space<vmem>>, %arg28: memref<128x1xf32, #tpu.memory_space<vmem>>, %arg29: memref<32x1xf32, #tpu.memory_space<vmem>>, %arg30: memref<32x1xf32, #tpu.memory_space<vmem>>, %arg31: memref<32x128xbf16, #tpu.memory_space<vmem>>, %arg32: memref<32x1xf32, #tpu.memory_space<vmem>>, %arg33: memref<32x1xf32, #tpu.memory_space<vmem>>, %arg34: memref<32x1xf32, #tpu.memory_space<vmem>>, %arg35: memref<3x96xf32, #tpu.memory_space<vmem>>, %arg36: memref<3x1xf32, #tpu.memory_space<vmem>>, %arg37: memref<3x2xf32, #tpu.memory_space<vmem>>) attributes {dimension_semantics = [], scalar_prefetch = 0 : i64, scratch_operands = 0 : i64, tpu.core_type = #tpu.core_type<tc>} {
    %c0 = arith.constant 0 : index
    %c0_0 = arith.constant 0 : index
    %c0_1 = arith.constant 0 : index
    %0 = vector.load %arg0[%c0, %c0_0, %c0_1] : memref<2x16x64xf32, #tpu.memory_space<vmem>>, vector<2x16x64xf32>
    %c0_2 = arith.constant 0 : index
    %c0_3 = arith.constant 0 : index
    %c0_4 = arith.constant 0 : index
    %1 = vector.load %arg1[%c0_2, %c0_3, %c0_4] : memref<8x16x1xf32, #tpu.memory_space<vmem>>, vector<8x16x1xf32>
    %cst = arith.constant 0.000000e+00 : f32
    %2 = vector.broadcast %cst : f32 to vector<2x16x57xf32>
    %3 = vector.extract_strided_slice %1 {offsets = [0, 0, 0], sizes = [1, 16, 1], strides = [1, 1, 1]} : vector<8x16x1xf32> to vector<1x16x1xf32>
    %4 = vector.shape_cast %3 : vector<1x16x1xf32> to vector<16x1xf32>
    %5 = vector.shape_cast %4 : vector<16x1xf32> to vector<1x16x1xf32>
    %6 = vector.extract_strided_slice %0 {offsets = [0, 0, 0], sizes = [2, 16, 57], strides = [1, 1, 1]} : vector<2x16x64xf32> to vector<2x16x57xf32>
    %7 = vector.broadcast %5 : vector<1x16x1xf32> to vector<2x16x57xf32>
    %8 = arith.mulf %7, %6 : vector<2x16x57xf32>
    %9 = arith.addf %2, %8 : vector<2x16x57xf32>
    %10 = vector.extract_strided_slice %1 {offsets = [1, 0, 0], sizes = [1, 16, 1], strides = [1, 1, 1]} : vector<8x16x1xf32> to vector<1x16x1xf32>
    %11 = vector.shape_cast %10 : vector<1x16x1xf32> to vector<16x1xf32>
    %12 = vector.shape_cast %11 : vector<16x1xf32> to vector<1x16x1xf32>
    %13 = vector.extract_strided_slice %0 {offsets = [0, 0, 1], sizes = [2, 16, 57], strides = [1, 1, 1]} : vector<2x16x64xf32> to vector<2x16x57xf32>
    %14 = vector.broadcast %12 : vector<1x16x1xf32> to vector<2x16x57xf32>
    %15 = arith.mulf %14, %13 : vector<2x16x57xf32>
    %16 = arith.addf %9, %15 : vector<2x16x57xf32>
    %17 = vector.extract_strided_slice %1 {offsets = [2, 0, 0], sizes = [1, 16, 1], strides = [1, 1, 1]} : vector<8x16x1xf32> to vector<1x16x1xf32>
    %18 = vector.shape_cast %17 : vector<1x16x1xf32> to vector<16x1xf32>
    %19 = vector.shape_cast %18 : vector<16x1xf32> to vector<1x16x1xf32>
    %20 = vector.extract_strided_slice %0 {offsets = [0, 0, 2], sizes = [2, 16, 57], strides = [1, 1, 1]} : vector<2x16x64xf32> to vector<2x16x57xf32>
    %21 = vector.broadcast %19 : vector<1x16x1xf32> to vector<2x16x57xf32>
    %22 = arith.mulf %21, %20 : vector<2x16x57xf32>
    %23 = arith.addf %16, %22 : vector<2x16x57xf32>
    %24 = vector.extract_strided_slice %1 {offsets = [3, 0, 0], sizes = [1, 16, 1], strides = [1, 1, 1]} : vector<8x16x1xf32> to vector<1x16x1xf32>
    %25 = vector.shape_cast %24 : vector<1x16x1xf32> to vector<16x1xf32>
    %26 = vector.shape_cast %25 : vector<16x1xf32> to vector<1x16x1xf32>
    %27 = vector.extract_strided_slice %0 {offsets = [0, 0, 3], sizes = [2, 16, 57], strides = [1, 1, 1]} : vector<2x16x64xf32> to vector<2x16x57xf32>
    %28 = vector.broadcast %26 : vector<1x16x1xf32> to vector<2x16x57xf32>
    %29 = arith.mulf %28, %27 : vector<2x16x57xf32>
    %30 = arith.addf %23, %29 : vector<2x16x57xf32>
    %31 = vector.extract_strided_slice %1 {offsets = [4, 0, 0], sizes = [1, 16, 1], strides = [1, 1, 1]} : vector<8x16x1xf32> to vector<1x16x1xf32>
    %32 = vector.shape_cast %31 : vector<1x16x1xf32> to vector<16x1xf32>
    %33 = vector.shape_cast %32 : vector<16x1xf32> to vector<1x16x1xf32>
    %34 = vector.extract_strided_slice %0 {offsets = [0, 0, 4], sizes = [2, 16, 57], strides = [1, 1, 1]} : vector<2x16x64xf32> to vector<2x16x57xf32>
    %35 = vector.broadcast %33 : vector<1x16x1xf32> to vector<2x16x57xf32>
    %36 = arith.mulf %35, %34 : vector<2x16x57xf32>
    %37 = arith.addf %30, %36 : vector<2x16x57xf32>
    %38 = vector.extract_strided_slice %1 {offsets = [5, 0, 0], sizes = [1, 16, 1], strides = [1, 1, 1]} : vector<8x16x1xf32> to vector<1x16x1xf32>
    %39 = vector.shape_cast %38 : vector<1x16x1xf32> to vector<16x1xf32>
    %40 = vector.shape_cast %39 : vector<16x1xf32> to vector<1x16x1xf32>
    %41 = vector.extract_strided_slice %0 {offsets = [0, 0, 5], sizes = [2, 16, 57], strides = [1, 1, 1]} : vector<2x16x64xf32> to vector<2x16x57xf32>
    %42 = vector.broadcast %40 : vector<1x16x1xf32> to vector<2x16x57xf32>
    %43 = arith.mulf %42, %41 : vector<2x16x57xf32>
    %44 = arith.addf %37, %43 : vector<2x16x57xf32>
    %45 = vector.extract_strided_slice %1 {offsets = [6, 0, 0], sizes = [1, 16, 1], strides = [1, 1, 1]} : vector<8x16x1xf32> to vector<1x16x1xf32>
    %46 = vector.shape_cast %45 : vector<1x16x1xf32> to vector<16x1xf32>
    %47 = vector.shape_cast %46 : vector<16x1xf32> to vector<1x16x1xf32>
    %48 = vector.extract_strided_slice %0 {offsets = [0, 0, 6], sizes = [2, 16, 57], strides = [1, 1, 1]} : vector<2x16x64xf32> to vector<2x16x57xf32>
    %49 = vector.broadcast %47 : vector<1x16x1xf32> to vector<2x16x57xf32>
    %50 = arith.mulf %49, %48 : vector<2x16x57xf32>
    %51 = arith.addf %44, %50 : vector<2x16x57xf32>
    %52 = vector.extract_strided_slice %1 {offsets = [7, 0, 0], sizes = [1, 16, 1], strides = [1, 1, 1]} : vector<8x16x1xf32> to vector<1x16x1xf32>
    %53 = vector.shape_cast %52 : vector<1x16x1xf32> to vector<16x1xf32>
    %54 = vector.shape_cast %53 : vector<16x1xf32> to vector<1x16x1xf32>
    %55 = vector.extract_strided_slice %0 {offsets = [0, 0, 7], sizes = [2, 16, 57], strides = [1, 1, 1]} : vector<2x16x64xf32> to vector<2x16x57xf32>
    %56 = vector.broadcast %54 : vector<1x16x1xf32> to vector<2x16x57xf32>
    %57 = arith.mulf %56, %55 : vector<2x16x57xf32>
    %58 = arith.addf %51, %57 : vector<2x16x57xf32>
    %c0_5 = arith.constant 0 : index
    %c0_6 = arith.constant 0 : index
    %c0_7 = arith.constant 0 : index
    %59 = vector.load %arg2[%c0_5, %c0_6, %c0_7] : memref<1x16x1xf32, #tpu.memory_space<vmem>>, vector<1x16x1xf32>
    %60 = vector.broadcast %59 : vector<1x16x1xf32> to vector<2x16x57xf32>
    %61 = arith.addf %58, %60 : vector<2x16x57xf32>
    %cst_8 = arith.constant 0.000000e+00 : f32
    %62 = vector.broadcast %cst_8 : f32 to vector<2x16x57xf32>
    %63 = arith.cmpf oge, %61, %62 : vector<2x16x57xf32>
    %cst_9 = arith.constant 0.00999999977 : f32
    %64 = vector.broadcast %cst_9 : f32 to vector<2x16x57xf32>
    %65 = arith.mulf %64, %61 : vector<2x16x57xf32>
    %66 = arith.select %63, %61, %65 : vector<2x16x57xi1>, vector<2x16x57xf32>
    %cst_10 = arith.constant dense<0.000000e+00> : vector<2x16xf32>
    %67 = vector.multi_reduction <add>, %66, %cst_10 [2] : vector<2x16x57xf32> to vector<2x16xf32>
    %68 = vector.shape_cast %67 : vector<2x16xf32> to vector<2x16x1xf32>
    %cst_11 = arith.constant dense<0.000000e+00> : vector<16x1xf32>
    %69 = vector.multi_reduction <add>, %68, %cst_11 [0] : vector<2x16x1xf32> to vector<16x1xf32>
    %70 = vector.shape_cast %69 : vector<16x1xf32> to vector<1x16x1xf32>
    %71 = vector.extract_strided_slice %70 {offsets = [0, 0, 0], sizes = [1, 4, 1], strides = [1, 1, 1]} : vector<1x16x1xf32> to vector<1x4x1xf32>
    %72 = vector.extract_strided_slice %70 {offsets = [0, 4, 0], sizes = [1, 4, 1], strides = [1, 1, 1]} : vector<1x16x1xf32> to vector<1x4x1xf32>
    %73 = arith.addf %71, %72 : vector<1x4x1xf32>
    %74 = vector.extract_strided_slice %70 {offsets = [0, 8, 0], sizes = [1, 4, 1], strides = [1, 1, 1]} : vector<1x16x1xf32> to vector<1x4x1xf32>
    %75 = arith.addf %73, %74 : vector<1x4x1xf32>
    %76 = vector.extract_strided_slice %70 {offsets = [0, 12, 0], sizes = [1, 4, 1], strides = [1, 1, 1]} : vector<1x16x1xf32> to vector<1x4x1xf32>
    %77 = arith.addf %75, %76 : vector<1x4x1xf32>
    %cst_12 = arith.constant 4.560000e+02 : f32
    %78 = vector.broadcast %cst_12 : f32 to vector<1x4x1xf32>
    %79 = arith.divf %77, %78 : vector<1x4x1xf32>
    %80 = tpu.concatenate %79, %79, %79, %79 in 1 : vector<1x4x1xf32>, vector<1x4x1xf32>, vector<1x4x1xf32>, vector<1x4x1xf32> -> vector<1x16x1xf32>
    %81 = vector.broadcast %80 : vector<1x16x1xf32> to vector<2x16x57xf32>
    %82 = arith.subf %66, %81 : vector<2x16x57xf32>
    %83 = arith.mulf %82, %82 : vector<2x16x57xf32>
    %cst_13 = arith.constant dense<0.000000e+00> : vector<2x16xf32>
    %84 = vector.multi_reduction <add>, %83, %cst_13 [2] : vector<2x16x57xf32> to vector<2x16xf32>
    %85 = vector.shape_cast %84 : vector<2x16xf32> to vector<2x16x1xf32>
    %cst_14 = arith.constant dense<0.000000e+00> : vector<16x1xf32>
    %86 = vector.multi_reduction <add>, %85, %cst_14 [0] : vector<2x16x1xf32> to vector<16x1xf32>
    %87 = vector.shape_cast %86 : vector<16x1xf32> to vector<1x16x1xf32>
    %88 = vector.extract_strided_slice %87 {offsets = [0, 0, 0], sizes = [1, 4, 1], strides = [1, 1, 1]} : vector<1x16x1xf32> to vector<1x4x1xf32>
    %89 = vector.extract_strided_slice %87 {offsets = [0, 4, 0], sizes = [1, 4, 1], strides = [1, 1, 1]} : vector<1x16x1xf32> to vector<1x4x1xf32>
    %90 = arith.addf %88, %89 : vector<1x4x1xf32>
    %91 = vector.extract_strided_slice %87 {offsets = [0, 8, 0], sizes = [1, 4, 1], strides = [1, 1, 1]} : vector<1x16x1xf32> to vector<1x4x1xf32>
    %92 = arith.addf %90, %91 : vector<1x4x1xf32>
    %93 = vector.extract_strided_slice %87 {offsets = [0, 12, 0], sizes = [1, 4, 1], strides = [1, 1, 1]} : vector<1x16x1xf32> to vector<1x4x1xf32>
    %94 = arith.addf %92, %93 : vector<1x4x1xf32>
    %cst_15 = arith.constant 4.560000e+02 : f32
    %95 = vector.broadcast %cst_15 : f32 to vector<1x4x1xf32>
    %96 = arith.divf %94, %95 : vector<1x4x1xf32>
    %c0_16 = arith.constant 0 : index
    %c0_17 = arith.constant 0 : index
    %c0_18 = arith.constant 0 : index
    %97 = vector.load %arg3[%c0_16, %c0_17, %c0_18] : memref<1x4x1xf32, #tpu.memory_space<vmem>>, vector<1x4x1xf32>
    %cst_19 = arith.constant 9.99999974E-6 : f32
    %98 = vector.broadcast %cst_19 : f32 to vector<1x4x1xf32>
    %99 = arith.addf %96, %98 : vector<1x4x1xf32>
    %100 = math.rsqrt %99 : vector<1x4x1xf32>
    %101 = arith.mulf %97, %100 : vector<1x4x1xf32>
    %c0_20 = arith.constant 0 : index
    %c0_21 = arith.constant 0 : index
    %c0_22 = arith.constant 0 : index
    %102 = vector.load %arg4[%c0_20, %c0_21, %c0_22] : memref<1x4x1xf32, #tpu.memory_space<vmem>>, vector<1x4x1xf32>
    %103 = arith.mulf %79, %101 : vector<1x4x1xf32>
    %104 = arith.subf %102, %103 : vector<1x4x1xf32>
    %105 = tpu.concatenate %101, %101, %101, %101 in 1 : vector<1x4x1xf32>, vector<1x4x1xf32>, vector<1x4x1xf32>, vector<1x4x1xf32> -> vector<1x16x1xf32>
    %106 = vector.broadcast %105 : vector<1x16x1xf32> to vector<2x16x57xf32>
    %107 = arith.mulf %66, %106 : vector<2x16x57xf32>
    %108 = tpu.concatenate %104, %104, %104, %104 in 1 : vector<1x4x1xf32>, vector<1x4x1xf32>, vector<1x4x1xf32>, vector<1x4x1xf32> -> vector<1x16x1xf32>
    %109 = vector.broadcast %108 : vector<1x16x1xf32> to vector<2x16x57xf32>
    %110 = arith.addf %107, %109 : vector<2x16x57xf32>
    %cst_23 = arith.constant 0.000000e+00 : f32
    %111 = vector.broadcast %cst_23 : f32 to vector<2x16x7xf32>
    %112 = tpu.concatenate %111, %110, %111 in 2 : vector<2x16x7xf32>, vector<2x16x57xf32>, vector<2x16x7xf32> -> vector<2x16x71xf32>
    %c0_24 = arith.constant 0 : index
    %c0_25 = arith.constant 0 : index
    %c0_26 = arith.constant 0 : index
    %113 = vector.load %arg5[%c0_24, %c0_25, %c0_26] : memref<15x16x1xf32, #tpu.memory_space<vmem>>, vector<15x16x1xf32>
    %cst_27 = arith.constant 0.000000e+00 : f32
    %114 = vector.broadcast %cst_27 : f32 to vector<2x16x57xf32>
    %115 = vector.extract_strided_slice %113 {offsets = [0, 0, 0], sizes = [1, 16, 1], strides = [1, 1, 1]} : vector<15x16x1xf32> to vector<1x16x1xf32>
    %116 = vector.shape_cast %115 : vector<1x16x1xf32> to vector<16x1xf32>
    %117 = vector.shape_cast %116 : vector<16x1xf32> to vector<1x16x1xf32>
    %118 = vector.extract_strided_slice %112 {offsets = [0, 0, 0], sizes = [2, 16, 57], strides = [1, 1, 1]} : vector<2x16x71xf32> to vector<2x16x57xf32>
    %119 = vector.broadcast %117 : vector<1x16x1xf32> to vector<2x16x57xf32>
    %120 = arith.mulf %119, %118 : vector<2x16x57xf32>
    %121 = arith.addf %114, %120 : vector<2x16x57xf32>
    %122 = vector.extract_strided_slice %113 {offsets = [1, 0, 0], sizes = [1, 16, 1], strides = [1, 1, 1]} : vector<15x16x1xf32> to vector<1x16x1xf32>
    %123 = vector.shape_cast %122 : vector<1x16x1xf32> to vector<16x1xf32>
    %124 = vector.shape_cast %123 : vector<16x1xf32> to vector<1x16x1xf32>
    %125 = vector.extract_strided_slice %112 {offsets = [0, 0, 1], sizes = [2, 16, 57], strides = [1, 1, 1]} : vector<2x16x71xf32> to vector<2x16x57xf32>
    %126 = vector.broadcast %124 : vector<1x16x1xf32> to vector<2x16x57xf32>
    %127 = arith.mulf %126, %125 : vector<2x16x57xf32>
    %128 = arith.addf %121, %127 : vector<2x16x57xf32>
    %129 = vector.extract_strided_slice %113 {offsets = [2, 0, 0], sizes = [1, 16, 1], strides = [1, 1, 1]} : vector<15x16x1xf32> to vector<1x16x1xf32>
    %130 = vector.shape_cast %129 : vector<1x16x1xf32> to vector<16x1xf32>
    %131 = vector.shape_cast %130 : vector<16x1xf32> to vector<1x16x1xf32>
    %132 = vector.extract_strided_slice %112 {offsets = [0, 0, 2], sizes = [2, 16, 57], strides = [1, 1, 1]} : vector<2x16x71xf32> to vector<2x16x57xf32>
    %133 = vector.broadcast %131 : vector<1x16x1xf32> to vector<2x16x57xf32>
    %134 = arith.mulf %133, %132 : vector<2x16x57xf32>
    %135 = arith.addf %128, %134 : vector<2x16x57xf32>
    %136 = vector.extract_strided_slice %113 {offsets = [3, 0, 0], sizes = [1, 16, 1], strides = [1, 1, 1]} : vector<15x16x1xf32> to vector<1x16x1xf32>
    %137 = vector.shape_cast %136 : vector<1x16x1xf32> to vector<16x1xf32>
    %138 = vector.shape_cast %137 : vector<16x1xf32> to vector<1x16x1xf32>
    %139 = vector.extract_strided_slice %112 {offsets = [0, 0, 3], sizes = [2, 16, 57], strides = [1, 1, 1]} : vector<2x16x71xf32> to vector<2x16x57xf32>
    %140 = vector.broadcast %138 : vector<1x16x1xf32> to vector<2x16x57xf32>
    %141 = arith.mulf %140, %139 : vector<2x16x57xf32>
    %142 = arith.addf %135, %141 : vector<2x16x57xf32>
    %143 = vector.extract_strided_slice %113 {offsets = [4, 0, 0], sizes = [1, 16, 1], strides = [1, 1, 1]} : vector<15x16x1xf32> to vector<1x16x1xf32>
    %144 = vector.shape_cast %143 : vector<1x16x1xf32> to vector<16x1xf32>
    %145 = vector.shape_cast %144 : vector<16x1xf32> to vector<1x16x1xf32>
    %146 = vector.extract_strided_slice %112 {offsets = [0, 0, 4], sizes = [2, 16, 57], strides = [1, 1, 1]} : vector<2x16x71xf32> to vector<2x16x57xf32>
    %147 = vector.broadcast %145 : vector<1x16x1xf32> to vector<2x16x57xf32>
    %148 = arith.mulf %147, %146 : vector<2x16x57xf32>
    %149 = arith.addf %142, %148 : vector<2x16x57xf32>
    %150 = vector.extract_strided_slice %113 {offsets = [5, 0, 0], sizes = [1, 16, 1], strides = [1, 1, 1]} : vector<15x16x1xf32> to vector<1x16x1xf32>
    %151 = vector.shape_cast %150 : vector<1x16x1xf32> to vector<16x1xf32>
    %152 = vector.shape_cast %151 : vector<16x1xf32> to vector<1x16x1xf32>
    %153 = vector.extract_strided_slice %112 {offsets = [0, 0, 5], sizes = [2, 16, 57], strides = [1, 1, 1]} : vector<2x16x71xf32> to vector<2x16x57xf32>
    %154 = vector.broadcast %152 : vector<1x16x1xf32> to vector<2x16x57xf32>
    %155 = arith.mulf %154, %153 : vector<2x16x57xf32>
    %156 = arith.addf %149, %155 : vector<2x16x57xf32>
    %157 = vector.extract_strided_slice %113 {offsets = [6, 0, 0], sizes = [1, 16, 1], strides = [1, 1, 1]} : vector<15x16x1xf32> to vector<1x16x1xf32>
    %158 = vector.shape_cast %157 : vector<1x16x1xf32> to vector<16x1xf32>
    %159 = vector.shape_cast %158 : vector<16x1xf32> to vector<1x16x1xf32>
    %160 = vector.extract_strided_slice %112 {offsets = [0, 0, 6], sizes = [2, 16, 57], strides = [1, 1, 1]} : vector<2x16x71xf32> to vector<2x16x57xf32>
    %161 = vector.broadcast %159 : vector<1x16x1xf32> to vector<2x16x57xf32>
    %162 = arith.mulf %161, %160 : vector<2x16x57xf32>
    %163 = arith.addf %156, %162 : vector<2x16x57xf32>
    %164 = vector.extract_strided_slice %113 {offsets = [7, 0, 0], sizes = [1, 16, 1], strides = [1, 1, 1]} : vector<15x16x1xf32> to vector<1x16x1xf32>
    %165 = vector.shape_cast %164 : vector<1x16x1xf32> to vector<16x1xf32>
    %166 = vector.shape_cast %165 : vector<16x1xf32> to vector<1x16x1xf32>
    %167 = vector.extract_strided_slice %112 {offsets = [0, 0, 7], sizes = [2, 16, 57], strides = [1, 1, 1]} : vector<2x16x71xf32> to vector<2x16x57xf32>
    %168 = vector.broadcast %166 : vector<1x16x1xf32> to vector<2x16x57xf32>
    %169 = arith.mulf %168, %167 : vector<2x16x57xf32>
    %170 = arith.addf %163, %169 : vector<2x16x57xf32>
    %171 = vector.extract_strided_slice %113 {offsets = [8, 0, 0], sizes = [1, 16, 1], strides = [1, 1, 1]} : vector<15x16x1xf32> to vector<1x16x1xf32>
    %172 = vector.shape_cast %171 : vector<1x16x1xf32> to vector<16x1xf32>
    %173 = vector.shape_cast %172 : vector<16x1xf32> to vector<1x16x1xf32>
    %174 = vector.extract_strided_slice %112 {offsets = [0, 0, 8], sizes = [2, 16, 57], strides = [1, 1, 1]} : vector<2x16x71xf32> to vector<2x16x57xf32>
    %175 = vector.broadcast %173 : vector<1x16x1xf32> to vector<2x16x57xf32>
    %176 = arith.mulf %175, %174 : vector<2x16x57xf32>
    %177 = arith.addf %170, %176 : vector<2x16x57xf32>
    %178 = vector.extract_strided_slice %113 {offsets = [9, 0, 0], sizes = [1, 16, 1], strides = [1, 1, 1]} : vector<15x16x1xf32> to vector<1x16x1xf32>
    %179 = vector.shape_cast %178 : vector<1x16x1xf32> to vector<16x1xf32>
    %180 = vector.shape_cast %179 : vector<16x1xf32> to vector<1x16x1xf32>
    %181 = vector.extract_strided_slice %112 {offsets = [0, 0, 9], sizes = [2, 16, 57], strides = [1, 1, 1]} : vector<2x16x71xf32> to vector<2x16x57xf32>
    %182 = vector.broadcast %180 : vector<1x16x1xf32> to vector<2x16x57xf32>
    %183 = arith.mulf %182, %181 : vector<2x16x57xf32>
    %184 = arith.addf %177, %183 : vector<2x16x57xf32>
    %185 = vector.extract_strided_slice %113 {offsets = [10, 0, 0], sizes = [1, 16, 1], strides = [1, 1, 1]} : vector<15x16x1xf32> to vector<1x16x1xf32>
    %186 = vector.shape_cast %185 : vector<1x16x1xf32> to vector<16x1xf32>
    %187 = vector.shape_cast %186 : vector<16x1xf32> to vector<1x16x1xf32>
    %188 = vector.extract_strided_slice %112 {offsets = [0, 0, 10], sizes = [2, 16, 57], strides = [1, 1, 1]} : vector<2x16x71xf32> to vector<2x16x57xf32>
    %189 = vector.broadcast %187 : vector<1x16x1xf32> to vector<2x16x57xf32>
    %190 = arith.mulf %189, %188 : vector<2x16x57xf32>
    %191 = arith.addf %184, %190 : vector<2x16x57xf32>
    %192 = vector.extract_strided_slice %113 {offsets = [11, 0, 0], sizes = [1, 16, 1], strides = [1, 1, 1]} : vector<15x16x1xf32> to vector<1x16x1xf32>
    %193 = vector.shape_cast %192 : vector<1x16x1xf32> to vector<16x1xf32>
    %194 = vector.shape_cast %193 : vector<16x1xf32> to vector<1x16x1xf32>
    %195 = vector.extract_strided_slice %112 {offsets = [0, 0, 11], sizes = [2, 16, 57], strides = [1, 1, 1]} : vector<2x16x71xf32> to vector<2x16x57xf32>
    %196 = vector.broadcast %194 : vector<1x16x1xf32> to vector<2x16x57xf32>
    %197 = arith.mulf %196, %195 : vector<2x16x57xf32>
    %198 = arith.addf %191, %197 : vector<2x16x57xf32>
    %199 = vector.extract_strided_slice %113 {offsets = [12, 0, 0], sizes = [1, 16, 1], strides = [1, 1, 1]} : vector<15x16x1xf32> to vector<1x16x1xf32>
    %200 = vector.shape_cast %199 : vector<1x16x1xf32> to vector<16x1xf32>
    %201 = vector.shape_cast %200 : vector<16x1xf32> to vector<1x16x1xf32>
    %202 = vector.extract_strided_slice %112 {offsets = [0, 0, 12], sizes = [2, 16, 57], strides = [1, 1, 1]} : vector<2x16x71xf32> to vector<2x16x57xf32>
    %203 = vector.broadcast %201 : vector<1x16x1xf32> to vector<2x16x57xf32>
    %204 = arith.mulf %203, %202 : vector<2x16x57xf32>
    %205 = arith.addf %198, %204 : vector<2x16x57xf32>
    %206 = vector.extract_strided_slice %113 {offsets = [13, 0, 0], sizes = [1, 16, 1], strides = [1, 1, 1]} : vector<15x16x1xf32> to vector<1x16x1xf32>
    %207 = vector.shape_cast %206 : vector<1x16x1xf32> to vector<16x1xf32>
    %208 = vector.shape_cast %207 : vector<16x1xf32> to vector<1x16x1xf32>
    %209 = vector.extract_strided_slice %112 {offsets = [0, 0, 13], sizes = [2, 16, 57], strides = [1, 1, 1]} : vector<2x16x71xf32> to vector<2x16x57xf32>
    %210 = vector.broadcast %208 : vector<1x16x1xf32> to vector<2x16x57xf32>
    %211 = arith.mulf %210, %209 : vector<2x16x57xf32>
    %212 = arith.addf %205, %211 : vector<2x16x57xf32>
    %213 = vector.extract_strided_slice %113 {offsets = [14, 0, 0], sizes = [1, 16, 1], strides = [1, 1, 1]} : vector<15x16x1xf32> to vector<1x16x1xf32>
    %214 = vector.shape_cast %213 : vector<1x16x1xf32> to vector<16x1xf32>
    %215 = vector.shape_cast %214 : vector<16x1xf32> to vector<1x16x1xf32>
    %216 = vector.extract_strided_slice %112 {offsets = [0, 0, 14], sizes = [2, 16, 57], strides = [1, 1, 1]} : vector<2x16x71xf32> to vector<2x16x57xf32>
    %217 = vector.broadcast %215 : vector<1x16x1xf32> to vector<2x16x57xf32>
    %218 = arith.mulf %217, %216 : vector<2x16x57xf32>
    %219 = arith.addf %212, %218 : vector<2x16x57xf32>
    %c0_28 = arith.constant 0 : index
    %c0_29 = arith.constant 0 : index
    %c0_30 = arith.constant 0 : index
    %220 = vector.load %arg6[%c0_28, %c0_29, %c0_30] : memref<1x16x1xf32, #tpu.memory_space<vmem>>, vector<1x16x1xf32>
    %221 = vector.broadcast %220 : vector<1x16x1xf32> to vector<2x16x57xf32>
    %222 = arith.addf %219, %221 : vector<2x16x57xf32>
    %223 = vector.extract_strided_slice %222 {offsets = [0, 0, 0], sizes = [1, 16, 57], strides = [1, 1, 1]} : vector<2x16x57xf32> to vector<1x16x57xf32>
    %224 = vector.shape_cast %223 : vector<1x16x57xf32> to vector<16x57xf32>
    %225 = vector.extract_strided_slice %222 {offsets = [1, 0, 0], sizes = [1, 16, 57], strides = [1, 1, 1]} : vector<2x16x57xf32> to vector<1x16x57xf32>
    %226 = vector.shape_cast %225 : vector<1x16x57xf32> to vector<16x57xf32>
    %227 = tpu.concatenate %224, %226 in 1 : vector<16x57xf32>, vector<16x57xf32> -> vector<16x114xf32>
    %c0_31 = arith.constant 0 : index
    %c0_32 = arith.constant 0 : index
    %228 = vector.load %arg7[%c0_31, %c0_32] : memref<128x16xbf16, #tpu.memory_space<vmem>>, vector<128x16xbf16>
    %229 = arith.truncf %227 : vector<16x114xf32> to vector<16x114xbf16>
    %cst_33 = arith.constant dense<0.000000e+00> : vector<128x114xf32>
    %230 = tpu.matmul %228, %229, %cst_33 {dimension_numbers = #tpu.dot_dimension_numbers<[1], [0], [0], [1], [0, 0, 1, 1], [], []>} : vector<128x16xbf16>, vector<16x114xbf16>, vector<128x114xf32> -> vector<128x114xf32>
    %c0_34 = arith.constant 0 : index
    %c0_35 = arith.constant 0 : index
    %231 = vector.load %arg8[%c0_34, %c0_35] : memref<128x1xf32, #tpu.memory_space<vmem>>, vector<128x1xf32>
    %232 = vector.broadcast %231 : vector<128x1xf32> to vector<128x114xf32>
    %233 = arith.addf %230, %232 : vector<128x114xf32>
    %cst_36 = arith.constant 0.000000e+00 : f32
    %234 = vector.broadcast %cst_36 : f32 to vector<128x114xf32>
    %235 = arith.cmpf oge, %233, %234 : vector<128x114xf32>
    %cst_37 = arith.constant 0.00999999977 : f32
    %236 = vector.broadcast %cst_37 : f32 to vector<128x114xf32>
    %237 = arith.mulf %236, %233 : vector<128x114xf32>
    %238 = arith.select %235, %233, %237 : vector<128x114xi1>, vector<128x114xf32>
    %cst_38 = arith.constant dense<0.000000e+00> : vector<128xf32>
    %239 = vector.multi_reduction <add>, %238, %cst_38 [1] : vector<128x114xf32> to vector<128xf32>
    %240 = vector.shape_cast %239 : vector<128xf32> to vector<128x1xf32>
    %241 = vector.extract_strided_slice %240 {offsets = [0, 0], sizes = [32, 1], strides = [1, 1]} : vector<128x1xf32> to vector<32x1xf32>
    %242 = vector.extract_strided_slice %240 {offsets = [32, 0], sizes = [32, 1], strides = [1, 1]} : vector<128x1xf32> to vector<32x1xf32>
    %243 = arith.addf %241, %242 : vector<32x1xf32>
    %244 = vector.extract_strided_slice %240 {offsets = [64, 0], sizes = [32, 1], strides = [1, 1]} : vector<128x1xf32> to vector<32x1xf32>
    %245 = arith.addf %243, %244 : vector<32x1xf32>
    %246 = vector.extract_strided_slice %240 {offsets = [96, 0], sizes = [32, 1], strides = [1, 1]} : vector<128x1xf32> to vector<32x1xf32>
    %247 = arith.addf %245, %246 : vector<32x1xf32>
    %cst_39 = arith.constant 4.560000e+02 : f32
    %248 = vector.broadcast %cst_39 : f32 to vector<32x1xf32>
    %249 = arith.divf %247, %248 : vector<32x1xf32>
    %250 = tpu.concatenate %249, %249, %249, %249 in 0 : vector<32x1xf32>, vector<32x1xf32>, vector<32x1xf32>, vector<32x1xf32> -> vector<128x1xf32>
    %251 = vector.broadcast %250 : vector<128x1xf32> to vector<128x114xf32>
    %252 = arith.subf %238, %251 : vector<128x114xf32>
    %253 = arith.mulf %252, %252 : vector<128x114xf32>
    %cst_40 = arith.constant dense<0.000000e+00> : vector<128xf32>
    %254 = vector.multi_reduction <add>, %253, %cst_40 [1] : vector<128x114xf32> to vector<128xf32>
    %255 = vector.shape_cast %254 : vector<128xf32> to vector<128x1xf32>
    %256 = vector.extract_strided_slice %255 {offsets = [0, 0], sizes = [32, 1], strides = [1, 1]} : vector<128x1xf32> to vector<32x1xf32>
    %257 = vector.extract_strided_slice %255 {offsets = [32, 0], sizes = [32, 1], strides = [1, 1]} : vector<128x1xf32> to vector<32x1xf32>
    %258 = arith.addf %256, %257 : vector<32x1xf32>
    %259 = vector.extract_strided_slice %255 {offsets = [64, 0], sizes = [32, 1], strides = [1, 1]} : vector<128x1xf32> to vector<32x1xf32>
    %260 = arith.addf %258, %259 : vector<32x1xf32>
    %261 = vector.extract_strided_slice %255 {offsets = [96, 0], sizes = [32, 1], strides = [1, 1]} : vector<128x1xf32> to vector<32x1xf32>
    %262 = arith.addf %260, %261 : vector<32x1xf32>
    %cst_41 = arith.constant 4.560000e+02 : f32
    %263 = vector.broadcast %cst_41 : f32 to vector<32x1xf32>
    %264 = arith.divf %262, %263 : vector<32x1xf32>
    %c0_42 = arith.constant 0 : index
    %c0_43 = arith.constant 0 : index
    %265 = vector.load %arg9[%c0_42, %c0_43] : memref<32x1xf32, #tpu.memory_space<vmem>>, vector<32x1xf32>
    %cst_44 = arith.constant 9.99999974E-6 : f32
    %266 = vector.broadcast %cst_44 : f32 to vector<32x1xf32>
    %267 = arith.addf %264, %266 : vector<32x1xf32>
    %268 = math.rsqrt %267 : vector<32x1xf32>
    %269 = arith.mulf %265, %268 : vector<32x1xf32>
    %c0_45 = arith.constant 0 : index
    %c0_46 = arith.constant 0 : index
    %270 = vector.load %arg10[%c0_45, %c0_46] : memref<32x1xf32, #tpu.memory_space<vmem>>, vector<32x1xf32>
    %271 = arith.mulf %249, %269 : vector<32x1xf32>
    %272 = arith.subf %270, %271 : vector<32x1xf32>
    %273 = tpu.concatenate %269, %269, %269, %269 in 0 : vector<32x1xf32>, vector<32x1xf32>, vector<32x1xf32>, vector<32x1xf32> -> vector<128x1xf32>
    %274 = vector.broadcast %273 : vector<128x1xf32> to vector<128x114xf32>
    %275 = arith.mulf %238, %274 : vector<128x114xf32>
    %276 = tpu.concatenate %272, %272, %272, %272 in 0 : vector<32x1xf32>, vector<32x1xf32>, vector<32x1xf32>, vector<32x1xf32> -> vector<128x1xf32>
    %277 = vector.broadcast %276 : vector<128x1xf32> to vector<128x114xf32>
    %278 = arith.addf %275, %277 : vector<128x114xf32>
    %c0_47 = arith.constant 0 : index
    %c0_48 = arith.constant 0 : index
    %279 = vector.load %arg11[%c0_47, %c0_48] : memref<32x128xbf16, #tpu.memory_space<vmem>>, vector<32x128xbf16>
    %280 = arith.truncf %278 : vector<128x114xf32> to vector<128x114xbf16>
    %cst_49 = arith.constant dense<0.000000e+00> : vector<32x114xf32>
    %281 = tpu.matmul %279, %280, %cst_49 {dimension_numbers = #tpu.dot_dimension_numbers<[1], [0], [0], [1], [0, 0, 1, 1], [], []>} : vector<32x128xbf16>, vector<128x114xbf16>, vector<32x114xf32> -> vector<32x114xf32>
    %c0_50 = arith.constant 0 : index
    %c0_51 = arith.constant 0 : index
    %282 = vector.load %arg12[%c0_50, %c0_51] : memref<32x1xf32, #tpu.memory_space<vmem>>, vector<32x1xf32>
    %283 = vector.broadcast %282 : vector<32x1xf32> to vector<32x114xf32>
    %284 = arith.addf %281, %283 : vector<32x114xf32>
    %cst_52 = arith.constant 0.000000e+00 : f32
    %285 = vector.broadcast %cst_52 : f32 to vector<32x114xf32>
    %286 = arith.cmpf oge, %284, %285 : vector<32x114xf32>
    %cst_53 = arith.constant 0.00999999977 : f32
    %287 = vector.broadcast %cst_53 : f32 to vector<32x114xf32>
    %288 = arith.mulf %287, %284 : vector<32x114xf32>
    %289 = arith.select %286, %284, %288 : vector<32x114xi1>, vector<32x114xf32>
    %cst_54 = arith.constant dense<0.000000e+00> : vector<32xf32>
    %290 = vector.multi_reduction <add>, %289, %cst_54 [1] : vector<32x114xf32> to vector<32xf32>
    %291 = vector.shape_cast %290 : vector<32xf32> to vector<32x1xf32>
    %cst_55 = arith.constant 1.140000e+02 : f32
    %292 = vector.broadcast %cst_55 : f32 to vector<32x1xf32>
    %293 = arith.divf %291, %292 : vector<32x1xf32>
    %294 = vector.broadcast %293 : vector<32x1xf32> to vector<32x114xf32>
    %295 = arith.subf %289, %294 : vector<32x114xf32>
    %296 = arith.mulf %295, %295 : vector<32x114xf32>
    %cst_56 = arith.constant dense<0.000000e+00> : vector<32xf32>
    %297 = vector.multi_reduction <add>, %296, %cst_56 [1] : vector<32x114xf32> to vector<32xf32>
    %298 = vector.shape_cast %297 : vector<32xf32> to vector<32x1xf32>
    %cst_57 = arith.constant 1.140000e+02 : f32
    %299 = vector.broadcast %cst_57 : f32 to vector<32x1xf32>
    %300 = arith.divf %298, %299 : vector<32x1xf32>
    %c0_58 = arith.constant 0 : index
    %c0_59 = arith.constant 0 : index
    %301 = vector.load %arg13[%c0_58, %c0_59] : memref<32x1xf32, #tpu.memory_space<vmem>>, vector<32x1xf32>
    %cst_60 = arith.constant 9.99999974E-6 : f32
    %302 = vector.broadcast %cst_60 : f32 to vector<32x1xf32>
    %303 = arith.addf %300, %302 : vector<32x1xf32>
    %304 = math.rsqrt %303 : vector<32x1xf32>
    %305 = arith.mulf %301, %304 : vector<32x1xf32>
    %c0_61 = arith.constant 0 : index
    %c0_62 = arith.constant 0 : index
    %306 = vector.load %arg14[%c0_61, %c0_62] : memref<32x1xf32, #tpu.memory_space<vmem>>, vector<32x1xf32>
    %307 = arith.mulf %293, %305 : vector<32x1xf32>
    %308 = arith.subf %306, %307 : vector<32x1xf32>
    %309 = vector.extract_strided_slice %289 {offsets = [0, 0], sizes = [32, 57], strides = [1, 1]} : vector<32x114xf32> to vector<32x57xf32>
    %cst_63 = arith.constant dense<0.000000e+00> : vector<32xf32>
    %310 = vector.multi_reduction <add>, %309, %cst_63 [1] : vector<32x57xf32> to vector<32xf32>
    %311 = vector.shape_cast %310 : vector<32xf32> to vector<32x1xf32>
    %cst_64 = arith.constant 5.700000e+01 : f32
    %312 = vector.broadcast %cst_64 : f32 to vector<32x1xf32>
    %313 = arith.divf %311, %312 : vector<32x1xf32>
    %314 = arith.mulf %313, %305 : vector<32x1xf32>
    %315 = arith.addf %314, %308 : vector<32x1xf32>
    %316 = vector.extract_strided_slice %289 {offsets = [0, 57], sizes = [32, 57], strides = [1, 1]} : vector<32x114xf32> to vector<32x57xf32>
    %cst_65 = arith.constant dense<0.000000e+00> : vector<32xf32>
    %317 = vector.multi_reduction <add>, %316, %cst_65 [1] : vector<32x57xf32> to vector<32xf32>
    %318 = vector.shape_cast %317 : vector<32xf32> to vector<32x1xf32>
    %cst_66 = arith.constant 5.700000e+01 : f32
    %319 = vector.broadcast %cst_66 : f32 to vector<32x1xf32>
    %320 = arith.divf %318, %319 : vector<32x1xf32>
    %321 = arith.mulf %320, %305 : vector<32x1xf32>
    %322 = arith.addf %321, %308 : vector<32x1xf32>
    %323 = vector.extract_strided_slice %278 {offsets = [0, 0], sizes = [128, 57], strides = [1, 1]} : vector<128x114xf32> to vector<128x57xf32>
    %324 = vector.extract_strided_slice %278 {offsets = [0, 57], sizes = [128, 57], strides = [1, 1]} : vector<128x114xf32> to vector<128x57xf32>
    %325 = vector.shape_cast %323 : vector<128x57xf32> to vector<1x128x57xf32>
    %326 = vector.shape_cast %324 : vector<128x57xf32> to vector<1x128x57xf32>
    %327 = tpu.concatenate %325, %326 in 0 : vector<1x128x57xf32>, vector<1x128x57xf32> -> vector<2x128x57xf32>
    %cst_67 = arith.constant 0.000000e+00 : f32
    %328 = vector.broadcast %cst_67 : f32 to vector<2x128x5xf32>
    %329 = tpu.concatenate %328, %327, %328 in 2 : vector<2x128x5xf32>, vector<2x128x57xf32>, vector<2x128x5xf32> -> vector<2x128x67xf32>
    %c0_68 = arith.constant 0 : index
    %c0_69 = arith.constant 0 : index
    %c0_70 = arith.constant 0 : index
    %330 = vector.load %arg15[%c0_68, %c0_69, %c0_70] : memref<11x128x1xf32, #tpu.memory_space<vmem>>, vector<11x128x1xf32>
    %cst_71 = arith.constant 0.000000e+00 : f32
    %331 = vector.broadcast %cst_71 : f32 to vector<2x128x57xf32>
    %332 = vector.extract_strided_slice %330 {offsets = [0, 0, 0], sizes = [1, 128, 1], strides = [1, 1, 1]} : vector<11x128x1xf32> to vector<1x128x1xf32>
    %333 = vector.shape_cast %332 : vector<1x128x1xf32> to vector<128x1xf32>
    %334 = vector.shape_cast %333 : vector<128x1xf32> to vector<1x128x1xf32>
    %335 = vector.extract_strided_slice %329 {offsets = [0, 0, 0], sizes = [2, 128, 57], strides = [1, 1, 1]} : vector<2x128x67xf32> to vector<2x128x57xf32>
    %336 = vector.broadcast %334 : vector<1x128x1xf32> to vector<2x128x57xf32>
    %337 = arith.mulf %336, %335 : vector<2x128x57xf32>
    %338 = arith.addf %331, %337 : vector<2x128x57xf32>
    %339 = vector.extract_strided_slice %330 {offsets = [1, 0, 0], sizes = [1, 128, 1], strides = [1, 1, 1]} : vector<11x128x1xf32> to vector<1x128x1xf32>
    %340 = vector.shape_cast %339 : vector<1x128x1xf32> to vector<128x1xf32>
    %341 = vector.shape_cast %340 : vector<128x1xf32> to vector<1x128x1xf32>
    %342 = vector.extract_strided_slice %329 {offsets = [0, 0, 1], sizes = [2, 128, 57], strides = [1, 1, 1]} : vector<2x128x67xf32> to vector<2x128x57xf32>
    %343 = vector.broadcast %341 : vector<1x128x1xf32> to vector<2x128x57xf32>
    %344 = arith.mulf %343, %342 : vector<2x128x57xf32>
    %345 = arith.addf %338, %344 : vector<2x128x57xf32>
    %346 = vector.extract_strided_slice %330 {offsets = [2, 0, 0], sizes = [1, 128, 1], strides = [1, 1, 1]} : vector<11x128x1xf32> to vector<1x128x1xf32>
    %347 = vector.shape_cast %346 : vector<1x128x1xf32> to vector<128x1xf32>
    %348 = vector.shape_cast %347 : vector<128x1xf32> to vector<1x128x1xf32>
    %349 = vector.extract_strided_slice %329 {offsets = [0, 0, 2], sizes = [2, 128, 57], strides = [1, 1, 1]} : vector<2x128x67xf32> to vector<2x128x57xf32>
    %350 = vector.broadcast %348 : vector<1x128x1xf32> to vector<2x128x57xf32>
    %351 = arith.mulf %350, %349 : vector<2x128x57xf32>
    %352 = arith.addf %345, %351 : vector<2x128x57xf32>
    %353 = vector.extract_strided_slice %330 {offsets = [3, 0, 0], sizes = [1, 128, 1], strides = [1, 1, 1]} : vector<11x128x1xf32> to vector<1x128x1xf32>
    %354 = vector.shape_cast %353 : vector<1x128x1xf32> to vector<128x1xf32>
    %355 = vector.shape_cast %354 : vector<128x1xf32> to vector<1x128x1xf32>
    %356 = vector.extract_strided_slice %329 {offsets = [0, 0, 3], sizes = [2, 128, 57], strides = [1, 1, 1]} : vector<2x128x67xf32> to vector<2x128x57xf32>
    %357 = vector.broadcast %355 : vector<1x128x1xf32> to vector<2x128x57xf32>
    %358 = arith.mulf %357, %356 : vector<2x128x57xf32>
    %359 = arith.addf %352, %358 : vector<2x128x57xf32>
    %360 = vector.extract_strided_slice %330 {offsets = [4, 0, 0], sizes = [1, 128, 1], strides = [1, 1, 1]} : vector<11x128x1xf32> to vector<1x128x1xf32>
    %361 = vector.shape_cast %360 : vector<1x128x1xf32> to vector<128x1xf32>
    %362 = vector.shape_cast %361 : vector<128x1xf32> to vector<1x128x1xf32>
    %363 = vector.extract_strided_slice %329 {offsets = [0, 0, 4], sizes = [2, 128, 57], strides = [1, 1, 1]} : vector<2x128x67xf32> to vector<2x128x57xf32>
    %364 = vector.broadcast %362 : vector<1x128x1xf32> to vector<2x128x57xf32>
    %365 = arith.mulf %364, %363 : vector<2x128x57xf32>
    %366 = arith.addf %359, %365 : vector<2x128x57xf32>
    %367 = vector.extract_strided_slice %330 {offsets = [5, 0, 0], sizes = [1, 128, 1], strides = [1, 1, 1]} : vector<11x128x1xf32> to vector<1x128x1xf32>
    %368 = vector.shape_cast %367 : vector<1x128x1xf32> to vector<128x1xf32>
    %369 = vector.shape_cast %368 : vector<128x1xf32> to vector<1x128x1xf32>
    %370 = vector.extract_strided_slice %329 {offsets = [0, 0, 5], sizes = [2, 128, 57], strides = [1, 1, 1]} : vector<2x128x67xf32> to vector<2x128x57xf32>
    %371 = vector.broadcast %369 : vector<1x128x1xf32> to vector<2x128x57xf32>
    %372 = arith.mulf %371, %370 : vector<2x128x57xf32>
    %373 = arith.addf %366, %372 : vector<2x128x57xf32>
    %374 = vector.extract_strided_slice %330 {offsets = [6, 0, 0], sizes = [1, 128, 1], strides = [1, 1, 1]} : vector<11x128x1xf32> to vector<1x128x1xf32>
    %375 = vector.shape_cast %374 : vector<1x128x1xf32> to vector<128x1xf32>
    %376 = vector.shape_cast %375 : vector<128x1xf32> to vector<1x128x1xf32>
    %377 = vector.extract_strided_slice %329 {offsets = [0, 0, 6], sizes = [2, 128, 57], strides = [1, 1, 1]} : vector<2x128x67xf32> to vector<2x128x57xf32>
    %378 = vector.broadcast %376 : vector<1x128x1xf32> to vector<2x128x57xf32>
    %379 = arith.mulf %378, %377 : vector<2x128x57xf32>
    %380 = arith.addf %373, %379 : vector<2x128x57xf32>
    %381 = vector.extract_strided_slice %330 {offsets = [7, 0, 0], sizes = [1, 128, 1], strides = [1, 1, 1]} : vector<11x128x1xf32> to vector<1x128x1xf32>
    %382 = vector.shape_cast %381 : vector<1x128x1xf32> to vector<128x1xf32>
    %383 = vector.shape_cast %382 : vector<128x1xf32> to vector<1x128x1xf32>
    %384 = vector.extract_strided_slice %329 {offsets = [0, 0, 7], sizes = [2, 128, 57], strides = [1, 1, 1]} : vector<2x128x67xf32> to vector<2x128x57xf32>
    %385 = vector.broadcast %383 : vector<1x128x1xf32> to vector<2x128x57xf32>
    %386 = arith.mulf %385, %384 : vector<2x128x57xf32>
    %387 = arith.addf %380, %386 : vector<2x128x57xf32>
    %388 = vector.extract_strided_slice %330 {offsets = [8, 0, 0], sizes = [1, 128, 1], strides = [1, 1, 1]} : vector<11x128x1xf32> to vector<1x128x1xf32>
    %389 = vector.shape_cast %388 : vector<1x128x1xf32> to vector<128x1xf32>
    %390 = vector.shape_cast %389 : vector<128x1xf32> to vector<1x128x1xf32>
    %391 = vector.extract_strided_slice %329 {offsets = [0, 0, 8], sizes = [2, 128, 57], strides = [1, 1, 1]} : vector<2x128x67xf32> to vector<2x128x57xf32>
    %392 = vector.broadcast %390 : vector<1x128x1xf32> to vector<2x128x57xf32>
    %393 = arith.mulf %392, %391 : vector<2x128x57xf32>
    %394 = arith.addf %387, %393 : vector<2x128x57xf32>
    %395 = vector.extract_strided_slice %330 {offsets = [9, 0, 0], sizes = [1, 128, 1], strides = [1, 1, 1]} : vector<11x128x1xf32> to vector<1x128x1xf32>
    %396 = vector.shape_cast %395 : vector<1x128x1xf32> to vector<128x1xf32>
    %397 = vector.shape_cast %396 : vector<128x1xf32> to vector<1x128x1xf32>
    %398 = vector.extract_strided_slice %329 {offsets = [0, 0, 9], sizes = [2, 128, 57], strides = [1, 1, 1]} : vector<2x128x67xf32> to vector<2x128x57xf32>
    %399 = vector.broadcast %397 : vector<1x128x1xf32> to vector<2x128x57xf32>
    %400 = arith.mulf %399, %398 : vector<2x128x57xf32>
    %401 = arith.addf %394, %400 : vector<2x128x57xf32>
    %402 = vector.extract_strided_slice %330 {offsets = [10, 0, 0], sizes = [1, 128, 1], strides = [1, 1, 1]} : vector<11x128x1xf32> to vector<1x128x1xf32>
    %403 = vector.shape_cast %402 : vector<1x128x1xf32> to vector<128x1xf32>
    %404 = vector.shape_cast %403 : vector<128x1xf32> to vector<1x128x1xf32>
    %405 = vector.extract_strided_slice %329 {offsets = [0, 0, 10], sizes = [2, 128, 57], strides = [1, 1, 1]} : vector<2x128x67xf32> to vector<2x128x57xf32>
    %406 = vector.broadcast %404 : vector<1x128x1xf32> to vector<2x128x57xf32>
    %407 = arith.mulf %406, %405 : vector<2x128x57xf32>
    %408 = arith.addf %401, %407 : vector<2x128x57xf32>
    %c0_72 = arith.constant 0 : index
    %c0_73 = arith.constant 0 : index
    %c0_74 = arith.constant 0 : index
    %409 = vector.load %arg16[%c0_72, %c0_73, %c0_74] : memref<1x128x1xf32, #tpu.memory_space<vmem>>, vector<1x128x1xf32>
    %410 = vector.broadcast %409 : vector<1x128x1xf32> to vector<2x128x57xf32>
    %411 = arith.addf %408, %410 : vector<2x128x57xf32>
    %412 = vector.extract_strided_slice %411 {offsets = [0, 0, 0], sizes = [1, 128, 57], strides = [1, 1, 1]} : vector<2x128x57xf32> to vector<1x128x57xf32>
    %413 = vector.shape_cast %412 : vector<1x128x57xf32> to vector<128x57xf32>
    %414 = vector.extract_strided_slice %411 {offsets = [1, 0, 0], sizes = [1, 128, 57], strides = [1, 1, 1]} : vector<2x128x57xf32> to vector<1x128x57xf32>
    %415 = vector.shape_cast %414 : vector<1x128x57xf32> to vector<128x57xf32>
    %416 = tpu.concatenate %413, %415 in 1 : vector<128x57xf32>, vector<128x57xf32> -> vector<128x114xf32>
    %c0_75 = arith.constant 0 : index
    %c0_76 = arith.constant 0 : index
    %417 = vector.load %arg17[%c0_75, %c0_76] : memref<128x128xbf16, #tpu.memory_space<vmem>>, vector<128x128xbf16>
    %418 = arith.truncf %416 : vector<128x114xf32> to vector<128x114xbf16>
    %cst_77 = arith.constant dense<0.000000e+00> : vector<128x114xf32>
    %419 = tpu.matmul %417, %418, %cst_77 {dimension_numbers = #tpu.dot_dimension_numbers<[1], [0], [0], [1], [0, 0, 1, 1], [], []>} : vector<128x128xbf16>, vector<128x114xbf16>, vector<128x114xf32> -> vector<128x114xf32>
    %c0_78 = arith.constant 0 : index
    %c0_79 = arith.constant 0 : index
    %420 = vector.load %arg18[%c0_78, %c0_79] : memref<128x1xf32, #tpu.memory_space<vmem>>, vector<128x1xf32>
    %421 = vector.broadcast %420 : vector<128x1xf32> to vector<128x114xf32>
    %422 = arith.addf %419, %421 : vector<128x114xf32>
    %cst_80 = arith.constant 0.000000e+00 : f32
    %423 = vector.broadcast %cst_80 : f32 to vector<128x114xf32>
    %424 = arith.cmpf oge, %422, %423 : vector<128x114xf32>
    %cst_81 = arith.constant 0.00999999977 : f32
    %425 = vector.broadcast %cst_81 : f32 to vector<128x114xf32>
    %426 = arith.mulf %425, %422 : vector<128x114xf32>
    %427 = arith.select %424, %422, %426 : vector<128x114xi1>, vector<128x114xf32>
    %cst_82 = arith.constant dense<0.000000e+00> : vector<128xf32>
    %428 = vector.multi_reduction <add>, %427, %cst_82 [1] : vector<128x114xf32> to vector<128xf32>
    %429 = vector.shape_cast %428 : vector<128xf32> to vector<128x1xf32>
    %430 = vector.extract_strided_slice %429 {offsets = [0, 0], sizes = [32, 1], strides = [1, 1]} : vector<128x1xf32> to vector<32x1xf32>
    %431 = vector.extract_strided_slice %429 {offsets = [32, 0], sizes = [32, 1], strides = [1, 1]} : vector<128x1xf32> to vector<32x1xf32>
    %432 = arith.addf %430, %431 : vector<32x1xf32>
    %433 = vector.extract_strided_slice %429 {offsets = [64, 0], sizes = [32, 1], strides = [1, 1]} : vector<128x1xf32> to vector<32x1xf32>
    %434 = arith.addf %432, %433 : vector<32x1xf32>
    %435 = vector.extract_strided_slice %429 {offsets = [96, 0], sizes = [32, 1], strides = [1, 1]} : vector<128x1xf32> to vector<32x1xf32>
    %436 = arith.addf %434, %435 : vector<32x1xf32>
    %cst_83 = arith.constant 4.560000e+02 : f32
    %437 = vector.broadcast %cst_83 : f32 to vector<32x1xf32>
    %438 = arith.divf %436, %437 : vector<32x1xf32>
    %439 = tpu.concatenate %438, %438, %438, %438 in 0 : vector<32x1xf32>, vector<32x1xf32>, vector<32x1xf32>, vector<32x1xf32> -> vector<128x1xf32>
    %440 = vector.broadcast %439 : vector<128x1xf32> to vector<128x114xf32>
    %441 = arith.subf %427, %440 : vector<128x114xf32>
    %442 = arith.mulf %441, %441 : vector<128x114xf32>
    %cst_84 = arith.constant dense<0.000000e+00> : vector<128xf32>
    %443 = vector.multi_reduction <add>, %442, %cst_84 [1] : vector<128x114xf32> to vector<128xf32>
    %444 = vector.shape_cast %443 : vector<128xf32> to vector<128x1xf32>
    %445 = vector.extract_strided_slice %444 {offsets = [0, 0], sizes = [32, 1], strides = [1, 1]} : vector<128x1xf32> to vector<32x1xf32>
    %446 = vector.extract_strided_slice %444 {offsets = [32, 0], sizes = [32, 1], strides = [1, 1]} : vector<128x1xf32> to vector<32x1xf32>
    %447 = arith.addf %445, %446 : vector<32x1xf32>
    %448 = vector.extract_strided_slice %444 {offsets = [64, 0], sizes = [32, 1], strides = [1, 1]} : vector<128x1xf32> to vector<32x1xf32>
    %449 = arith.addf %447, %448 : vector<32x1xf32>
    %450 = vector.extract_strided_slice %444 {offsets = [96, 0], sizes = [32, 1], strides = [1, 1]} : vector<128x1xf32> to vector<32x1xf32>
    %451 = arith.addf %449, %450 : vector<32x1xf32>
    %cst_85 = arith.constant 4.560000e+02 : f32
    %452 = vector.broadcast %cst_85 : f32 to vector<32x1xf32>
    %453 = arith.divf %451, %452 : vector<32x1xf32>
    %c0_86 = arith.constant 0 : index
    %c0_87 = arith.constant 0 : index
    %454 = vector.load %arg19[%c0_86, %c0_87] : memref<32x1xf32, #tpu.memory_space<vmem>>, vector<32x1xf32>
    %cst_88 = arith.constant 9.99999974E-6 : f32
    %455 = vector.broadcast %cst_88 : f32 to vector<32x1xf32>
    %456 = arith.addf %453, %455 : vector<32x1xf32>
    %457 = math.rsqrt %456 : vector<32x1xf32>
    %458 = arith.mulf %454, %457 : vector<32x1xf32>
    %c0_89 = arith.constant 0 : index
    %c0_90 = arith.constant 0 : index
    %459 = vector.load %arg20[%c0_89, %c0_90] : memref<32x1xf32, #tpu.memory_space<vmem>>, vector<32x1xf32>
    %460 = arith.mulf %438, %458 : vector<32x1xf32>
    %461 = arith.subf %459, %460 : vector<32x1xf32>
    %462 = tpu.concatenate %458, %458, %458, %458 in 0 : vector<32x1xf32>, vector<32x1xf32>, vector<32x1xf32>, vector<32x1xf32> -> vector<128x1xf32>
    %463 = vector.broadcast %462 : vector<128x1xf32> to vector<128x114xf32>
    %464 = arith.mulf %427, %463 : vector<128x114xf32>
    %465 = tpu.concatenate %461, %461, %461, %461 in 0 : vector<32x1xf32>, vector<32x1xf32>, vector<32x1xf32>, vector<32x1xf32> -> vector<128x1xf32>
    %466 = vector.broadcast %465 : vector<128x1xf32> to vector<128x114xf32>
    %467 = arith.addf %464, %466 : vector<128x114xf32>
    %c0_91 = arith.constant 0 : index
    %c0_92 = arith.constant 0 : index
    %468 = vector.load %arg21[%c0_91, %c0_92] : memref<32x128xbf16, #tpu.memory_space<vmem>>, vector<32x128xbf16>
    %469 = arith.truncf %467 : vector<128x114xf32> to vector<128x114xbf16>
    %cst_93 = arith.constant dense<0.000000e+00> : vector<32x114xf32>
    %470 = tpu.matmul %468, %469, %cst_93 {dimension_numbers = #tpu.dot_dimension_numbers<[1], [0], [0], [1], [0, 0, 1, 1], [], []>} : vector<32x128xbf16>, vector<128x114xbf16>, vector<32x114xf32> -> vector<32x114xf32>
    %c0_94 = arith.constant 0 : index
    %c0_95 = arith.constant 0 : index
    %471 = vector.load %arg22[%c0_94, %c0_95] : memref<32x1xf32, #tpu.memory_space<vmem>>, vector<32x1xf32>
    %472 = vector.broadcast %471 : vector<32x1xf32> to vector<32x114xf32>
    %473 = arith.addf %470, %472 : vector<32x114xf32>
    %cst_96 = arith.constant 0.000000e+00 : f32
    %474 = vector.broadcast %cst_96 : f32 to vector<32x114xf32>
    %475 = arith.cmpf oge, %473, %474 : vector<32x114xf32>
    %cst_97 = arith.constant 0.00999999977 : f32
    %476 = vector.broadcast %cst_97 : f32 to vector<32x114xf32>
    %477 = arith.mulf %476, %473 : vector<32x114xf32>
    %478 = arith.select %475, %473, %477 : vector<32x114xi1>, vector<32x114xf32>
    %cst_98 = arith.constant dense<0.000000e+00> : vector<32xf32>
    %479 = vector.multi_reduction <add>, %478, %cst_98 [1] : vector<32x114xf32> to vector<32xf32>
    %480 = vector.shape_cast %479 : vector<32xf32> to vector<32x1xf32>
    %cst_99 = arith.constant 1.140000e+02 : f32
    %481 = vector.broadcast %cst_99 : f32 to vector<32x1xf32>
    %482 = arith.divf %480, %481 : vector<32x1xf32>
    %483 = vector.broadcast %482 : vector<32x1xf32> to vector<32x114xf32>
    %484 = arith.subf %478, %483 : vector<32x114xf32>
    %485 = arith.mulf %484, %484 : vector<32x114xf32>
    %cst_100 = arith.constant dense<0.000000e+00> : vector<32xf32>
    %486 = vector.multi_reduction <add>, %485, %cst_100 [1] : vector<32x114xf32> to vector<32xf32>
    %487 = vector.shape_cast %486 : vector<32xf32> to vector<32x1xf32>
    %cst_101 = arith.constant 1.140000e+02 : f32
    %488 = vector.broadcast %cst_101 : f32 to vector<32x1xf32>
    %489 = arith.divf %487, %488 : vector<32x1xf32>
    %c0_102 = arith.constant 0 : index
    %c0_103 = arith.constant 0 : index
    %490 = vector.load %arg23[%c0_102, %c0_103] : memref<32x1xf32, #tpu.memory_space<vmem>>, vector<32x1xf32>
    %cst_104 = arith.constant 9.99999974E-6 : f32
    %491 = vector.broadcast %cst_104 : f32 to vector<32x1xf32>
    %492 = arith.addf %489, %491 : vector<32x1xf32>
    %493 = math.rsqrt %492 : vector<32x1xf32>
    %494 = arith.mulf %490, %493 : vector<32x1xf32>
    %c0_105 = arith.constant 0 : index
    %c0_106 = arith.constant 0 : index
    %495 = vector.load %arg24[%c0_105, %c0_106] : memref<32x1xf32, #tpu.memory_space<vmem>>, vector<32x1xf32>
    %496 = arith.mulf %482, %494 : vector<32x1xf32>
    %497 = arith.subf %495, %496 : vector<32x1xf32>
    %498 = vector.extract_strided_slice %478 {offsets = [0, 0], sizes = [32, 57], strides = [1, 1]} : vector<32x114xf32> to vector<32x57xf32>
    %cst_107 = arith.constant dense<0.000000e+00> : vector<32xf32>
    %499 = vector.multi_reduction <add>, %498, %cst_107 [1] : vector<32x57xf32> to vector<32xf32>
    %500 = vector.shape_cast %499 : vector<32xf32> to vector<32x1xf32>
    %cst_108 = arith.constant 5.700000e+01 : f32
    %501 = vector.broadcast %cst_108 : f32 to vector<32x1xf32>
    %502 = arith.divf %500, %501 : vector<32x1xf32>
    %503 = arith.mulf %502, %494 : vector<32x1xf32>
    %504 = arith.addf %503, %497 : vector<32x1xf32>
    %505 = vector.extract_strided_slice %478 {offsets = [0, 57], sizes = [32, 57], strides = [1, 1]} : vector<32x114xf32> to vector<32x57xf32>
    %cst_109 = arith.constant dense<0.000000e+00> : vector<32xf32>
    %506 = vector.multi_reduction <add>, %505, %cst_109 [1] : vector<32x57xf32> to vector<32xf32>
    %507 = vector.shape_cast %506 : vector<32xf32> to vector<32x1xf32>
    %cst_110 = arith.constant 5.700000e+01 : f32
    %508 = vector.broadcast %cst_110 : f32 to vector<32x1xf32>
    %509 = arith.divf %507, %508 : vector<32x1xf32>
    %510 = arith.mulf %509, %494 : vector<32x1xf32>
    %511 = arith.addf %510, %497 : vector<32x1xf32>
    %512 = vector.extract_strided_slice %467 {offsets = [0, 0], sizes = [128, 57], strides = [1, 1]} : vector<128x114xf32> to vector<128x57xf32>
    %513 = vector.extract_strided_slice %467 {offsets = [0, 57], sizes = [128, 57], strides = [1, 1]} : vector<128x114xf32> to vector<128x57xf32>
    %514 = vector.shape_cast %512 : vector<128x57xf32> to vector<1x128x57xf32>
    %515 = vector.shape_cast %513 : vector<128x57xf32> to vector<1x128x57xf32>
    %516 = tpu.concatenate %514, %515 in 0 : vector<1x128x57xf32>, vector<1x128x57xf32> -> vector<2x128x57xf32>
    %cst_111 = arith.constant 0.000000e+00 : f32
    %517 = vector.broadcast %cst_111 : f32 to vector<2x128x2xf32>
    %518 = tpu.concatenate %517, %516, %517 in 2 : vector<2x128x2xf32>, vector<2x128x57xf32>, vector<2x128x2xf32> -> vector<2x128x61xf32>
    %c0_112 = arith.constant 0 : index
    %c0_113 = arith.constant 0 : index
    %c0_114 = arith.constant 0 : index
    %519 = vector.load %arg25[%c0_112, %c0_113, %c0_114] : memref<5x128x1xf32, #tpu.memory_space<vmem>>, vector<5x128x1xf32>
    %cst_115 = arith.constant 0.000000e+00 : f32
    %520 = vector.broadcast %cst_115 : f32 to vector<2x128x57xf32>
    %521 = vector.extract_strided_slice %519 {offsets = [0, 0, 0], sizes = [1, 128, 1], strides = [1, 1, 1]} : vector<5x128x1xf32> to vector<1x128x1xf32>
    %522 = vector.shape_cast %521 : vector<1x128x1xf32> to vector<128x1xf32>
    %523 = vector.shape_cast %522 : vector<128x1xf32> to vector<1x128x1xf32>
    %524 = vector.extract_strided_slice %518 {offsets = [0, 0, 0], sizes = [2, 128, 57], strides = [1, 1, 1]} : vector<2x128x61xf32> to vector<2x128x57xf32>
    %525 = vector.broadcast %523 : vector<1x128x1xf32> to vector<2x128x57xf32>
    %526 = arith.mulf %525, %524 : vector<2x128x57xf32>
    %527 = arith.addf %520, %526 : vector<2x128x57xf32>
    %528 = vector.extract_strided_slice %519 {offsets = [1, 0, 0], sizes = [1, 128, 1], strides = [1, 1, 1]} : vector<5x128x1xf32> to vector<1x128x1xf32>
    %529 = vector.shape_cast %528 : vector<1x128x1xf32> to vector<128x1xf32>
    %530 = vector.shape_cast %529 : vector<128x1xf32> to vector<1x128x1xf32>
    %531 = vector.extract_strided_slice %518 {offsets = [0, 0, 1], sizes = [2, 128, 57], strides = [1, 1, 1]} : vector<2x128x61xf32> to vector<2x128x57xf32>
    %532 = vector.broadcast %530 : vector<1x128x1xf32> to vector<2x128x57xf32>
    %533 = arith.mulf %532, %531 : vector<2x128x57xf32>
    %534 = arith.addf %527, %533 : vector<2x128x57xf32>
    %535 = vector.extract_strided_slice %519 {offsets = [2, 0, 0], sizes = [1, 128, 1], strides = [1, 1, 1]} : vector<5x128x1xf32> to vector<1x128x1xf32>
    %536 = vector.shape_cast %535 : vector<1x128x1xf32> to vector<128x1xf32>
    %537 = vector.shape_cast %536 : vector<128x1xf32> to vector<1x128x1xf32>
    %538 = vector.extract_strided_slice %518 {offsets = [0, 0, 2], sizes = [2, 128, 57], strides = [1, 1, 1]} : vector<2x128x61xf32> to vector<2x128x57xf32>
    %539 = vector.broadcast %537 : vector<1x128x1xf32> to vector<2x128x57xf32>
    %540 = arith.mulf %539, %538 : vector<2x128x57xf32>
    %541 = arith.addf %534, %540 : vector<2x128x57xf32>
    %542 = vector.extract_strided_slice %519 {offsets = [3, 0, 0], sizes = [1, 128, 1], strides = [1, 1, 1]} : vector<5x128x1xf32> to vector<1x128x1xf32>
    %543 = vector.shape_cast %542 : vector<1x128x1xf32> to vector<128x1xf32>
    %544 = vector.shape_cast %543 : vector<128x1xf32> to vector<1x128x1xf32>
    %545 = vector.extract_strided_slice %518 {offsets = [0, 0, 3], sizes = [2, 128, 57], strides = [1, 1, 1]} : vector<2x128x61xf32> to vector<2x128x57xf32>
    %546 = vector.broadcast %544 : vector<1x128x1xf32> to vector<2x128x57xf32>
    %547 = arith.mulf %546, %545 : vector<2x128x57xf32>
    %548 = arith.addf %541, %547 : vector<2x128x57xf32>
    %549 = vector.extract_strided_slice %519 {offsets = [4, 0, 0], sizes = [1, 128, 1], strides = [1, 1, 1]} : vector<5x128x1xf32> to vector<1x128x1xf32>
    %550 = vector.shape_cast %549 : vector<1x128x1xf32> to vector<128x1xf32>
    %551 = vector.shape_cast %550 : vector<128x1xf32> to vector<1x128x1xf32>
    %552 = vector.extract_strided_slice %518 {offsets = [0, 0, 4], sizes = [2, 128, 57], strides = [1, 1, 1]} : vector<2x128x61xf32> to vector<2x128x57xf32>
    %553 = vector.broadcast %551 : vector<1x128x1xf32> to vector<2x128x57xf32>
    %554 = arith.mulf %553, %552 : vector<2x128x57xf32>
    %555 = arith.addf %548, %554 : vector<2x128x57xf32>
    %c0_116 = arith.constant 0 : index
    %c0_117 = arith.constant 0 : index
    %c0_118 = arith.constant 0 : index
    %556 = vector.load %arg26[%c0_116, %c0_117, %c0_118] : memref<1x128x1xf32, #tpu.memory_space<vmem>>, vector<1x128x1xf32>
    %557 = vector.broadcast %556 : vector<1x128x1xf32> to vector<2x128x57xf32>
    %558 = arith.addf %555, %557 : vector<2x128x57xf32>
    %559 = vector.extract_strided_slice %558 {offsets = [0, 0, 0], sizes = [1, 128, 57], strides = [1, 1, 1]} : vector<2x128x57xf32> to vector<1x128x57xf32>
    %560 = vector.shape_cast %559 : vector<1x128x57xf32> to vector<128x57xf32>
    %561 = vector.extract_strided_slice %558 {offsets = [1, 0, 0], sizes = [1, 128, 57], strides = [1, 1, 1]} : vector<2x128x57xf32> to vector<1x128x57xf32>
    %562 = vector.shape_cast %561 : vector<1x128x57xf32> to vector<128x57xf32>
    %563 = tpu.concatenate %560, %562 in 1 : vector<128x57xf32>, vector<128x57xf32> -> vector<128x114xf32>
    %c0_119 = arith.constant 0 : index
    %c0_120 = arith.constant 0 : index
    %564 = vector.load %arg27[%c0_119, %c0_120] : memref<128x128xbf16, #tpu.memory_space<vmem>>, vector<128x128xbf16>
    %565 = arith.truncf %563 : vector<128x114xf32> to vector<128x114xbf16>
    %cst_121 = arith.constant dense<0.000000e+00> : vector<128x114xf32>
    %566 = tpu.matmul %564, %565, %cst_121 {dimension_numbers = #tpu.dot_dimension_numbers<[1], [0], [0], [1], [0, 0, 1, 1], [], []>} : vector<128x128xbf16>, vector<128x114xbf16>, vector<128x114xf32> -> vector<128x114xf32>
    %c0_122 = arith.constant 0 : index
    %c0_123 = arith.constant 0 : index
    %567 = vector.load %arg28[%c0_122, %c0_123] : memref<128x1xf32, #tpu.memory_space<vmem>>, vector<128x1xf32>
    %568 = vector.broadcast %567 : vector<128x1xf32> to vector<128x114xf32>
    %569 = arith.addf %566, %568 : vector<128x114xf32>
    %cst_124 = arith.constant 0.000000e+00 : f32
    %570 = vector.broadcast %cst_124 : f32 to vector<128x114xf32>
    %571 = arith.cmpf oge, %569, %570 : vector<128x114xf32>
    %cst_125 = arith.constant 0.00999999977 : f32
    %572 = vector.broadcast %cst_125 : f32 to vector<128x114xf32>
    %573 = arith.mulf %572, %569 : vector<128x114xf32>
    %574 = arith.select %571, %569, %573 : vector<128x114xi1>, vector<128x114xf32>
    %cst_126 = arith.constant dense<0.000000e+00> : vector<128xf32>
    %575 = vector.multi_reduction <add>, %574, %cst_126 [1] : vector<128x114xf32> to vector<128xf32>
    %576 = vector.shape_cast %575 : vector<128xf32> to vector<128x1xf32>
    %577 = vector.extract_strided_slice %576 {offsets = [0, 0], sizes = [32, 1], strides = [1, 1]} : vector<128x1xf32> to vector<32x1xf32>
    %578 = vector.extract_strided_slice %576 {offsets = [32, 0], sizes = [32, 1], strides = [1, 1]} : vector<128x1xf32> to vector<32x1xf32>
    %579 = arith.addf %577, %578 : vector<32x1xf32>
    %580 = vector.extract_strided_slice %576 {offsets = [64, 0], sizes = [32, 1], strides = [1, 1]} : vector<128x1xf32> to vector<32x1xf32>
    %581 = arith.addf %579, %580 : vector<32x1xf32>
    %582 = vector.extract_strided_slice %576 {offsets = [96, 0], sizes = [32, 1], strides = [1, 1]} : vector<128x1xf32> to vector<32x1xf32>
    %583 = arith.addf %581, %582 : vector<32x1xf32>
    %cst_127 = arith.constant 4.560000e+02 : f32
    %584 = vector.broadcast %cst_127 : f32 to vector<32x1xf32>
    %585 = arith.divf %583, %584 : vector<32x1xf32>
    %586 = tpu.concatenate %585, %585, %585, %585 in 0 : vector<32x1xf32>, vector<32x1xf32>, vector<32x1xf32>, vector<32x1xf32> -> vector<128x1xf32>
    %587 = vector.broadcast %586 : vector<128x1xf32> to vector<128x114xf32>
    %588 = arith.subf %574, %587 : vector<128x114xf32>
    %589 = arith.mulf %588, %588 : vector<128x114xf32>
    %cst_128 = arith.constant dense<0.000000e+00> : vector<128xf32>
    %590 = vector.multi_reduction <add>, %589, %cst_128 [1] : vector<128x114xf32> to vector<128xf32>
    %591 = vector.shape_cast %590 : vector<128xf32> to vector<128x1xf32>
    %592 = vector.extract_strided_slice %591 {offsets = [0, 0], sizes = [32, 1], strides = [1, 1]} : vector<128x1xf32> to vector<32x1xf32>
    %593 = vector.extract_strided_slice %591 {offsets = [32, 0], sizes = [32, 1], strides = [1, 1]} : vector<128x1xf32> to vector<32x1xf32>
    %594 = arith.addf %592, %593 : vector<32x1xf32>
    %595 = vector.extract_strided_slice %591 {offsets = [64, 0], sizes = [32, 1], strides = [1, 1]} : vector<128x1xf32> to vector<32x1xf32>
    %596 = arith.addf %594, %595 : vector<32x1xf32>
    %597 = vector.extract_strided_slice %591 {offsets = [96, 0], sizes = [32, 1], strides = [1, 1]} : vector<128x1xf32> to vector<32x1xf32>
    %598 = arith.addf %596, %597 : vector<32x1xf32>
    %cst_129 = arith.constant 4.560000e+02 : f32
    %599 = vector.broadcast %cst_129 : f32 to vector<32x1xf32>
    %600 = arith.divf %598, %599 : vector<32x1xf32>
    %c0_130 = arith.constant 0 : index
    %c0_131 = arith.constant 0 : index
    %601 = vector.load %arg29[%c0_130, %c0_131] : memref<32x1xf32, #tpu.memory_space<vmem>>, vector<32x1xf32>
    %cst_132 = arith.constant 9.99999974E-6 : f32
    %602 = vector.broadcast %cst_132 : f32 to vector<32x1xf32>
    %603 = arith.addf %600, %602 : vector<32x1xf32>
    %604 = math.rsqrt %603 : vector<32x1xf32>
    %605 = arith.mulf %601, %604 : vector<32x1xf32>
    %c0_133 = arith.constant 0 : index
    %c0_134 = arith.constant 0 : index
    %606 = vector.load %arg30[%c0_133, %c0_134] : memref<32x1xf32, #tpu.memory_space<vmem>>, vector<32x1xf32>
    %607 = arith.mulf %585, %605 : vector<32x1xf32>
    %608 = arith.subf %606, %607 : vector<32x1xf32>
    %609 = tpu.concatenate %605, %605, %605, %605 in 0 : vector<32x1xf32>, vector<32x1xf32>, vector<32x1xf32>, vector<32x1xf32> -> vector<128x1xf32>
    %610 = vector.broadcast %609 : vector<128x1xf32> to vector<128x114xf32>
    %611 = arith.mulf %574, %610 : vector<128x114xf32>
    %612 = tpu.concatenate %608, %608, %608, %608 in 0 : vector<32x1xf32>, vector<32x1xf32>, vector<32x1xf32>, vector<32x1xf32> -> vector<128x1xf32>
    %613 = vector.broadcast %612 : vector<128x1xf32> to vector<128x114xf32>
    %614 = arith.addf %611, %613 : vector<128x114xf32>
    %c0_135 = arith.constant 0 : index
    %c0_136 = arith.constant 0 : index
    %615 = vector.load %arg31[%c0_135, %c0_136] : memref<32x128xbf16, #tpu.memory_space<vmem>>, vector<32x128xbf16>
    %616 = arith.truncf %614 : vector<128x114xf32> to vector<128x114xbf16>
    %cst_137 = arith.constant dense<0.000000e+00> : vector<32x114xf32>
    %617 = tpu.matmul %615, %616, %cst_137 {dimension_numbers = #tpu.dot_dimension_numbers<[1], [0], [0], [1], [0, 0, 1, 1], [], []>} : vector<32x128xbf16>, vector<128x114xbf16>, vector<32x114xf32> -> vector<32x114xf32>
    %c0_138 = arith.constant 0 : index
    %c0_139 = arith.constant 0 : index
    %618 = vector.load %arg32[%c0_138, %c0_139] : memref<32x1xf32, #tpu.memory_space<vmem>>, vector<32x1xf32>
    %619 = vector.broadcast %618 : vector<32x1xf32> to vector<32x114xf32>
    %620 = arith.addf %617, %619 : vector<32x114xf32>
    %cst_140 = arith.constant 0.000000e+00 : f32
    %621 = vector.broadcast %cst_140 : f32 to vector<32x114xf32>
    %622 = arith.cmpf oge, %620, %621 : vector<32x114xf32>
    %cst_141 = arith.constant 0.00999999977 : f32
    %623 = vector.broadcast %cst_141 : f32 to vector<32x114xf32>
    %624 = arith.mulf %623, %620 : vector<32x114xf32>
    %625 = arith.select %622, %620, %624 : vector<32x114xi1>, vector<32x114xf32>
    %cst_142 = arith.constant dense<0.000000e+00> : vector<32xf32>
    %626 = vector.multi_reduction <add>, %625, %cst_142 [1] : vector<32x114xf32> to vector<32xf32>
    %627 = vector.shape_cast %626 : vector<32xf32> to vector<32x1xf32>
    %cst_143 = arith.constant 1.140000e+02 : f32
    %628 = vector.broadcast %cst_143 : f32 to vector<32x1xf32>
    %629 = arith.divf %627, %628 : vector<32x1xf32>
    %630 = vector.broadcast %629 : vector<32x1xf32> to vector<32x114xf32>
    %631 = arith.subf %625, %630 : vector<32x114xf32>
    %632 = arith.mulf %631, %631 : vector<32x114xf32>
    %cst_144 = arith.constant dense<0.000000e+00> : vector<32xf32>
    %633 = vector.multi_reduction <add>, %632, %cst_144 [1] : vector<32x114xf32> to vector<32xf32>
    %634 = vector.shape_cast %633 : vector<32xf32> to vector<32x1xf32>
    %cst_145 = arith.constant 1.140000e+02 : f32
    %635 = vector.broadcast %cst_145 : f32 to vector<32x1xf32>
    %636 = arith.divf %634, %635 : vector<32x1xf32>
    %c0_146 = arith.constant 0 : index
    %c0_147 = arith.constant 0 : index
    %637 = vector.load %arg33[%c0_146, %c0_147] : memref<32x1xf32, #tpu.memory_space<vmem>>, vector<32x1xf32>
    %cst_148 = arith.constant 9.99999974E-6 : f32
    %638 = vector.broadcast %cst_148 : f32 to vector<32x1xf32>
    %639 = arith.addf %636, %638 : vector<32x1xf32>
    %640 = math.rsqrt %639 : vector<32x1xf32>
    %641 = arith.mulf %637, %640 : vector<32x1xf32>
    %c0_149 = arith.constant 0 : index
    %c0_150 = arith.constant 0 : index
    %642 = vector.load %arg34[%c0_149, %c0_150] : memref<32x1xf32, #tpu.memory_space<vmem>>, vector<32x1xf32>
    %643 = arith.mulf %629, %641 : vector<32x1xf32>
    %644 = arith.subf %642, %643 : vector<32x1xf32>
    %645 = vector.extract_strided_slice %625 {offsets = [0, 0], sizes = [32, 57], strides = [1, 1]} : vector<32x114xf32> to vector<32x57xf32>
    %cst_151 = arith.constant dense<0.000000e+00> : vector<32xf32>
    %646 = vector.multi_reduction <add>, %645, %cst_151 [1] : vector<32x57xf32> to vector<32xf32>
    %647 = vector.shape_cast %646 : vector<32xf32> to vector<32x1xf32>
    %cst_152 = arith.constant 5.700000e+01 : f32
    %648 = vector.broadcast %cst_152 : f32 to vector<32x1xf32>
    %649 = arith.divf %647, %648 : vector<32x1xf32>
    %650 = arith.mulf %649, %641 : vector<32x1xf32>
    %651 = arith.addf %650, %644 : vector<32x1xf32>
    %652 = vector.extract_strided_slice %625 {offsets = [0, 57], sizes = [32, 57], strides = [1, 1]} : vector<32x114xf32> to vector<32x57xf32>
    %cst_153 = arith.constant dense<0.000000e+00> : vector<32xf32>
    %653 = vector.multi_reduction <add>, %652, %cst_153 [1] : vector<32x57xf32> to vector<32xf32>
    %654 = vector.shape_cast %653 : vector<32xf32> to vector<32x1xf32>
    %cst_154 = arith.constant 5.700000e+01 : f32
    %655 = vector.broadcast %cst_154 : f32 to vector<32x1xf32>
    %656 = arith.divf %654, %655 : vector<32x1xf32>
    %657 = arith.mulf %656, %641 : vector<32x1xf32>
    %658 = arith.addf %657, %644 : vector<32x1xf32>
    %659 = tpu.concatenate %315, %504, %651 in 0 : vector<32x1xf32>, vector<32x1xf32>, vector<32x1xf32> -> vector<96x1xf32>
    %660 = tpu.concatenate %322, %511, %658 in 0 : vector<32x1xf32>, vector<32x1xf32>, vector<32x1xf32> -> vector<96x1xf32>
    %661 = tpu.concatenate %659, %660 in 1 : vector<96x1xf32>, vector<96x1xf32> -> vector<96x2xf32>
    %c0_155 = arith.constant 0 : index
    %c0_156 = arith.constant 0 : index
    %662 = vector.load %arg35[%c0_155, %c0_156] : memref<3x96xf32, #tpu.memory_space<vmem>>, vector<3x96xf32>
    %cst_157 = arith.constant dense<0.000000e+00> : vector<3x2xf32>
    %663 = tpu.matmul %662, %661, %cst_157 {dimension_numbers = #tpu.dot_dimension_numbers<[1], [0], [0], [1], [0, 0, 1, 1], [], []>} : vector<3x96xf32>, vector<96x2xf32>, vector<3x2xf32> -> vector<3x2xf32>
    %c0_158 = arith.constant 0 : index
    %c0_159 = arith.constant 0 : index
    %664 = vector.load %arg36[%c0_158, %c0_159] : memref<3x1xf32, #tpu.memory_space<vmem>>, vector<3x1xf32>
    %665 = vector.broadcast %664 : vector<3x1xf32> to vector<3x2xf32>
    %666 = arith.addf %663, %665 : vector<3x2xf32>
    %c0_160 = arith.constant 0 : index
    %c0_161 = arith.constant 0 : index
    %667 = vector.load %arg37[%c0_160, %c0_161] : memref<3x2xf32, #tpu.memory_space<vmem>>, vector<3x2xf32>
    tpu.vector_store %arg37[%c0_160, %c0_161], %666 {strides = array<i32>} : memref<3x2xf32, #tpu.memory_space<vmem>>, vector<3x2xf32>,
    return
  }
}

</mosaic_0001>

<llo_original>
// kernel: msnn_forward.1
$region0: #{msnn_forward.1}
  #allocation0 [shape = 'u32[]', space=smem, size = 0x4, offset = 0x4, fixed_abs, tag = 'smem constant byte address 0x4 - core index']
  #allocation1 [shape = 'u32[144,128]{1,0:T(1,128)}', space=vmem, size = 0x12000, scoped, tag = 'internal scratch']
  %s0 = inlined_call_operand.smem [shape: u32[38], index: -1, kind: input, shape index: {}]
  %s1 = sld [smem:[%s0]]
  %s2 = scalar_lea.smem %s0, 1
  %s3 = sld [smem:[%s2]]
  %s4 = scalar_lea.smem %s0, 2
  %s5 = sld [smem:[%s4]]
  %s6 = scalar_lea.smem %s0, 3
  %s7 = sld [smem:[%s6]]
  %s8 = scalar_lea.smem %s0, 4
  %s9 = sld [smem:[%s8]]
  %s10 = scalar_lea.smem %s0, 5
  %s11 = sld [smem:[%s10]]
  %s12 = scalar_lea.smem %s0, 6
  %s13 = sld [smem:[%s12]]
  %s14 = scalar_lea.smem %s0, 7
  %s15 = sld [smem:[%s14]]
  %s16 = scalar_lea.smem %s0, 8
  %s17 = sld [smem:[%s16]]
  %s18 = scalar_lea.smem %s0, 9
  %s19 = sld [smem:[%s18]]
  %s20 = scalar_lea.smem %s0, 10
  %s21 = sld [smem:[%s20]]
  %s22 = scalar_lea.smem %s0, 11
  %s23 = sld [smem:[%s22]]
  %s24 = scalar_lea.smem %s0, 12
  %s25 = sld [smem:[%s24]]
  %s26 = scalar_lea.smem %s0, 13
  %s27 = sld [smem:[%s26]]
  %s28 = scalar_lea.smem %s0, 14
  %s29 = sld [smem:[%s28]]
  %s30 = scalar_lea.smem %s0, 15
  %s31 = sld [smem:[%s30]]
  %s32 = scalar_lea.smem %s0, 16
  %s33 = sld [smem:[%s32]]
  %s34 = scalar_lea.smem %s0, 17
  %s35 = sld [smem:[%s34]]
  %s36 = scalar_lea.smem %s0, 18
  %s37 = sld [smem:[%s36]]
  %s38 = scalar_lea.smem %s0, 19
  %s39 = sld [smem:[%s38]]
  %s40 = scalar_lea.smem %s0, 20
  %s41 = sld [smem:[%s40]]
  %s42 = scalar_lea.smem %s0, 21
  %s43 = sld [smem:[%s42]]
  %s44 = scalar_lea.smem %s0, 22
  %s45 = sld [smem:[%s44]]
  %s46 = scalar_lea.smem %s0, 23
  %s47 = sld [smem:[%s46]]
  %s48 = scalar_lea.smem %s0, 24
  %s49 = sld [smem:[%s48]]
  %s50 = scalar_lea.smem %s0, 25
  %s51 = sld [smem:[%s50]]
  %s52 = scalar_lea.smem %s0, 26
  %s53 = sld [smem:[%s52]]
  %s54 = scalar_lea.smem %s0, 27
  %s55 = sld [smem:[%s54]]
  %s56 = scalar_lea.smem %s0, 28
  %s57 = sld [smem:[%s56]]
  %s58 = scalar_lea.smem %s0, 29
  %s59 = sld [smem:[%s58]]
  %s60 = scalar_lea.smem %s0, 30
  %s61 = sld [smem:[%s60]]
  %s62 = scalar_lea.smem %s0, 31
  %s63 = sld [smem:[%s62]]
  %s64 = scalar_lea.smem %s0, 32
  %s65 = sld [smem:[%s64]]
  %s66 = scalar_lea.smem %s0, 33
  %s67 = sld [smem:[%s66]]
  %s68 = scalar_lea.smem %s0, 34
  %s69 = sld [smem:[%s68]]
  %s70 = scalar_lea.smem %s0, 35
  %s71 = sld [smem:[%s70]]
  %s72 = scalar_lea.smem %s0, 36
  %s73 = sld [smem:[%s72]]
  %s74 = scalar_lea.smem %s0, 37
  %s75 = sld [smem:[%s74]]
  %s76 = sld [smem:[#allocation0]]
  $region158: #{msnn_forward.1} parent=0
    _
  %s78 = ssub.s32 1, %s76
  %s79 = scalar_select 0, %s78, %s76
  // Predicated region
  $region2: #{msnn_forward.1} parent=0 // pred_check
    _
  $region3: #{msnn_forward.1} parent=0 // pred_check_branch
    %81 = sbr.rel (0) target = $region5
  $region4: #{msnn_forward.1} parent=0 // pred_region
    _
  $region5: #{msnn_forward.1} parent=0 // pred_fallthru
    _
  // Predicated region
  $region6: #{msnn_forward.1} parent=0 // pred_check
    _
  $region7: #{msnn_forward.1} parent=0 // pred_check_branch
    %83 = sbr.rel (0) target = $region9
  $region8: #{msnn_forward.1} parent=0 // pred_region
    _
  $region9: #{msnn_forward.1} parent=0 // pred_fallthru
    _
  // Predicated region
  $region10: #{msnn_forward.1} parent=0 // pred_check
    _
  $region11: #{msnn_forward.1} parent=0 // pred_check_branch
    %85 = sbr.rel (0) target = $region13
  $region12: #{msnn_forward.1} parent=0 // pred_region
    _
  $region13: #{msnn_forward.1} parent=0 // pred_fallthru
    _
  // Predicated region
  $region14: #{msnn_forward.1} parent=0 // pred_check
    _
  $region15: #{msnn_forward.1} parent=0 // pred_check_branch
    %87 = sbr.rel (0) target = $region17
  $region16: #{msnn_forward.1} parent=0 // pred_region
    _
  $region17: #{msnn_forward.1} parent=0 // pred_fallthru
    _
  // Predicated region
  $region18: #{msnn_forward.1} parent=0 // pred_check
    _
  $region19: #{msnn_forward.1} parent=0 // pred_check_branch
    %89 = sbr.rel (0) target = $region21
  $region20: #{msnn_forward.1} parent=0 // pred_region
    _
  $region21: #{msnn_forward.1} parent=0 // pred_fallthru
    _
  // Predicated region
  $region22: #{msnn_forward.1} parent=0 // pred_check
    _
  $region23: #{msnn_forward.1} parent=0 // pred_check_branch
    %91 = sbr.rel (0) target = $region25
  $region24: #{msnn_forward.1} parent=0 // pred_region
    _
  $region25: #{msnn_forward.1} parent=0 // pred_fallthru
    _
  // Predicated region
  $region26: #{msnn_forward.1} parent=0 // pred_check
    _
  $region27: #{msnn_forward.1} parent=0 // pred_check_branch
    %93 = sbr.rel (0) target = $region29
  $region28: #{msnn_forward.1} parent=0 // pred_region
    _
  $region29: #{msnn_forward.1} parent=0 // pred_fallthru
    _
  // Predicated region
  $region30: #{msnn_forward.1} parent=0 // pred_check
    _
  $region31: #{msnn_forward.1} parent=0 // pred_check_branch
    %95 = sbr.rel (0) target = $region33
  $region32: #{msnn_forward.1} parent=0 // pred_region
    _
  $region33: #{msnn_forward.1} parent=0 // pred_fallthru
    _
  // Predicated region
  $region34: #{msnn_forward.1} parent=0 // pred_check
    _
  $region35: #{msnn_forward.1} parent=0 // pred_check_branch
    %97 = sbr.rel (0) target = $region37
  $region36: #{msnn_forward.1} parent=0 // pred_region
    _
  $region37: #{msnn_forward.1} parent=0 // pred_fallthru
    _
  // Predicated region
  $region38: #{msnn_forward.1} parent=0 // pred_check
    _
  $region39: #{msnn_forward.1} parent=0 // pred_check_branch
    %99 = sbr.rel (0) target = $region41
  $region40: #{msnn_forward.1} parent=0 // pred_region
    _
  $region41: #{msnn_forward.1} parent=0 // pred_fallthru
    _
  // Predicated region
  $region42: #{msnn_forward.1} parent=0 // pred_check
    _
  $region43: #{msnn_forward.1} parent=0 // pred_check_branch
    %101 = sbr.rel (0) target = $region45
  $region44: #{msnn_forward.1} parent=0 // pred_region
    _
  $region45: #{msnn_forward.1} parent=0 // pred_fallthru
    _
  // Predicated region
  $region46: #{msnn_forward.1} parent=0 // pred_check
    _
  $region47: #{msnn_forward.1} parent=0 // pred_check_branch
    %103 = sbr.rel (0) target = $region49
  $region48: #{msnn_forward.1} parent=0 // pred_region
    _
  $region49: #{msnn_forward.1} parent=0 // pred_fallthru
    _
  // Predicated region
  $region50: #{msnn_forward.1} parent=0 // pred_check
    _
  $region51: #{msnn_forward.1} parent=0 // pred_check_branch
    %105 = sbr.rel (0) target = $region53
  $region52: #{msnn_forward.1} parent=0 // pred_region
    _
  $region53: #{msnn_forward.1} parent=0 // pred_fallthru
    _
  // Predicated region
  $region54: #{msnn_forward.1} parent=0 // pred_check
    _
  $region55: #{msnn_forward.1} parent=0 // pred_check_branch
    %107 = sbr.rel (0) target = $region57
  $region56: #{msnn_forward.1} parent=0 // pred_region
    _
  $region57: #{msnn_forward.1} parent=0 // pred_fallthru
    _
  // Predicated region
  $region58: #{msnn_forward.1} parent=0 // pred_check
    _
  $region59: #{msnn_forward.1} parent=0 // pred_check_branch
    %109 = sbr.rel (0) target = $region61
  $region60: #{msnn_forward.1} parent=0 // pred_region
    _
  $region61: #{msnn_forward.1} parent=0 // pred_fallthru
    _
  // Predicated region
  $region62: #{msnn_forward.1} parent=0 // pred_check
    _
  $region63: #{msnn_forward.1} parent=0 // pred_check_branch
    %111 = sbr.rel (0) target = $region65
  $region64: #{msnn_forward.1} parent=0 // pred_region
    _
  $region65: #{msnn_forward.1} parent=0 // pred_fallthru
    _
  // Predicated region
  $region66: #{msnn_forward.1} parent=0 // pred_check
    _
  $region67: #{msnn_forward.1} parent=0 // pred_check_branch
    %113 = sbr.rel (0) target = $region69
  $region68: #{msnn_forward.1} parent=0 // pred_region
    _
  $region69: #{msnn_forward.1} parent=0 // pred_fallthru
    _
  // Predicated region
  $region70: #{msnn_forward.1} parent=0 // pred_check
    _
  $region71: #{msnn_forward.1} parent=0 // pred_check_branch
    %115 = sbr.rel (0) target = $region73
  $region72: #{msnn_forward.1} parent=0 // pred_region
    _
  $region73: #{msnn_forward.1} parent=0 // pred_fallthru
    _
  // Predicated region
  $region74: #{msnn_forward.1} parent=0 // pred_check
    _
  $region75: #{msnn_forward.1} parent=0 // pred_check_branch
    %117 = sbr.rel (0) target = $region77
  $region76: #{msnn_forward.1} parent=0 // pred_region
    _
  $region77: #{msnn_forward.1} parent=0 // pred_fallthru
    _
  // Predicated region
  $region78: #{msnn_forward.1} parent=0 // pred_check
    _
  $region79: #{msnn_forward.1} parent=0 // pred_check_branch
    %119 = sbr.rel (0) target = $region81
  $region80: #{msnn_forward.1} parent=0 // pred_region
    _
  $region81: #{msnn_forward.1} parent=0 // pred_fallthru
    _
  // Predicated region
  $region82: #{msnn_forward.1} parent=0 // pred_check
    _
  $region83: #{msnn_forward.1} parent=0 // pred_check_branch
    %121 = sbr.rel (0) target = $region85
  $region84: #{msnn_forward.1} parent=0 // pred_region
    _
  $region85: #{msnn_forward.1} parent=0 // pred_fallthru
    _
  // Predicated region
  $region86: #{msnn_forward.1} parent=0 // pred_check
    _
  $region87: #{msnn_forward.1} parent=0 // pred_check_branch
    %123 = sbr.rel (0) target = $region89
  $region88: #{msnn_forward.1} parent=0 // pred_region
    _
  $region89: #{msnn_forward.1} parent=0 // pred_fallthru
    _
  // Predicated region
  $region90: #{msnn_forward.1} parent=0 // pred_check
    _
  $region91: #{msnn_forward.1} parent=0 // pred_check_branch
    %125 = sbr.rel (0) target = $region93
  $region92: #{msnn_forward.1} parent=0 // pred_region
    _
  $region93: #{msnn_forward.1} parent=0 // pred_fallthru
    _
  // Predicated region
  $region94: #{msnn_forward.1} parent=0 // pred_check
    _
  $region95: #{msnn_forward.1} parent=0 // pred_check_branch
    %127 = sbr.rel (0) target = $region97
  $region96: #{msnn_forward.1} parent=0 // pred_region
    _
  $region97: #{msnn_forward.1} parent=0 // pred_fallthru
    _
  // Predicated region
  $region98: #{msnn_forward.1} parent=0 // pred_check
    _
  $region99: #{msnn_forward.1} parent=0 // pred_check_branch
    %129 = sbr.rel (0) target = $region101
  $region100: #{msnn_forward.1} parent=0 // pred_region
    _
  $region101: #{msnn_forward.1} parent=0 // pred_fallthru
    _
  // Predicated region
  $region102: #{msnn_forward.1} parent=0 // pred_check
    _
  $region103: #{msnn_forward.1} parent=0 // pred_check_branch
    %131 = sbr.rel (0) target = $region105
  $region104: #{msnn_forward.1} parent=0 // pred_region
    _
  $region105: #{msnn_forward.1} parent=0 // pred_fallthru
    _
  // Predicated region
  $region106: #{msnn_forward.1} parent=0 // pred_check
    _
  $region107: #{msnn_forward.1} parent=0 // pred_check_branch
    %133 = sbr.rel (0) target = $region109
  $region108: #{msnn_forward.1} parent=0 // pred_region
    _
  $region109: #{msnn_forward.1} parent=0 // pred_fallthru
    _
  // Predicated region
  $region110: #{msnn_forward.1} parent=0 // pred_check
    _
  $region111: #{msnn_forward.1} parent=0 // pred_check_branch
    %135 = sbr.rel (0) target = $region113
  $region112: #{msnn_forward.1} parent=0 // pred_region
    _
  $region113: #{msnn_forward.1} parent=0 // pred_fallthru
    _
  // Predicated region
  $region114: #{msnn_forward.1} parent=0 // pred_check
    _
  $region115: #{msnn_forward.1} parent=0 // pred_check_branch
    %137 = sbr.rel (0) target = $region117
  $region116: #{msnn_forward.1} parent=0 // pred_region
    _
  $region117: #{msnn_forward.1} parent=0 // pred_fallthru
    _
  // Predicated region
  $region118: #{msnn_forward.1} parent=0 // pred_check
    _
  $region119: #{msnn_forward.1} parent=0 // pred_check_branch
    %139 = sbr.rel (0) target = $region121
  $region120: #{msnn_forward.1} parent=0 // pred_region
    _
  $region121: #{msnn_forward.1} parent=0 // pred_fallthru
    _
  // Predicated region
  $region122: #{msnn_forward.1} parent=0 // pred_check
    _
  $region123: #{msnn_forward.1} parent=0 // pred_check_branch
    %141 = sbr.rel (0) target = $region125
  $region124: #{msnn_forward.1} parent=0 // pred_region
    _
  $region125: #{msnn_forward.1} parent=0 // pred_fallthru
    _
  // Predicated region
  $region126: #{msnn_forward.1} parent=0 // pred_check
    _
  $region127: #{msnn_forward.1} parent=0 // pred_check_branch
    %143 = sbr.rel (0) target = $region129
  $region128: #{msnn_forward.1} parent=0 // pred_region
    _
  $region129: #{msnn_forward.1} parent=0 // pred_fallthru
    _
  // Predicated region
  $region130: #{msnn_forward.1} parent=0 // pred_check
    _
  $region131: #{msnn_forward.1} parent=0 // pred_check_branch
    %145 = sbr.rel (0) target = $region133
  $region132: #{msnn_forward.1} parent=0 // pred_region
    _
  $region133: #{msnn_forward.1} parent=0 // pred_fallthru
    _
  // Predicated region
  $region134: #{msnn_forward.1} parent=0 // pred_check
    _
  $region135: #{msnn_forward.1} parent=0 // pred_check_branch
    %147 = sbr.rel (0) target = $region137
  $region136: #{msnn_forward.1} parent=0 // pred_region
    _
  $region137: #{msnn_forward.1} parent=0 // pred_fallthru
    _
  // Predicated region
  $region138: #{msnn_forward.1} parent=0 // pred_check
    _
  $region139: #{msnn_forward.1} parent=0 // pred_check_branch
    %149 = sbr.rel (0) target = $region141
  $region140: #{msnn_forward.1} parent=0 // pred_region
    _
  $region141: #{msnn_forward.1} parent=0 // pred_fallthru
    _
  // Predicated region
  $region142: #{msnn_forward.1} parent=0 // pred_check
    _
  $region143: #{msnn_forward.1} parent=0 // pred_check_branch
    %151 = sbr.rel (0) target = $region145
  $region144: #{msnn_forward.1} parent=0 // pred_region
    _
  $region145: #{msnn_forward.1} parent=0 // pred_fallthru
    _
  // Predicated region
  $region146: #{msnn_forward.1} parent=0 // pred_check
    _
  $region147: #{msnn_forward.1} parent=0 // pred_check_branch
    %153 = sbr.rel (0) target = $region149
  $region148: #{msnn_forward.1} parent=0 // pred_region
    _
  $region149: #{msnn_forward.1} parent=0 // pred_fallthru
    _
  %v155 = vld [vmem:[%s1] sm:$0xff]
  %v156 = vld [vmem:[%s1 + $0x8] sm:$0xff]
  %v157 = vld [vmem:[%s1 + $0x10] sm:$0xff]
  %v158 = vld [vmem:[%s1 + $0x18] sm:$0xff]
  %v159 = vld [vmem:[%s3] sm:$0xff]
  %v160 = vld [vmem:[%s3 + $0x8] sm:$0xff]
  %v161 = vld [vmem:[%s3 + $0x10] sm:$0xff]
  %v162 = vld [vmem:[%s3 + $0x18] sm:$0xff]
  %v163 = vld [vmem:[%s3 + $0x20] sm:$0xff]
  %v164 = vld [vmem:[%s3 + $0x28] sm:$0xff]
  %v165 = vld [vmem:[%s3 + $0x30] sm:$0xff]
  %v166 = vld [vmem:[%s3 + $0x38] sm:$0xff]
  %v167 = vld [vmem:[%s3 + $0x40] sm:$0xff]
  %v168 = vld [vmem:[%s3 + $0x48] sm:$0xff]
  %v169 = vld [vmem:[%s3 + $0x50] sm:$0xff]
  %v170 = vld [vmem:[%s3 + $0x58] sm:$0xff]
  %v171 = vld [vmem:[%s3 + $0x60] sm:$0xff]
  %v172 = vld [vmem:[%s3 + $0x68] sm:$0xff]
  %v173 = vld [vmem:[%s3 + $0x70] sm:$0xff]
  %v174 = vld [vmem:[%s3 + $0x78] sm:$0xff]
  %176 = vset.pattern.permute.xlu0 0
  %177 = vperm.xlu0 %176, %v159
  %v178 = vpop.permute.xlu0 %177
  %181 = vset.pattern.permute.xlu0 0
  %182 = vperm.xlu0 %181, %v160
  %v183 = vpop.permute.xlu0 %182
  %v185 = vmul.f32 %v178, %v155
  %v186 = vmul.f32 %v183, %v156
  %v187 = vmul.f32 %v178, %v157
  %v188 = vmul.f32 %v183, %v158
  %v189 = vadd.f32 %v185, 0.0
  %v190 = vadd.f32 %v186, 0.0
  %v191 = vadd.f32 %v187, 0.0
  %v192 = vadd.f32 %v188, 0.0
  %194 = vset.pattern.permute.xlu0 0
  %195 = vperm.xlu0 %194, %v161
  %v196 = vpop.permute.xlu0 %195
  %199 = vset.pattern.permute.xlu0 0
  %200 = vperm.xlu0 %199, %v162
  %v201 = vpop.permute.xlu0 %200
  %v203 = vmul.f32 %v196, %v155
  %v204 = vmul.f32 %v201, %v156
  %v205 = vmul.f32 %v196, %v157
  %v206 = vmul.f32 %v201, %v158
  %211 = vrot.lane.b32.xlu0 %v203, 127
  %v212 = vpop.permute.xlu0 %211
  %213 = vrot.lane.b32.xlu0 %v204, 127
  %v214 = vpop.permute.xlu0 %213
  %215 = vrot.lane.b32.xlu0 %v205, 127
  %v216 = vpop.permute.xlu0 %215
  %217 = vrot.lane.b32.xlu0 %v206, 127
  %v218 = vpop.permute.xlu0 %217
  %v223 = vadd.f32 %v189, %v212
  %v224 = vadd.f32 %v190, %v214
  %v225 = vadd.f32 %v191, %v216
  %v226 = vadd.f32 %v192, %v218
  %228 = vset.pattern.permute.xlu0 0
  %229 = vperm.xlu0 %228, %v163
  %v230 = vpop.permute.xlu0 %229
  %233 = vset.pattern.permute.xlu0 0
  %234 = vperm.xlu0 %233, %v164
  %v235 = vpop.permute.xlu0 %234
  %v237 = vmul.f32 %v230, %v155
  %v238 = vmul.f32 %v235, %v156
  %v239 = vmul.f32 %v230, %v157
  %v240 = vmul.f32 %v235, %v158
  %245 = vrot.lane.b32.xlu0 %v237, 126
  %v246 = vpop.permute.xlu0 %245
  %247 = vrot.lane.b32.xlu0 %v238, 126
  %v248 = vpop.permute.xlu0 %247
  %249 = vrot.lane.b32.xlu0 %v239, 126
  %v250 = vpop.permute.xlu0 %249
  %251 = vrot.lane.b32.xlu0 %v240, 126
  %v252 = vpop.permute.xlu0 %251
  %v257 = vadd.f32 %v223, %v246
  %v258 = vadd.f32 %v224, %v248
  %v259 = vadd.f32 %v225, %v250
  %v260 = vadd.f32 %v226, %v252
  %262 = vset.pattern.permute.xlu0 0
  %263 = vperm.xlu0 %262, %v165
  %v264 = vpop.permute.xlu0 %263
  %267 = vset.pattern.permute.xlu0 0
  %268 = vperm.xlu0 %267, %v166
  %v269 = vpop.permute.xlu0 %268
  %v271 = vmul.f32 %v264, %v155
  %v272 = vmul.f32 %v269, %v156
  %v273 = vmul.f32 %v264, %v157
  %v274 = vmul.f32 %v269, %v158
  %279 = vrot.lane.b32.xlu0 %v271, 125
  %v280 = vpop.permute.xlu0 %279
  %281 = vrot.lane.b32.xlu0 %v272, 125
  %v282 = vpop.permute.xlu0 %281
  %283 = vrot.lane.b32.xlu0 %v273, 125
  %v284 = vpop.permute.xlu0 %283
  %285 = vrot.lane.b32.xlu0 %v274, 125
  %v286 = vpop.permute.xlu0 %285
  %v291 = vadd.f32 %v257, %v280
  %v292 = vadd.f32 %v258, %v282
  %v293 = vadd.f32 %v259, %v284
  %v294 = vadd.f32 %v260, %v286
  %296 = vset.pattern.permute.xlu0 0
  %297 = vperm.xlu0 %296, %v167
  %v298 = vpop.permute.xlu0 %297
  %301 = vset.pattern.permute.xlu0 0
  %302 = vperm.xlu0 %301, %v168
  %v303 = vpop.permute.xlu0 %302
  %v305 = vmul.f32 %v298, %v155
  %v306 = vmul.f32 %v303, %v156
  %v307 = vmul.f32 %v298, %v157
  %v308 = vmul.f32 %v303, %v158
  %313 = vrot.lane.b32.xlu0 %v305, 124
  %v314 = vpop.permute.xlu0 %313
  %315 = vrot.lane.b32.xlu0 %v306, 124
  %v316 = vpop.permute.xlu0 %315
  %317 = vrot.lane.b32.xlu0 %v307, 124
  %v318 = vpop.permute.xlu0 %317
  %319 = vrot.lane.b32.xlu0 %v308, 124
  %v320 = vpop.permute.xlu0 %319
  %v325 = vadd.f32 %v291, %v314
  %v326 = vadd.f32 %v292, %v316
  %v327 = vadd.f32 %v293, %v318
  %v328 = vadd.f32 %v294, %v320
  %330 = vset.pattern.permute.xlu0 0
  %331 = vperm.xlu0 %330, %v169
  %v332 = vpop.permute.xlu0 %331
  %335 = vset.pattern.permute.xlu0 0
  %336 = vperm.xlu0 %335, %v170
  %v337 = vpop.permute.xlu0 %336
  %v339 = vmul.f32 %v332, %v155
  %v340 = vmul.f32 %v337, %v156
  %v341 = vmul.f32 %v332, %v157
  %v342 = vmul.f32 %v337, %v158
  %347 = vrot.lane.b32.xlu0 %v339, 123
  %v348 = vpop.permute.xlu0 %347
  %349 = vrot.lane.b32.xlu0 %v340, 123
  %v350 = vpop.permute.xlu0 %349
  %351 = vrot.lane.b32.xlu0 %v341, 123
  %v352 = vpop.permute.xlu0 %351
  %353 = vrot.lane.b32.xlu0 %v342, 123
  %v354 = vpop.permute.xlu0 %353
  %v359 = vadd.f32 %v325, %v348
  %v360 = vadd.f32 %v326, %v350
  %v361 = vadd.f32 %v327, %v352
  %v362 = vadd.f32 %v328, %v354
  %364 = vset.pattern.permute.xlu0 0
  %365 = vperm.xlu0 %364, %v171
  %v366 = vpop.permute.xlu0 %365
  %369 = vset.pattern.permute.xlu0 0
  %370 = vperm.xlu0 %369, %v172
  %v371 = vpop.permute.xlu0 %370
  %v373 = vmul.f32 %v366, %v155
  %v374 = vmul.f32 %v371, %v156
  %v375 = vmul.f32 %v366, %v157
  %v376 = vmul.f32 %v371, %v158
  %381 = vrot.lane.b32.xlu0 %v373, 122
  %v382 = vpop.permute.xlu0 %381
  %383 = vrot.lane.b32.xlu0 %v374, 122
  %v384 = vpop.permute.xlu0 %383
  %385 = vrot.lane.b32.xlu0 %v375, 122
  %v386 = vpop.permute.xlu0 %385
  %387 = vrot.lane.b32.xlu0 %v376, 122
  %v388 = vpop.permute.xlu0 %387
  %v393 = vadd.f32 %v359, %v382
  %v394 = vadd.f32 %v360, %v384
  %v395 = vadd.f32 %v361, %v386
  %v396 = vadd.f32 %v362, %v388
  %398 = vset.pattern.permute.xlu0 0
  %399 = vperm.xlu0 %398, %v173
  %v400 = vpop.permute.xlu0 %399
  %403 = vset.pattern.permute.xlu0 0
  %404 = vperm.xlu0 %403, %v174
  %v405 = vpop.permute.xlu0 %404
  %v407 = vmul.f32 %v400, %v155
  %v408 = vmul.f32 %v405, %v156
  %v409 = vmul.f32 %v400, %v157
  %v410 = vmul.f32 %v405, %v158
  %415 = vrot.lane.b32.xlu0 %v407, 121
  %v416 = vpop.permute.xlu0 %415
  %417 = vrot.lane.b32.xlu0 %v408, 121
  %v418 = vpop.permute.xlu0 %417
  %419 = vrot.lane.b32.xlu0 %v409, 121
  %v420 = vpop.permute.xlu0 %419
  %421 = vrot.lane.b32.xlu0 %v410, 121
  %v422 = vpop.permute.xlu0 %421
  %v427 = vadd.f32 %v393, %v416
  %v428 = vadd.f32 %v394, %v418
  %v429 = vadd.f32 %v395, %v420
  %v430 = vadd.f32 %v396, %v422
  %v431 = vld [vmem:[%s5] sm:$0xff]
  %v432 = vld [vmem:[%s5 + $0x8] sm:$0xff]
  %434 = vset.pattern.permute.xlu0 0
  %435 = vperm.xlu0 %434, %v431
  %v436 = vpop.permute.xlu0 %435
  %439 = vset.pattern.permute.xlu0 0
  %440 = vperm.xlu0 %439, %v432
  %v441 = vpop.permute.xlu0 %440
  %v443 = vadd.f32 %v427, %v436
  %v444 = vadd.f32 %v428, %v441
  %v445 = vadd.f32 %v429, %v436
  %v446 = vadd.f32 %v430, %v441
  %vm447 = vcmp.ge.f32.partialorder %v443, 0.0
  %vm448 = vcmp.ge.f32.partialorder %v444, 0.0
  %vm449 = vcmp.ge.f32.partialorder %v445, 0.0
  %vm450 = vcmp.ge.f32.partialorder %v446, 0.0
  %v451 = vmul.f32 %v443, 0.01
  %v452 = vmul.f32 %v444, 0.01
  %v453 = vmul.f32 %v445, 0.01
  %v454 = vmul.f32 %v446, 0.01
  %v455 = vsel %vm447, %v443, %v451
  %v456 = vsel %vm448, %v444, %v452
  %v457 = vsel %vm449, %v445, %v453
  %v458 = vsel %vm450, %v446, %v454
  %vm459 = vcmask 465920
  %v460 = vsel %vm459, %v455, 0.0
  %461 = vadd.xlane.f32.xlu0 %v460
  %v462 = vpop.xlane.xlu0 %461
  %v463 = vsel %vm459, %v456, 0.0
  %464 = vadd.xlane.f32.xlu0 %v463
  %v465 = vpop.xlane.xlu0 %464
  %v466 = vsel %vm459, %v457, 0.0
  %467 = vadd.xlane.f32.xlu0 %v466
  %v468 = vpop.xlane.xlu0 %467
  %v469 = vsel %vm459, %v458, 0.0
  %470 = vadd.xlane.f32.xlu0 %v469
  %v471 = vpop.xlane.xlu0 %470
  %v472 = vadd.f32 %v462, %v468
  %v473 = vadd.f32 %v465, %v471
  %v475 = vrot.slane %v472, 4
  %v477 = vadd.f32 %v472, %v475
  %v478 = vadd.f32 %v477, %v473
  %v480 = vrot.slane %v473, 4
  %v482 = vadd.f32 %v478, %v480
  %v483 = vrcp.pop 456.0
  %v484 = vmul.f32 %v482, %v483
  %v486 = vrot.slane %v484, 4
  %vm488 = vcmask 1043456
  %v489 = vsel %vm488, %v484, %v486
  %491 = vset.pattern.permute.xlu0 0
  %492 = vperm.xlu0 %491, %v489
  %v493 = vpop.permute.xlu0 %492
  %v495 = vsub.f32 %v455, %v493
  %v496 = vsub.f32 %v456, %v493
  %v497 = vsub.f32 %v457, %v493
  %v498 = vsub.f32 %v458, %v493
  %v499 = vmul.f32 %v495, %v495
  %v500 = vmul.f32 %v496, %v496
  %v501 = vmul.f32 %v497, %v497
  %v502 = vmul.f32 %v498, %v498
  %v503 = vsel %vm459, %v499, 0.0
  %504 = vadd.xlane.f32.xlu0 %v503
  %v505 = vpop.xlane.xlu0 %504
  %v506 = vsel %vm459, %v500, 0.0
  %507 = vadd.xlane.f32.xlu0 %v506
  %v508 = vpop.xlane.xlu0 %507
  %v509 = vsel %vm459, %v501, 0.0
  %510 = vadd.xlane.f32.xlu0 %v509
  %v511 = vpop.xlane.xlu0 %510
  %v512 = vsel %vm459, %v502, 0.0
  %513 = vadd.xlane.f32.xlu0 %v512
  %v514 = vpop.xlane.xlu0 %513
  %v515 = vadd.f32 %v505, %v511
  %v516 = vadd.f32 %v508, %v514
  %v518 = vrot.slane %v515, 4
  %v520 = vadd.f32 %v515, %v518
  %v521 = vadd.f32 %v520, %v516
  %v523 = vrot.slane %v516, 4
  %v525 = vadd.f32 %v521, %v523
  %v526 = vmul.f32 %v525, %v483
  %v527 = vld [vmem:[%s7] sm:$0xf]
  %v528 = vadd.f32 %v526, 1e-05
  %v529 = vrsqrt.pop %v528
  %v530 = vmul.f32 %v527, %v529
  %v531 = vld [vmem:[%s9] sm:$0xf]
  %v532 = vmul.f32 %v484, %v530
  %v533 = vsub.f32 %v531, %v532
  %v535 = vrot.slane %v530, 4
  %v537 = vsel %vm488, %v530, %v535
  %539 = vset.pattern.permute.xlu0 0
  %540 = vperm.xlu0 %539, %v537
  %v541 = vpop.permute.xlu0 %540
  %v543 = vmul.f32 %v455, %v541
  %v544 = vmul.f32 %v456, %v541
  %v545 = vmul.f32 %v457, %v541
  %v546 = vmul.f32 %v458, %v541
  %v548 = vrot.slane %v533, 4
  %v550 = vsel %vm488, %v533, %v548
  %552 = vset.pattern.permute.xlu0 0
  %553 = vperm.xlu0 %552, %v550
  %v554 = vpop.permute.xlu0 %553
  %v556 = vadd.f32 %v543, %v554
  %v557 = vadd.f32 %v544, %v554
  %v558 = vadd.f32 %v545, %v554
  %v559 = vadd.f32 %v546, %v554
  %564 = vrot.lane.b32.xlu0 %v556, 7
  %v565 = vpop.permute.xlu0 %564
  %566 = vrot.lane.b32.xlu0 %v557, 7
  %v567 = vpop.permute.xlu0 %566
  %568 = vrot.lane.b32.xlu0 %v558, 7
  %v569 = vpop.permute.xlu0 %568
  %570 = vrot.lane.b32.xlu0 %v559, 7
  %v571 = vpop.permute.xlu0 %570
  %vm576 = vcmask 56320
  %v577 = vsel %vm576, 0.0, %v565
  %v578 = vsel %vm576, 0.0, %v567
  %v579 = vsel %vm576, 0.0, %v569
  %v580 = vsel %vm576, 0.0, %v571
  %vm581 = vcmask 523264
  %v582 = vsel %vm581, %v577, 0.0
  %v583 = vsel %vm581, %v578, 0.0
  %v584 = vsel %vm581, %v579, 0.0
  %v585 = vsel %vm581, %v580, 0.0
  %v586 = vld [vmem:[%s11] sm:$0xff]
  %v587 = vld [vmem:[%s11 + $0x8] sm:$0xff]
  %v588 = vld [vmem:[%s11 + $0x10] sm:$0xff]
  %v589 = vld [vmem:[%s11 + $0x18] sm:$0xff]
  %v590 = vld [vmem:[%s11 + $0x20] sm:$0xff]
  %v591 = vld [vmem:[%s11 + $0x28] sm:$0xff]
  %v592 = vld [vmem:[%s11 + $0x30] sm:$0xff]
  %v593 = vld [vmem:[%s11 + $0x38] sm:$0xff]
  %v594 = vld [vmem:[%s11 + $0x40] sm:$0xff]
  %v595 = vld [vmem:[%s11 + $0x48] sm:$0xff]
  %v596 = vld [vmem:[%s11 + $0x50] sm:$0xff]
  %v597 = vld [vmem:[%s11 + $0x58] sm:$0xff]
  %v598 = vld [vmem:[%s11 + $0x60] sm:$0xff]
  %v599 = vld [vmem:[%s11 + $0x68] sm:$0xff]
  %v600 = vld [vmem:[%s11 + $0x70] sm:$0xff]
  %v601 = vld [vmem:[%s11 + $0x78] sm:$0xff]
  %v602 = vld [vmem:[%s11 + $0x80] sm:$0xff]
  %v603 = vld [vmem:[%s11 + $0x88] sm:$0xff]
  %v604 = vld [vmem:[%s11 + $0x90] sm:$0xff]
  %v605 = vld [vmem:[%s11 + $0x98] sm:$0xff]
  %v606 = vld [vmem:[%s11 + $0xa0] sm:$0xff]
  %v607 = vld [vmem:[%s11 + $0xa8] sm:$0xff]
  %v608 = vld [vmem:[%s11 + $0xb0] sm:$0xff]
  %v609 = vld [vmem:[%s11 + $0xb8] sm:$0xff]
  %v610 = vld [vmem:[%s11 + $0xc0] sm:$0xff]
  %v611 = vld [vmem:[%s11 + $0xc8] sm:$0xff]
  %v612 = vld [vmem:[%s11 + $0xd0] sm:$0xff]
  %v613 = vld [vmem:[%s11 + $0xd8] sm:$0xff]
  %v614 = vld [vmem:[%s11 + $0xe0] sm:$0xff]
  %v615 = vld [vmem:[%s11 + $0xe8] sm:$0xff]
  %617 = vset.pattern.permute.xlu0 0
  %618 = vperm.xlu0 %617, %v586
  %v619 = vpop.permute.xlu0 %618
  %622 = vset.pattern.permute.xlu0 0
  %623 = vperm.xlu0 %622, %v587
  %v624 = vpop.permute.xlu0 %623
  %v626 = vmul.f32 %v619, %v582
  %v627 = vmul.f32 %v624, %v583
  %v628 = vmul.f32 %v619, %v584
  %v629 = vmul.f32 %v624, %v585
  %v630 = vadd.f32 %v626, 0.0
  %v631 = vadd.f32 %v627, 0.0
  %v632 = vadd.f32 %v628, 0.0
  %v633 = vadd.f32 %v629, 0.0
  %635 = vset.pattern.permute.xlu0 0
  %636 = vperm.xlu0 %635, %v588
  %v637 = vpop.permute.xlu0 %636
  %640 = vset.pattern.permute.xlu0 0
  %641 = vperm.xlu0 %640, %v589
  %v642 = vpop.permute.xlu0 %641
  %v644 = vmul.f32 %v637, %v582
  %v645 = vmul.f32 %v642, %v583
  %v646 = vmul.f32 %v637, %v584
  %v647 = vmul.f32 %v642, %v585
  %652 = vrot.lane.b32.xlu0 %v644, 127
  %v653 = vpop.permute.xlu0 %652
  %654 = vrot.lane.b32.xlu0 %v645, 127
  %v655 = vpop.permute.xlu0 %654
  %656 = vrot.lane.b32.xlu0 %v646, 127
  %v657 = vpop.permute.xlu0 %656
  %658 = vrot.lane.b32.xlu0 %v647, 127
  %v659 = vpop.permute.xlu0 %658
  %v664 = vadd.f32 %v630, %v653
  %v665 = vadd.f32 %v631, %v655
  %v666 = vadd.f32 %v632, %v657
  %v667 = vadd.f32 %v633, %v659
  %669 = vset.pattern.permute.xlu0 0
  %670 = vperm.xlu0 %669, %v590
  %v671 = vpop.permute.xlu0 %670
  %674 = vset.pattern.permute.xlu0 0
  %675 = vperm.xlu0 %674, %v591
  %v676 = vpop.permute.xlu0 %675
  %v678 = vmul.f32 %v671, %v582
  %v679 = vmul.f32 %v676, %v583
  %v680 = vmul.f32 %v671, %v584
  %v681 = vmul.f32 %v676, %v585
  %686 = vrot.lane.b32.xlu0 %v678, 126
  %v687 = vpop.permute.xlu0 %686
  %688 = vrot.lane.b32.xlu0 %v679, 126
  %v689 = vpop.permute.xlu0 %688
  %690 = vrot.lane.b32.xlu0 %v680, 126
  %v691 = vpop.permute.xlu0 %690
  %692 = vrot.lane.b32.xlu0 %v681, 126
  %v693 = vpop.permute.xlu0 %692
  %v698 = vadd.f32 %v664, %v687
  %v699 = vadd.f32 %v665, %v689
  %v700 = vadd.f32 %v666, %v691
  %v701 = vadd.f32 %v667, %v693
  %703 = vset.pattern.permute.xlu0 0
  %704 = vperm.xlu0 %703, %v592
  %v705 = vpop.permute.xlu0 %704
  %708 = vset.pattern.permute.xlu0 0
  %709 = vperm.xlu0 %708, %v593
  %v710 = vpop.permute.xlu0 %709
  %v712 = vmul.f32 %v705, %v582
  %v713 = vmul.f32 %v710, %v583
  %v714 = vmul.f32 %v705, %v584
  %v715 = vmul.f32 %v710, %v585
  %720 = vrot.lane.b32.xlu0 %v712, 125
  %v721 = vpop.permute.xlu0 %720
  %722 = vrot.lane.b32.xlu0 %v713, 125
  %v723 = vpop.permute.xlu0 %722
  %724 = vrot.lane.b32.xlu0 %v714, 125
  %v725 = vpop.permute.xlu0 %724
  %726 = vrot.lane.b32.xlu0 %v715, 125
  %v727 = vpop.permute.xlu0 %726
  %v732 = vadd.f32 %v698, %v721
  %v733 = vadd.f32 %v699, %v723
  %v734 = vadd.f32 %v700, %v725
  %v735 = vadd.f32 %v701, %v727
  %737 = vset.pattern.permute.xlu0 0
  %738 = vperm.xlu0 %737, %v594
  %v739 = vpop.permute.xlu0 %738
  %742 = vset.pattern.permute.xlu0 0
  %743 = vperm.xlu0 %742, %v595
  %v744 = vpop.permute.xlu0 %743
  %v746 = vmul.f32 %v739, %v582
  %v747 = vmul.f32 %v744, %v583
  %v748 = vmul.f32 %v739, %v584
  %v749 = vmul.f32 %v744, %v585
  %754 = vrot.lane.b32.xlu0 %v746, 124
  %v755 = vpop.permute.xlu0 %754
  %756 = vrot.lane.b32.xlu0 %v747, 124
  %v757 = vpop.permute.xlu0 %756
  %758 = vrot.lane.b32.xlu0 %v748, 124
  %v759 = vpop.permute.xlu0 %758
  %760 = vrot.lane.b32.xlu0 %v749, 124
  %v761 = vpop.permute.xlu0 %760
  %v766 = vadd.f32 %v732, %v755
  %v767 = vadd.f32 %v733, %v757
  %v768 = vadd.f32 %v734, %v759
  %v769 = vadd.f32 %v735, %v761
  %771 = vset.pattern.permute.xlu0 0
  %772 = vperm.xlu0 %771, %v596
  %v773 = vpop.permute.xlu0 %772
  %776 = vset.pattern.permute.xlu0 0
  %777 = vperm.xlu0 %776, %v597
  %v778 = vpop.permute.xlu0 %777
  %v780 = vmul.f32 %v773, %v582
  %v781 = vmul.f32 %v778, %v583
  %v782 = vmul.f32 %v773, %v584
  %v783 = vmul.f32 %v778, %v585
  %788 = vrot.lane.b32.xlu0 %v780, 123
  %v789 = vpop.permute.xlu0 %788
  %790 = vrot.lane.b32.xlu0 %v781, 123
  %v791 = vpop.permute.xlu0 %790
  %792 = vrot.lane.b32.xlu0 %v782, 123
  %v793 = vpop.permute.xlu0 %792
  %794 = vrot.lane.b32.xlu0 %v783, 123
  %v795 = vpop.permute.xlu0 %794
  %v800 = vadd.f32 %v766, %v789
  %v801 = vadd.f32 %v767, %v791
  %v802 = vadd.f32 %v768, %v793
  %v803 = vadd.f32 %v769, %v795
  %805 = vset.pattern.permute.xlu0 0
  %806 = vperm.xlu0 %805, %v598
  %v807 = vpop.permute.xlu0 %806
  %810 = vset.pattern.permute.xlu0 0
  %811 = vperm.xlu0 %810, %v599
  %v812 = vpop.permute.xlu0 %811
  %v814 = vmul.f32 %v807, %v582
  %v815 = vmul.f32 %v812, %v583
  %v816 = vmul.f32 %v807, %v584
  %v817 = vmul.f32 %v812, %v585
  %822 = vrot.lane.b32.xlu0 %v814, 122
  %v823 = vpop.permute.xlu0 %822
  %824 = vrot.lane.b32.xlu0 %v815, 122
  %v825 = vpop.permute.xlu0 %824
  %826 = vrot.lane.b32.xlu0 %v816, 122
  %v827 = vpop.permute.xlu0 %826
  %828 = vrot.lane.b32.xlu0 %v817, 122
  %v829 = vpop.permute.xlu0 %828
  %v834 = vadd.f32 %v800, %v823
  %v835 = vadd.f32 %v801, %v825
  %v836 = vadd.f32 %v802, %v827
  %v837 = vadd.f32 %v803, %v829
  %839 = vset.pattern.permute.xlu0 0
  %840 = vperm.xlu0 %839, %v600
  %v841 = vpop.permute.xlu0 %840
  %844 = vset.pattern.permute.xlu0 0
  %845 = vperm.xlu0 %844, %v601
  %v846 = vpop.permute.xlu0 %845
  %v848 = vmul.f32 %v841, %v582
  %v849 = vmul.f32 %v846, %v583
  %v850 = vmul.f32 %v841, %v584
  %v851 = vmul.f32 %v846, %v585
  %856 = vrot.lane.b32.xlu0 %v848, 121
  %v857 = vpop.permute.xlu0 %856
  %858 = vrot.lane.b32.xlu0 %v849, 121
  %v859 = vpop.permute.xlu0 %858
  %860 = vrot.lane.b32.xlu0 %v850, 121
  %v861 = vpop.permute.xlu0 %860
  %862 = vrot.lane.b32.xlu0 %v851, 121
  %v863 = vpop.permute.xlu0 %862
  %v868 = vadd.f32 %v834, %v857
  %v869 = vadd.f32 %v835, %v859
  %v870 = vadd.f32 %v836, %v861
  %v871 = vadd.f32 %v837, %v863
  %873 = vset.pattern.permute.xlu0 0
  %874 = vperm.xlu0 %873, %v602
  %v875 = vpop.permute.xlu0 %874
  %878 = vset.pattern.permute.xlu0 0
  %879 = vperm.xlu0 %878, %v603
  %v880 = vpop.permute.xlu0 %879
  %v882 = vmul.f32 %v875, %v582
  %v883 = vmul.f32 %v880, %v583
  %v884 = vmul.f32 %v875, %v584
  %v885 = vmul.f32 %v880, %v585
  %890 = vrot.lane.b32.xlu0 %v882, 120
  %v891 = vpop.permute.xlu0 %890
  %892 = vrot.lane.b32.xlu0 %v883, 120
  %v893 = vpop.permute.xlu0 %892
  %894 = vrot.lane.b32.xlu0 %v884, 120
  %v895 = vpop.permute.xlu0 %894
  %896 = vrot.lane.b32.xlu0 %v885, 120
  %v897 = vpop.permute.xlu0 %896
  %v902 = vadd.f32 %v868, %v891
  %v903 = vadd.f32 %v869, %v893
  %v904 = vadd.f32 %v870, %v895
  %v905 = vadd.f32 %v871, %v897
  %907 = vset.pattern.permute.xlu0 0
  %908 = vperm.xlu0 %907, %v604
  %v909 = vpop.permute.xlu0 %908
  %912 = vset.pattern.permute.xlu0 0
  %913 = vperm.xlu0 %912, %v605
  %v914 = vpop.permute.xlu0 %913
  %v916 = vmul.f32 %v909, %v582
  %v917 = vmul.f32 %v914, %v583
  %v918 = vmul.f32 %v909, %v584
  %v919 = vmul.f32 %v914, %v585
  %924 = vrot.lane.b32.xlu0 %v916, 119
  %v925 = vpop.permute.xlu0 %924
  %926 = vrot.lane.b32.xlu0 %v917, 119
  %v927 = vpop.permute.xlu0 %926
  %928 = vrot.lane.b32.xlu0 %v918, 119
  %v929 = vpop.permute.xlu0 %928
  %930 = vrot.lane.b32.xlu0 %v919, 119
  %v931 = vpop.permute.xlu0 %930
  %v936 = vadd.f32 %v902, %v925
  %v937 = vadd.f32 %v903, %v927
  %v938 = vadd.f32 %v904, %v929
  %v939 = vadd.f32 %v905, %v931
  %941 = vset.pattern.permute.xlu0 0
  %942 = vperm.xlu0 %941, %v606
  %v943 = vpop.permute.xlu0 %942
  %946 = vset.pattern.permute.xlu0 0
  %947 = vperm.xlu0 %946, %v607
  %v948 = vpop.permute.xlu0 %947
  %v950 = vmul.f32 %v943, %v582
  %v951 = vmul.f32 %v948, %v583
  %v952 = vmul.f32 %v943, %v584
  %v953 = vmul.f32 %v948, %v585
  %958 = vrot.lane.b32.xlu0 %v950, 118
  %v959 = vpop.permute.xlu0 %958
  %960 = vrot.lane.b32.xlu0 %v951, 118
  %v961 = vpop.permute.xlu0 %960
  %962 = vrot.lane.b32.xlu0 %v952, 118
  %v963 = vpop.permute.xlu0 %962
  %964 = vrot.lane.b32.xlu0 %v953, 118
  %v965 = vpop.permute.xlu0 %964
  %v970 = vadd.f32 %v936, %v959
  %v971 = vadd.f32 %v937, %v961
  %v972 = vadd.f32 %v938, %v963
  %v973 = vadd.f32 %v939, %v965
  %975 = vset.pattern.permute.xlu0 0
  %976 = vperm.xlu0 %975, %v608
  %v977 = vpop.permute.xlu0 %976
  %980 = vset.pattern.permute.xlu0 0
  %981 = vperm.xlu0 %980, %v609
  %v982 = vpop.permute.xlu0 %981
  %v984 = vmul.f32 %v977, %v582
  %v985 = vmul.f32 %v982, %v583
  %v986 = vmul.f32 %v977, %v584
  %v987 = vmul.f32 %v982, %v585
  %992 = vrot.lane.b32.xlu0 %v984, 117
  %v993 = vpop.permute.xlu0 %992
  %994 = vrot.lane.b32.xlu0 %v985, 117
  %v995 = vpop.permute.xlu0 %994
  %996 = vrot.lane.b32.xlu0 %v986, 117
  %v997 = vpop.permute.xlu0 %996
  %998 = vrot.lane.b32.xlu0 %v987, 117
  %v999 = vpop.permute.xlu0 %998
  %v1004 = vadd.f32 %v970, %v993
  %v1005 = vadd.f32 %v971, %v995
  %v1006 = vadd.f32 %v972, %v997
  %v1007 = vadd.f32 %v973, %v999
  %1009 = vset.pattern.permute.xlu0 0
  %1010 = vperm.xlu0 %1009, %v610
  %v1011 = vpop.permute.xlu0 %1010
  %1014 = vset.pattern.permute.xlu0 0
  %1015 = vperm.xlu0 %1014, %v611
  %v1016 = vpop.permute.xlu0 %1015
  %v1018 = vmul.f32 %v1011, %v582
  %v1019 = vmul.f32 %v1016, %v583
  %v1020 = vmul.f32 %v1011, %v584
  %v1021 = vmul.f32 %v1016, %v585
  %1026 = vrot.lane.b32.xlu0 %v1018, 116
  %v1027 = vpop.permute.xlu0 %1026
  %1028 = vrot.lane.b32.xlu0 %v1019, 116
  %v1029 = vpop.permute.xlu0 %1028
  %1030 = vrot.lane.b32.xlu0 %v1020, 116
  %v1031 = vpop.permute.xlu0 %1030
  %1032 = vrot.lane.b32.xlu0 %v1021, 116
  %v1033 = vpop.permute.xlu0 %1032
  %v1038 = vadd.f32 %v1004, %v1027
  %v1039 = vadd.f32 %v1005, %v1029
  %v1040 = vadd.f32 %v1006, %v1031
  %v1041 = vadd.f32 %v1007, %v1033
  %1043 = vset.pattern.permute.xlu0 0
  %1044 = vperm.xlu0 %1043, %v612
  %v1045 = vpop.permute.xlu0 %1044
  %1048 = vset.pattern.permute.xlu0 0
  %1049 = vperm.xlu0 %1048, %v613
  %v1050 = vpop.permute.xlu0 %1049
  %v1052 = vmul.f32 %v1045, %v582
  %v1053 = vmul.f32 %v1050, %v583
  %v1054 = vmul.f32 %v1045, %v584
  %v1055 = vmul.f32 %v1050, %v585
  %1060 = vrot.lane.b32.xlu0 %v1052, 115
  %v1061 = vpop.permute.xlu0 %1060
  %1062 = vrot.lane.b32.xlu0 %v1053, 115
  %v1063 = vpop.permute.xlu0 %1062
  %1064 = vrot.lane.b32.xlu0 %v1054, 115
  %v1065 = vpop.permute.xlu0 %1064
  %1066 = vrot.lane.b32.xlu0 %v1055, 115
  %v1067 = vpop.permute.xlu0 %1066
  %v1072 = vadd.f32 %v1038, %v1061
  %v1073 = vadd.f32 %v1039, %v1063
  %v1074 = vadd.f32 %v1040, %v1065
  %v1075 = vadd.f32 %v1041, %v1067
  %1077 = vset.pattern.permute.xlu0 0
  %1078 = vperm.xlu0 %1077, %v614
  %v1079 = vpop.permute.xlu0 %1078
  %1082 = vset.pattern.permute.xlu0 0
  %1083 = vperm.xlu0 %1082, %v615
  %v1084 = vpop.permute.xlu0 %1083
  %v1086 = vmul.f32 %v1079, %v582
  %v1087 = vmul.f32 %v1084, %v583
  %v1088 = vmul.f32 %v1079, %v584
  %v1089 = vmul.f32 %v1084, %v585
  %1094 = vrot.lane.b32.xlu0 %v1086, 114
  %v1095 = vpop.permute.xlu0 %1094
  %1096 = vrot.lane.b32.xlu0 %v1087, 114
  %v1097 = vpop.permute.xlu0 %1096
  %1098 = vrot.lane.b32.xlu0 %v1088, 114
  %v1099 = vpop.permute.xlu0 %1098
  %1100 = vrot.lane.b32.xlu0 %v1089, 114
  %v1101 = vpop.permute.xlu0 %1100
  %v1106 = vadd.f32 %v1072, %v1095
  %v1107 = vadd.f32 %v1073, %v1097
  %v1108 = vadd.f32 %v1074, %v1099
  %v1109 = vadd.f32 %v1075, %v1101
  %v1110 = vld [vmem:[%s13] sm:$0xff]
  %v1111 = vld [vmem:[%s13 + $0x8] sm:$0xff]
  %1113 = vset.pattern.permute.xlu0 0
  %1114 = vperm.xlu0 %1113, %v1110
  %v1115 = vpop.permute.xlu0 %1114
  %1118 = vset.pattern.permute.xlu0 0
  %1119 = vperm.xlu0 %1118, %v1111
  %v1120 = vpop.permute.xlu0 %1119
  %v1122 = vadd.f32 %v1106, %v1115
  %v1123 = vadd.f32 %v1107, %v1120
  %v1124 = vadd.f32 %v1108, %v1115
  %v1125 = vadd.f32 %v1109, %v1120
  %1128 = vrot.lane.b32.xlu0 %v1124, 57
  %v1129 = vpop.permute.xlu0 %1128
  %1130 = vrot.lane.b32.xlu0 %v1125, 57
  %v1131 = vpop.permute.xlu0 %1130
  %v1134 = vsel %vm459, %v1122, %v1129
  %v1135 = vsel %vm459, %v1123, %v1131
  %v1136 = vld [vmem:[%s15] sm:$0xf]
  %v1137 = vld [vmem:[%s15 + $0x4] sm:$0xf]
  %v1138 = vld [vmem:[%s15 + $0x8] sm:$0xf]
  %v1139 = vld [vmem:[%s15 + $0xc] sm:$0xf]
  %v1140 = vld [vmem:[%s15 + $0x10] sm:$0xf]
  %v1141 = vld [vmem:[%s15 + $0x14] sm:$0xf]
  %v1142 = vld [vmem:[%s15 + $0x18] sm:$0xf]
  %v1143 = vld [vmem:[%s15 + $0x1c] sm:$0xf]
  %v1144 = vld [vmem:[%s15 + $0x20] sm:$0xf]
  %v1145 = vld [vmem:[%s15 + $0x24] sm:$0xf]
  %v1146 = vld [vmem:[%s15 + $0x28] sm:$0xf]
  %v1147 = vld [vmem:[%s15 + $0x2c] sm:$0xf]
  %v1148 = vld [vmem:[%s15 + $0x30] sm:$0xf]
  %v1149 = vld [vmem:[%s15 + $0x34] sm:$0xf]
  %v1150 = vld [vmem:[%s15 + $0x38] sm:$0xf]
  %v1151 = vld [vmem:[%s15 + $0x3c] sm:$0xf]
  %v1152 = vpack.c.bf16 %v1135, %v1134
  %v1153 = vld [vmem:[%s17] sm:$0xff]
  %v1154 = vld [vmem:[%s17 + $0x8] sm:$0xff]
  %v1155 = vld [vmem:[%s17 + $0x10] sm:$0xff]
  %v1156 = vld [vmem:[%s17 + $0x18] sm:$0xff]
  %v1157 = vld [vmem:[%s17 + $0x20] sm:$0xff]
  %v1158 = vld [vmem:[%s17 + $0x28] sm:$0xff]
  %v1159 = vld [vmem:[%s17 + $0x30] sm:$0xff]
  %v1160 = vld [vmem:[%s17 + $0x38] sm:$0xff]
  %v1161 = vld [vmem:[%s17 + $0x40] sm:$0xff]
  %v1162 = vld [vmem:[%s17 + $0x48] sm:$0xff]
  %v1163 = vld [vmem:[%s17 + $0x50] sm:$0xff]
  %v1164 = vld [vmem:[%s17 + $0x58] sm:$0xff]
  %v1165 = vld [vmem:[%s17 + $0x60] sm:$0xff]
  %v1166 = vld [vmem:[%s17 + $0x68] sm:$0xff]
  %v1167 = vld [vmem:[%s17 + $0x70] sm:$0xff]
  %v1168 = vld [vmem:[%s17 + $0x78] sm:$0xff]
  %1170 = vset.pattern.permute.xlu0 0
  %1171 = vperm.xlu0 %1170, %v1153
  %v1172 = vpop.permute.xlu0 %1171
  %1175 = vset.pattern.permute.xlu0 0
  %1176 = vperm.xlu0 %1175, %v1154
  %v1177 = vpop.permute.xlu0 %1176
  %1180 = vset.pattern.permute.xlu0 0
  %1181 = vperm.xlu0 %1180, %v1155
  %v1182 = vpop.permute.xlu0 %1181
  %1185 = vset.pattern.permute.xlu0 0
  %1186 = vperm.xlu0 %1185, %v1156
  %v1187 = vpop.permute.xlu0 %1186
  %1190 = vset.pattern.permute.xlu0 0
  %1191 = vperm.xlu0 %1190, %v1157
  %v1192 = vpop.permute.xlu0 %1191
  %1195 = vset.pattern.permute.xlu0 0
  %1196 = vperm.xlu0 %1195, %v1158
  %v1197 = vpop.permute.xlu0 %1196
  %1200 = vset.pattern.permute.xlu0 0
  %1201 = vperm.xlu0 %1200, %v1159
  %v1202 = vpop.permute.xlu0 %1201
  %1205 = vset.pattern.permute.xlu0 0
  %1206 = vperm.xlu0 %1205, %v1160
  %v1207 = vpop.permute.xlu0 %1206
  %1210 = vset.pattern.permute.xlu0 0
  %1211 = vperm.xlu0 %1210, %v1161
  %v1212 = vpop.permute.xlu0 %1211
  %1215 = vset.pattern.permute.xlu0 0
  %1216 = vperm.xlu0 %1215, %v1162
  %v1217 = vpop.permute.xlu0 %1216
  %1220 = vset.pattern.permute.xlu0 0
  %1221 = vperm.xlu0 %1220, %v1163
  %v1222 = vpop.permute.xlu0 %1221
  %1225 = vset.pattern.permute.xlu0 0
  %1226 = vperm.xlu0 %1225, %v1164
  %v1227 = vpop.permute.xlu0 %1226
  %1230 = vset.pattern.permute.xlu0 0
  %1231 = vperm.xlu0 %1230, %v1165
  %v1232 = vpop.permute.xlu0 %1231
  %1235 = vset.pattern.permute.xlu0 0
  %1236 = vperm.xlu0 %1235, %v1166
  %v1237 = vpop.permute.xlu0 %1236
  %1240 = vset.pattern.permute.xlu0 0
  %1241 = vperm.xlu0 %1240, %v1167
  %v1242 = vpop.permute.xlu0 %1241
  %1245 = vset.pattern.permute.xlu0 0
  %1246 = vperm.xlu0 %1245, %v1168
  %v1247 = vpop.permute.xlu0 %1246
  %v1265 = vunpack.c.l.b16 %v1136
  %v1266 = vunpack.c.l.b16 %v1137
  %v1267 = vunpack.c.l.b16 %v1138
  %v1268 = vunpack.c.l.b16 %v1139
  %v1269 = vunpack.c.l.b16 %v1140
  %v1270 = vunpack.c.l.b16 %v1141
  %v1271 = vunpack.c.l.b16 %v1142
  %v1272 = vunpack.c.l.b16 %v1143
  %v1273 = vunpack.c.l.b16 %v1144
  %v1274 = vunpack.c.l.b16 %v1145
  %v1275 = vunpack.c.l.b16 %v1146
  %v1276 = vunpack.c.l.b16 %v1147
  %v1277 = vunpack.c.l.b16 %v1148
  %v1278 = vunpack.c.l.b16 %v1149
  %v1279 = vunpack.c.l.b16 %v1150
  %v1280 = vunpack.c.l.b16 %v1151
  %v1281 = vpack.c.b16 %v1266, %v1265
  %v1282 = vpack.c.b16 %v1268, %v1267
  %v1283 = vpack.c.b16 %v1270, %v1269
  %v1284 = vpack.c.b16 %v1272, %v1271
  %v1285 = vpack.c.b16 %v1274, %v1273
  %v1286 = vpack.c.b16 %v1276, %v1275
  %v1287 = vpack.c.b16 %v1278, %v1277
  %v1288 = vpack.c.b16 %v1280, %v1279
  %vm1289 = vcmask 130048
  %v1291 = vsel %vm1289, %v1281, 0
  %v1294 = vsel %vm1289, %v1282, 0
  %v1297 = vsel %vm1289, %v1283, 0
  %v1300 = vsel %vm1289, %v1284, 0
  %v1303 = vsel %vm1289, %v1285, 0
  %v1306 = vsel %vm1289, %v1286, 0
  %v1309 = vsel %vm1289, %v1287, 0
  %v1312 = vsel %vm1289, %v1288, 0
  %1314 = vmatprep.subr.bf16.mxu0 0
  %1315 = vmatpush1.bf16.msra.mxu0 %v1152
  %1316 = vmatprep.subr.bf16.mxu0 0
  %1317 = vmatpush1.bf16.msra.mxu0 0
  %1318 = vmatprep.subr.bf16.mxu0 0
  %1319 = vmatpush1.bf16.msra.mxu0 0
  %1320 = vmatprep.subr.bf16.mxu0 0
  %1321 = vmatpush1.bf16.msra.mxu0 0
  %1322 = vmatprep.subr.bf16.mxu0 0
  %1323 = vmatpush1.bf16.msra.mxu0 0
  %1324 = vmatprep.subr.bf16.mxu0 0
  %1325 = vmatpush1.bf16.msra.mxu0 0
  %1326 = vmatprep.subr.bf16.mxu0 0
  %1327 = vmatpush1.bf16.msra.mxu0 0
  %1328 = vmatprep.subr.bf16.mxu0 0
  %1329 = vmatpush1.bf16.msra.mxu0 0
  %1330 = vmatprep.subr.bf16.mxu0 0
  %1331 = vmatpush1.bf16.msra.mxu0 0
  %1332 = vmatprep.subr.bf16.mxu0 0
  %1333 = vmatpush1.bf16.msra.mxu0 0
  %1334 = vmatprep.subr.bf16.mxu0 0
  %1335 = vmatpush1.bf16.msra.mxu0 0
  %1336 = vmatprep.subr.bf16.mxu0 0
  %1337 = vmatpush1.bf16.msra.mxu0 0
  %1338 = vmatprep.subr.bf16.mxu0 0
  %1339 = vmatpush1.bf16.msra.mxu0 0
  %1340 = vmatprep.subr.bf16.mxu0 0
  %1341 = vmatpush1.bf16.msra.mxu0 0
  %1342 = vmatprep.subr.bf16.mxu0 0
  %1343 = vmatpush1.bf16.msra.mxu0 0
  %1344 = vmatprep.subr.bf16.mxu0 0
  %1345 = vmatpush1.bf16.msra.mxu0 0
  %1346 = vmatprep.mubr.bf16.mxu0 0
  %1347 = vmatmul.mubr.bf16.gmra.mrb[0].mxu0 %v1291
  %v1348 = vpop.f32.mrb[0].mxu0
  %v1349 = vadd.f32 %v1172, %v1348
  %v1350 = vpop.f32.mrb[0].mxu0
  %v1351 = vpop.f32.mrb[0].mxu0
  %v1352 = vadd.f32 %v1177, %v1351
  %v1353 = vpop.f32.mrb[0].mxu0
  %1354 = vmatprep.mubr.bf16.mxu0 0
  %1355 = vmatmul.mubr.bf16.gmra.mrb[0].mxu0 %v1294
  %v1356 = vpop.f32.mrb[0].mxu0
  %v1357 = vadd.f32 %v1182, %v1356
  %v1358 = vpop.f32.mrb[0].mxu0
  %v1359 = vpop.f32.mrb[0].mxu0
  %v1360 = vadd.f32 %v1187, %v1359
  %v1361 = vpop.f32.mrb[0].mxu0
  %1362 = vmatprep.mubr.bf16.mxu0 0
  %1363 = vmatmul.mubr.bf16.gmra.mrb[0].mxu0 %v1297
  %v1364 = vpop.f32.mrb[0].mxu0
  %v1365 = vadd.f32 %v1192, %v1364
  %v1366 = vpop.f32.mrb[0].mxu0
  %v1367 = vpop.f32.mrb[0].mxu0
  %v1368 = vadd.f32 %v1197, %v1367
  %v1369 = vpop.f32.mrb[0].mxu0
  %1370 = vmatprep.mubr.bf16.mxu0 0
  %1371 = vmatmul.mubr.bf16.gmra.mrb[0].mxu0 %v1300
  %v1372 = vpop.f32.mrb[0].mxu0
  %v1373 = vadd.f32 %v1202, %v1372
  %v1374 = vpop.f32.mrb[0].mxu0
  %v1375 = vpop.f32.mrb[0].mxu0
  %v1376 = vadd.f32 %v1207, %v1375
  %v1377 = vpop.f32.mrb[0].mxu0
  %1378 = vmatprep.mubr.bf16.mxu0 0
  %1379 = vmatmul.mubr.bf16.gmra.mrb[0].mxu0 %v1303
  %v1380 = vpop.f32.mrb[0].mxu0
  %v1381 = vadd.f32 %v1212, %v1380
  %v1382 = vpop.f32.mrb[0].mxu0
  %v1383 = vpop.f32.mrb[0].mxu0
  %v1384 = vadd.f32 %v1217, %v1383
  %v1385 = vpop.f32.mrb[0].mxu0
  %1386 = vmatprep.mubr.bf16.mxu0 0
  %1387 = vmatmul.mubr.bf16.gmra.mrb[0].mxu0 %v1306
  %v1388 = vpop.f32.mrb[0].mxu0
  %v1389 = vadd.f32 %v1222, %v1388
  %v1390 = vpop.f32.mrb[0].mxu0
  %v1391 = vpop.f32.mrb[0].mxu0
  %v1392 = vadd.f32 %v1227, %v1391
  %v1393 = vpop.f32.mrb[0].mxu0
  %1394 = vmatprep.mubr.bf16.mxu0 0
  %1395 = vmatmul.mubr.bf16.gmra.mrb[0].mxu0 %v1309
  %v1396 = vpop.f32.mrb[0].mxu0
  %v1397 = vadd.f32 %v1232, %v1396
  %v1398 = vpop.f32.mrb[0].mxu0
  %v1399 = vpop.f32.mrb[0].mxu0
  %v1400 = vadd.f32 %v1237, %v1399
  %v1401 = vpop.f32.mrb[0].mxu0
  %1402 = vmatprep.mubr.bf16.mxu0 0
  %1403 = vmatmul.mubr.bf16.gmra.mrb[0].mxu0 %v1312
  %v1404 = vpop.f32.mrb[0].mxu0
  %v1405 = vadd.f32 %v1242, %v1404
  %v1406 = vpop.f32.mrb[0].mxu0
  %v1407 = vpop.f32.mrb[0].mxu0
  %v1408 = vadd.f32 %v1247, %v1407
  %v1409 = vpop.f32.mrb[0].mxu0
  %1410 = vdwg.mxu0
  %vm1411 = vcmp.ge.f32.partialorder %v1349, 0.0
  %vm1412 = vcmp.ge.f32.partialorder %v1352, 0.0
  %vm1413 = vcmp.ge.f32.partialorder %v1357, 0.0
  %vm1414 = vcmp.ge.f32.partialorder %v1360, 0.0
  %vm1415 = vcmp.ge.f32.partialorder %v1365, 0.0
  %vm1416 = vcmp.ge.f32.partialorder %v1368, 0.0
  %vm1417 = vcmp.ge.f32.partialorder %v1373, 0.0
  %vm1418 = vcmp.ge.f32.partialorder %v1376, 0.0
  %vm1419 = vcmp.ge.f32.partialorder %v1381, 0.0
  %vm1420 = vcmp.ge.f32.partialorder %v1384, 0.0
  %vm1421 = vcmp.ge.f32.partialorder %v1389, 0.0
  %vm1422 = vcmp.ge.f32.partialorder %v1392, 0.0
  %vm1423 = vcmp.ge.f32.partialorder %v1397, 0.0
  %vm1424 = vcmp.ge.f32.partialorder %v1400, 0.0
  %vm1425 = vcmp.ge.f32.partialorder %v1405, 0.0
  %vm1426 = vcmp.ge.f32.partialorder %v1408, 0.0
  %v1427 = vmul.f32 %v1349, 0.01
  %v1428 = vmul.f32 %v1352, 0.01
  %v1429 = vmul.f32 %v1357, 0.01
  %v1430 = vmul.f32 %v1360, 0.01
  %v1431 = vmul.f32 %v1365, 0.01
  %v1432 = vmul.f32 %v1368, 0.01
  %v1433 = vmul.f32 %v1373, 0.01
  %v1434 = vmul.f32 %v1376, 0.01
  %v1435 = vmul.f32 %v1381, 0.01
  %v1436 = vmul.f32 %v1384, 0.01
  %v1437 = vmul.f32 %v1389, 0.01
  %v1438 = vmul.f32 %v1392, 0.01
  %v1439 = vmul.f32 %v1397, 0.01
  %v1440 = vmul.f32 %v1400, 0.01
  %v1441 = vmul.f32 %v1405, 0.01
  %v1442 = vmul.f32 %v1408, 0.01
  %v1443 = vsel %vm1411, %v1349, %v1427
  %v1444 = vsel %vm1412, %v1352, %v1428
  %v1445 = vsel %vm1413, %v1357, %v1429
  %v1446 = vsel %vm1414, %v1360, %v1430
  %v1447 = vsel %vm1415, %v1365, %v1431
  %v1448 = vsel %vm1416, %v1368, %v1432
  %v1449 = vsel %vm1417, %v1373, %v1433
  %v1450 = vsel %vm1418, %v1376, %v1434
  %v1451 = vsel %vm1419, %v1381, %v1435
  %v1452 = vsel %vm1420, %v1384, %v1436
  %v1453 = vsel %vm1421, %v1389, %v1437
  %v1454 = vsel %vm1422, %v1392, %v1438
  %v1455 = vsel %vm1423, %v1397, %v1439
  %v1456 = vsel %vm1424, %v1400, %v1440
  %v1457 = vsel %vm1425, %v1405, %v1441
  %v1458 = vsel %vm1426, %v1408, %v1442
  %vm1459 = vcmask 932864
  %v1460 = vsel %vm1459, %v1443, 0.0
  %1461 = vadd.xlane.f32.xlu0 %v1460
  %v1462 = vpop.xlane.xlu0 %1461
  %v1463 = vsel %vm1459, %v1444, 0.0
  %1464 = vadd.xlane.f32.xlu0 %v1463
  %v1465 = vpop.xlane.xlu0 %1464
  %v1466 = vsel %vm1459, %v1445, 0.0
  %1467 = vadd.xlane.f32.xlu0 %v1466
  %v1468 = vpop.xlane.xlu0 %1467
  %v1469 = vsel %vm1459, %v1446, 0.0
  %1470 = vadd.xlane.f32.xlu0 %v1469
  %v1471 = vpop.xlane.xlu0 %1470
  %v1472 = vsel %vm1459, %v1447, 0.0
  %1473 = vadd.xlane.f32.xlu0 %v1472
  %v1474 = vpop.xlane.xlu0 %1473
  %v1475 = vsel %vm1459, %v1448, 0.0
  %1476 = vadd.xlane.f32.xlu0 %v1475
  %v1477 = vpop.xlane.xlu0 %1476
  %v1478 = vsel %vm1459, %v1449, 0.0
  %1479 = vadd.xlane.f32.xlu0 %v1478
  %v1480 = vpop.xlane.xlu0 %1479
  %v1481 = vsel %vm1459, %v1450, 0.0
  %1482 = vadd.xlane.f32.xlu0 %v1481
  %v1483 = vpop.xlane.xlu0 %1482
  %v1484 = vsel %vm1459, %v1451, 0.0
  %1485 = vadd.xlane.f32.xlu0 %v1484
  %v1486 = vpop.xlane.xlu0 %1485
  %v1487 = vsel %vm1459, %v1452, 0.0
  %1488 = vadd.xlane.f32.xlu0 %v1487
  %v1489 = vpop.xlane.xlu0 %1488
  %v1490 = vsel %vm1459, %v1453, 0.0
  %1491 = vadd.xlane.f32.xlu0 %v1490
  %v1492 = vpop.xlane.xlu0 %1491
  %v1493 = vsel %vm1459, %v1454, 0.0
  %1494 = vadd.xlane.f32.xlu0 %v1493
  %v1495 = vpop.xlane.xlu0 %1494
  %v1496 = vsel %vm1459, %v1455, 0.0
  %1497 = vadd.xlane.f32.xlu0 %v1496
  %v1498 = vpop.xlane.xlu0 %1497
  %v1499 = vsel %vm1459, %v1456, 0.0
  %1500 = vadd.xlane.f32.xlu0 %v1499
  %v1501 = vpop.xlane.xlu0 %1500
  %v1502 = vsel %vm1459, %v1457, 0.0
  %1503 = vadd.xlane.f32.xlu0 %v1502
  %v1504 = vpop.xlane.xlu0 %1503
  %v1505 = vsel %vm1459, %v1458, 0.0
  %1506 = vadd.xlane.f32.xlu0 %v1505
  %v1507 = vpop.xlane.xlu0 %1506
  %v1508 = vadd.f32 %v1462, %v1474
  %v1509 = vadd.f32 %v1465, %v1477
  %v1510 = vadd.f32 %v1468, %v1480
  %v1511 = vadd.f32 %v1471, %v1483
  %v1512 = vadd.f32 %v1508, %v1486
  %v1513 = vadd.f32 %v1509, %v1489
  %v1514 = vadd.f32 %v1510, %v1492
  %v1515 = vadd.f32 %v1511, %v1495
  %v1516 = vadd.f32 %v1512, %v1498
  %v1517 = vadd.f32 %v1513, %v1501
  %v1518 = vadd.f32 %v1514, %v1504
  %v1519 = vadd.f32 %v1515, %v1507
  %v1520 = vmul.f32 %v1516, %v483
  %v1521 = vmul.f32 %v1517, %v483
  %v1522 = vmul.f32 %v1518, %v483
  %v1523 = vmul.f32 %v1519, %v483
  %1525 = vset.pattern.permute.xlu0 0
  %1526 = vperm.xlu0 %1525, %v1520
  %v1527 = vpop.permute.xlu0 %1526
  %1530 = vset.pattern.permute.xlu0 0
  %1531 = vperm.xlu0 %1530, %v1521
  %v1532 = vpop.permute.xlu0 %1531
  %1535 = vset.pattern.permute.xlu0 0
  %1536 = vperm.xlu0 %1535, %v1522
  %v1537 = vpop.permute.xlu0 %1536
  %1540 = vset.pattern.permute.xlu0 0
  %1541 = vperm.xlu0 %1540, %v1523
  %v1542 = vpop.permute.xlu0 %1541
  %v1544 = vsub.f32 %v1443, %v1527
  %v1545 = vsub.f32 %v1444, %v1532
  %v1546 = vsub.f32 %v1445, %v1537
  %v1547 = vsub.f32 %v1446, %v1542
  %v1548 = vsub.f32 %v1447, %v1527
  %v1549 = vsub.f32 %v1448, %v1532
  %v1550 = vsub.f32 %v1449, %v1537
  %v1551 = vsub.f32 %v1450, %v1542
  %v1552 = vsub.f32 %v1451, %v1527
  %v1553 = vsub.f32 %v1452, %v1532
  %v1554 = vsub.f32 %v1453, %v1537
  %v1555 = vsub.f32 %v1454, %v1542
  %v1556 = vsub.f32 %v1455, %v1527
  %v1557 = vsub.f32 %v1456, %v1532
  %v1558 = vsub.f32 %v1457, %v1537
  %v1559 = vsub.f32 %v1458, %v1542
  %v1560 = vmul.f32 %v1544, %v1544
  %v1561 = vmul.f32 %v1545, %v1545
  %v1562 = vmul.f32 %v1546, %v1546
  %v1563 = vmul.f32 %v1547, %v1547
  %v1564 = vmul.f32 %v1548, %v1548
  %v1565 = vmul.f32 %v1549, %v1549
  %v1566 = vmul.f32 %v1550, %v1550
  %v1567 = vmul.f32 %v1551, %v1551
  %v1568 = vmul.f32 %v1552, %v1552
  %v1569 = vmul.f32 %v1553, %v1553
  %v1570 = vmul.f32 %v1554, %v1554
  %v1571 = vmul.f32 %v1555, %v1555
  %v1572 = vmul.f32 %v1556, %v1556
  %v1573 = vmul.f32 %v1557, %v1557
  %v1574 = vmul.f32 %v1558, %v1558
  %v1575 = vmul.f32 %v1559, %v1559
  %v1576 = vsel %vm1459, %v1560, 0.0
  %1577 = vadd.xlane.f32.xlu0 %v1576
  %v1578 = vpop.xlane.xlu0 %1577
  %v1579 = vsel %vm1459, %v1561, 0.0
  %1580 = vadd.xlane.f32.xlu0 %v1579
  %v1581 = vpop.xlane.xlu0 %1580
  %v1582 = vsel %vm1459, %v1562, 0.0
  %1583 = vadd.xlane.f32.xlu0 %v1582
  %v1584 = vpop.xlane.xlu0 %1583
  %v1585 = vsel %vm1459, %v1563, 0.0
  %1586 = vadd.xlane.f32.xlu0 %v1585
  %v1587 = vpop.xlane.xlu0 %1586
  %v1588 = vsel %vm1459, %v1564, 0.0
  %1589 = vadd.xlane.f32.xlu0 %v1588
  %v1590 = vpop.xlane.xlu0 %1589
  %v1591 = vsel %vm1459, %v1565, 0.0
  %1592 = vadd.xlane.f32.xlu0 %v1591
  %v1593 = vpop.xlane.xlu0 %1592
  %v1594 = vsel %vm1459, %v1566, 0.0
  %1595 = vadd.xlane.f32.xlu0 %v1594
  %v1596 = vpop.xlane.xlu0 %1595
  %v1597 = vsel %vm1459, %v1567, 0.0
  %1598 = vadd.xlane.f32.xlu0 %v1597
  %v1599 = vpop.xlane.xlu0 %1598
  %v1600 = vsel %vm1459, %v1568, 0.0
  %1601 = vadd.xlane.f32.xlu0 %v1600
  %v1602 = vpop.xlane.xlu0 %1601
  %v1603 = vsel %vm1459, %v1569, 0.0
  %1604 = vadd.xlane.f32.xlu0 %v1603
  %v1605 = vpop.xlane.xlu0 %1604
  %v1606 = vsel %vm1459, %v1570, 0.0
  %1607 = vadd.xlane.f32.xlu0 %v1606
  %v1608 = vpop.xlane.xlu0 %1607
  %v1609 = vsel %vm1459, %v1571, 0.0
  %1610 = vadd.xlane.f32.xlu0 %v1609
  %v1611 = vpop.xlane.xlu0 %1610
  %v1612 = vsel %vm1459, %v1572, 0.0
  %1613 = vadd.xlane.f32.xlu0 %v1612
  %v1614 = vpop.xlane.xlu0 %1613
  %v1615 = vsel %vm1459, %v1573, 0.0
  %1616 = vadd.xlane.f32.xlu0 %v1615
  %v1617 = vpop.xlane.xlu0 %1616
  %v1618 = vsel %vm1459, %v1574, 0.0
  %1619 = vadd.xlane.f32.xlu0 %v1618
  %v1620 = vpop.xlane.xlu0 %1619
  %v1621 = vsel %vm1459, %v1575, 0.0
  %1622 = vadd.xlane.f32.xlu0 %v1621
  %v1623 = vpop.xlane.xlu0 %1622
  %v1624 = vadd.f32 %v1578, %v1590
  %v1625 = vadd.f32 %v1581, %v1593
  %v1626 = vadd.f32 %v1584, %v1596
  %v1627 = vadd.f32 %v1587, %v1599
  %v1628 = vadd.f32 %v1624, %v1602
  %v1629 = vadd.f32 %v1625, %v1605
  %v1630 = vadd.f32 %v1626, %v1608
  %v1631 = vadd.f32 %v1627, %v1611
  %v1632 = vadd.f32 %v1628, %v1614
  %v1633 = vadd.f32 %v1629, %v1617
  %v1634 = vadd.f32 %v1630, %v1620
  %v1635 = vadd.f32 %v1631, %v1623
  %v1636 = vmul.f32 %v1632, %v483
  %v1637 = vmul.f32 %v1633, %v483
  %v1638 = vmul.f32 %v1634, %v483
  %v1639 = vmul.f32 %v1635, %v483
  %v1640 = vld [vmem:[%s19] sm:$0xff]
  %v1641 = vld [vmem:[%s19 + $0x8] sm:$0xff]
  %v1642 = vld [vmem:[%s19 + $0x10] sm:$0xff]
  %v1643 = vld [vmem:[%s19 + $0x18] sm:$0xff]
  %v1644 = vadd.f32 %v1636, 1e-05
  %v1645 = vadd.f32 %v1637, 1e-05
  %v1646 = vadd.f32 %v1638, 1e-05
  %v1647 = vadd.f32 %v1639, 1e-05
  %v1648 = vrsqrt.pop %v1644
  %v1649 = vrsqrt.pop %v1645
  %v1650 = vrsqrt.pop %v1646
  %v1651 = vrsqrt.pop %v1647
  %v1652 = vmul.f32 %v1640, %v1648
  %v1653 = vmul.f32 %v1641, %v1649
  %v1654 = vmul.f32 %v1642, %v1650
  %v1655 = vmul.f32 %v1643, %v1651
  %v1656 = vld [vmem:[%s21] sm:$0xff]
  %v1657 = vld [vmem:[%s21 + $0x8] sm:$0xff]
  %v1658 = vld [vmem:[%s21 + $0x10] sm:$0xff]
  %v1659 = vld [vmem:[%s21 + $0x18] sm:$0xff]
  %v1660 = vmul.f32 %v1520, %v1652
  %v1661 = vmul.f32 %v1521, %v1653
  %v1662 = vmul.f32 %v1522, %v1654
  %v1663 = vmul.f32 %v1523, %v1655
  %v1664 = vsub.f32 %v1656, %v1660
  %v1665 = vsub.f32 %v1657, %v1661
  %v1666 = vsub.f32 %v1658, %v1662
  %v1667 = vsub.f32 %v1659, %v1663
  %1669 = vset.pattern.permute.xlu0 0
  %1670 = vperm.xlu0 %1669, %v1652
  %v1671 = vpop.permute.xlu0 %1670
  %1674 = vset.pattern.permute.xlu0 0
  %1675 = vperm.xlu0 %1674, %v1653
  %v1676 = vpop.permute.xlu0 %1675
  %1679 = vset.pattern.permute.xlu0 0
  %1680 = vperm.xlu0 %1679, %v1654
  %v1681 = vpop.permute.xlu0 %1680
  %1684 = vset.pattern.permute.xlu0 0
  %1685 = vperm.xlu0 %1684, %v1655
  %v1686 = vpop.permute.xlu0 %1685
  %v1688 = vmul.f32 %v1443, %v1671
  %v1689 = vmul.f32 %v1444, %v1676
  %v1690 = vmul.f32 %v1445, %v1681
  %v1691 = vmul.f32 %v1446, %v1686
  %v1692 = vmul.f32 %v1447, %v1671
  %v1693 = vmul.f32 %v1448, %v1676
  %v1694 = vmul.f32 %v1449, %v1681
  %v1695 = vmul.f32 %v1450, %v1686
  %v1696 = vmul.f32 %v1451, %v1671
  %v1697 = vmul.f32 %v1452, %v1676
  %v1698 = vmul.f32 %v1453, %v1681
  %v1699 = vmul.f32 %v1454, %v1686
  %v1700 = vmul.f32 %v1455, %v1671
  %v1701 = vmul.f32 %v1456, %v1676
  %v1702 = vmul.f32 %v1457, %v1681
  %v1703 = vmul.f32 %v1458, %v1686
  %1705 = vset.pattern.permute.xlu0 0
  %1706 = vperm.xlu0 %1705, %v1664
  %v1707 = vpop.permute.xlu0 %1706
  %1710 = vset.pattern.permute.xlu0 0
  %1711 = vperm.xlu0 %1710, %v1665
  %v1712 = vpop.permute.xlu0 %1711
  %1715 = vset.pattern.permute.xlu0 0
  %1716 = vperm.xlu0 %1715, %v1666
  %v1717 = vpop.permute.xlu0 %1716
  %1720 = vset.pattern.permute.xlu0 0
  %1721 = vperm.xlu0 %1720, %v1667
  %v1722 = vpop.permute.xlu0 %1721
  %v1724 = vadd.f32 %v1688, %v1707
  %v1725 = vadd.f32 %v1689, %v1712
  %v1726 = vadd.f32 %v1690, %v1717
  %v1727 = vadd.f32 %v1691, %v1722
  %v1728 = vadd.f32 %v1692, %v1707
  %v1729 = vadd.f32 %v1693, %v1712
  %v1730 = vadd.f32 %v1694, %v1717
  %v1731 = vadd.f32 %v1695, %v1722
  %v1732 = vadd.f32 %v1696, %v1707
  %v1733 = vadd.f32 %v1697, %v1712
  %v1734 = vadd.f32 %v1698, %v1717
  %v1735 = vadd.f32 %v1699, %v1722
  %v1736 = vadd.f32 %v1700, %v1707
  %v1737 = vadd.f32 %v1701, %v1712
  %v1738 = vadd.f32 %v1702, %v1717
  %v1739 = vadd.f32 %v1703, %v1722
  %v1740 = vld [vmem:[%s23] sm:$0xf]
  %v1741 = vld [vmem:[%s23 + $0x4] sm:$0xf]
  %v1742 = vld [vmem:[%s23 + $0x8] sm:$0xf]
  %v1743 = vld [vmem:[%s23 + $0xc] sm:$0xf]
  %v1744 = vpack.c.bf16 %v1725, %v1724
  %v1745 = vpack.c.bf16 %v1727, %v1726
  %v1746 = vpack.c.bf16 %v1729, %v1728
  %v1747 = vpack.c.bf16 %v1731, %v1730
  %v1748 = vpack.c.bf16 %v1733, %v1732
  %v1749 = vpack.c.bf16 %v1735, %v1734
  %v1750 = vpack.c.bf16 %v1737, %v1736
  %v1751 = vpack.c.bf16 %v1739, %v1738
  %v1752 = vld [vmem:[%s25] sm:$0xff]
  %v1753 = vld [vmem:[%s25 + $0x8] sm:$0xff]
  %v1754 = vld [vmem:[%s25 + $0x10] sm:$0xff]
  %v1755 = vld [vmem:[%s25 + $0x18] sm:$0xff]
  %1757 = vset.pattern.permute.xlu0 0
  %1758 = vperm.xlu0 %1757, %v1752
  %v1759 = vpop.permute.xlu0 %1758
  %1762 = vset.pattern.permute.xlu0 0
  %1763 = vperm.xlu0 %1762, %v1753
  %v1764 = vpop.permute.xlu0 %1763
  %1767 = vset.pattern.permute.xlu0 0
  %1768 = vperm.xlu0 %1767, %v1754
  %v1769 = vpop.permute.xlu0 %1768
  %1772 = vset.pattern.permute.xlu0 0
  %1773 = vperm.xlu0 %1772, %v1755
  %v1774 = vpop.permute.xlu0 %1773
  %v1780 = vunpack.c.l.b16 %v1740
  %v1781 = vunpack.c.l.b16 %v1741
  %v1782 = vunpack.c.l.b16 %v1742
  %v1783 = vunpack.c.l.b16 %v1743
  %v1784 = vpack.c.b16 %v1781, %v1780
  %v1785 = vpack.c.b16 %v1783, %v1782
  %1788 = vmatprep.subr.bf16.mxu0 0
  %1789 = vmatpush1.bf16.msra.mxu0 %v1744
  %1790 = vmatprep.subr.bf16.mxu0 0
  %1791 = vmatpush1.bf16.msra.mxu0 %v1745
  %1792 = vmatprep.subr.bf16.mxu0 0
  %1793 = vmatpush1.bf16.msra.mxu0 %v1746
  %1794 = vmatprep.subr.bf16.mxu0 0
  %1795 = vmatpush1.bf16.msra.mxu0 %v1747
  %1796 = vmatprep.subr.bf16.mxu0 0
  %1797 = vmatpush1.bf16.msra.mxu0 %v1748
  %1798 = vmatprep.subr.bf16.mxu0 0
  %1799 = vmatpush1.bf16.msra.mxu0 %v1749
  %1800 = vmatprep.subr.bf16.mxu0 0
  %1801 = vmatpush1.bf16.msra.mxu0 %v1750
  %1802 = vmatprep.subr.bf16.mxu0 0
  %1803 = vmatpush1.bf16.msra.mxu0 %v1751
  %1804 = vmatprep.subr.bf16.mxu0 0
  %1805 = vmatpush1.bf16.msra.mxu0 0
  %1806 = vmatprep.subr.bf16.mxu0 0
  %1807 = vmatpush1.bf16.msra.mxu0 0
  %1808 = vmatprep.subr.bf16.mxu0 0
  %1809 = vmatpush1.bf16.msra.mxu0 0
  %1810 = vmatprep.subr.bf16.mxu0 0
  %1811 = vmatpush1.bf16.msra.mxu0 0
  %1812 = vmatprep.subr.bf16.mxu0 0
  %1813 = vmatpush1.bf16.msra.mxu0 0
  %1814 = vmatprep.subr.bf16.mxu0 0
  %1815 = vmatpush1.bf16.msra.mxu0 0
  %1816 = vmatprep.subr.bf16.mxu0 0
  %1817 = vmatpush1.bf16.msra.mxu0 0
  %1818 = vmatprep.subr.bf16.mxu0 0
  %1819 = vmatpush1.bf16.msra.mxu0 0
  %1820 = vmatprep.mubr.bf16.mxu0 0
  %1821 = vmatmul.mubr.bf16.gmra.mrb[0].mxu0 %v1784
  %v1822 = vpop.f32.mrb[0].mxu0
  %v1823 = vadd.f32 %v1759, %v1822
  %v1824 = vpop.f32.mrb[0].mxu0
  %v1825 = vpop.f32.mrb[0].mxu0
  %v1826 = vadd.f32 %v1764, %v1825
  %v1827 = vpop.f32.mrb[0].mxu0
  %1828 = vmatprep.mubr.bf16.mxu0 0
  %1829 = vmatmul.mubr.bf16.gmra.mrb[0].mxu0 %v1785
  %v1830 = vpop.f32.mrb[0].mxu0
  %v1831 = vadd.f32 %v1769, %v1830
  %v1832 = vpop.f32.mrb[0].mxu0
  %v1833 = vpop.f32.mrb[0].mxu0
  %v1834 = vadd.f32 %v1774, %v1833
  %v1835 = vpop.f32.mrb[0].mxu0
  %1836 = vdwg.mxu0
  %vm1837 = vcmp.ge.f32.partialorder %v1823, 0.0
  %vm1838 = vcmp.ge.f32.partialorder %v1826, 0.0
  %vm1839 = vcmp.ge.f32.partialorder %v1831, 0.0
  %vm1840 = vcmp.ge.f32.partialorder %v1834, 0.0
  %v1841 = vmul.f32 %v1823, 0.01
  %v1842 = vmul.f32 %v1826, 0.01
  %v1843 = vmul.f32 %v1831, 0.01
  %v1844 = vmul.f32 %v1834, 0.01
  %v1845 = vsel %vm1837, %v1823, %v1841
  %v1846 = vsel %vm1838, %v1826, %v1842
  %v1847 = vsel %vm1839, %v1831, %v1843
  %v1848 = vsel %vm1840, %v1834, %v1844
  %v1849 = vsel %vm1459, %v1845, 0.0
  %1850 = vadd.xlane.f32.xlu0 %v1849
  %v1851 = vpop.xlane.xlu0 %1850
  %v1852 = vsel %vm1459, %v1846, 0.0
  %1853 = vadd.xlane.f32.xlu0 %v1852
  %v1854 = vpop.xlane.xlu0 %1853
  %v1855 = vsel %vm1459, %v1847, 0.0
  %1856 = vadd.xlane.f32.xlu0 %v1855
  %v1857 = vpop.xlane.xlu0 %1856
  %v1858 = vsel %vm1459, %v1848, 0.0
  %1859 = vadd.xlane.f32.xlu0 %v1858
  %v1860 = vpop.xlane.xlu0 %1859
  %v1861 = vrcp.pop 114.0
  %v1862 = vmul.f32 %v1851, %v1861
  %v1863 = vmul.f32 %v1854, %v1861
  %v1864 = vmul.f32 %v1857, %v1861
  %v1865 = vmul.f32 %v1860, %v1861
  %v1866 = vsub.f32 %v1845, %v1862
  %v1867 = vsub.f32 %v1846, %v1863
  %v1868 = vsub.f32 %v1847, %v1864
  %v1869 = vsub.f32 %v1848, %v1865
  %v1870 = vmul.f32 %v1866, %v1866
  %v1871 = vmul.f32 %v1867, %v1867
  %v1872 = vmul.f32 %v1868, %v1868
  %v1873 = vmul.f32 %v1869, %v1869
  %v1874 = vsel %vm1459, %v1870, 0.0
  %1875 = vadd.xlane.f32.xlu0 %v1874
  %v1876 = vpop.xlane.xlu0 %1875
  %v1877 = vsel %vm1459, %v1871, 0.0
  %1878 = vadd.xlane.f32.xlu0 %v1877
  %v1879 = vpop.xlane.xlu0 %1878
  %v1880 = vsel %vm1459, %v1872, 0.0
  %1881 = vadd.xlane.f32.xlu0 %v1880
  %v1882 = vpop.xlane.xlu0 %1881
  %v1883 = vsel %vm1459, %v1873, 0.0
  %1884 = vadd.xlane.f32.xlu0 %v1883
  %v1885 = vpop.xlane.xlu0 %1884
  %v1886 = vmul.f32 %v1876, %v1861
  %v1887 = vmul.f32 %v1879, %v1861
  %v1888 = vmul.f32 %v1882, %v1861
  %v1889 = vmul.f32 %v1885, %v1861
  %v1890 = vld [vmem:[%s27] sm:$0xff]
  %v1891 = vld [vmem:[%s27 + $0x8] sm:$0xff]
  %v1892 = vld [vmem:[%s27 + $0x10] sm:$0xff]
  %v1893 = vld [vmem:[%s27 + $0x18] sm:$0xff]
  %v1894 = vadd.f32 %v1886, 1e-05
  %v1895 = vadd.f32 %v1887, 1e-05
  %v1896 = vadd.f32 %v1888, 1e-05
  %v1897 = vadd.f32 %v1889, 1e-05
  %v1898 = vrsqrt.pop %v1894
  %v1899 = vrsqrt.pop %v1895
  %v1900 = vrsqrt.pop %v1896
  %v1901 = vrsqrt.pop %v1897
  %v1902 = vmul.f32 %v1890, %v1898
  %v1903 = vmul.f32 %v1891, %v1899
  %v1904 = vmul.f32 %v1892, %v1900
  %v1905 = vmul.f32 %v1893, %v1901
  %v1906 = vld [vmem:[%s29] sm:$0xff]
  %v1907 = vld [vmem:[%s29 + $0x8] sm:$0xff]
  %v1908 = vld [vmem:[%s29 + $0x10] sm:$0xff]
  %v1909 = vld [vmem:[%s29 + $0x18] sm:$0xff]
  %v1910 = vmul.f32 %v1862, %v1902
  %v1911 = vmul.f32 %v1863, %v1903
  %v1912 = vmul.f32 %v1864, %v1904
  %v1913 = vmul.f32 %v1865, %v1905
  %v1914 = vsub.f32 %v1906, %v1910
  %v1915 = vsub.f32 %v1907, %v1911
  %v1916 = vsub.f32 %v1908, %v1912
  %v1917 = vsub.f32 %v1909, %v1913
  %v1918 = vsel %vm459, %v1845, 0.0
  %1919 = vadd.xlane.f32.xlu0 %v1918
  %v1920 = vpop.xlane.xlu0 %1919
  %v1921 = vsel %vm459, %v1846, 0.0
  %1922 = vadd.xlane.f32.xlu0 %v1921
  %v1923 = vpop.xlane.xlu0 %1922
  %v1924 = vsel %vm459, %v1847, 0.0
  %1925 = vadd.xlane.f32.xlu0 %v1924
  %v1926 = vpop.xlane.xlu0 %1925
  %v1927 = vsel %vm459, %v1848, 0.0
  %1928 = vadd.xlane.f32.xlu0 %v1927
  %v1929 = vpop.xlane.xlu0 %1928
  %v1930 = vrcp.pop 57.0
  %v1931 = vmul.f32 %v1920, %v1930
  %v1932 = vmul.f32 %v1923, %v1930
  %v1933 = vmul.f32 %v1926, %v1930
  %v1934 = vmul.f32 %v1929, %v1930
  %v1935 = vmul.f32 %v1931, %v1902
  %v1936 = vmul.f32 %v1932, %v1903
  %v1937 = vmul.f32 %v1933, %v1904
  %v1938 = vmul.f32 %v1934, %v1905
  %v1939 = vadd.f32 %v1935, %v1914
  %v1940 = vadd.f32 %v1936, %v1915
  %v1941 = vadd.f32 %v1937, %v1916
  %v1942 = vadd.f32 %v1938, %v1917
  %1947 = vrot.lane.b32.xlu0 %v1845, 71
  %v1948 = vpop.permute.xlu0 %1947
  %1949 = vrot.lane.b32.xlu0 %v1846, 71
  %v1950 = vpop.permute.xlu0 %1949
  %1951 = vrot.lane.b32.xlu0 %v1847, 71
  %v1952 = vpop.permute.xlu0 %1951
  %1953 = vrot.lane.b32.xlu0 %v1848, 71
  %v1954 = vpop.permute.xlu0 %1953
  %v1959 = vsel %vm459, %v1948, 0.0
  %1960 = vadd.xlane.f32.xlu0 %v1959
  %v1961 = vpop.xlane.xlu0 %1960
  %v1962 = vsel %vm459, %v1950, 0.0
  %1963 = vadd.xlane.f32.xlu0 %v1962
  %v1964 = vpop.xlane.xlu0 %1963
  %v1965 = vsel %vm459, %v1952, 0.0
  %1966 = vadd.xlane.f32.xlu0 %v1965
  %v1967 = vpop.xlane.xlu0 %1966
  %v1968 = vsel %vm459, %v1954, 0.0
  %1969 = vadd.xlane.f32.xlu0 %v1968
  %v1970 = vpop.xlane.xlu0 %1969
  %v1971 = vmul.f32 %v1961, %v1930
  %v1972 = vmul.f32 %v1964, %v1930
  %v1973 = vmul.f32 %v1967, %v1930
  %v1974 = vmul.f32 %v1970, %v1930
  %v1975 = vmul.f32 %v1971, %v1902
  %v1976 = vmul.f32 %v1972, %v1903
  %v1977 = vmul.f32 %v1973, %v1904
  %v1978 = vmul.f32 %v1974, %v1905
  %v1979 = vadd.f32 %v1975, %v1914
  %v1980 = vadd.f32 %v1976, %v1915
  %v1981 = vadd.f32 %v1977, %v1916
  %v1982 = vadd.f32 %v1978, %v1917
  %1999 = vrot.lane.b32.xlu0 %v1724, 71
  %v2000 = vpop.permute.xlu0 %1999
  %2001 = vrot.lane.b32.xlu0 %v1725, 71
  %v2002 = vpop.permute.xlu0 %2001
  %2003 = vrot.lane.b32.xlu0 %v1726, 71
  %v2004 = vpop.permute.xlu0 %2003
  %2005 = vrot.lane.b32.xlu0 %v1727, 71
  %v2006 = vpop.permute.xlu0 %2005
  %2007 = vrot.lane.b32.xlu0 %v1728, 71
  %v2008 = vpop.permute.xlu0 %2007
  %2009 = vrot.lane.b32.xlu0 %v1729, 71
  %v2010 = vpop.permute.xlu0 %2009
  %2011 = vrot.lane.b32.xlu0 %v1730, 71
  %v2012 = vpop.permute.xlu0 %2011
  %2013 = vrot.lane.b32.xlu0 %v1731, 71
  %v2014 = vpop.permute.xlu0 %2013
  %2015 = vrot.lane.b32.xlu0 %v1732, 71
  %v2016 = vpop.permute.xlu0 %2015
  %2017 = vrot.lane.b32.xlu0 %v1733, 71
  %v2018 = vpop.permute.xlu0 %2017
  %2019 = vrot.lane.b32.xlu0 %v1734, 71
  %v2020 = vpop.permute.xlu0 %2019
  %2021 = vrot.lane.b32.xlu0 %v1735, 71
  %v2022 = vpop.permute.xlu0 %2021
  %2023 = vrot.lane.b32.xlu0 %v1736, 71
  %v2024 = vpop.permute.xlu0 %2023
  %2025 = vrot.lane.b32.xlu0 %v1737, 71
  %v2026 = vpop.permute.xlu0 %2025
  %2027 = vrot.lane.b32.xlu0 %v1738, 71
  %v2028 = vpop.permute.xlu0 %2027
  %2029 = vrot.lane.b32.xlu0 %v1739, 71
  %v2030 = vpop.permute.xlu0 %2029
  %2031 = vrot.lane.b32.xlu0 %v1724, 5
  %v2032 = vpop.permute.xlu0 %2031
  %2033 = vrot.lane.b32.xlu0 %v1725, 5
  %v2034 = vpop.permute.xlu0 %2033
  %2035 = vrot.lane.b32.xlu0 %v1726, 5
  %v2036 = vpop.permute.xlu0 %2035
  %2037 = vrot.lane.b32.xlu0 %v1727, 5
  %v2038 = vpop.permute.xlu0 %2037
  %2039 = vrot.lane.b32.xlu0 %v1728, 5
  %v2040 = vpop.permute.xlu0 %2039
  %2041 = vrot.lane.b32.xlu0 %v1729, 5
  %v2042 = vpop.permute.xlu0 %2041
  %2043 = vrot.lane.b32.xlu0 %v1730, 5
  %v2044 = vpop.permute.xlu0 %2043
  %2045 = vrot.lane.b32.xlu0 %v1731, 5
  %v2046 = vpop.permute.xlu0 %2045
  %2047 = vrot.lane.b32.xlu0 %v1732, 5
  %v2048 = vpop.permute.xlu0 %2047
  %2049 = vrot.lane.b32.xlu0 %v1733, 5
  %v2050 = vpop.permute.xlu0 %2049
  %2051 = vrot.lane.b32.xlu0 %v1734, 5
  %v2052 = vpop.permute.xlu0 %2051
  %2053 = vrot.lane.b32.xlu0 %v1735, 5
  %v2054 = vpop.permute.xlu0 %2053
  %2055 = vrot.lane.b32.xlu0 %v1736, 5
  %v2056 = vpop.permute.xlu0 %2055
  %2057 = vrot.lane.b32.xlu0 %v1737, 5
  %v2058 = vpop.permute.xlu0 %2057
  %2059 = vrot.lane.b32.xlu0 %v1738, 5
  %v2060 = vpop.permute.xlu0 %2059
  %2061 = vrot.lane.b32.xlu0 %v1739, 5
  %v2062 = vpop.permute.xlu0 %2061
  %2063 = vrot.lane.b32.xlu0 %v2000, 5
  %v2064 = vpop.permute.xlu0 %2063
  %2065 = vrot.lane.b32.xlu0 %v2002, 5
  %v2066 = vpop.permute.xlu0 %2065
  %2067 = vrot.lane.b32.xlu0 %v2004, 5
  %v2068 = vpop.permute.xlu0 %2067
  %2069 = vrot.lane.b32.xlu0 %v2006, 5
  %v2070 = vpop.permute.xlu0 %2069
  %2071 = vrot.lane.b32.xlu0 %v2008, 5
  %v2072 = vpop.permute.xlu0 %2071
  %2073 = vrot.lane.b32.xlu0 %v2010, 5
  %v2074 = vpop.permute.xlu0 %2073
  %2075 = vrot.lane.b32.xlu0 %v2012, 5
  %v2076 = vpop.permute.xlu0 %2075
  %2077 = vrot.lane.b32.xlu0 %v2014, 5
  %v2078 = vpop.permute.xlu0 %2077
  %2079 = vrot.lane.b32.xlu0 %v2016, 5
  %v2080 = vpop.permute.xlu0 %2079
  %2081 = vrot.lane.b32.xlu0 %v2018, 5
  %v2082 = vpop.permute.xlu0 %2081
  %2083 = vrot.lane.b32.xlu0 %v2020, 5
  %v2084 = vpop.permute.xlu0 %2083
  %2085 = vrot.lane.b32.xlu0 %v2022, 5
  %v2086 = vpop.permute.xlu0 %2085
  %2087 = vrot.lane.b32.xlu0 %v2024, 5
  %v2088 = vpop.permute.xlu0 %2087
  %2089 = vrot.lane.b32.xlu0 %v2026, 5
  %v2090 = vpop.permute.xlu0 %2089
  %2091 = vrot.lane.b32.xlu0 %v2028, 5
  %v2092 = vpop.permute.xlu0 %2091
  %2093 = vrot.lane.b32.xlu0 %v2030, 5
  %v2094 = vpop.permute.xlu0 %2093
  %vm2127 = vcmask 39936
  %v2128 = vsel %vm2127, 0.0, %v2032
  %v2129 = vsel %vm2127, 0.0, %v2034
  %v2130 = vsel %vm2127, 0.0, %v2036
  %v2131 = vsel %vm2127, 0.0, %v2038
  %v2132 = vsel %vm2127, 0.0, %v2040
  %v2133 = vsel %vm2127, 0.0, %v2042
  %v2134 = vsel %vm2127, 0.0, %v2044
  %v2135 = vsel %vm2127, 0.0, %v2046
  %v2136 = vsel %vm2127, 0.0, %v2048
  %v2137 = vsel %vm2127, 0.0, %v2050
  %v2138 = vsel %vm2127, 0.0, %v2052
  %v2139 = vsel %vm2127, 0.0, %v2054
  %v2140 = vsel %vm2127, 0.0, %v2056
  %v2141 = vsel %vm2127, 0.0, %v2058
  %v2142 = vsel %vm2127, 0.0, %v2060
  %v2143 = vsel %vm2127, 0.0, %v2062
  %v2144 = vsel %vm2127, 0.0, %v2064
  %v2145 = vsel %vm2127, 0.0, %v2066
  %v2146 = vsel %vm2127, 0.0, %v2068
  %v2147 = vsel %vm2127, 0.0, %v2070
  %v2148 = vsel %vm2127, 0.0, %v2072
  %v2149 = vsel %vm2127, 0.0, %v2074
  %v2150 = vsel %vm2127, 0.0, %v2076
  %v2151 = vsel %vm2127, 0.0, %v2078
  %v2152 = vsel %vm2127, 0.0, %v2080
  %v2153 = vsel %vm2127, 0.0, %v2082
  %v2154 = vsel %vm2127, 0.0, %v2084
  %v2155 = vsel %vm2127, 0.0, %v2086
  %v2156 = vsel %vm2127, 0.0, %v2088
  %v2157 = vsel %vm2127, 0.0, %v2090
  %v2158 = vsel %vm2127, 0.0, %v2092
  %v2159 = vsel %vm2127, 0.0, %v2094
  %vm2160 = vcmask 506880
  %v2161 = vsel %vm2160, %v2128, 0.0
  %v2162 = vsel %vm2160, %v2129, 0.0
  %v2163 = vsel %vm2160, %v2130, 0.0
  %v2164 = vsel %vm2160, %v2131, 0.0
  %v2165 = vsel %vm2160, %v2132, 0.0
  %v2166 = vsel %vm2160, %v2133, 0.0
  %v2167 = vsel %vm2160, %v2134, 0.0
  %v2168 = vsel %vm2160, %v2135, 0.0
  %v2169 = vsel %vm2160, %v2136, 0.0
  %v2170 = vsel %vm2160, %v2137, 0.0
  %v2171 = vsel %vm2160, %v2138, 0.0
  %v2172 = vsel %vm2160, %v2139, 0.0
  %v2173 = vsel %vm2160, %v2140, 0.0
  %v2174 = vsel %vm2160, %v2141, 0.0
  %v2175 = vsel %vm2160, %v2142, 0.0
  %v2176 = vsel %vm2160, %v2143, 0.0
  %v2177 = vsel %vm2160, %v2144, 0.0
  %v2178 = vsel %vm2160, %v2145, 0.0
  %v2179 = vsel %vm2160, %v2146, 0.0
  %v2180 = vsel %vm2160, %v2147, 0.0
  %v2181 = vsel %vm2160, %v2148, 0.0
  %v2182 = vsel %vm2160, %v2149, 0.0
  %v2183 = vsel %vm2160, %v2150, 0.0
  %v2184 = vsel %vm2160, %v2151, 0.0
  %v2185 = vsel %vm2160, %v2152, 0.0
  %v2186 = vsel %vm2160, %v2153, 0.0
  %v2187 = vsel %vm2160, %v2154, 0.0
  %v2188 = vsel %vm2160, %v2155, 0.0
  %v2189 = vsel %vm2160, %v2156, 0.0
  %v2190 = vsel %vm2160, %v2157, 0.0
  %v2191 = vsel %vm2160, %v2158, 0.0
  %v2192 = vsel %vm2160, %v2159, 0.0
  %v2193 = vld [vmem:[%s31] sm:$0xff]
  %v2194 = vld [vmem:[%s31 + $0x8] sm:$0xff]
  %v2195 = vld [vmem:[%s31 + $0x10] sm:$0xff]
  %v2196 = vld [vmem:[%s31 + $0x18] sm:$0xff]
  %v2197 = vld [vmem:[%s31 + $0x20] sm:$0xff]
  %v2198 = vld [vmem:[%s31 + $0x28] sm:$0xff]
  %v2199 = vld [vmem:[%s31 + $0x30] sm:$0xff]
  %v2200 = vld [vmem:[%s31 + $0x38] sm:$0xff]
  %v2201 = vld [vmem:[%s31 + $0x40] sm:$0xff]
  %v2202 = vld [vmem:[%s31 + $0x48] sm:$0xff]
  %v2203 = vld [vmem:[%s31 + $0x50] sm:$0xff]
  %v2204 = vld [vmem:[%s31 + $0x58] sm:$0xff]
  %v2205 = vld [vmem:[%s31 + $0x60] sm:$0xff]
  %v2206 = vld [vmem:[%s31 + $0x68] sm:$0xff]
  %v2207 = vld [vmem:[%s31 + $0x70] sm:$0xff]
  %v2208 = vld [vmem:[%s31 + $0x78] sm:$0xff]
  %v2209 = vld [vmem:[%s31 + $0x80] sm:$0xff]
  %v2210 = vld [vmem:[%s31 + $0x88] sm:$0xff]
  %v2211 = vld [vmem:[%s31 + $0x90] sm:$0xff]
  %v2212 = vld [vmem:[%s31 + $0x98] sm:$0xff]
  %v2213 = vld [vmem:[%s31 + $0xa0] sm:$0xff]
  %v2214 = vld [vmem:[%s31 + $0xa8] sm:$0xff]
  %v2215 = vld [vmem:[%s31 + $0xb0] sm:$0xff]
  %v2216 = vld [vmem:[%s31 + $0xb8] sm:$0xff]
  %v2217 = vld [vmem:[%s31 + $0xc0] sm:$0xff]
  %v2218 = vld [vmem:[%s31 + $0xc8] sm:$0xff]
  %v2219 = vld [vmem:[%s31 + $0xd0] sm:$0xff]
  %v2220 = vld [vmem:[%s31 + $0xd8] sm:$0xff]
  %v2221 = vld [vmem:[%s31 + $0xe0] sm:$0xff]
  %v2222 = vld [vmem:[%s31 + $0xe8] sm:$0xff]
  %v2223 = vld [vmem:[%s31 + $0xf0] sm:$0xff]
  %v2224 = vld [vmem:[%s31 + $0xf8] sm:$0xff]
  %v2225 = vld [vmem:[%s31 + $0x100] sm:$0xff]
  %v2226 = vld [vmem:[%s31 + $0x108] sm:$0xff]
  %v2227 = vld [vmem:[%s31 + $0x110] sm:$0xff]
  %v2228 = vld [vmem:[%s31 + $0x118] sm:$0xff]
  %v2229 = vld [vmem:[%s31 + $0x120] sm:$0xff]
  %v2230 = vld [vmem:[%s31 + $0x128] sm:$0xff]
  %v2231 = vld [vmem:[%s31 + $0x130] sm:$0xff]
  %v2232 = vld [vmem:[%s31 + $0x138] sm:$0xff]
  %v2233 = vld [vmem:[%s31 + $0x140] sm:$0xff]
  %v2234 = vld [vmem:[%s31 + $0x148] sm:$0xff]
  %v2235 = vld [vmem:[%s31 + $0x150] sm:$0xff]
  %v2236 = vld [vmem:[%s31 + $0x158] sm:$0xff]
  %v2237 = vld [vmem:[%s31 + $0x160] sm:$0xff]
  %v2238 = vld [vmem:[%s31 + $0x168] sm:$0xff]
  %v2239 = vld [vmem:[%s31 + $0x170] sm:$0xff]
  %v2240 = vld [vmem:[%s31 + $0x178] sm:$0xff]
  %v2241 = vld [vmem:[%s31 + $0x180] sm:$0xff]
  %v2242 = vld [vmem:[%s31 + $0x188] sm:$0xff]
  %v2243 = vld [vmem:[%s31 + $0x190] sm:$0xff]
  %v2244 = vld [vmem:[%s31 + $0x198] sm:$0xff]
  %v2245 = vld [vmem:[%s31 + $0x1a0] sm:$0xff]
  %v2246 = vld [vmem:[%s31 + $0x1a8] sm:$0xff]
  %v2247 = vld [vmem:[%s31 + $0x1b0] sm:$0xff]
  %v2248 = vld [vmem:[%s31 + $0x1b8] sm:$0xff]
  %v2249 = vld [vmem:[%s31 + $0x1c0] sm:$0xff]
  %v2250 = vld [vmem:[%s31 + $0x1c8] sm:$0xff]
  %v2251 = vld [vmem:[%s31 + $0x1d0] sm:$0xff]
  %v2252 = vld [vmem:[%s31 + $0x1d8] sm:$0xff]
  %v2253 = vld [vmem:[%s31 + $0x1e0] sm:$0xff]
  %v2254 = vld [vmem:[%s31 + $0x1e8] sm:$0xff]
  %v2255 = vld [vmem:[%s31 + $0x1f0] sm:$0xff]
  %v2256 = vld [vmem:[%s31 + $0x1f8] sm:$0xff]
  %v2257 = vld [vmem:[%s31 + $0x200] sm:$0xff]
  %v2258 = vld [vmem:[%s31 + $0x208] sm:$0xff]
  %v2259 = vld [vmem:[%s31 + $0x210] sm:$0xff]
  %v2260 = vld [vmem:[%s31 + $0x218] sm:$0xff]
  %v2261 = vld [vmem:[%s31 + $0x220] sm:$0xff]
  %v2262 = vld [vmem:[%s31 + $0x228] sm:$0xff]
  %v2263 = vld [vmem:[%s31 + $0x230] sm:$0xff]
  %v2264 = vld [vmem:[%s31 + $0x238] sm:$0xff]
  %v2265 = vld [vmem:[%s31 + $0x240] sm:$0xff]
  %v2266 = vld [vmem:[%s31 + $0x248] sm:$0xff]
  %v2267 = vld [vmem:[%s31 + $0x250] sm:$0xff]
  %v2268 = vld [vmem:[%s31 + $0x258] sm:$0xff]
  %v2269 = vld [vmem:[%s31 + $0x260] sm:$0xff]
  %v2270 = vld [vmem:[%s31 + $0x268] sm:$0xff]
  %v2271 = vld [vmem:[%s31 + $0x270] sm:$0xff]
  %v2272 = vld [vmem:[%s31 + $0x278] sm:$0xff]
  %v2273 = vld [vmem:[%s31 + $0x280] sm:$0xff]
  %v2274 = vld [vmem:[%s31 + $0x288] sm:$0xff]
  %v2275 = vld [vmem:[%s31 + $0x290] sm:$0xff]
  %v2276 = vld [vmem:[%s31 + $0x298] sm:$0xff]
  %v2277 = vld [vmem:[%s31 + $0x2a0] sm:$0xff]
  %v2278 = vld [vmem:[%s31 + $0x2a8] sm:$0xff]
  %v2279 = vld [vmem:[%s31 + $0x2b0] sm:$0xff]
  %v2280 = vld [vmem:[%s31 + $0x2b8] sm:$0xff]
  %v2281 = vld [vmem:[%s31 + $0x2c0] sm:$0xff]
  %v2282 = vld [vmem:[%s31 + $0x2c8] sm:$0xff]
  %v2283 = vld [vmem:[%s31 + $0x2d0] sm:$0xff]
  %v2284 = vld [vmem:[%s31 + $0x2d8] sm:$0xff]
  %v2285 = vld [vmem:[%s31 + $0x2e0] sm:$0xff]
  %v2286 = vld [vmem:[%s31 + $0x2e8] sm:$0xff]
  %v2287 = vld [vmem:[%s31 + $0x2f0] sm:$0xff]
  %v2288 = vld [vmem:[%s31 + $0x2f8] sm:$0xff]
  %v2289 = vld [vmem:[%s31 + $0x300] sm:$0xff]
  %v2290 = vld [vmem:[%s31 + $0x308] sm:$0xff]
  %v2291 = vld [vmem:[%s31 + $0x310] sm:$0xff]
  %v2292 = vld [vmem:[%s31 + $0x318] sm:$0xff]
  %v2293 = vld [vmem:[%s31 + $0x320] sm:$0xff]
  %v2294 = vld [vmem:[%s31 + $0x328] sm:$0xff]
  %v2295 = vld [vmem:[%s31 + $0x330] sm:$0xff]
  %v2296 = vld [vmem:[%s31 + $0x338] sm:$0xff]
  %v2297 = vld [vmem:[%s31 + $0x340] sm:$0xff]
  %v2298 = vld [vmem:[%s31 + $0x348] sm:$0xff]
  %v2299 = vld [vmem:[%s31 + $0x350] sm:$0xff]
  %v2300 = vld [vmem:[%s31 + $0x358] sm:$0xff]
  %v2301 = vld [vmem:[%s31 + $0x360] sm:$0xff]
  %v2302 = vld [vmem:[%s31 + $0x368] sm:$0xff]
  %v2303 = vld [vmem:[%s31 + $0x370] sm:$0xff]
  %v2304 = vld [vmem:[%s31 + $0x378] sm:$0xff]
  %v2305 = vld [vmem:[%s31 + $0x380] sm:$0xff]
  %v2306 = vld [vmem:[%s31 + $0x388] sm:$0xff]
  %v2307 = vld [vmem:[%s31 + $0x390] sm:$0xff]
  %v2308 = vld [vmem:[%s31 + $0x398] sm:$0xff]
  %v2309 = vld [vmem:[%s31 + $0x3a0] sm:$0xff]
  %v2310 = vld [vmem:[%s31 + $0x3a8] sm:$0xff]
  %v2311 = vld [vmem:[%s31 + $0x3b0] sm:$0xff]
  %v2312 = vld [vmem:[%s31 + $0x3b8] sm:$0xff]
  %v2313 = vld [vmem:[%s31 + $0x3c0] sm:$0xff]
  %v2314 = vld [vmem:[%s31 + $0x3c8] sm:$0xff]
  %v2315 = vld [vmem:[%s31 + $0x3d0] sm:$0xff]
  %v2316 = vld [vmem:[%s31 + $0x3d8] sm:$0xff]
  %v2317 = vld [vmem:[%s31 + $0x3e0] sm:$0xff]
  %v2318 = vld [vmem:[%s31 + $0x3e8] sm:$0xff]
  %v2319 = vld [vmem:[%s31 + $0x3f0] sm:$0xff]
  %v2320 = vld [vmem:[%s31 + $0x3f8] sm:$0xff]
  %v2321 = vld [vmem:[%s31 + $0x400] sm:$0xff]
  %v2322 = vld [vmem:[%s31 + $0x408] sm:$0xff]
  %v2323 = vld [vmem:[%s31 + $0x410] sm:$0xff]
  %v2324 = vld [vmem:[%s31 + $0x418] sm:$0xff]
  %v2325 = vld [vmem:[%s31 + $0x420] sm:$0xff]
  %v2326 = vld [vmem:[%s31 + $0x428] sm:$0xff]
  %v2327 = vld [vmem:[%s31 + $0x430] sm:$0xff]
  %v2328 = vld [vmem:[%s31 + $0x438] sm:$0xff]
  %v2329 = vld [vmem:[%s31 + $0x440] sm:$0xff]
  %v2330 = vld [vmem:[%s31 + $0x448] sm:$0xff]
  %v2331 = vld [vmem:[%s31 + $0x450] sm:$0xff]
  %v2332 = vld [vmem:[%s31 + $0x458] sm:$0xff]
  %v2333 = vld [vmem:[%s31 + $0x460] sm:$0xff]
  %v2334 = vld [vmem:[%s31 + $0x468] sm:$0xff]
  %v2335 = vld [vmem:[%s31 + $0x470] sm:$0xff]
  %v2336 = vld [vmem:[%s31 + $0x478] sm:$0xff]
  %v2337 = vld [vmem:[%s31 + $0x480] sm:$0xff]
  %v2338 = vld [vmem:[%s31 + $0x488] sm:$0xff]
  %v2339 = vld [vmem:[%s31 + $0x490] sm:$0xff]
  %v2340 = vld [vmem:[%s31 + $0x498] sm:$0xff]
  %v2341 = vld [vmem:[%s31 + $0x4a0] sm:$0xff]
  %v2342 = vld [vmem:[%s31 + $0x4a8] sm:$0xff]
  %v2343 = vld [vmem:[%s31 + $0x4b0] sm:$0xff]
  %v2344 = vld [vmem:[%s31 + $0x4b8] sm:$0xff]
  %v2345 = vld [vmem:[%s31 + $0x4c0] sm:$0xff]
  %v2346 = vld [vmem:[%s31 + $0x4c8] sm:$0xff]
  %v2347 = vld [vmem:[%s31 + $0x4d0] sm:$0xff]
  %v2348 = vld [vmem:[%s31 + $0x4d8] sm:$0xff]
  %v2349 = vld [vmem:[%s31 + $0x4e0] sm:$0xff]
  %v2350 = vld [vmem:[%s31 + $0x4e8] sm:$0xff]
  %v2351 = vld [vmem:[%s31 + $0x4f0] sm:$0xff]
  %v2352 = vld [vmem:[%s31 + $0x4f8] sm:$0xff]
  %v2353 = vld [vmem:[%s31 + $0x500] sm:$0xff]
  %v2354 = vld [vmem:[%s31 + $0x508] sm:$0xff]
  %v2355 = vld [vmem:[%s31 + $0x510] sm:$0xff]
  %v2356 = vld [vmem:[%s31 + $0x518] sm:$0xff]
  %v2357 = vld [vmem:[%s31 + $0x520] sm:$0xff]
  %v2358 = vld [vmem:[%s31 + $0x528] sm:$0xff]
  %v2359 = vld [vmem:[%s31 + $0x530] sm:$0xff]
  %v2360 = vld [vmem:[%s31 + $0x538] sm:$0xff]
  %v2361 = vld [vmem:[%s31 + $0x540] sm:$0xff]
  %v2362 = vld [vmem:[%s31 + $0x548] sm:$0xff]
  %v2363 = vld [vmem:[%s31 + $0x550] sm:$0xff]
  %v2364 = vld [vmem:[%s31 + $0x558] sm:$0xff]
  %v2365 = vld [vmem:[%s31 + $0x560] sm:$0xff]
  %v2366 = vld [vmem:[%s31 + $0x568] sm:$0xff]
  %v2367 = vld [vmem:[%s31 + $0x570] sm:$0xff]
  %v2368 = vld [vmem:[%s31 + $0x578] sm:$0xff]
  %2370 = vset.pattern.permute.xlu0 0
  %2371 = vperm.xlu0 %2370, %v2193
  %v2372 = vpop.permute.xlu0 %2371
  %2375 = vset.pattern.permute.xlu0 0
  %2376 = vperm.xlu0 %2375, %v2194
  %v2377 = vpop.permute.xlu0 %2376
  %2380 = vset.pattern.permute.xlu0 0
  %2381 = vperm.xlu0 %2380, %v2195
  %v2382 = vpop.permute.xlu0 %2381
  %2385 = vset.pattern.permute.xlu0 0
  %2386 = vperm.xlu0 %2385, %v2196
  %v2387 = vpop.permute.xlu0 %2386
  %2390 = vset.pattern.permute.xlu0 0
  %2391 = vperm.xlu0 %2390, %v2197
  %v2392 = vpop.permute.xlu0 %2391
  %2395 = vset.pattern.permute.xlu0 0
  %2396 = vperm.xlu0 %2395, %v2198
  %v2397 = vpop.permute.xlu0 %2396
  %2400 = vset.pattern.permute.xlu0 0
  %2401 = vperm.xlu0 %2400, %v2199
  %v2402 = vpop.permute.xlu0 %2401
  %2405 = vset.pattern.permute.xlu0 0
  %2406 = vperm.xlu0 %2405, %v2200
  %v2407 = vpop.permute.xlu0 %2406
  %2410 = vset.pattern.permute.xlu0 0
  %2411 = vperm.xlu0 %2410, %v2201
  %v2412 = vpop.permute.xlu0 %2411
  %2415 = vset.pattern.permute.xlu0 0
  %2416 = vperm.xlu0 %2415, %v2202
  %v2417 = vpop.permute.xlu0 %2416
  %2420 = vset.pattern.permute.xlu0 0
  %2421 = vperm.xlu0 %2420, %v2203
  %v2422 = vpop.permute.xlu0 %2421
  %2425 = vset.pattern.permute.xlu0 0
  %2426 = vperm.xlu0 %2425, %v2204
  %v2427 = vpop.permute.xlu0 %2426
  %2430 = vset.pattern.permute.xlu0 0
  %2431 = vperm.xlu0 %2430, %v2205
  %v2432 = vpop.permute.xlu0 %2431
  %2435 = vset.pattern.permute.xlu0 0
  %2436 = vperm.xlu0 %2435, %v2206
  %v2437 = vpop.permute.xlu0 %2436
  %2440 = vset.pattern.permute.xlu0 0
  %2441 = vperm.xlu0 %2440, %v2207
  %v2442 = vpop.permute.xlu0 %2441
  %2445 = vset.pattern.permute.xlu0 0
  %2446 = vperm.xlu0 %2445, %v2208
  %v2447 = vpop.permute.xlu0 %2446
  %v2449 = vmul.f32 %v2372, %v2161
  %v2450 = vmul.f32 %v2377, %v2162
  %v2451 = vmul.f32 %v2382, %v2163
  %v2452 = vmul.f32 %v2387, %v2164
  %v2453 = vmul.f32 %v2392, %v2165
  %v2454 = vmul.f32 %v2397, %v2166
  %v2455 = vmul.f32 %v2402, %v2167
  %v2456 = vmul.f32 %v2407, %v2168
  %v2457 = vmul.f32 %v2412, %v2169
  %v2458 = vmul.f32 %v2417, %v2170
  %v2459 = vmul.f32 %v2422, %v2171
  %v2460 = vmul.f32 %v2427, %v2172
  %v2461 = vmul.f32 %v2432, %v2173
  %v2462 = vmul.f32 %v2437, %v2174
  %v2463 = vmul.f32 %v2442, %v2175
  %v2464 = vmul.f32 %v2447, %v2176
  %v2465 = vmul.f32 %v2372, %v2177
  %v2466 = vmul.f32 %v2377, %v2178
  %v2467 = vmul.f32 %v2382, %v2179
  %v2468 = vmul.f32 %v2387, %v2180
  %v2469 = vmul.f32 %v2392, %v2181
  %v2470 = vmul.f32 %v2397, %v2182
  %v2471 = vmul.f32 %v2402, %v2183
  %v2472 = vmul.f32 %v2407, %v2184
  %v2473 = vmul.f32 %v2412, %v2185
  %v2474 = vmul.f32 %v2417, %v2186
  %v2475 = vmul.f32 %v2422, %v2187
  %v2476 = vmul.f32 %v2427, %v2188
  %v2477 = vmul.f32 %v2432, %v2189
  %v2478 = vmul.f32 %v2437, %v2190
  %v2479 = vmul.f32 %v2442, %v2191
  %v2480 = vmul.f32 %v2447, %v2192
  %v2481 = vadd.f32 %v2449, 0.0
  %v2482 = vadd.f32 %v2450, 0.0
  %v2483 = vadd.f32 %v2451, 0.0
  %v2484 = vadd.f32 %v2452, 0.0
  %v2485 = vadd.f32 %v2453, 0.0
  %v2486 = vadd.f32 %v2454, 0.0
  %v2487 = vadd.f32 %v2455, 0.0
  %v2488 = vadd.f32 %v2456, 0.0
  %v2489 = vadd.f32 %v2457, 0.0
  %v2490 = vadd.f32 %v2458, 0.0
  %v2491 = vadd.f32 %v2459, 0.0
  %v2492 = vadd.f32 %v2460, 0.0
  %v2493 = vadd.f32 %v2461, 0.0
  %v2494 = vadd.f32 %v2462, 0.0
  %v2495 = vadd.f32 %v2463, 0.0
  %v2496 = vadd.f32 %v2464, 0.0
  %v2497 = vadd.f32 %v2465, 0.0
  %v2498 = vadd.f32 %v2466, 0.0
  %v2499 = vadd.f32 %v2467, 0.0
  %v2500 = vadd.f32 %v2468, 0.0
  %v2501 = vadd.f32 %v2469, 0.0
  %v2502 = vadd.f32 %v2470, 0.0
  %v2503 = vadd.f32 %v2471, 0.0
  %v2504 = vadd.f32 %v2472, 0.0
  %v2505 = vadd.f32 %v2473, 0.0
  %v2506 = vadd.f32 %v2474, 0.0
  %v2507 = vadd.f32 %v2475, 0.0
  %v2508 = vadd.f32 %v2476, 0.0
  %v2509 = vadd.f32 %v2477, 0.0
  %v2510 = vadd.f32 %v2478, 0.0
  %v2511 = vadd.f32 %v2479, 0.0
  %v2512 = vadd.f32 %v2480, 0.0
  %2514 = vset.pattern.permute.xlu0 0
  %2515 = vperm.xlu0 %2514, %v2209
  %v2516 = vpop.permute.xlu0 %2515
  %2519 = vset.pattern.permute.xlu0 0
  %2520 = vperm.xlu0 %2519, %v2210
  %v2521 = vpop.permute.xlu0 %2520
  %2524 = vset.pattern.permute.xlu0 0
  %2525 = vperm.xlu0 %2524, %v2211
  %v2526 = vpop.permute.xlu0 %2525
  %2529 = vset.pattern.permute.xlu0 0
  %2530 = vperm.xlu0 %2529, %v2212
  %v2531 = vpop.permute.xlu0 %2530
  %2534 = vset.pattern.permute.xlu0 0
  %2535 = vperm.xlu0 %2534, %v2213
  %v2536 = vpop.permute.xlu0 %2535
  %2539 = vset.pattern.permute.xlu0 0
  %2540 = vperm.xlu0 %2539, %v2214
  %v2541 = vpop.permute.xlu0 %2540
  %2544 = vset.pattern.permute.xlu0 0
  %2545 = vperm.xlu0 %2544, %v2215
  %v2546 = vpop.permute.xlu0 %2545
  %2549 = vset.pattern.permute.xlu0 0
  %2550 = vperm.xlu0 %2549, %v2216
  %v2551 = vpop.permute.xlu0 %2550
  %2554 = vset.pattern.permute.xlu0 0
  %2555 = vperm.xlu0 %2554, %v2217
  %v2556 = vpop.permute.xlu0 %2555
  %2559 = vset.pattern.permute.xlu0 0
  %2560 = vperm.xlu0 %2559, %v2218
  %v2561 = vpop.permute.xlu0 %2560
  %2564 = vset.pattern.permute.xlu0 0
  %2565 = vperm.xlu0 %2564, %v2219
  %v2566 = vpop.permute.xlu0 %2565
  %2569 = vset.pattern.permute.xlu0 0
  %2570 = vperm.xlu0 %2569, %v2220
  %v2571 = vpop.permute.xlu0 %2570
  %2574 = vset.pattern.permute.xlu0 0
  %2575 = vperm.xlu0 %2574, %v2221
  %v2576 = vpop.permute.xlu0 %2575
  %2579 = vset.pattern.permute.xlu0 0
  %2580 = vperm.xlu0 %2579, %v2222
  %v2581 = vpop.permute.xlu0 %2580
  %2584 = vset.pattern.permute.xlu0 0
  %2585 = vperm.xlu0 %2584, %v2223
  %v2586 = vpop.permute.xlu0 %2585
  %2589 = vset.pattern.permute.xlu0 0
  %2590 = vperm.xlu0 %2589, %v2224
  %v2591 = vpop.permute.xlu0 %2590
  %v2593 = vmul.f32 %v2516, %v2161
  %v2594 = vmul.f32 %v2521, %v2162
  %v2595 = vmul.f32 %v2526, %v2163
  %v2596 = vmul.f32 %v2531, %v2164
  %v2597 = vmul.f32 %v2536, %v2165
  %v2598 = vmul.f32 %v2541, %v2166
  %v2599 = vmul.f32 %v2546, %v2167
  %v2600 = vmul.f32 %v2551, %v2168
  %v2601 = vmul.f32 %v2556, %v2169
  %v2602 = vmul.f32 %v2561, %v2170
  %v2603 = vmul.f32 %v2566, %v2171
  %v2604 = vmul.f32 %v2571, %v2172
  %v2605 = vmul.f32 %v2576, %v2173
  %v2606 = vmul.f32 %v2581, %v2174
  %v2607 = vmul.f32 %v2586, %v2175
  %v2608 = vmul.f32 %v2591, %v2176
  %v2609 = vmul.f32 %v2516, %v2177
  %v2610 = vmul.f32 %v2521, %v2178
  %v2611 = vmul.f32 %v2526, %v2179
  %v2612 = vmul.f32 %v2531, %v2180
  %v2613 = vmul.f32 %v2536, %v2181
  %v2614 = vmul.f32 %v2541, %v2182
  %v2615 = vmul.f32 %v2546, %v2183
  %v2616 = vmul.f32 %v2551, %v2184
  %v2617 = vmul.f32 %v2556, %v2185
  %v2618 = vmul.f32 %v2561, %v2186
  %v2619 = vmul.f32 %v2566, %v2187
  %v2620 = vmul.f32 %v2571, %v2188
  %v2621 = vmul.f32 %v2576, %v2189
  %v2622 = vmul.f32 %v2581, %v2190
  %v2623 = vmul.f32 %v2586, %v2191
  %v2624 = vmul.f32 %v2591, %v2192
  %2657 = vrot.lane.b32.xlu0 %v2593, 127
  %v2658 = vpop.permute.xlu0 %2657
  %2659 = vrot.lane.b32.xlu0 %v2594, 127
  %v2660 = vpop.permute.xlu0 %2659
  %2661 = vrot.lane.b32.xlu0 %v2595, 127
  %v2662 = vpop.permute.xlu0 %2661
  %2663 = vrot.lane.b32.xlu0 %v2596, 127
  %v2664 = vpop.permute.xlu0 %2663
  %2665 = vrot.lane.b32.xlu0 %v2597, 127
  %v2666 = vpop.permute.xlu0 %2665
  %2667 = vrot.lane.b32.xlu0 %v2598, 127
  %v2668 = vpop.permute.xlu0 %2667
  %2669 = vrot.lane.b32.xlu0 %v2599, 127
  %v2670 = vpop.permute.xlu0 %2669
  %2671 = vrot.lane.b32.xlu0 %v2600, 127
  %v2672 = vpop.permute.xlu0 %2671
  %2673 = vrot.lane.b32.xlu0 %v2601, 127
  %v2674 = vpop.permute.xlu0 %2673
  %2675 = vrot.lane.b32.xlu0 %v2602, 127
  %v2676 = vpop.permute.xlu0 %2675
  %2677 = vrot.lane.b32.xlu0 %v2603, 127
  %v2678 = vpop.permute.xlu0 %2677
  %2679 = vrot.lane.b32.xlu0 %v2604, 127
  %v2680 = vpop.permute.xlu0 %2679
  %2681 = vrot.lane.b32.xlu0 %v2605, 127
  %v2682 = vpop.permute.xlu0 %2681
  %2683 = vrot.lane.b32.xlu0 %v2606, 127
  %v2684 = vpop.permute.xlu0 %2683
  %2685 = vrot.lane.b32.xlu0 %v2607, 127
  %v2686 = vpop.permute.xlu0 %2685
  %2687 = vrot.lane.b32.xlu0 %v2608, 127
  %v2688 = vpop.permute.xlu0 %2687
  %2689 = vrot.lane.b32.xlu0 %v2609, 127
  %v2690 = vpop.permute.xlu0 %2689
  %2691 = vrot.lane.b32.xlu0 %v2610, 127
  %v2692 = vpop.permute.xlu0 %2691
  %2693 = vrot.lane.b32.xlu0 %v2611, 127
  %v2694 = vpop.permute.xlu0 %2693
  %2695 = vrot.lane.b32.xlu0 %v2612, 127
  %v2696 = vpop.permute.xlu0 %2695
  %2697 = vrot.lane.b32.xlu0 %v2613, 127
  %v2698 = vpop.permute.xlu0 %2697
  %2699 = vrot.lane.b32.xlu0 %v2614, 127
  %v2700 = vpop.permute.xlu0 %2699
  %2701 = vrot.lane.b32.xlu0 %v2615, 127
  %v2702 = vpop.permute.xlu0 %2701
  %2703 = vrot.lane.b32.xlu0 %v2616, 127
  %v2704 = vpop.permute.xlu0 %2703
  %2705 = vrot.lane.b32.xlu0 %v2617, 127
  %v2706 = vpop.permute.xlu0 %2705
  %2707 = vrot.lane.b32.xlu0 %v2618, 127
  %v2708 = vpop.permute.xlu0 %2707
  %2709 = vrot.lane.b32.xlu0 %v2619, 127
  %v2710 = vpop.permute.xlu0 %2709
  %2711 = vrot.lane.b32.xlu0 %v2620, 127
  %v2712 = vpop.permute.xlu0 %2711
  %2713 = vrot.lane.b32.xlu0 %v2621, 127
  %v2714 = vpop.permute.xlu0 %2713
  %2715 = vrot.lane.b32.xlu0 %v2622, 127
  %v2716 = vpop.permute.xlu0 %2715
  %2717 = vrot.lane.b32.xlu0 %v2623, 127
  %v2718 = vpop.permute.xlu0 %2717
  %2719 = vrot.lane.b32.xlu0 %v2624, 127
  %v2720 = vpop.permute.xlu0 %2719
  %v2753 = vadd.f32 %v2481, %v2658
  %v2754 = vadd.f32 %v2482, %v2660
  %v2755 = vadd.f32 %v2483, %v2662
  %v2756 = vadd.f32 %v2484, %v2664
  %v2757 = vadd.f32 %v2485, %v2666
  %v2758 = vadd.f32 %v2486, %v2668
  %v2759 = vadd.f32 %v2487, %v2670
  %v2760 = vadd.f32 %v2488, %v2672
  %v2761 = vadd.f32 %v2489, %v2674
  %v2762 = vadd.f32 %v2490, %v2676
  %v2763 = vadd.f32 %v2491, %v2678
  %v2764 = vadd.f32 %v2492, %v2680
  %v2765 = vadd.f32 %v2493, %v2682
  %v2766 = vadd.f32 %v2494, %v2684
  %v2767 = vadd.f32 %v2495, %v2686
  %v2768 = vadd.f32 %v2496, %v2688
  %v2769 = vadd.f32 %v2497, %v2690
  %v2770 = vadd.f32 %v2498, %v2692
  %v2771 = vadd.f32 %v2499, %v2694
  %v2772 = vadd.f32 %v2500, %v2696
  %v2773 = vadd.f32 %v2501, %v2698
  %v2774 = vadd.f32 %v2502, %v2700
  %v2775 = vadd.f32 %v2503, %v2702
  %v2776 = vadd.f32 %v2504, %v2704
  %v2777 = vadd.f32 %v2505, %v2706
  %v2778 = vadd.f32 %v2506, %v2708
  %v2779 = vadd.f32 %v2507, %v2710
  %v2780 = vadd.f32 %v2508, %v2712
  %v2781 = vadd.f32 %v2509, %v2714
  %v2782 = vadd.f32 %v2510, %v2716
  %v2783 = vadd.f32 %v2511, %v2718
  %v2784 = vadd.f32 %v2512, %v2720
  %2786 = vset.pattern.permute.xlu0 0
  %2787 = vperm.xlu0 %2786, %v2225
  %v2788 = vpop.permute.xlu0 %2787
  %2791 = vset.pattern.permute.xlu0 0
  %2792 = vperm.xlu0 %2791, %v2226
  %v2793 = vpop.permute.xlu0 %2792
  %2796 = vset.pattern.permute.xlu0 0
  %2797 = vperm.xlu0 %2796, %v2227
  %v2798 = vpop.permute.xlu0 %2797
  %2801 = vset.pattern.permute.xlu0 0
  %2802 = vperm.xlu0 %2801, %v2228
  %v2803 = vpop.permute.xlu0 %2802
  %2806 = vset.pattern.permute.xlu0 0
  %2807 = vperm.xlu0 %2806, %v2229
  %v2808 = vpop.permute.xlu0 %2807
  %2811 = vset.pattern.permute.xlu0 0
  %2812 = vperm.xlu0 %2811, %v2230
  %v2813 = vpop.permute.xlu0 %2812
  %2816 = vset.pattern.permute.xlu0 0
  %2817 = vperm.xlu0 %2816, %v2231
  %v2818 = vpop.permute.xlu0 %2817
  %2821 = vset.pattern.permute.xlu0 0
  %2822 = vperm.xlu0 %2821, %v2232
  %v2823 = vpop.permute.xlu0 %2822
  %2826 = vset.pattern.permute.xlu0 0
  %2827 = vperm.xlu0 %2826, %v2233
  %v2828 = vpop.permute.xlu0 %2827
  %2831 = vset.pattern.permute.xlu0 0
  %2832 = vperm.xlu0 %2831, %v2234
  %v2833 = vpop.permute.xlu0 %2832
  %2836 = vset.pattern.permute.xlu0 0
  %2837 = vperm.xlu0 %2836, %v2235
  %v2838 = vpop.permute.xlu0 %2837
  %2841 = vset.pattern.permute.xlu0 0
  %2842 = vperm.xlu0 %2841, %v2236
  %v2843 = vpop.permute.xlu0 %2842
  %2846 = vset.pattern.permute.xlu0 0
  %2847 = vperm.xlu0 %2846, %v2237
  %v2848 = vpop.permute.xlu0 %2847
  %2851 = vset.pattern.permute.xlu0 0
  %2852 = vperm.xlu0 %2851, %v2238
  %v2853 = vpop.permute.xlu0 %2852
  %2856 = vset.pattern.permute.xlu0 0
  %2857 = vperm.xlu0 %2856, %v2239
  %v2858 = vpop.permute.xlu0 %2857
  %2861 = vset.pattern.permute.xlu0 0
  %2862 = vperm.xlu0 %2861, %v2240
  %v2863 = vpop.permute.xlu0 %2862
  %v2865 = vmul.f32 %v2788, %v2161
  %v2866 = vmul.f32 %v2793, %v2162
  %v2867 = vmul.f32 %v2798, %v2163
  %v2868 = vmul.f32 %v2803, %v2164
  %v2869 = vmul.f32 %v2808, %v2165
  %v2870 = vmul.f32 %v2813, %v2166
  %v2871 = vmul.f32 %v2818, %v2167
  %v2872 = vmul.f32 %v2823, %v2168
  %v2873 = vmul.f32 %v2828, %v2169
  %v2874 = vmul.f32 %v2833, %v2170
  %v2875 = vmul.f32 %v2838, %v2171
  %v2876 = vmul.f32 %v2843, %v2172
  %v2877 = vmul.f32 %v2848, %v2173
  %v2878 = vmul.f32 %v2853, %v2174
  %v2879 = vmul.f32 %v2858, %v2175
  %v2880 = vmul.f32 %v2863, %v2176
  %v2881 = vmul.f32 %v2788, %v2177
  %v2882 = vmul.f32 %v2793, %v2178
  %v2883 = vmul.f32 %v2798, %v2179
  %v2884 = vmul.f32 %v2803, %v2180
  %v2885 = vmul.f32 %v2808, %v2181
  %v2886 = vmul.f32 %v2813, %v2182
  %v2887 = vmul.f32 %v2818, %v2183
  %v2888 = vmul.f32 %v2823, %v2184
  %v2889 = vmul.f32 %v2828, %v2185
  %v2890 = vmul.f32 %v2833, %v2186
  %v2891 = vmul.f32 %v2838, %v2187
  %v2892 = vmul.f32 %v2843, %v2188
  %v2893 = vmul.f32 %v2848, %v2189
  %v2894 = vmul.f32 %v2853, %v2190
  %v2895 = vmul.f32 %v2858, %v2191
  %v2896 = vmul.f32 %v2863, %v2192
  %2929 = vrot.lane.b32.xlu0 %v2865, 126
  %v2930 = vpop.permute.xlu0 %2929
  %2931 = vrot.lane.b32.xlu0 %v2866, 126
  %v2932 = vpop.permute.xlu0 %2931
  %2933 = vrot.lane.b32.xlu0 %v2867, 126
  %v2934 = vpop.permute.xlu0 %2933
  %2935 = vrot.lane.b32.xlu0 %v2868, 126
  %v2936 = vpop.permute.xlu0 %2935
  %2937 = vrot.lane.b32.xlu0 %v2869, 126
  %v2938 = vpop.permute.xlu0 %2937
  %2939 = vrot.lane.b32.xlu0 %v2870, 126
  %v2940 = vpop.permute.xlu0 %2939
  %2941 = vrot.lane.b32.xlu0 %v2871, 126
  %v2942 = vpop.permute.xlu0 %2941
  %2943 = vrot.lane.b32.xlu0 %v2872, 126
  %v2944 = vpop.permute.xlu0 %2943
  %2945 = vrot.lane.b32.xlu0 %v2873, 126
  %v2946 = vpop.permute.xlu0 %2945
  %2947 = vrot.lane.b32.xlu0 %v2874, 126
  %v2948 = vpop.permute.xlu0 %2947
  %2949 = vrot.lane.b32.xlu0 %v2875, 126
  %v2950 = vpop.permute.xlu0 %2949
  %2951 = vrot.lane.b32.xlu0 %v2876, 126
  %v2952 = vpop.permute.xlu0 %2951
  %2953 = vrot.lane.b32.xlu0 %v2877, 126
  %v2954 = vpop.permute.xlu0 %2953
  %2955 = vrot.lane.b32.xlu0 %v2878, 126
  %v2956 = vpop.permute.xlu0 %2955
  %2957 = vrot.lane.b32.xlu0 %v2879, 126
  %v2958 = vpop.permute.xlu0 %2957
  %2959 = vrot.lane.b32.xlu0 %v2880, 126
  %v2960 = vpop.permute.xlu0 %2959
  %2961 = vrot.lane.b32.xlu0 %v2881, 126
  %v2962 = vpop.permute.xlu0 %2961
  %2963 = vrot.lane.b32.xlu0 %v2882, 126
  %v2964 = vpop.permute.xlu0 %2963
  %2965 = vrot.lane.b32.xlu0 %v2883, 126
  %v2966 = vpop.permute.xlu0 %2965
  %2967 = vrot.lane.b32.xlu0 %v2884, 126
  %v2968 = vpop.permute.xlu0 %2967
  %2969 = vrot.lane.b32.xlu0 %v2885, 126
  %v2970 = vpop.permute.xlu0 %2969
  %2971 = vrot.lane.b32.xlu0 %v2886, 126
  %v2972 = vpop.permute.xlu0 %2971
  %2973 = vrot.lane.b32.xlu0 %v2887, 126
  %v2974 = vpop.permute.xlu0 %2973
  %2975 = vrot.lane.b32.xlu0 %v2888, 126
  %v2976 = vpop.permute.xlu0 %2975
  %2977 = vrot.lane.b32.xlu0 %v2889, 126
  %v2978 = vpop.permute.xlu0 %2977
  %2979 = vrot.lane.b32.xlu0 %v2890, 126
  %v2980 = vpop.permute.xlu0 %2979
  %2981 = vrot.lane.b32.xlu0 %v2891, 126
  %v2982 = vpop.permute.xlu0 %2981
  %2983 = vrot.lane.b32.xlu0 %v2892, 126
  %v2984 = vpop.permute.xlu0 %2983
  %2985 = vrot.lane.b32.xlu0 %v2893, 126
  %v2986 = vpop.permute.xlu0 %2985
  %2987 = vrot.lane.b32.xlu0 %v2894, 126
  %v2988 = vpop.permute.xlu0 %2987
  %2989 = vrot.lane.b32.xlu0 %v2895, 126
  %v2990 = vpop.permute.xlu0 %2989
  %2991 = vrot.lane.b32.xlu0 %v2896, 126
  %v2992 = vpop.permute.xlu0 %2991
  %v3025 = vadd.f32 %v2753, %v2930
  %v3026 = vadd.f32 %v2754, %v2932
  %v3027 = vadd.f32 %v2755, %v2934
  %v3028 = vadd.f32 %v2756, %v2936
  %v3029 = vadd.f32 %v2757, %v2938
  %v3030 = vadd.f32 %v2758, %v2940
  %v3031 = vadd.f32 %v2759, %v2942
  %v3032 = vadd.f32 %v2760, %v2944
  %v3033 = vadd.f32 %v2761, %v2946
  %v3034 = vadd.f32 %v2762, %v2948
  %v3035 = vadd.f32 %v2763, %v2950
  %v3036 = vadd.f32 %v2764, %v2952
  %v3037 = vadd.f32 %v2765, %v2954
  %v3038 = vadd.f32 %v2766, %v2956
  %v3039 = vadd.f32 %v2767, %v2958
  %v3040 = vadd.f32 %v2768, %v2960
  %v3041 = vadd.f32 %v2769, %v2962
  %v3042 = vadd.f32 %v2770, %v2964
  %v3043 = vadd.f32 %v2771, %v2966
  %v3044 = vadd.f32 %v2772, %v2968
  %v3045 = vadd.f32 %v2773, %v2970
  %v3046 = vadd.f32 %v2774, %v2972
  %v3047 = vadd.f32 %v2775, %v2974
  %v3048 = vadd.f32 %v2776, %v2976
  %v3049 = vadd.f32 %v2777, %v2978
  %v3050 = vadd.f32 %v2778, %v2980
  %v3051 = vadd.f32 %v2779, %v2982
  %v3052 = vadd.f32 %v2780, %v2984
  %v3053 = vadd.f32 %v2781, %v2986
  %v3054 = vadd.f32 %v2782, %v2988
  %v3055 = vadd.f32 %v2783, %v2990
  %v3056 = vadd.f32 %v2784, %v2992
  %3058 = vset.pattern.permute.xlu0 0
  %3059 = vperm.xlu0 %3058, %v2241
  %v3060 = vpop.permute.xlu0 %3059
  %3063 = vset.pattern.permute.xlu0 0
  %3064 = vperm.xlu0 %3063, %v2242
  %v3065 = vpop.permute.xlu0 %3064
  %3068 = vset.pattern.permute.xlu0 0
  %3069 = vperm.xlu0 %3068, %v2243
  %v3070 = vpop.permute.xlu0 %3069
  %3073 = vset.pattern.permute.xlu0 0
  %3074 = vperm.xlu0 %3073, %v2244
  %v3075 = vpop.permute.xlu0 %3074
  %3078 = vset.pattern.permute.xlu0 0
  %3079 = vperm.xlu0 %3078, %v2245
  %v3080 = vpop.permute.xlu0 %3079
  %3083 = vset.pattern.permute.xlu0 0
  %3084 = vperm.xlu0 %3083, %v2246
  %v3085 = vpop.permute.xlu0 %3084
  %3088 = vset.pattern.permute.xlu0 0
  %3089 = vperm.xlu0 %3088, %v2247
  %v3090 = vpop.permute.xlu0 %3089
  %3093 = vset.pattern.permute.xlu0 0
  %3094 = vperm.xlu0 %3093, %v2248
  %v3095 = vpop.permute.xlu0 %3094
  %3098 = vset.pattern.permute.xlu0 0
  %3099 = vperm.xlu0 %3098, %v2249
  %v3100 = vpop.permute.xlu0 %3099
  %3103 = vset.pattern.permute.xlu0 0
  %3104 = vperm.xlu0 %3103, %v2250
  %v3105 = vpop.permute.xlu0 %3104
  %3108 = vset.pattern.permute.xlu0 0
  %3109 = vperm.xlu0 %3108, %v2251
  %v3110 = vpop.permute.xlu0 %3109
  %3113 = vset.pattern.permute.xlu0 0
  %3114 = vperm.xlu0 %3113, %v2252
  %v3115 = vpop.permute.xlu0 %3114
  %3118 = vset.pattern.permute.xlu0 0
  %3119 = vperm.xlu0 %3118, %v2253
  %v3120 = vpop.permute.xlu0 %3119
  %3123 = vset.pattern.permute.xlu0 0
  %3124 = vperm.xlu0 %3123, %v2254
  %v3125 = vpop.permute.xlu0 %3124
  %3128 = vset.pattern.permute.xlu0 0
  %3129 = vperm.xlu0 %3128, %v2255
  %v3130 = vpop.permute.xlu0 %3129
  %3133 = vset.pattern.permute.xlu0 0
  %3134 = vperm.xlu0 %3133, %v2256
  %v3135 = vpop.permute.xlu0 %3134
  %v3137 = vmul.f32 %v3060, %v2161
  %v3138 = vmul.f32 %v3065, %v2162
  %v3139 = vmul.f32 %v3070, %v2163
  %v3140 = vmul.f32 %v3075, %v2164
  %v3141 = vmul.f32 %v3080, %v2165
  %v3142 = vmul.f32 %v3085, %v2166
  %v3143 = vmul.f32 %v3090, %v2167
  %v3144 = vmul.f32 %v3095, %v2168
  %v3145 = vmul.f32 %v3100, %v2169
  %v3146 = vmul.f32 %v3105, %v2170
  %v3147 = vmul.f32 %v3110, %v2171
  %v3148 = vmul.f32 %v3115, %v2172
  %v3149 = vmul.f32 %v3120, %v2173
  %v3150 = vmul.f32 %v3125, %v2174
  %v3151 = vmul.f32 %v3130, %v2175
  %v3152 = vmul.f32 %v3135, %v2176
  %v3153 = vmul.f32 %v3060, %v2177
  %v3154 = vmul.f32 %v3065, %v2178
  %v3155 = vmul.f32 %v3070, %v2179
  %v3156 = vmul.f32 %v3075, %v2180
  %v3157 = vmul.f32 %v3080, %v2181
  %v3158 = vmul.f32 %v3085, %v2182
  %v3159 = vmul.f32 %v3090, %v2183
  %v3160 = vmul.f32 %v3095, %v2184
  %v3161 = vmul.f32 %v3100, %v2185
  %v3162 = vmul.f32 %v3105, %v2186
  %v3163 = vmul.f32 %v3110, %v2187
  %v3164 = vmul.f32 %v3115, %v2188
  %v3165 = vmul.f32 %v3120, %v2189
  %v3166 = vmul.f32 %v3125, %v2190
  %v3167 = vmul.f32 %v3130, %v2191
  %v3168 = vmul.f32 %v3135, %v2192
  %3201 = vrot.lane.b32.xlu0 %v3137, 125
  %v3202 = vpop.permute.xlu0 %3201
  %3203 = vrot.lane.b32.xlu0 %v3138, 125
  %v3204 = vpop.permute.xlu0 %3203
  %3205 = vrot.lane.b32.xlu0 %v3139, 125
  %v3206 = vpop.permute.xlu0 %3205
  %3207 = vrot.lane.b32.xlu0 %v3140, 125
  %v3208 = vpop.permute.xlu0 %3207
  %3209 = vrot.lane.b32.xlu0 %v3141, 125
  %v3210 = vpop.permute.xlu0 %3209
  %3211 = vrot.lane.b32.xlu0 %v3142, 125
  %v3212 = vpop.permute.xlu0 %3211
  %3213 = vrot.lane.b32.xlu0 %v3143, 125
  %v3214 = vpop.permute.xlu0 %3213
  %3215 = vrot.lane.b32.xlu0 %v3144, 125
  %v3216 = vpop.permute.xlu0 %3215
  %3217 = vrot.lane.b32.xlu0 %v3145, 125
  %v3218 = vpop.permute.xlu0 %3217
  %3219 = vrot.lane.b32.xlu0 %v3146, 125
  %v3220 = vpop.permute.xlu0 %3219
  %3221 = vrot.lane.b32.xlu0 %v3147, 125
  %v3222 = vpop.permute.xlu0 %3221
  %3223 = vrot.lane.b32.xlu0 %v3148, 125
  %v3224 = vpop.permute.xlu0 %3223
  %3225 = vrot.lane.b32.xlu0 %v3149, 125
  %v3226 = vpop.permute.xlu0 %3225
  %3227 = vrot.lane.b32.xlu0 %v3150, 125
  %v3228 = vpop.permute.xlu0 %3227
  %3229 = vrot.lane.b32.xlu0 %v3151, 125
  %v3230 = vpop.permute.xlu0 %3229
  %3231 = vrot.lane.b32.xlu0 %v3152, 125
  %v3232 = vpop.permute.xlu0 %3231
  %3233 = vrot.lane.b32.xlu0 %v3153, 125
  %v3234 = vpop.permute.xlu0 %3233
  %3235 = vrot.lane.b32.xlu0 %v3154, 125
  %v3236 = vpop.permute.xlu0 %3235
  %3237 = vrot.lane.b32.xlu0 %v3155, 125
  %v3238 = vpop.permute.xlu0 %3237
  %3239 = vrot.lane.b32.xlu0 %v3156, 125
  %v3240 = vpop.permute.xlu0 %3239
  %3241 = vrot.lane.b32.xlu0 %v3157, 125
  %v3242 = vpop.permute.xlu0 %3241
  %3243 = vrot.lane.b32.xlu0 %v3158, 125
  %v3244 = vpop.permute.xlu0 %3243
  %3245 = vrot.lane.b32.xlu0 %v3159, 125
  %v3246 = vpop.permute.xlu0 %3245
  %3247 = vrot.lane.b32.xlu0 %v3160, 125
  %v3248 = vpop.permute.xlu0 %3247
  %3249 = vrot.lane.b32.xlu0 %v3161, 125
  %v3250 = vpop.permute.xlu0 %3249
  %3251 = vrot.lane.b32.xlu0 %v3162, 125
  %v3252 = vpop.permute.xlu0 %3251
  %3253 = vrot.lane.b32.xlu0 %v3163, 125
  %v3254 = vpop.permute.xlu0 %3253
  %3255 = vrot.lane.b32.xlu0 %v3164, 125
  %v3256 = vpop.permute.xlu0 %3255
  %3257 = vrot.lane.b32.xlu0 %v3165, 125
  %v3258 = vpop.permute.xlu0 %3257
  %3259 = vrot.lane.b32.xlu0 %v3166, 125
  %v3260 = vpop.permute.xlu0 %3259
  %3261 = vrot.lane.b32.xlu0 %v3167, 125
  %v3262 = vpop.permute.xlu0 %3261
  %3263 = vrot.lane.b32.xlu0 %v3168, 125
  %v3264 = vpop.permute.xlu0 %3263
  %v3297 = vadd.f32 %v3025, %v3202
  %v3298 = vadd.f32 %v3026, %v3204
  %v3299 = vadd.f32 %v3027, %v3206
  %v3300 = vadd.f32 %v3028, %v3208
  %v3301 = vadd.f32 %v3029, %v3210
  %v3302 = vadd.f32 %v3030, %v3212
  %v3303 = vadd.f32 %v3031, %v3214
  %v3304 = vadd.f32 %v3032, %v3216
  %v3305 = vadd.f32 %v3033, %v3218
  %v3306 = vadd.f32 %v3034, %v3220
  %v3307 = vadd.f32 %v3035, %v3222
  %v3308 = vadd.f32 %v3036, %v3224
  %v3309 = vadd.f32 %v3037, %v3226
  %v3310 = vadd.f32 %v3038, %v3228
  %v3311 = vadd.f32 %v3039, %v3230
  %v3312 = vadd.f32 %v3040, %v3232
  %v3313 = vadd.f32 %v3041, %v3234
  %v3314 = vadd.f32 %v3042, %v3236
  %v3315 = vadd.f32 %v3043, %v3238
  %v3316 = vadd.f32 %v3044, %v3240
  %v3317 = vadd.f32 %v3045, %v3242
  %v3318 = vadd.f32 %v3046, %v3244
  %v3319 = vadd.f32 %v3047, %v3246
  %v3320 = vadd.f32 %v3048, %v3248
  %v3321 = vadd.f32 %v3049, %v3250
  %v3322 = vadd.f32 %v3050, %v3252
  %v3323 = vadd.f32 %v3051, %v3254
  %v3324 = vadd.f32 %v3052, %v3256
  %v3325 = vadd.f32 %v3053, %v3258
  %v3326 = vadd.f32 %v3054, %v3260
  %v3327 = vadd.f32 %v3055, %v3262
  %v3328 = vadd.f32 %v3056, %v3264
  %3330 = vset.pattern.permute.xlu0 0
  %3331 = vperm.xlu0 %3330, %v2257
  %v3332 = vpop.permute.xlu0 %3331
  %3335 = vset.pattern.permute.xlu0 0
  %3336 = vperm.xlu0 %3335, %v2258
  %v3337 = vpop.permute.xlu0 %3336
  %3340 = vset.pattern.permute.xlu0 0
  %3341 = vperm.xlu0 %3340, %v2259
  %v3342 = vpop.permute.xlu0 %3341
  %3345 = vset.pattern.permute.xlu0 0
  %3346 = vperm.xlu0 %3345, %v2260
  %v3347 = vpop.permute.xlu0 %3346
  %3350 = vset.pattern.permute.xlu0 0
  %3351 = vperm.xlu0 %3350, %v2261
  %v3352 = vpop.permute.xlu0 %3351
  %3355 = vset.pattern.permute.xlu0 0
  %3356 = vperm.xlu0 %3355, %v2262
  %v3357 = vpop.permute.xlu0 %3356
  %3360 = vset.pattern.permute.xlu0 0
  %3361 = vperm.xlu0 %3360, %v2263
  %v3362 = vpop.permute.xlu0 %3361
  %3365 = vset.pattern.permute.xlu0 0
  %3366 = vperm.xlu0 %3365, %v2264
  %v3367 = vpop.permute.xlu0 %3366
  %3370 = vset.pattern.permute.xlu0 0
  %3371 = vperm.xlu0 %3370, %v2265
  %v3372 = vpop.permute.xlu0 %3371
  %3375 = vset.pattern.permute.xlu0 0
  %3376 = vperm.xlu0 %3375, %v2266
  %v3377 = vpop.permute.xlu0 %3376
  %3380 = vset.pattern.permute.xlu0 0
  %3381 = vperm.xlu0 %3380, %v2267
  %v3382 = vpop.permute.xlu0 %3381
  %3385 = vset.pattern.permute.xlu0 0
  %3386 = vperm.xlu0 %3385, %v2268
  %v3387 = vpop.permute.xlu0 %3386
  %3390 = vset.pattern.permute.xlu0 0
  %3391 = vperm.xlu0 %3390, %v2269
  %v3392 = vpop.permute.xlu0 %3391
  %3395 = vset.pattern.permute.xlu0 0
  %3396 = vperm.xlu0 %3395, %v2270
  %v3397 = vpop.permute.xlu0 %3396
  %3400 = vset.pattern.permute.xlu0 0
  %3401 = vperm.xlu0 %3400, %v2271
  %v3402 = vpop.permute.xlu0 %3401
  %3405 = vset.pattern.permute.xlu0 0
  %3406 = vperm.xlu0 %3405, %v2272
  %v3407 = vpop.permute.xlu0 %3406
  %v3409 = vmul.f32 %v3332, %v2161
  %v3410 = vmul.f32 %v3337, %v2162
  %v3411 = vmul.f32 %v3342, %v2163
  %v3412 = vmul.f32 %v3347, %v2164
  %v3413 = vmul.f32 %v3352, %v2165
  %v3414 = vmul.f32 %v3357, %v2166
  %v3415 = vmul.f32 %v3362, %v2167
  %v3416 = vmul.f32 %v3367, %v2168
  %v3417 = vmul.f32 %v3372, %v2169
  %v3418 = vmul.f32 %v3377, %v2170
  %v3419 = vmul.f32 %v3382, %v2171
  %v3420 = vmul.f32 %v3387, %v2172
  %v3421 = vmul.f32 %v3392, %v2173
  %v3422 = vmul.f32 %v3397, %v2174
  %v3423 = vmul.f32 %v3402, %v2175
  %v3424 = vmul.f32 %v3407, %v2176
  %v3425 = vmul.f32 %v3332, %v2177
  %v3426 = vmul.f32 %v3337, %v2178
  %v3427 = vmul.f32 %v3342, %v2179
  %v3428 = vmul.f32 %v3347, %v2180
  %v3429 = vmul.f32 %v3352, %v2181
  %v3430 = vmul.f32 %v3357, %v2182
  %v3431 = vmul.f32 %v3362, %v2183
  %v3432 = vmul.f32 %v3367, %v2184
  %v3433 = vmul.f32 %v3372, %v2185
  %v3434 = vmul.f32 %v3377, %v2186
  %v3435 = vmul.f32 %v3382, %v2187
  %v3436 = vmul.f32 %v3387, %v2188
  %v3437 = vmul.f32 %v3392, %v2189
  %v3438 = vmul.f32 %v3397, %v2190
  %v3439 = vmul.f32 %v3402, %v2191
  %v3440 = vmul.f32 %v3407, %v2192
  %3473 = vrot.lane.b32.xlu0 %v3409, 124
  %v3474 = vpop.permute.xlu0 %3473
  %3475 = vrot.lane.b32.xlu0 %v3410, 124
  %v3476 = vpop.permute.xlu0 %3475
  %3477 = vrot.lane.b32.xlu0 %v3411, 124
  %v3478 = vpop.permute.xlu0 %3477
  %3479 = vrot.lane.b32.xlu0 %v3412, 124
  %v3480 = vpop.permute.xlu0 %3479
  %3481 = vrot.lane.b32.xlu0 %v3413, 124
  %v3482 = vpop.permute.xlu0 %3481
  %3483 = vrot.lane.b32.xlu0 %v3414, 124
  %v3484 = vpop.permute.xlu0 %3483
  %3485 = vrot.lane.b32.xlu0 %v3415, 124
  %v3486 = vpop.permute.xlu0 %3485
  %3487 = vrot.lane.b32.xlu0 %v3416, 124
  %v3488 = vpop.permute.xlu0 %3487
  %3489 = vrot.lane.b32.xlu0 %v3417, 124
  %v3490 = vpop.permute.xlu0 %3489
  %3491 = vrot.lane.b32.xlu0 %v3418, 124
  %v3492 = vpop.permute.xlu0 %3491
  %3493 = vrot.lane.b32.xlu0 %v3419, 124
  %v3494 = vpop.permute.xlu0 %3493
  %3495 = vrot.lane.b32.xlu0 %v3420, 124
  %v3496 = vpop.permute.xlu0 %3495
  %3497 = vrot.lane.b32.xlu0 %v3421, 124
  %v3498 = vpop.permute.xlu0 %3497
  %3499 = vrot.lane.b32.xlu0 %v3422, 124
  %v3500 = vpop.permute.xlu0 %3499
  %3501 = vrot.lane.b32.xlu0 %v3423, 124
  %v3502 = vpop.permute.xlu0 %3501
  %3503 = vrot.lane.b32.xlu0 %v3424, 124
  %v3504 = vpop.permute.xlu0 %3503
  %3505 = vrot.lane.b32.xlu0 %v3425, 124
  %v3506 = vpop.permute.xlu0 %3505
  %3507 = vrot.lane.b32.xlu0 %v3426, 124
  %v3508 = vpop.permute.xlu0 %3507
  %3509 = vrot.lane.b32.xlu0 %v3427, 124
  %v3510 = vpop.permute.xlu0 %3509
  %3511 = vrot.lane.b32.xlu0 %v3428, 124
  %v3512 = vpop.permute.xlu0 %3511
  %3513 = vrot.lane.b32.xlu0 %v3429, 124
  %v3514 = vpop.permute.xlu0 %3513
  %3515 = vrot.lane.b32.xlu0 %v3430, 124
  %v3516 = vpop.permute.xlu0 %3515
  %3517 = vrot.lane.b32.xlu0 %v3431, 124
  %v3518 = vpop.permute.xlu0 %3517
  %3519 = vrot.lane.b32.xlu0 %v3432, 124
  %v3520 = vpop.permute.xlu0 %3519
  %3521 = vrot.lane.b32.xlu0 %v3433, 124
  %v3522 = vpop.permute.xlu0 %3521
  %3523 = vrot.lane.b32.xlu0 %v3434, 124
  %v3524 = vpop.permute.xlu0 %3523
  %3525 = vrot.lane.b32.xlu0 %v3435, 124
  %v3526 = vpop.permute.xlu0 %3525
  %3527 = vrot.lane.b32.xlu0 %v3436, 124
  %v3528 = vpop.permute.xlu0 %3527
  %3529 = vrot.lane.b32.xlu0 %v3437, 124
  %v3530 = vpop.permute.xlu0 %3529
  %3531 = vrot.lane.b32.xlu0 %v3438, 124
  %v3532 = vpop.permute.xlu0 %3531
  %3533 = vrot.lane.b32.xlu0 %v3439, 124
  %v3534 = vpop.permute.xlu0 %3533
  %3535 = vrot.lane.b32.xlu0 %v3440, 124
  %v3536 = vpop.permute.xlu0 %3535
  %v3569 = vadd.f32 %v3297, %v3474
  %v3570 = vadd.f32 %v3298, %v3476
  %v3571 = vadd.f32 %v3299, %v3478
  %v3572 = vadd.f32 %v3300, %v3480
  %v3573 = vadd.f32 %v3301, %v3482
  %v3574 = vadd.f32 %v3302, %v3484
  %v3575 = vadd.f32 %v3303, %v3486
  %v3576 = vadd.f32 %v3304, %v3488
  %v3577 = vadd.f32 %v3305, %v3490
  %v3578 = vadd.f32 %v3306, %v3492
  %v3579 = vadd.f32 %v3307, %v3494
  %v3580 = vadd.f32 %v3308, %v3496
  %v3581 = vadd.f32 %v3309, %v3498
  %v3582 = vadd.f32 %v3310, %v3500
  %v3583 = vadd.f32 %v3311, %v3502
  %v3584 = vadd.f32 %v3312, %v3504
  %v3585 = vadd.f32 %v3313, %v3506
  %v3586 = vadd.f32 %v3314, %v3508
  %v3587 = vadd.f32 %v3315, %v3510
  %v3588 = vadd.f32 %v3316, %v3512
  %v3589 = vadd.f32 %v3317, %v3514
  %v3590 = vadd.f32 %v3318, %v3516
  %v3591 = vadd.f32 %v3319, %v3518
  %v3592 = vadd.f32 %v3320, %v3520
  %v3593 = vadd.f32 %v3321, %v3522
  %v3594 = vadd.f32 %v3322, %v3524
  %v3595 = vadd.f32 %v3323, %v3526
  %v3596 = vadd.f32 %v3324, %v3528
  %v3597 = vadd.f32 %v3325, %v3530
  %v3598 = vadd.f32 %v3326, %v3532
  %v3599 = vadd.f32 %v3327, %v3534
  %v3600 = vadd.f32 %v3328, %v3536
  %3602 = vset.pattern.permute.xlu0 0
  %3603 = vperm.xlu0 %3602, %v2273
  %v3604 = vpop.permute.xlu0 %3603
  %3607 = vset.pattern.permute.xlu0 0
  %3608 = vperm.xlu0 %3607, %v2274
  %v3609 = vpop.permute.xlu0 %3608
  %3612 = vset.pattern.permute.xlu0 0
  %3613 = vperm.xlu0 %3612, %v2275
  %v3614 = vpop.permute.xlu0 %3613
  %3617 = vset.pattern.permute.xlu0 0
  %3618 = vperm.xlu0 %3617, %v2276
  %v3619 = vpop.permute.xlu0 %3618
  %3622 = vset.pattern.permute.xlu0 0
  %3623 = vperm.xlu0 %3622, %v2277
  %v3624 = vpop.permute.xlu0 %3623
  %3627 = vset.pattern.permute.xlu0 0
  %3628 = vperm.xlu0 %3627, %v2278
  %v3629 = vpop.permute.xlu0 %3628
  %3632 = vset.pattern.permute.xlu0 0
  %3633 = vperm.xlu0 %3632, %v2279
  %v3634 = vpop.permute.xlu0 %3633
  %3637 = vset.pattern.permute.xlu0 0
  %3638 = vperm.xlu0 %3637, %v2280
  %v3639 = vpop.permute.xlu0 %3638
  %3642 = vset.pattern.permute.xlu0 0
  %3643 = vperm.xlu0 %3642, %v2281
  %v3644 = vpop.permute.xlu0 %3643
  %3647 = vset.pattern.permute.xlu0 0
  %3648 = vperm.xlu0 %3647, %v2282
  %v3649 = vpop.permute.xlu0 %3648
  %3652 = vset.pattern.permute.xlu0 0
  %3653 = vperm.xlu0 %3652, %v2283
  %v3654 = vpop.permute.xlu0 %3653
  %3657 = vset.pattern.permute.xlu0 0
  %3658 = vperm.xlu0 %3657, %v2284
  %v3659 = vpop.permute.xlu0 %3658
  %3662 = vset.pattern.permute.xlu0 0
  %3663 = vperm.xlu0 %3662, %v2285
  %v3664 = vpop.permute.xlu0 %3663
  %3667 = vset.pattern.permute.xlu0 0
  %3668 = vperm.xlu0 %3667, %v2286
  %v3669 = vpop.permute.xlu0 %3668
  %3672 = vset.pattern.permute.xlu0 0
  %3673 = vperm.xlu0 %3672, %v2287
  %v3674 = vpop.permute.xlu0 %3673
  %3677 = vset.pattern.permute.xlu0 0
  %3678 = vperm.xlu0 %3677, %v2288
  %v3679 = vpop.permute.xlu0 %3678
  %v3681 = vmul.f32 %v3604, %v2161
  %v3682 = vmul.f32 %v3609, %v2162
  %v3683 = vmul.f32 %v3614, %v2163
  %v3684 = vmul.f32 %v3619, %v2164
  %v3685 = vmul.f32 %v3624, %v2165
  %v3686 = vmul.f32 %v3629, %v2166
  %v3687 = vmul.f32 %v3634, %v2167
  %v3688 = vmul.f32 %v3639, %v2168
  %v3689 = vmul.f32 %v3644, %v2169
  %v3690 = vmul.f32 %v3649, %v2170
  %v3691 = vmul.f32 %v3654, %v2171
  %v3692 = vmul.f32 %v3659, %v2172
  %v3693 = vmul.f32 %v3664, %v2173
  %v3694 = vmul.f32 %v3669, %v2174
  %v3695 = vmul.f32 %v3674, %v2175
  %v3696 = vmul.f32 %v3679, %v2176
  %v3697 = vmul.f32 %v3604, %v2177
  %v3698 = vmul.f32 %v3609, %v2178
  %v3699 = vmul.f32 %v3614, %v2179
  %v3700 = vmul.f32 %v3619, %v2180
  %v3701 = vmul.f32 %v3624, %v2181
  %v3702 = vmul.f32 %v3629, %v2182
  %v3703 = vmul.f32 %v3634, %v2183
  %v3704 = vmul.f32 %v3639, %v2184
  %v3705 = vmul.f32 %v3644, %v2185
  %v3706 = vmul.f32 %v3649, %v2186
  %v3707 = vmul.f32 %v3654, %v2187
  %v3708 = vmul.f32 %v3659, %v2188
  %v3709 = vmul.f32 %v3664, %v2189
  %v3710 = vmul.f32 %v3669, %v2190
  %v3711 = vmul.f32 %v3674, %v2191
  %v3712 = vmul.f32 %v3679, %v2192
  %3745 = vrot.lane.b32.xlu0 %v3681, 123
  %v3746 = vpop.permute.xlu0 %3745
  %3747 = vrot.lane.b32.xlu0 %v3682, 123
  %v3748 = vpop.permute.xlu0 %3747
  %3749 = vrot.lane.b32.xlu0 %v3683, 123
  %v3750 = vpop.permute.xlu0 %3749
  %3751 = vrot.lane.b32.xlu0 %v3684, 123
  %v3752 = vpop.permute.xlu0 %3751
  %3753 = vrot.lane.b32.xlu0 %v3685, 123
  %v3754 = vpop.permute.xlu0 %3753
  %3755 = vrot.lane.b32.xlu0 %v3686, 123
  %v3756 = vpop.permute.xlu0 %3755
  %3757 = vrot.lane.b32.xlu0 %v3687, 123
  %v3758 = vpop.permute.xlu0 %3757
  %3759 = vrot.lane.b32.xlu0 %v3688, 123
  %v3760 = vpop.permute.xlu0 %3759
  %3761 = vrot.lane.b32.xlu0 %v3689, 123
  %v3762 = vpop.permute.xlu0 %3761
  %3763 = vrot.lane.b32.xlu0 %v3690, 123
  %v3764 = vpop.permute.xlu0 %3763
  %3765 = vrot.lane.b32.xlu0 %v3691, 123
  %v3766 = vpop.permute.xlu0 %3765
  %3767 = vrot.lane.b32.xlu0 %v3692, 123
  %v3768 = vpop.permute.xlu0 %3767
  %3769 = vrot.lane.b32.xlu0 %v3693, 123
  %v3770 = vpop.permute.xlu0 %3769
  %3771 = vrot.lane.b32.xlu0 %v3694, 123
  %v3772 = vpop.permute.xlu0 %3771
  %3773 = vrot.lane.b32.xlu0 %v3695, 123
  %v3774 = vpop.permute.xlu0 %3773
  %3775 = vrot.lane.b32.xlu0 %v3696, 123
  %v3776 = vpop.permute.xlu0 %3775
  %3777 = vrot.lane.b32.xlu0 %v3697, 123
  %v3778 = vpop.permute.xlu0 %3777
  %3779 = vrot.lane.b32.xlu0 %v3698, 123
  %v3780 = vpop.permute.xlu0 %3779
  %3781 = vrot.lane.b32.xlu0 %v3699, 123
  %v3782 = vpop.permute.xlu0 %3781
  %3783 = vrot.lane.b32.xlu0 %v3700, 123
  %v3784 = vpop.permute.xlu0 %3783
  %3785 = vrot.lane.b32.xlu0 %v3701, 123
  %v3786 = vpop.permute.xlu0 %3785
  %3787 = vrot.lane.b32.xlu0 %v3702, 123
  %v3788 = vpop.permute.xlu0 %3787
  %3789 = vrot.lane.b32.xlu0 %v3703, 123
  %v3790 = vpop.permute.xlu0 %3789
  %3791 = vrot.lane.b32.xlu0 %v3704, 123
  %v3792 = vpop.permute.xlu0 %3791
  %3793 = vrot.lane.b32.xlu0 %v3705, 123
  %v3794 = vpop.permute.xlu0 %3793
  %3795 = vrot.lane.b32.xlu0 %v3706, 123
  %v3796 = vpop.permute.xlu0 %3795
  %3797 = vrot.lane.b32.xlu0 %v3707, 123
  %v3798 = vpop.permute.xlu0 %3797
  %3799 = vrot.lane.b32.xlu0 %v3708, 123
  %v3800 = vpop.permute.xlu0 %3799
  %3801 = vrot.lane.b32.xlu0 %v3709, 123
  %v3802 = vpop.permute.xlu0 %3801
  %3803 = vrot.lane.b32.xlu0 %v3710, 123
  %v3804 = vpop.permute.xlu0 %3803
  %3805 = vrot.lane.b32.xlu0 %v3711, 123
  %v3806 = vpop.permute.xlu0 %3805
  %3807 = vrot.lane.b32.xlu0 %v3712, 123
  %v3808 = vpop.permute.xlu0 %3807
  %v3841 = vadd.f32 %v3569, %v3746
  %v3842 = vadd.f32 %v3570, %v3748
  %v3843 = vadd.f32 %v3571, %v3750
  %v3844 = vadd.f32 %v3572, %v3752
  %v3845 = vadd.f32 %v3573, %v3754
  %v3846 = vadd.f32 %v3574, %v3756
  %v3847 = vadd.f32 %v3575, %v3758
  %v3848 = vadd.f32 %v3576, %v3760
  %v3849 = vadd.f32 %v3577, %v3762
  %v3850 = vadd.f32 %v3578, %v3764
  %v3851 = vadd.f32 %v3579, %v3766
  %v3852 = vadd.f32 %v3580, %v3768
  %v3853 = vadd.f32 %v3581, %v3770
  %v3854 = vadd.f32 %v3582, %v3772
  %v3855 = vadd.f32 %v3583, %v3774
  %v3856 = vadd.f32 %v3584, %v3776
  %v3857 = vadd.f32 %v3585, %v3778
  %v3858 = vadd.f32 %v3586, %v3780
  %v3859 = vadd.f32 %v3587, %v3782
  %v3860 = vadd.f32 %v3588, %v3784
  %v3861 = vadd.f32 %v3589, %v3786
  %v3862 = vadd.f32 %v3590, %v3788
  %v3863 = vadd.f32 %v3591, %v3790
  %v3864 = vadd.f32 %v3592, %v3792
  %v3865 = vadd.f32 %v3593, %v3794
  %v3866 = vadd.f32 %v3594, %v3796
  %v3867 = vadd.f32 %v3595, %v3798
  %v3868 = vadd.f32 %v3596, %v3800
  %v3869 = vadd.f32 %v3597, %v3802
  %v3870 = vadd.f32 %v3598, %v3804
  %v3871 = vadd.f32 %v3599, %v3806
  %v3872 = vadd.f32 %v3600, %v3808
  %3874 = vset.pattern.permute.xlu0 0
  %3875 = vperm.xlu0 %3874, %v2289
  %v3876 = vpop.permute.xlu0 %3875
  %3879 = vset.pattern.permute.xlu0 0
  %3880 = vperm.xlu0 %3879, %v2290
  %v3881 = vpop.permute.xlu0 %3880
  %3884 = vset.pattern.permute.xlu0 0
  %3885 = vperm.xlu0 %3884, %v2291
  %v3886 = vpop.permute.xlu0 %3885
  %3889 = vset.pattern.permute.xlu0 0
  %3890 = vperm.xlu0 %3889, %v2292
  %v3891 = vpop.permute.xlu0 %3890
  %3894 = vset.pattern.permute.xlu0 0
  %3895 = vperm.xlu0 %3894, %v2293
  %v3896 = vpop.permute.xlu0 %3895
  %3899 = vset.pattern.permute.xlu0 0
  %3900 = vperm.xlu0 %3899, %v2294
  %v3901 = vpop.permute.xlu0 %3900
  %3904 = vset.pattern.permute.xlu0 0
  %3905 = vperm.xlu0 %3904, %v2295
  %v3906 = vpop.permute.xlu0 %3905
  %3909 = vset.pattern.permute.xlu0 0
  %3910 = vperm.xlu0 %3909, %v2296
  %v3911 = vpop.permute.xlu0 %3910
  %3914 = vset.pattern.permute.xlu0 0
  %3915 = vperm.xlu0 %3914, %v2297
  %v3916 = vpop.permute.xlu0 %3915
  %3919 = vset.pattern.permute.xlu0 0
  %3920 = vperm.xlu0 %3919, %v2298
  %v3921 = vpop.permute.xlu0 %3920
  %3924 = vset.pattern.permute.xlu0 0
  %3925 = vperm.xlu0 %3924, %v2299
  %v3926 = vpop.permute.xlu0 %3925
  %3929 = vset.pattern.permute.xlu0 0
  %3930 = vperm.xlu0 %3929, %v2300
  %v3931 = vpop.permute.xlu0 %3930
  %3934 = vset.pattern.permute.xlu0 0
  %3935 = vperm.xlu0 %3934, %v2301
  %v3936 = vpop.permute.xlu0 %3935
  %3939 = vset.pattern.permute.xlu0 0
  %3940 = vperm.xlu0 %3939, %v2302
  %v3941 = vpop.permute.xlu0 %3940
  %3944 = vset.pattern.permute.xlu0 0
  %3945 = vperm.xlu0 %3944, %v2303
  %v3946 = vpop.permute.xlu0 %3945
  %3949 = vset.pattern.permute.xlu0 0
  %3950 = vperm.xlu0 %3949, %v2304
  %v3951 = vpop.permute.xlu0 %3950
  %v3953 = vmul.f32 %v3876, %v2161
  %v3954 = vmul.f32 %v3881, %v2162
  %v3955 = vmul.f32 %v3886, %v2163
  %v3956 = vmul.f32 %v3891, %v2164
  %v3957 = vmul.f32 %v3896, %v2165
  %v3958 = vmul.f32 %v3901, %v2166
  %v3959 = vmul.f32 %v3906, %v2167
  %v3960 = vmul.f32 %v3911, %v2168
  %v3961 = vmul.f32 %v3916, %v2169
  %v3962 = vmul.f32 %v3921, %v2170
  %v3963 = vmul.f32 %v3926, %v2171
  %v3964 = vmul.f32 %v3931, %v2172
  %v3965 = vmul.f32 %v3936, %v2173
  %v3966 = vmul.f32 %v3941, %v2174
  %v3967 = vmul.f32 %v3946, %v2175
  %v3968 = vmul.f32 %v3951, %v2176
  %v3969 = vmul.f32 %v3876, %v2177
  %v3970 = vmul.f32 %v3881, %v2178
  %v3971 = vmul.f32 %v3886, %v2179
  %v3972 = vmul.f32 %v3891, %v2180
  %v3973 = vmul.f32 %v3896, %v2181
  %v3974 = vmul.f32 %v3901, %v2182
  %v3975 = vmul.f32 %v3906, %v2183
  %v3976 = vmul.f32 %v3911, %v2184
  %v3977 = vmul.f32 %v3916, %v2185
  %v3978 = vmul.f32 %v3921, %v2186
  %v3979 = vmul.f32 %v3926, %v2187
  %v3980 = vmul.f32 %v3931, %v2188
  %v3981 = vmul.f32 %v3936, %v2189
  %v3982 = vmul.f32 %v3941, %v2190
  %v3983 = vmul.f32 %v3946, %v2191
  %v3984 = vmul.f32 %v3951, %v2192
  %4017 = vrot.lane.b32.xlu0 %v3953, 122
  %v4018 = vpop.permute.xlu0 %4017
  %4019 = vrot.lane.b32.xlu0 %v3954, 122
  %v4020 = vpop.permute.xlu0 %4019
  %4021 = vrot.lane.b32.xlu0 %v3955, 122
  %v4022 = vpop.permute.xlu0 %4021
  %4023 = vrot.lane.b32.xlu0 %v3956, 122
  %v4024 = vpop.permute.xlu0 %4023
  %4025 = vrot.lane.b32.xlu0 %v3957, 122
  %v4026 = vpop.permute.xlu0 %4025
  %4027 = vrot.lane.b32.xlu0 %v3958, 122
  %v4028 = vpop.permute.xlu0 %4027
  %4029 = vrot.lane.b32.xlu0 %v3959, 122
  %v4030 = vpop.permute.xlu0 %4029
  %4031 = vrot.lane.b32.xlu0 %v3960, 122
  %v4032 = vpop.permute.xlu0 %4031
  %4033 = vrot.lane.b32.xlu0 %v3961, 122
  %v4034 = vpop.permute.xlu0 %4033
  %4035 = vrot.lane.b32.xlu0 %v3962, 122
  %v4036 = vpop.permute.xlu0 %4035
  %4037 = vrot.lane.b32.xlu0 %v3963, 122
  %v4038 = vpop.permute.xlu0 %4037
  %4039 = vrot.lane.b32.xlu0 %v3964, 122
  %v4040 = vpop.permute.xlu0 %4039
  %4041 = vrot.lane.b32.xlu0 %v3965, 122
  %v4042 = vpop.permute.xlu0 %4041
  %4043 = vrot.lane.b32.xlu0 %v3966, 122
  %v4044 = vpop.permute.xlu0 %4043
  %4045 = vrot.lane.b32.xlu0 %v3967, 122
  %v4046 = vpop.permute.xlu0 %4045
  %4047 = vrot.lane.b32.xlu0 %v3968, 122
  %v4048 = vpop.permute.xlu0 %4047
  %4049 = vrot.lane.b32.xlu0 %v3969, 122
  %v4050 = vpop.permute.xlu0 %4049
  %4051 = vrot.lane.b32.xlu0 %v3970, 122
  %v4052 = vpop.permute.xlu0 %4051
  %4053 = vrot.lane.b32.xlu0 %v3971, 122
  %v4054 = vpop.permute.xlu0 %4053
  %4055 = vrot.lane.b32.xlu0 %v3972, 122
  %v4056 = vpop.permute.xlu0 %4055
  %4057 = vrot.lane.b32.xlu0 %v3973, 122
  %v4058 = vpop.permute.xlu0 %4057
  %4059 = vrot.lane.b32.xlu0 %v3974, 122
  %v4060 = vpop.permute.xlu0 %4059
  %4061 = vrot.lane.b32.xlu0 %v3975, 122
  %v4062 = vpop.permute.xlu0 %4061
  %4063 = vrot.lane.b32.xlu0 %v3976, 122
  %v4064 = vpop.permute.xlu0 %4063
  %4065 = vrot.lane.b32.xlu0 %v3977, 122
  %v4066 = vpop.permute.xlu0 %4065
  %4067 = vrot.lane.b32.xlu0 %v3978, 122
  %v4068 = vpop.permute.xlu0 %4067
  %4069 = vrot.lane.b32.xlu0 %v3979, 122
  %v4070 = vpop.permute.xlu0 %4069
  %4071 = vrot.lane.b32.xlu0 %v3980, 122
  %v4072 = vpop.permute.xlu0 %4071
  %4073 = vrot.lane.b32.xlu0 %v3981, 122
  %v4074 = vpop.permute.xlu0 %4073
  %4075 = vrot.lane.b32.xlu0 %v3982, 122
  %v4076 = vpop.permute.xlu0 %4075
  %4077 = vrot.lane.b32.xlu0 %v3983, 122
  %v4078 = vpop.permute.xlu0 %4077
  %4079 = vrot.lane.b32.xlu0 %v3984, 122
  %v4080 = vpop.permute.xlu0 %4079
  %v4113 = vadd.f32 %v3841, %v4018
  %v4114 = vadd.f32 %v3842, %v4020
  %v4115 = vadd.f32 %v3843, %v4022
  %v4116 = vadd.f32 %v3844, %v4024
  %v4117 = vadd.f32 %v3845, %v4026
  %v4118 = vadd.f32 %v3846, %v4028
  %v4119 = vadd.f32 %v3847, %v4030
  %v4120 = vadd.f32 %v3848, %v4032
  %v4121 = vadd.f32 %v3849, %v4034
  %v4122 = vadd.f32 %v3850, %v4036
  %v4123 = vadd.f32 %v3851, %v4038
  %v4124 = vadd.f32 %v3852, %v4040
  %v4125 = vadd.f32 %v3853, %v4042
  %v4126 = vadd.f32 %v3854, %v4044
  %v4127 = vadd.f32 %v3855, %v4046
  %v4128 = vadd.f32 %v3856, %v4048
  %v4129 = vadd.f32 %v3857, %v4050
  %v4130 = vadd.f32 %v3858, %v4052
  %v4131 = vadd.f32 %v3859, %v4054
  %v4132 = vadd.f32 %v3860, %v4056
  %v4133 = vadd.f32 %v3861, %v4058
  %v4134 = vadd.f32 %v3862, %v4060
  %v4135 = vadd.f32 %v3863, %v4062
  %v4136 = vadd.f32 %v3864, %v4064
  %v4137 = vadd.f32 %v3865, %v4066
  %v4138 = vadd.f32 %v3866, %v4068
  %v4139 = vadd.f32 %v3867, %v4070
  %v4140 = vadd.f32 %v3868, %v4072
  %v4141 = vadd.f32 %v3869, %v4074
  %v4142 = vadd.f32 %v3870, %v4076
  %v4143 = vadd.f32 %v3871, %v4078
  %v4144 = vadd.f32 %v3872, %v4080
  %4146 = vset.pattern.permute.xlu0 0
  %4147 = vperm.xlu0 %4146, %v2305
  %v4148 = vpop.permute.xlu0 %4147
  %4151 = vset.pattern.permute.xlu0 0
  %4152 = vperm.xlu0 %4151, %v2306
  %v4153 = vpop.permute.xlu0 %4152
  %4156 = vset.pattern.permute.xlu0 0
  %4157 = vperm.xlu0 %4156, %v2307
  %v4158 = vpop.permute.xlu0 %4157
  %4161 = vset.pattern.permute.xlu0 0
  %4162 = vperm.xlu0 %4161, %v2308
  %v4163 = vpop.permute.xlu0 %4162
  %4166 = vset.pattern.permute.xlu0 0
  %4167 = vperm.xlu0 %4166, %v2309
  %v4168 = vpop.permute.xlu0 %4167
  %4171 = vset.pattern.permute.xlu0 0
  %4172 = vperm.xlu0 %4171, %v2310
  %v4173 = vpop.permute.xlu0 %4172
  %4176 = vset.pattern.permute.xlu0 0
  %4177 = vperm.xlu0 %4176, %v2311
  %v4178 = vpop.permute.xlu0 %4177
  %4181 = vset.pattern.permute.xlu0 0
  %4182 = vperm.xlu0 %4181, %v2312
  %v4183 = vpop.permute.xlu0 %4182
  %4186 = vset.pattern.permute.xlu0 0
  %4187 = vperm.xlu0 %4186, %v2313
  %v4188 = vpop.permute.xlu0 %4187
  %4191 = vset.pattern.permute.xlu0 0
  %4192 = vperm.xlu0 %4191, %v2314
  %v4193 = vpop.permute.xlu0 %4192
  %4196 = vset.pattern.permute.xlu0 0
  %4197 = vperm.xlu0 %4196, %v2315
  %v4198 = vpop.permute.xlu0 %4197
  %4201 = vset.pattern.permute.xlu0 0
  %4202 = vperm.xlu0 %4201, %v2316
  %v4203 = vpop.permute.xlu0 %4202
  %4206 = vset.pattern.permute.xlu0 0
  %4207 = vperm.xlu0 %4206, %v2317
  %v4208 = vpop.permute.xlu0 %4207
  %4211 = vset.pattern.permute.xlu0 0
  %4212 = vperm.xlu0 %4211, %v2318
  %v4213 = vpop.permute.xlu0 %4212
  %4216 = vset.pattern.permute.xlu0 0
  %4217 = vperm.xlu0 %4216, %v2319
  %v4218 = vpop.permute.xlu0 %4217
  %4221 = vset.pattern.permute.xlu0 0
  %4222 = vperm.xlu0 %4221, %v2320
  %v4223 = vpop.permute.xlu0 %4222
  %v4225 = vmul.f32 %v4148, %v2161
  %v4226 = vmul.f32 %v4153, %v2162
  %v4227 = vmul.f32 %v4158, %v2163
  %v4228 = vmul.f32 %v4163, %v2164
  %v4229 = vmul.f32 %v4168, %v2165
  %v4230 = vmul.f32 %v4173, %v2166
  %v4231 = vmul.f32 %v4178, %v2167
  %v4232 = vmul.f32 %v4183, %v2168
  %v4233 = vmul.f32 %v4188, %v2169
  %v4234 = vmul.f32 %v4193, %v2170
  %v4235 = vmul.f32 %v4198, %v2171
  %v4236 = vmul.f32 %v4203, %v2172
  %v4237 = vmul.f32 %v4208, %v2173
  %v4238 = vmul.f32 %v4213, %v2174
  %v4239 = vmul.f32 %v4218, %v2175
  %v4240 = vmul.f32 %v4223, %v2176
  %v4241 = vmul.f32 %v4148, %v2177
  %v4242 = vmul.f32 %v4153, %v2178
  %v4243 = vmul.f32 %v4158, %v2179
  %v4244 = vmul.f32 %v4163, %v2180
  %v4245 = vmul.f32 %v4168, %v2181
  %v4246 = vmul.f32 %v4173, %v2182
  %v4247 = vmul.f32 %v4178, %v2183
  %v4248 = vmul.f32 %v4183, %v2184
  %v4249 = vmul.f32 %v4188, %v2185
  %v4250 = vmul.f32 %v4193, %v2186
  %v4251 = vmul.f32 %v4198, %v2187
  %v4252 = vmul.f32 %v4203, %v2188
  %v4253 = vmul.f32 %v4208, %v2189
  %v4254 = vmul.f32 %v4213, %v2190
  %v4255 = vmul.f32 %v4218, %v2191
  %v4256 = vmul.f32 %v4223, %v2192
  %4289 = vrot.lane.b32.xlu0 %v4225, 121
  %v4290 = vpop.permute.xlu0 %4289
  %4291 = vrot.lane.b32.xlu0 %v4226, 121
  %v4292 = vpop.permute.xlu0 %4291
  %4293 = vrot.lane.b32.xlu0 %v4227, 121
  %v4294 = vpop.permute.xlu0 %4293
  %4295 = vrot.lane.b32.xlu0 %v4228, 121
  %v4296 = vpop.permute.xlu0 %4295
  %4297 = vrot.lane.b32.xlu0 %v4229, 121
  %v4298 = vpop.permute.xlu0 %4297
  %4299 = vrot.lane.b32.xlu0 %v4230, 121
  %v4300 = vpop.permute.xlu0 %4299
  %4301 = vrot.lane.b32.xlu0 %v4231, 121
  %v4302 = vpop.permute.xlu0 %4301
  %4303 = vrot.lane.b32.xlu0 %v4232, 121
  %v4304 = vpop.permute.xlu0 %4303
  %4305 = vrot.lane.b32.xlu0 %v4233, 121
  %v4306 = vpop.permute.xlu0 %4305
  %4307 = vrot.lane.b32.xlu0 %v4234, 121
  %v4308 = vpop.permute.xlu0 %4307
  %4309 = vrot.lane.b32.xlu0 %v4235, 121
  %v4310 = vpop.permute.xlu0 %4309
  %4311 = vrot.lane.b32.xlu0 %v4236, 121
  %v4312 = vpop.permute.xlu0 %4311
  %4313 = vrot.lane.b32.xlu0 %v4237, 121
  %v4314 = vpop.permute.xlu0 %4313
  %4315 = vrot.lane.b32.xlu0 %v4238, 121
  %v4316 = vpop.permute.xlu0 %4315
  %4317 = vrot.lane.b32.xlu0 %v4239, 121
  %v4318 = vpop.permute.xlu0 %4317
  %4319 = vrot.lane.b32.xlu0 %v4240, 121
  %v4320 = vpop.permute.xlu0 %4319
  %4321 = vrot.lane.b32.xlu0 %v4241, 121
  %v4322 = vpop.permute.xlu0 %4321
  %4323 = vrot.lane.b32.xlu0 %v4242, 121
  %v4324 = vpop.permute.xlu0 %4323
  %4325 = vrot.lane.b32.xlu0 %v4243, 121
  %v4326 = vpop.permute.xlu0 %4325
  %4327 = vrot.lane.b32.xlu0 %v4244, 121
  %v4328 = vpop.permute.xlu0 %4327
  %4329 = vrot.lane.b32.xlu0 %v4245, 121
  %v4330 = vpop.permute.xlu0 %4329
  %4331 = vrot.lane.b32.xlu0 %v4246, 121
  %v4332 = vpop.permute.xlu0 %4331
  %4333 = vrot.lane.b32.xlu0 %v4247, 121
  %v4334 = vpop.permute.xlu0 %4333
  %4335 = vrot.lane.b32.xlu0 %v4248, 121
  %v4336 = vpop.permute.xlu0 %4335
  %4337 = vrot.lane.b32.xlu0 %v4249, 121
  %v4338 = vpop.permute.xlu0 %4337
  %4339 = vrot.lane.b32.xlu0 %v4250, 121
  %v4340 = vpop.permute.xlu0 %4339
  %4341 = vrot.lane.b32.xlu0 %v4251, 121
  %v4342 = vpop.permute.xlu0 %4341
  %4343 = vrot.lane.b32.xlu0 %v4252, 121
  %v4344 = vpop.permute.xlu0 %4343
  %4345 = vrot.lane.b32.xlu0 %v4253, 121
  %v4346 = vpop.permute.xlu0 %4345
  %4347 = vrot.lane.b32.xlu0 %v4254, 121
  %v4348 = vpop.permute.xlu0 %4347
  %4349 = vrot.lane.b32.xlu0 %v4255, 121
  %v4350 = vpop.permute.xlu0 %4349
  %4351 = vrot.lane.b32.xlu0 %v4256, 121
  %v4352 = vpop.permute.xlu0 %4351
  %v4385 = vadd.f32 %v4113, %v4290
  %v4386 = vadd.f32 %v4114, %v4292
  %v4387 = vadd.f32 %v4115, %v4294
  %v4388 = vadd.f32 %v4116, %v4296
  %v4389 = vadd.f32 %v4117, %v4298
  %v4390 = vadd.f32 %v4118, %v4300
  %v4391 = vadd.f32 %v4119, %v4302
  %v4392 = vadd.f32 %v4120, %v4304
  %v4393 = vadd.f32 %v4121, %v4306
  %v4394 = vadd.f32 %v4122, %v4308
  %v4395 = vadd.f32 %v4123, %v4310
  %v4396 = vadd.f32 %v4124, %v4312
  %v4397 = vadd.f32 %v4125, %v4314
  %v4398 = vadd.f32 %v4126, %v4316
  %v4399 = vadd.f32 %v4127, %v4318
  %v4400 = vadd.f32 %v4128, %v4320
  %v4401 = vadd.f32 %v4129, %v4322
  %v4402 = vadd.f32 %v4130, %v4324
  %v4403 = vadd.f32 %v4131, %v4326
  %v4404 = vadd.f32 %v4132, %v4328
  %v4405 = vadd.f32 %v4133, %v4330
  %v4406 = vadd.f32 %v4134, %v4332
  %v4407 = vadd.f32 %v4135, %v4334
  %v4408 = vadd.f32 %v4136, %v4336
  %v4409 = vadd.f32 %v4137, %v4338
  %v4410 = vadd.f32 %v4138, %v4340
  %v4411 = vadd.f32 %v4139, %v4342
  %v4412 = vadd.f32 %v4140, %v4344
  %v4413 = vadd.f32 %v4141, %v4346
  %v4414 = vadd.f32 %v4142, %v4348
  %v4415 = vadd.f32 %v4143, %v4350
  %v4416 = vadd.f32 %v4144, %v4352
  %4418 = vset.pattern.permute.xlu0 0
  %4419 = vperm.xlu0 %4418, %v2321
  %v4420 = vpop.permute.xlu0 %4419
  %4423 = vset.pattern.permute.xlu0 0
  %4424 = vperm.xlu0 %4423, %v2322
  %v4425 = vpop.permute.xlu0 %4424
  %4428 = vset.pattern.permute.xlu0 0
  %4429 = vperm.xlu0 %4428, %v2323
  %v4430 = vpop.permute.xlu0 %4429
  %4433 = vset.pattern.permute.xlu0 0
  %4434 = vperm.xlu0 %4433, %v2324
  %v4435 = vpop.permute.xlu0 %4434
  %4438 = vset.pattern.permute.xlu0 0
  %4439 = vperm.xlu0 %4438, %v2325
  %v4440 = vpop.permute.xlu0 %4439
  %4443 = vset.pattern.permute.xlu0 0
  %4444 = vperm.xlu0 %4443, %v2326
  %v4445 = vpop.permute.xlu0 %4444
  %4448 = vset.pattern.permute.xlu0 0
  %4449 = vperm.xlu0 %4448, %v2327
  %v4450 = vpop.permute.xlu0 %4449
  %4453 = vset.pattern.permute.xlu0 0
  %4454 = vperm.xlu0 %4453, %v2328
  %v4455 = vpop.permute.xlu0 %4454
  %4458 = vset.pattern.permute.xlu0 0
  %4459 = vperm.xlu0 %4458, %v2329
  %v4460 = vpop.permute.xlu0 %4459
  %4463 = vset.pattern.permute.xlu0 0
  %4464 = vperm.xlu0 %4463, %v2330
  %v4465 = vpop.permute.xlu0 %4464
  %4468 = vset.pattern.permute.xlu0 0
  %4469 = vperm.xlu0 %4468, %v2331
  %v4470 = vpop.permute.xlu0 %4469
  %4473 = vset.pattern.permute.xlu0 0
  %4474 = vperm.xlu0 %4473, %v2332
  %v4475 = vpop.permute.xlu0 %4474
  %4478 = vset.pattern.permute.xlu0 0
  %4479 = vperm.xlu0 %4478, %v2333
  %v4480 = vpop.permute.xlu0 %4479
  %4483 = vset.pattern.permute.xlu0 0
  %4484 = vperm.xlu0 %4483, %v2334
  %v4485 = vpop.permute.xlu0 %4484
  %4488 = vset.pattern.permute.xlu0 0
  %4489 = vperm.xlu0 %4488, %v2335
  %v4490 = vpop.permute.xlu0 %4489
  %4493 = vset.pattern.permute.xlu0 0
  %4494 = vperm.xlu0 %4493, %v2336
  %v4495 = vpop.permute.xlu0 %4494
  %v4497 = vmul.f32 %v4420, %v2161
  %v4498 = vmul.f32 %v4425, %v2162
  %v4499 = vmul.f32 %v4430, %v2163
  %v4500 = vmul.f32 %v4435, %v2164
  %v4501 = vmul.f32 %v4440, %v2165
  %v4502 = vmul.f32 %v4445, %v2166
  %v4503 = vmul.f32 %v4450, %v2167
  %v4504 = vmul.f32 %v4455, %v2168
  %v4505 = vmul.f32 %v4460, %v2169
  %v4506 = vmul.f32 %v4465, %v2170
  %v4507 = vmul.f32 %v4470, %v2171
  %v4508 = vmul.f32 %v4475, %v2172
  %v4509 = vmul.f32 %v4480, %v2173
  %v4510 = vmul.f32 %v4485, %v2174
  %v4511 = vmul.f32 %v4490, %v2175
  %v4512 = vmul.f32 %v4495, %v2176
  %v4513 = vmul.f32 %v4420, %v2177
  %v4514 = vmul.f32 %v4425, %v2178
  %v4515 = vmul.f32 %v4430, %v2179
  %v4516 = vmul.f32 %v4435, %v2180
  %v4517 = vmul.f32 %v4440, %v2181
  %v4518 = vmul.f32 %v4445, %v2182
  %v4519 = vmul.f32 %v4450, %v2183
  %v4520 = vmul.f32 %v4455, %v2184
  %v4521 = vmul.f32 %v4460, %v2185
  %v4522 = vmul.f32 %v4465, %v2186
  %v4523 = vmul.f32 %v4470, %v2187
  %v4524 = vmul.f32 %v4475, %v2188
  %v4525 = vmul.f32 %v4480, %v2189
  %v4526 = vmul.f32 %v4485, %v2190
  %v4527 = vmul.f32 %v4490, %v2191
  %v4528 = vmul.f32 %v4495, %v2192
  %4561 = vrot.lane.b32.xlu0 %v4497, 120
  %v4562 = vpop.permute.xlu0 %4561
  %4563 = vrot.lane.b32.xlu0 %v4498, 120
  %v4564 = vpop.permute.xlu0 %4563
  %4565 = vrot.lane.b32.xlu0 %v4499, 120
  %v4566 = vpop.permute.xlu0 %4565
  %4567 = vrot.lane.b32.xlu0 %v4500, 120
  %v4568 = vpop.permute.xlu0 %4567
  %4569 = vrot.lane.b32.xlu0 %v4501, 120
  %v4570 = vpop.permute.xlu0 %4569
  %4571 = vrot.lane.b32.xlu0 %v4502, 120
  %v4572 = vpop.permute.xlu0 %4571
  %4573 = vrot.lane.b32.xlu0 %v4503, 120
  %v4574 = vpop.permute.xlu0 %4573
  %4575 = vrot.lane.b32.xlu0 %v4504, 120
  %v4576 = vpop.permute.xlu0 %4575
  %4577 = vrot.lane.b32.xlu0 %v4505, 120
  %v4578 = vpop.permute.xlu0 %4577
  %4579 = vrot.lane.b32.xlu0 %v4506, 120
  %v4580 = vpop.permute.xlu0 %4579
  %4581 = vrot.lane.b32.xlu0 %v4507, 120
  %v4582 = vpop.permute.xlu0 %4581
  %4583 = vrot.lane.b32.xlu0 %v4508, 120
  %v4584 = vpop.permute.xlu0 %4583
  %4585 = vrot.lane.b32.xlu0 %v4509, 120
  %v4586 = vpop.permute.xlu0 %4585
  %4587 = vrot.lane.b32.xlu0 %v4510, 120
  %v4588 = vpop.permute.xlu0 %4587
  %4589 = vrot.lane.b32.xlu0 %v4511, 120
  %v4590 = vpop.permute.xlu0 %4589
  %4591 = vrot.lane.b32.xlu0 %v4512, 120
  %v4592 = vpop.permute.xlu0 %4591
  %4593 = vrot.lane.b32.xlu0 %v4513, 120
  %v4594 = vpop.permute.xlu0 %4593
  %4595 = vrot.lane.b32.xlu0 %v4514, 120
  %v4596 = vpop.permute.xlu0 %4595
  %4597 = vrot.lane.b32.xlu0 %v4515, 120
  %v4598 = vpop.permute.xlu0 %4597
  %4599 = vrot.lane.b32.xlu0 %v4516, 120
  %v4600 = vpop.permute.xlu0 %4599
  %4601 = vrot.lane.b32.xlu0 %v4517, 120
  %v4602 = vpop.permute.xlu0 %4601
  %4603 = vrot.lane.b32.xlu0 %v4518, 120
  %v4604 = vpop.permute.xlu0 %4603
  %4605 = vrot.lane.b32.xlu0 %v4519, 120
  %v4606 = vpop.permute.xlu0 %4605
  %4607 = vrot.lane.b32.xlu0 %v4520, 120
  %v4608 = vpop.permute.xlu0 %4607
  %4609 = vrot.lane.b32.xlu0 %v4521, 120
  %v4610 = vpop.permute.xlu0 %4609
  %4611 = vrot.lane.b32.xlu0 %v4522, 120
  %v4612 = vpop.permute.xlu0 %4611
  %4613 = vrot.lane.b32.xlu0 %v4523, 120
  %v4614 = vpop.permute.xlu0 %4613
  %4615 = vrot.lane.b32.xlu0 %v4524, 120
  %v4616 = vpop.permute.xlu0 %4615
  %4617 = vrot.lane.b32.xlu0 %v4525, 120
  %v4618 = vpop.permute.xlu0 %4617
  %4619 = vrot.lane.b32.xlu0 %v4526, 120
  %v4620 = vpop.permute.xlu0 %4619
  %4621 = vrot.lane.b32.xlu0 %v4527, 120
  %v4622 = vpop.permute.xlu0 %4621
  %4623 = vrot.lane.b32.xlu0 %v4528, 120
  %v4624 = vpop.permute.xlu0 %4623
  %v4657 = vadd.f32 %v4385, %v4562
  %v4658 = vadd.f32 %v4386, %v4564
  %v4659 = vadd.f32 %v4387, %v4566
  %v4660 = vadd.f32 %v4388, %v4568
  %v4661 = vadd.f32 %v4389, %v4570
  %v4662 = vadd.f32 %v4390, %v4572
  %v4663 = vadd.f32 %v4391, %v4574
  %v4664 = vadd.f32 %v4392, %v4576
  %v4665 = vadd.f32 %v4393, %v4578
  %v4666 = vadd.f32 %v4394, %v4580
  %v4667 = vadd.f32 %v4395, %v4582
  %v4668 = vadd.f32 %v4396, %v4584
  %v4669 = vadd.f32 %v4397, %v4586
  %v4670 = vadd.f32 %v4398, %v4588
  %v4671 = vadd.f32 %v4399, %v4590
  %v4672 = vadd.f32 %v4400, %v4592
  %v4673 = vadd.f32 %v4401, %v4594
  %v4674 = vadd.f32 %v4402, %v4596
  %v4675 = vadd.f32 %v4403, %v4598
  %v4676 = vadd.f32 %v4404, %v4600
  %v4677 = vadd.f32 %v4405, %v4602
  %v4678 = vadd.f32 %v4406, %v4604
  %v4679 = vadd.f32 %v4407, %v4606
  %v4680 = vadd.f32 %v4408, %v4608
  %v4681 = vadd.f32 %v4409, %v4610
  %v4682 = vadd.f32 %v4410, %v4612
  %v4683 = vadd.f32 %v4411, %v4614
  %v4684 = vadd.f32 %v4412, %v4616
  %v4685 = vadd.f32 %v4413, %v4618
  %v4686 = vadd.f32 %v4414, %v4620
  %v4687 = vadd.f32 %v4415, %v4622
  %v4688 = vadd.f32 %v4416, %v4624
  %4690 = vset.pattern.permute.xlu0 0
  %4691 = vperm.xlu0 %4690, %v2337
  %v4692 = vpop.permute.xlu0 %4691
  %4695 = vset.pattern.permute.xlu0 0
  %4696 = vperm.xlu0 %4695, %v2338
  %v4697 = vpop.permute.xlu0 %4696
  %4700 = vset.pattern.permute.xlu0 0
  %4701 = vperm.xlu0 %4700, %v2339
  %v4702 = vpop.permute.xlu0 %4701
  %4705 = vset.pattern.permute.xlu0 0
  %4706 = vperm.xlu0 %4705, %v2340
  %v4707 = vpop.permute.xlu0 %4706
  %4710 = vset.pattern.permute.xlu0 0
  %4711 = vperm.xlu0 %4710, %v2341
  %v4712 = vpop.permute.xlu0 %4711
  %4715 = vset.pattern.permute.xlu0 0
  %4716 = vperm.xlu0 %4715, %v2342
  %v4717 = vpop.permute.xlu0 %4716
  %4720 = vset.pattern.permute.xlu0 0
  %4721 = vperm.xlu0 %4720, %v2343
  %v4722 = vpop.permute.xlu0 %4721
  %4725 = vset.pattern.permute.xlu0 0
  %4726 = vperm.xlu0 %4725, %v2344
  %v4727 = vpop.permute.xlu0 %4726
  %4730 = vset.pattern.permute.xlu0 0
  %4731 = vperm.xlu0 %4730, %v2345
  %v4732 = vpop.permute.xlu0 %4731
  %4735 = vset.pattern.permute.xlu0 0
  %4736 = vperm.xlu0 %4735, %v2346
  %v4737 = vpop.permute.xlu0 %4736
  %4740 = vset.pattern.permute.xlu0 0
  %4741 = vperm.xlu0 %4740, %v2347
  %v4742 = vpop.permute.xlu0 %4741
  %4745 = vset.pattern.permute.xlu0 0
  %4746 = vperm.xlu0 %4745, %v2348
  %v4747 = vpop.permute.xlu0 %4746
  %4750 = vset.pattern.permute.xlu0 0
  %4751 = vperm.xlu0 %4750, %v2349
  %v4752 = vpop.permute.xlu0 %4751
  %4755 = vset.pattern.permute.xlu0 0
  %4756 = vperm.xlu0 %4755, %v2350
  %v4757 = vpop.permute.xlu0 %4756
  %4760 = vset.pattern.permute.xlu0 0
  %4761 = vperm.xlu0 %4760, %v2351
  %v4762 = vpop.permute.xlu0 %4761
  %4765 = vset.pattern.permute.xlu0 0
  %4766 = vperm.xlu0 %4765, %v2352
  %v4767 = vpop.permute.xlu0 %4766
  %v4769 = vmul.f32 %v4692, %v2161
  %v4770 = vmul.f32 %v4697, %v2162
  %v4771 = vmul.f32 %v4702, %v2163
  %v4772 = vmul.f32 %v4707, %v2164
  %v4773 = vmul.f32 %v4712, %v2165
  %v4774 = vmul.f32 %v4717, %v2166
  %v4775 = vmul.f32 %v4722, %v2167
  %v4776 = vmul.f32 %v4727, %v2168
  %v4777 = vmul.f32 %v4732, %v2169
  %v4778 = vmul.f32 %v4737, %v2170
  %v4779 = vmul.f32 %v4742, %v2171
  %v4780 = vmul.f32 %v4747, %v2172
  %v4781 = vmul.f32 %v4752, %v2173
  %v4782 = vmul.f32 %v4757, %v2174
  %v4783 = vmul.f32 %v4762, %v2175
  %v4784 = vmul.f32 %v4767, %v2176
  %v4785 = vmul.f32 %v4692, %v2177
  %v4786 = vmul.f32 %v4697, %v2178
  %v4787 = vmul.f32 %v4702, %v2179
  %v4788 = vmul.f32 %v4707, %v2180
  %v4789 = vmul.f32 %v4712, %v2181
  %v4790 = vmul.f32 %v4717, %v2182
  %v4791 = vmul.f32 %v4722, %v2183
  %v4792 = vmul.f32 %v4727, %v2184
  %v4793 = vmul.f32 %v4732, %v2185
  %v4794 = vmul.f32 %v4737, %v2186
  %v4795 = vmul.f32 %v4742, %v2187
  %v4796 = vmul.f32 %v4747, %v2188
  %v4797 = vmul.f32 %v4752, %v2189
  %v4798 = vmul.f32 %v4757, %v2190
  %v4799 = vmul.f32 %v4762, %v2191
  %v4800 = vmul.f32 %v4767, %v2192
  %4833 = vrot.lane.b32.xlu0 %v4769, 119
  %v4834 = vpop.permute.xlu0 %4833
  %4835 = vrot.lane.b32.xlu0 %v4770, 119
  %v4836 = vpop.permute.xlu0 %4835
  %4837 = vrot.lane.b32.xlu0 %v4771, 119
  %v4838 = vpop.permute.xlu0 %4837
  %4839 = vrot.lane.b32.xlu0 %v4772, 119
  %v4840 = vpop.permute.xlu0 %4839
  %4841 = vrot.lane.b32.xlu0 %v4773, 119
  %v4842 = vpop.permute.xlu0 %4841
  %4843 = vrot.lane.b32.xlu0 %v4774, 119
  %v4844 = vpop.permute.xlu0 %4843
  %4845 = vrot.lane.b32.xlu0 %v4775, 119
  %v4846 = vpop.permute.xlu0 %4845
  %4847 = vrot.lane.b32.xlu0 %v4776, 119
  %v4848 = vpop.permute.xlu0 %4847
  %4849 = vrot.lane.b32.xlu0 %v4777, 119
  %v4850 = vpop.permute.xlu0 %4849
  %4851 = vrot.lane.b32.xlu0 %v4778, 119
  %v4852 = vpop.permute.xlu0 %4851
  %4853 = vrot.lane.b32.xlu0 %v4779, 119
  %v4854 = vpop.permute.xlu0 %4853
  %4855 = vrot.lane.b32.xlu0 %v4780, 119
  %v4856 = vpop.permute.xlu0 %4855
  %4857 = vrot.lane.b32.xlu0 %v4781, 119
  %v4858 = vpop.permute.xlu0 %4857
  %4859 = vrot.lane.b32.xlu0 %v4782, 119
  %v4860 = vpop.permute.xlu0 %4859
  %4861 = vrot.lane.b32.xlu0 %v4783, 119
  %v4862 = vpop.permute.xlu0 %4861
  %4863 = vrot.lane.b32.xlu0 %v4784, 119
  %v4864 = vpop.permute.xlu0 %4863
  %4865 = vrot.lane.b32.xlu0 %v4785, 119
  %v4866 = vpop.permute.xlu0 %4865
  %4867 = vrot.lane.b32.xlu0 %v4786, 119
  %v4868 = vpop.permute.xlu0 %4867
  %4869 = vrot.lane.b32.xlu0 %v4787, 119
  %v4870 = vpop.permute.xlu0 %4869
  %4871 = vrot.lane.b32.xlu0 %v4788, 119
  %v4872 = vpop.permute.xlu0 %4871
  %4873 = vrot.lane.b32.xlu0 %v4789, 119
  %v4874 = vpop.permute.xlu0 %4873
  %4875 = vrot.lane.b32.xlu0 %v4790, 119
  %v4876 = vpop.permute.xlu0 %4875
  %4877 = vrot.lane.b32.xlu0 %v4791, 119
  %v4878 = vpop.permute.xlu0 %4877
  %4879 = vrot.lane.b32.xlu0 %v4792, 119
  %v4880 = vpop.permute.xlu0 %4879
  %4881 = vrot.lane.b32.xlu0 %v4793, 119
  %v4882 = vpop.permute.xlu0 %4881
  %4883 = vrot.lane.b32.xlu0 %v4794, 119
  %v4884 = vpop.permute.xlu0 %4883
  %4885 = vrot.lane.b32.xlu0 %v4795, 119
  %v4886 = vpop.permute.xlu0 %4885
  %4887 = vrot.lane.b32.xlu0 %v4796, 119
  %v4888 = vpop.permute.xlu0 %4887
  %4889 = vrot.lane.b32.xlu0 %v4797, 119
  %v4890 = vpop.permute.xlu0 %4889
  %4891 = vrot.lane.b32.xlu0 %v4798, 119
  %v4892 = vpop.permute.xlu0 %4891
  %4893 = vrot.lane.b32.xlu0 %v4799, 119
  %v4894 = vpop.permute.xlu0 %4893
  %4895 = vrot.lane.b32.xlu0 %v4800, 119
  %v4896 = vpop.permute.xlu0 %4895
  %v4929 = vadd.f32 %v4657, %v4834
  %v4930 = vadd.f32 %v4658, %v4836
  %v4931 = vadd.f32 %v4659, %v4838
  %v4932 = vadd.f32 %v4660, %v4840
  %v4933 = vadd.f32 %v4661, %v4842
  %v4934 = vadd.f32 %v4662, %v4844
  %v4935 = vadd.f32 %v4663, %v4846
  %v4936 = vadd.f32 %v4664, %v4848
  %v4937 = vadd.f32 %v4665, %v4850
  %v4938 = vadd.f32 %v4666, %v4852
  %v4939 = vadd.f32 %v4667, %v4854
  %v4940 = vadd.f32 %v4668, %v4856
  %v4941 = vadd.f32 %v4669, %v4858
  %v4942 = vadd.f32 %v4670, %v4860
  %v4943 = vadd.f32 %v4671, %v4862
  %v4944 = vadd.f32 %v4672, %v4864
  %v4945 = vadd.f32 %v4673, %v4866
  %v4946 = vadd.f32 %v4674, %v4868
  %v4947 = vadd.f32 %v4675, %v4870
  %v4948 = vadd.f32 %v4676, %v4872
  %v4949 = vadd.f32 %v4677, %v4874
  %v4950 = vadd.f32 %v4678, %v4876
  %v4951 = vadd.f32 %v4679, %v4878
  %v4952 = vadd.f32 %v4680, %v4880
  %v4953 = vadd.f32 %v4681, %v4882
  %v4954 = vadd.f32 %v4682, %v4884
  %v4955 = vadd.f32 %v4683, %v4886
  %v4956 = vadd.f32 %v4684, %v4888
  %v4957 = vadd.f32 %v4685, %v4890
  %v4958 = vadd.f32 %v4686, %v4892
  %v4959 = vadd.f32 %v4687, %v4894
  %v4960 = vadd.f32 %v4688, %v4896
  %4962 = vset.pattern.permute.xlu0 0
  %4963 = vperm.xlu0 %4962, %v2353
  %v4964 = vpop.permute.xlu0 %4963
  %4967 = vset.pattern.permute.xlu0 0
  %4968 = vperm.xlu0 %4967, %v2354
  %v4969 = vpop.permute.xlu0 %4968
  %4972 = vset.pattern.permute.xlu0 0
  %4973 = vperm.xlu0 %4972, %v2355
  %v4974 = vpop.permute.xlu0 %4973
  %4977 = vset.pattern.permute.xlu0 0
  %4978 = vperm.xlu0 %4977, %v2356
  %v4979 = vpop.permute.xlu0 %4978
  %4982 = vset.pattern.permute.xlu0 0
  %4983 = vperm.xlu0 %4982, %v2357
  %v4984 = vpop.permute.xlu0 %4983
  %4987 = vset.pattern.permute.xlu0 0
  %4988 = vperm.xlu0 %4987, %v2358
  %v4989 = vpop.permute.xlu0 %4988
  %4992 = vset.pattern.permute.xlu0 0
  %4993 = vperm.xlu0 %4992, %v2359
  %v4994 = vpop.permute.xlu0 %4993
  %4997 = vset.pattern.permute.xlu0 0
  %4998 = vperm.xlu0 %4997, %v2360
  %v4999 = vpop.permute.xlu0 %4998
  %5002 = vset.pattern.permute.xlu0 0
  %5003 = vperm.xlu0 %5002, %v2361
  %v5004 = vpop.permute.xlu0 %5003
  %5007 = vset.pattern.permute.xlu0 0
  %5008 = vperm.xlu0 %5007, %v2362
  %v5009 = vpop.permute.xlu0 %5008
  %5012 = vset.pattern.permute.xlu0 0
  %5013 = vperm.xlu0 %5012, %v2363
  %v5014 = vpop.permute.xlu0 %5013
  %5017 = vset.pattern.permute.xlu0 0
  %5018 = vperm.xlu0 %5017, %v2364
  %v5019 = vpop.permute.xlu0 %5018
  %5022 = vset.pattern.permute.xlu0 0
  %5023 = vperm.xlu0 %5022, %v2365
  %v5024 = vpop.permute.xlu0 %5023
  %5027 = vset.pattern.permute.xlu0 0
  %5028 = vperm.xlu0 %5027, %v2366
  %v5029 = vpop.permute.xlu0 %5028
  %5032 = vset.pattern.permute.xlu0 0
  %5033 = vperm.xlu0 %5032, %v2367
  %v5034 = vpop.permute.xlu0 %5033
  %5037 = vset.pattern.permute.xlu0 0
  %5038 = vperm.xlu0 %5037, %v2368
  %v5039 = vpop.permute.xlu0 %5038
  %v5041 = vmul.f32 %v4964, %v2161
  %v5042 = vmul.f32 %v4969, %v2162
  %v5043 = vmul.f32 %v4974, %v2163
  %v5044 = vmul.f32 %v4979, %v2164
  %v5045 = vmul.f32 %v4984, %v2165
  %v5046 = vmul.f32 %v4989, %v2166
  %v5047 = vmul.f32 %v4994, %v2167
  %v5048 = vmul.f32 %v4999, %v2168
  %v5049 = vmul.f32 %v5004, %v2169
  %v5050 = vmul.f32 %v5009, %v2170
  %v5051 = vmul.f32 %v5014, %v2171
  %v5052 = vmul.f32 %v5019, %v2172
  %v5053 = vmul.f32 %v5024, %v2173
  %v5054 = vmul.f32 %v5029, %v2174
  %v5055 = vmul.f32 %v5034, %v2175
  %v5056 = vmul.f32 %v5039, %v2176
  %v5057 = vmul.f32 %v4964, %v2177
  %v5058 = vmul.f32 %v4969, %v2178
  %v5059 = vmul.f32 %v4974, %v2179
  %v5060 = vmul.f32 %v4979, %v2180
  %v5061 = vmul.f32 %v4984, %v2181
  %v5062 = vmul.f32 %v4989, %v2182
  %v5063 = vmul.f32 %v4994, %v2183
  %v5064 = vmul.f32 %v4999, %v2184
  %v5065 = vmul.f32 %v5004, %v2185
  %v5066 = vmul.f32 %v5009, %v2186
  %v5067 = vmul.f32 %v5014, %v2187
  %v5068 = vmul.f32 %v5019, %v2188
  %v5069 = vmul.f32 %v5024, %v2189
  %v5070 = vmul.f32 %v5029, %v2190
  %v5071 = vmul.f32 %v5034, %v2191
  %v5072 = vmul.f32 %v5039, %v2192
  %5105 = vrot.lane.b32.xlu0 %v5041, 118
  %v5106 = vpop.permute.xlu0 %5105
  %5107 = vrot.lane.b32.xlu0 %v5042, 118
  %v5108 = vpop.permute.xlu0 %5107
  %5109 = vrot.lane.b32.xlu0 %v5043, 118
  %v5110 = vpop.permute.xlu0 %5109
  %5111 = vrot.lane.b32.xlu0 %v5044, 118
  %v5112 = vpop.permute.xlu0 %5111
  %5113 = vrot.lane.b32.xlu0 %v5045, 118
  %v5114 = vpop.permute.xlu0 %5113
  %5115 = vrot.lane.b32.xlu0 %v5046, 118
  %v5116 = vpop.permute.xlu0 %5115
  %5117 = vrot.lane.b32.xlu0 %v5047, 118
  %v5118 = vpop.permute.xlu0 %5117
  %5119 = vrot.lane.b32.xlu0 %v5048, 118
  %v5120 = vpop.permute.xlu0 %5119
  %5121 = vrot.lane.b32.xlu0 %v5049, 118
  %v5122 = vpop.permute.xlu0 %5121
  %5123 = vrot.lane.b32.xlu0 %v5050, 118
  %v5124 = vpop.permute.xlu0 %5123
  %5125 = vrot.lane.b32.xlu0 %v5051, 118
  %v5126 = vpop.permute.xlu0 %5125
  %5127 = vrot.lane.b32.xlu0 %v5052, 118
  %v5128 = vpop.permute.xlu0 %5127
  %5129 = vrot.lane.b32.xlu0 %v5053, 118
  %v5130 = vpop.permute.xlu0 %5129
  %5131 = vrot.lane.b32.xlu0 %v5054, 118
  %v5132 = vpop.permute.xlu0 %5131
  %5133 = vrot.lane.b32.xlu0 %v5055, 118
  %v5134 = vpop.permute.xlu0 %5133
  %5135 = vrot.lane.b32.xlu0 %v5056, 118
  %v5136 = vpop.permute.xlu0 %5135
  %5137 = vrot.lane.b32.xlu0 %v5057, 118
  %v5138 = vpop.permute.xlu0 %5137
  %5139 = vrot.lane.b32.xlu0 %v5058, 118
  %v5140 = vpop.permute.xlu0 %5139
  %5141 = vrot.lane.b32.xlu0 %v5059, 118
  %v5142 = vpop.permute.xlu0 %5141
  %5143 = vrot.lane.b32.xlu0 %v5060, 118
  %v5144 = vpop.permute.xlu0 %5143
  %5145 = vrot.lane.b32.xlu0 %v5061, 118
  %v5146 = vpop.permute.xlu0 %5145
  %5147 = vrot.lane.b32.xlu0 %v5062, 118
  %v5148 = vpop.permute.xlu0 %5147
  %5149 = vrot.lane.b32.xlu0 %v5063, 118
  %v5150 = vpop.permute.xlu0 %5149
  %5151 = vrot.lane.b32.xlu0 %v5064, 118
  %v5152 = vpop.permute.xlu0 %5151
  %5153 = vrot.lane.b32.xlu0 %v5065, 118
  %v5154 = vpop.permute.xlu0 %5153
  %5155 = vrot.lane.b32.xlu0 %v5066, 118
  %v5156 = vpop.permute.xlu0 %5155
  %5157 = vrot.lane.b32.xlu0 %v5067, 118
  %v5158 = vpop.permute.xlu0 %5157
  %5159 = vrot.lane.b32.xlu0 %v5068, 118
  %v5160 = vpop.permute.xlu0 %5159
  %5161 = vrot.lane.b32.xlu0 %v5069, 118
  %v5162 = vpop.permute.xlu0 %5161
  %5163 = vrot.lane.b32.xlu0 %v5070, 118
  %v5164 = vpop.permute.xlu0 %5163
  %5165 = vrot.lane.b32.xlu0 %v5071, 118
  %v5166 = vpop.permute.xlu0 %5165
  %5167 = vrot.lane.b32.xlu0 %v5072, 118
  %v5168 = vpop.permute.xlu0 %5167
  %v5201 = vadd.f32 %v4929, %v5106
  %v5202 = vadd.f32 %v4930, %v5108
  %v5203 = vadd.f32 %v4931, %v5110
  %v5204 = vadd.f32 %v4932, %v5112
  %v5205 = vadd.f32 %v4933, %v5114
  %v5206 = vadd.f32 %v4934, %v5116
  %v5207 = vadd.f32 %v4935, %v5118
  %v5208 = vadd.f32 %v4936, %v5120
  %v5209 = vadd.f32 %v4937, %v5122
  %v5210 = vadd.f32 %v4938, %v5124
  %v5211 = vadd.f32 %v4939, %v5126
  %v5212 = vadd.f32 %v4940, %v5128
  %v5213 = vadd.f32 %v4941, %v5130
  %v5214 = vadd.f32 %v4942, %v5132
  %v5215 = vadd.f32 %v4943, %v5134
  %v5216 = vadd.f32 %v4944, %v5136
  %v5217 = vadd.f32 %v4945, %v5138
  %v5218 = vadd.f32 %v4946, %v5140
  %v5219 = vadd.f32 %v4947, %v5142
  %v5220 = vadd.f32 %v4948, %v5144
  %v5221 = vadd.f32 %v4949, %v5146
  %v5222 = vadd.f32 %v4950, %v5148
  %v5223 = vadd.f32 %v4951, %v5150
  %v5224 = vadd.f32 %v4952, %v5152
  %v5225 = vadd.f32 %v4953, %v5154
  %v5226 = vadd.f32 %v4954, %v5156
  %v5227 = vadd.f32 %v4955, %v5158
  %v5228 = vadd.f32 %v4956, %v5160
  %v5229 = vadd.f32 %v4957, %v5162
  %v5230 = vadd.f32 %v4958, %v5164
  %v5231 = vadd.f32 %v4959, %v5166
  %v5232 = vadd.f32 %v4960, %v5168
  %v5233 = vld [vmem:[%s33] sm:$0xff]
  %v5234 = vld [vmem:[%s33 + $0x8] sm:$0xff]
  %v5235 = vld [vmem:[%s33 + $0x10] sm:$0xff]
  %v5236 = vld [vmem:[%s33 + $0x18] sm:$0xff]
  %v5237 = vld [vmem:[%s33 + $0x20] sm:$0xff]
  %v5238 = vld [vmem:[%s33 + $0x28] sm:$0xff]
  %v5239 = vld [vmem:[%s33 + $0x30] sm:$0xff]
  %v5240 = vld [vmem:[%s33 + $0x38] sm:$0xff]
  %v5241 = vld [vmem:[%s33 + $0x40] sm:$0xff]
  %v5242 = vld [vmem:[%s33 + $0x48] sm:$0xff]
  %v5243 = vld [vmem:[%s33 + $0x50] sm:$0xff]
  %v5244 = vld [vmem:[%s33 + $0x58] sm:$0xff]
  %v5245 = vld [vmem:[%s33 + $0x60] sm:$0xff]
  %v5246 = vld [vmem:[%s33 + $0x68] sm:$0xff]
  %v5247 = vld [vmem:[%s33 + $0x70] sm:$0xff]
  %v5248 = vld [vmem:[%s33 + $0x78] sm:$0xff]
  %5250 = vset.pattern.permute.xlu0 0
  %5251 = vperm.xlu0 %5250, %v5233
  %v5252 = vpop.permute.xlu0 %5251
  %5255 = vset.pattern.permute.xlu0 0
  %5256 = vperm.xlu0 %5255, %v5234
  %v5257 = vpop.permute.xlu0 %5256
  %5260 = vset.pattern.permute.xlu0 0
  %5261 = vperm.xlu0 %5260, %v5235
  %v5262 = vpop.permute.xlu0 %5261
  %5265 = vset.pattern.permute.xlu0 0
  %5266 = vperm.xlu0 %5265, %v5236
  %v5267 = vpop.permute.xlu0 %5266
  %5270 = vset.pattern.permute.xlu0 0
  %5271 = vperm.xlu0 %5270, %v5237
  %v5272 = vpop.permute.xlu0 %5271
  %5275 = vset.pattern.permute.xlu0 0
  %5276 = vperm.xlu0 %5275, %v5238
  %v5277 = vpop.permute.xlu0 %5276
  %5280 = vset.pattern.permute.xlu0 0
  %5281 = vperm.xlu0 %5280, %v5239
  %v5282 = vpop.permute.xlu0 %5281
  %5285 = vset.pattern.permute.xlu0 0
  %5286 = vperm.xlu0 %5285, %v5240
  %v5287 = vpop.permute.xlu0 %5286
  %5290 = vset.pattern.permute.xlu0 0
  %5291 = vperm.xlu0 %5290, %v5241
  %v5292 = vpop.permute.xlu0 %5291
  %5295 = vset.pattern.permute.xlu0 0
  %5296 = vperm.xlu0 %5295, %v5242
  %v5297 = vpop.permute.xlu0 %5296
  %5300 = vset.pattern.permute.xlu0 0
  %5301 = vperm.xlu0 %5300, %v5243
  %v5302 = vpop.permute.xlu0 %5301
  %5305 = vset.pattern.permute.xlu0 0
  %5306 = vperm.xlu0 %5305, %v5244
  %v5307 = vpop.permute.xlu0 %5306
  %5310 = vset.pattern.permute.xlu0 0
  %5311 = vperm.xlu0 %5310, %v5245
  %v5312 = vpop.permute.xlu0 %5311
  %5315 = vset.pattern.permute.xlu0 0
  %5316 = vperm.xlu0 %5315, %v5246
  %v5317 = vpop.permute.xlu0 %5316
  %5320 = vset.pattern.permute.xlu0 0
  %5321 = vperm.xlu0 %5320, %v5247
  %v5322 = vpop.permute.xlu0 %5321
  %5325 = vset.pattern.permute.xlu0 0
  %5326 = vperm.xlu0 %5325, %v5248
  %v5327 = vpop.permute.xlu0 %5326
  %v5329 = vadd.f32 %v5201, %v5252
  %v5330 = vadd.f32 %v5202, %v5257
  %v5331 = vadd.f32 %v5203, %v5262
  %v5332 = vadd.f32 %v5204, %v5267
  %v5333 = vadd.f32 %v5205, %v5272
  %v5334 = vadd.f32 %v5206, %v5277
  %v5335 = vadd.f32 %v5207, %v5282
  %v5336 = vadd.f32 %v5208, %v5287
  %v5337 = vadd.f32 %v5209, %v5292
  %v5338 = vadd.f32 %v5210, %v5297
  %v5339 = vadd.f32 %v5211, %v5302
  %v5340 = vadd.f32 %v5212, %v5307
  %v5341 = vadd.f32 %v5213, %v5312
  %v5342 = vadd.f32 %v5214, %v5317
  %v5343 = vadd.f32 %v5215, %v5322
  %v5344 = vadd.f32 %v5216, %v5327
  %v5345 = vadd.f32 %v5217, %v5252
  %v5346 = vadd.f32 %v5218, %v5257
  %v5347 = vadd.f32 %v5219, %v5262
  %v5348 = vadd.f32 %v5220, %v5267
  %v5349 = vadd.f32 %v5221, %v5272
  %v5350 = vadd.f32 %v5222, %v5277
  %v5351 = vadd.f32 %v5223, %v5282
  %v5352 = vadd.f32 %v5224, %v5287
  %v5353 = vadd.f32 %v5225, %v5292
  %v5354 = vadd.f32 %v5226, %v5297
  %v5355 = vadd.f32 %v5227, %v5302
  %v5356 = vadd.f32 %v5228, %v5307
  %v5357 = vadd.f32 %v5229, %v5312
  %v5358 = vadd.f32 %v5230, %v5317
  %v5359 = vadd.f32 %v5231, %v5322
  %v5360 = vadd.f32 %v5232, %v5327
  %5377 = vrot.lane.b32.xlu0 %v5345, 57
  %v5378 = vpop.permute.xlu0 %5377
  %5379 = vrot.lane.b32.xlu0 %v5346, 57
  %v5380 = vpop.permute.xlu0 %5379
  %5381 = vrot.lane.b32.xlu0 %v5347, 57
  %v5382 = vpop.permute.xlu0 %5381
  %5383 = vrot.lane.b32.xlu0 %v5348, 57
  %v5384 = vpop.permute.xlu0 %5383
  %5385 = vrot.lane.b32.xlu0 %v5349, 57
  %v5386 = vpop.permute.xlu0 %5385
  %5387 = vrot.lane.b32.xlu0 %v5350, 57
  %v5388 = vpop.permute.xlu0 %5387
  %5389 = vrot.lane.b32.xlu0 %v5351, 57
  %v5390 = vpop.permute.xlu0 %5389
  %5391 = vrot.lane.b32.xlu0 %v5352, 57
  %v5392 = vpop.permute.xlu0 %5391
  %5393 = vrot.lane.b32.xlu0 %v5353, 57
  %v5394 = vpop.permute.xlu0 %5393
  %5395 = vrot.lane.b32.xlu0 %v5354, 57
  %v5396 = vpop.permute.xlu0 %5395
  %5397 = vrot.lane.b32.xlu0 %v5355, 57
  %v5398 = vpop.permute.xlu0 %5397
  %5399 = vrot.lane.b32.xlu0 %v5356, 57
  %v5400 = vpop.permute.xlu0 %5399
  %5401 = vrot.lane.b32.xlu0 %v5357, 57
  %v5402 = vpop.permute.xlu0 %5401
  %5403 = vrot.lane.b32.xlu0 %v5358, 57
  %v5404 = vpop.permute.xlu0 %5403
  %5405 = vrot.lane.b32.xlu0 %v5359, 57
  %v5406 = vpop.permute.xlu0 %5405
  %5407 = vrot.lane.b32.xlu0 %v5360, 57
  %v5408 = vpop.permute.xlu0 %5407
  %v5425 = vsel %vm459, %v5329, %v5378
  %v5426 = vsel %vm459, %v5330, %v5380
  %v5427 = vsel %vm459, %v5331, %v5382
  %v5428 = vsel %vm459, %v5332, %v5384
  %v5429 = vsel %vm459, %v5333, %v5386
  %v5430 = vsel %vm459, %v5334, %v5388
  %v5431 = vsel %vm459, %v5335, %v5390
  %v5432 = vsel %vm459, %v5336, %v5392
  %v5433 = vsel %vm459, %v5337, %v5394
  %v5434 = vsel %vm459, %v5338, %v5396
  %v5435 = vsel %vm459, %v5339, %v5398
  %v5436 = vsel %vm459, %v5340, %v5400
  %v5437 = vsel %vm459, %v5341, %v5402
  %v5438 = vsel %vm459, %v5342, %v5404
  %v5439 = vsel %vm459, %v5343, %v5406
  %v5440 = vsel %vm459, %v5344, %v5408
  %v5441 = vld [vmem:[%s35] sm:$0xf]
  %v5442 = vld [vmem:[%s35 + $0x4] sm:$0xf]
  %v5443 = vld [vmem:[%s35 + $0x8] sm:$0xf]
  %v5444 = vld [vmem:[%s35 + $0xc] sm:$0xf]
  %v5445 = vld [vmem:[%s35 + $0x10] sm:$0xf]
  %v5446 = vld [vmem:[%s35 + $0x14] sm:$0xf]
  %v5447 = vld [vmem:[%s35 + $0x18] sm:$0xf]
  %v5448 = vld [vmem:[%s35 + $0x1c] sm:$0xf]
  %v5449 = vld [vmem:[%s35 + $0x20] sm:$0xf]
  %v5450 = vld [vmem:[%s35 + $0x24] sm:$0xf]
  %v5451 = vld [vmem:[%s35 + $0x28] sm:$0xf]
  %v5452 = vld [vmem:[%s35 + $0x2c] sm:$0xf]
  %v5453 = vld [vmem:[%s35 + $0x30] sm:$0xf]
  %v5454 = vld [vmem:[%s35 + $0x34] sm:$0xf]
  %v5455 = vld [vmem:[%s35 + $0x38] sm:$0xf]
  %v5456 = vld [vmem:[%s35 + $0x3c] sm:$0xf]
  %v5457 = vpack.c.bf16 %v5426, %v5425
  %v5458 = vpack.c.bf16 %v5428, %v5427
  %v5459 = vpack.c.bf16 %v5430, %v5429
  %v5460 = vpack.c.bf16 %v5432, %v5431
  %v5461 = vpack.c.bf16 %v5434, %v5433
  %v5462 = vpack.c.bf16 %v5436, %v5435
  %v5463 = vpack.c.bf16 %v5438, %v5437
  %v5464 = vpack.c.bf16 %v5440, %v5439
  %v5465 = vld [vmem:[%s37] sm:$0xff]
  %v5466 = vld [vmem:[%s37 + $0x8] sm:$0xff]
  %v5467 = vld [vmem:[%s37 + $0x10] sm:$0xff]
  %v5468 = vld [vmem:[%s37 + $0x18] sm:$0xff]
  %v5469 = vld [vmem:[%s37 + $0x20] sm:$0xff]
  %v5470 = vld [vmem:[%s37 + $0x28] sm:$0xff]
  %v5471 = vld [vmem:[%s37 + $0x30] sm:$0xff]
  %v5472 = vld [vmem:[%s37 + $0x38] sm:$0xff]
  %v5473 = vld [vmem:[%s37 + $0x40] sm:$0xff]
  %v5474 = vld [vmem:[%s37 + $0x48] sm:$0xff]
  %v5475 = vld [vmem:[%s37 + $0x50] sm:$0xff]
  %v5476 = vld [vmem:[%s37 + $0x58] sm:$0xff]
  %v5477 = vld [vmem:[%s37 + $0x60] sm:$0xff]
  %v5478 = vld [vmem:[%s37 + $0x68] sm:$0xff]
  %v5479 = vld [vmem:[%s37 + $0x70] sm:$0xff]
  %v5480 = vld [vmem:[%s37 + $0x78] sm:$0xff]
  %5482 = vset.pattern.permute.xlu0 0
  %5483 = vperm.xlu0 %5482, %v5465
  %v5484 = vpop.permute.xlu0 %5483
  %5487 = vset.pattern.permute.xlu0 0
  %5488 = vperm.xlu0 %5487, %v5466
  %v5489 = vpop.permute.xlu0 %5488
  %5492 = vset.pattern.permute.xlu0 0
  %5493 = vperm.xlu0 %5492, %v5467
  %v5494 = vpop.permute.xlu0 %5493
  %5497 = vset.pattern.permute.xlu0 0
  %5498 = vperm.xlu0 %5497, %v5468
  %v5499 = vpop.permute.xlu0 %5498
  %5502 = vset.pattern.permute.xlu0 0
  %5503 = vperm.xlu0 %5502, %v5469
  %v5504 = vpop.permute.xlu0 %5503
  %5507 = vset.pattern.permute.xlu0 0
  %5508 = vperm.xlu0 %5507, %v5470
  %v5509 = vpop.permute.xlu0 %5508
  %5512 = vset.pattern.permute.xlu0 0
  %5513 = vperm.xlu0 %5512, %v5471
  %v5514 = vpop.permute.xlu0 %5513
  %5517 = vset.pattern.permute.xlu0 0
  %5518 = vperm.xlu0 %5517, %v5472
  %v5519 = vpop.permute.xlu0 %5518
  %5522 = vset.pattern.permute.xlu0 0
  %5523 = vperm.xlu0 %5522, %v5473
  %v5524 = vpop.permute.xlu0 %5523
  %5527 = vset.pattern.permute.xlu0 0
  %5528 = vperm.xlu0 %5527, %v5474
  %v5529 = vpop.permute.xlu0 %5528
  %5532 = vset.pattern.permute.xlu0 0
  %5533 = vperm.xlu0 %5532, %v5475
  %v5534 = vpop.permute.xlu0 %5533
  %5537 = vset.pattern.permute.xlu0 0
  %5538 = vperm.xlu0 %5537, %v5476
  %v5539 = vpop.permute.xlu0 %5538
  %5542 = vset.pattern.permute.xlu0 0
  %5543 = vperm.xlu0 %5542, %v5477
  %v5544 = vpop.permute.xlu0 %5543
  %5547 = vset.pattern.permute.xlu0 0
  %5548 = vperm.xlu0 %5547, %v5478
  %v5549 = vpop.permute.xlu0 %5548
  %5552 = vset.pattern.permute.xlu0 0
  %5553 = vperm.xlu0 %5552, %v5479
  %v5554 = vpop.permute.xlu0 %5553
  %5557 = vset.pattern.permute.xlu0 0
  %5558 = vperm.xlu0 %5557, %v5480
  %v5559 = vpop.permute.xlu0 %5558
  %v5577 = vunpack.c.l.b16 %v5441
  %v5578 = vunpack.c.l.b16 %v5442
  %v5579 = vunpack.c.l.b16 %v5443
  %v5580 = vunpack.c.l.b16 %v5444
  %v5581 = vunpack.c.l.b16 %v5445
  %v5582 = vunpack.c.l.b16 %v5446
  %v5583 = vunpack.c.l.b16 %v5447
  %v5584 = vunpack.c.l.b16 %v5448
  %v5585 = vunpack.c.l.b16 %v5449
  %v5586 = vunpack.c.l.b16 %v5450
  %v5587 = vunpack.c.l.b16 %v5451
  %v5588 = vunpack.c.l.b16 %v5452
  %v5589 = vunpack.c.l.b16 %v5453
  %v5590 = vunpack.c.l.b16 %v5454
  %v5591 = vunpack.c.l.b16 %v5455
  %v5592 = vunpack.c.l.b16 %v5456
  %v5593 = vpack.c.b16 %v5578, %v5577
  %v5594 = vpack.c.b16 %v5580, %v5579
  %v5595 = vpack.c.b16 %v5582, %v5581
  %v5596 = vpack.c.b16 %v5584, %v5583
  %v5597 = vpack.c.b16 %v5586, %v5585
  %v5598 = vpack.c.b16 %v5588, %v5587
  %v5599 = vpack.c.b16 %v5590, %v5589
  %v5600 = vpack.c.b16 %v5592, %v5591
  %5609 = vmatprep.subr.bf16.mxu0 0
  %5610 = vmatpush1.bf16.msra.mxu0 %v5457
  %5611 = vmatprep.subr.bf16.mxu0 0
  %5612 = vmatpush1.bf16.msra.mxu0 %v5458
  %5613 = vmatprep.subr.bf16.mxu0 0
  %5614 = vmatpush1.bf16.msra.mxu0 %v5459
  %5615 = vmatprep.subr.bf16.mxu0 0
  %5616 = vmatpush1.bf16.msra.mxu0 %v5460
  %5617 = vmatprep.subr.bf16.mxu0 0
  %5618 = vmatpush1.bf16.msra.mxu0 %v5461
  %5619 = vmatprep.subr.bf16.mxu0 0
  %5620 = vmatpush1.bf16.msra.mxu0 %v5462
  %5621 = vmatprep.subr.bf16.mxu0 0
  %5622 = vmatpush1.bf16.msra.mxu0 %v5463
  %5623 = vmatprep.subr.bf16.mxu0 0
  %5624 = vmatpush1.bf16.msra.mxu0 %v5464
  %5625 = vmatprep.subr.bf16.mxu0 0
  %5626 = vmatpush1.bf16.msra.mxu0 0
  %5627 = vmatprep.subr.bf16.mxu0 0
  %5628 = vmatpush1.bf16.msra.mxu0 0
  %5629 = vmatprep.subr.bf16.mxu0 0
  %5630 = vmatpush1.bf16.msra.mxu0 0
  %5631 = vmatprep.subr.bf16.mxu0 0
  %5632 = vmatpush1.bf16.msra.mxu0 0
  %5633 = vmatprep.subr.bf16.mxu0 0
  %5634 = vmatpush1.bf16.msra.mxu0 0
  %5635 = vmatprep.subr.bf16.mxu0 0
  %5636 = vmatpush1.bf16.msra.mxu0 0
  %5637 = vmatprep.subr.bf16.mxu0 0
  %5638 = vmatpush1.bf16.msra.mxu0 0
  %5639 = vmatprep.subr.bf16.mxu0 0
  %5640 = vmatpush1.bf16.msra.mxu0 0
  %5641 = vmatprep.mubr.bf16.mxu0 0
  %5642 = vmatmul.mubr.bf16.gmra.mrb[0].mxu0 %v5593
  %v5643 = vpop.f32.mrb[0].mxu0
  %v5644 = vadd.f32 %v5484, %v5643
  %v5645 = vpop.f32.mrb[0].mxu0
  %v5646 = vpop.f32.mrb[0].mxu0
  %v5647 = vadd.f32 %v5489, %v5646
  %v5648 = vpop.f32.mrb[0].mxu0
  %5649 = vmatprep.mubr.bf16.mxu0 0
  %5650 = vmatmul.mubr.bf16.gmra.mrb[0].mxu0 %v5594
  %v5651 = vpop.f32.mrb[0].mxu0
  %v5652 = vadd.f32 %v5494, %v5651
  %v5653 = vpop.f32.mrb[0].mxu0
  %v5654 = vpop.f32.mrb[0].mxu0
  %v5655 = vadd.f32 %v5499, %v5654
  %v5656 = vpop.f32.mrb[0].mxu0
  %5657 = vmatprep.mubr.bf16.mxu0 0
  %5658 = vmatmul.mubr.bf16.gmra.mrb[0].mxu0 %v5595
  %v5659 = vpop.f32.mrb[0].mxu0
  %v5660 = vadd.f32 %v5504, %v5659
  %v5661 = vpop.f32.mrb[0].mxu0
  %v5662 = vpop.f32.mrb[0].mxu0
  %v5663 = vadd.f32 %v5509, %v5662
  %v5664 = vpop.f32.mrb[0].mxu0
  %5665 = vmatprep.mubr.bf16.mxu0 0
  %5666 = vmatmul.mubr.bf16.gmra.mrb[0].mxu0 %v5596
  %v5667 = vpop.f32.mrb[0].mxu0
  %v5668 = vadd.f32 %v5514, %v5667
  %v5669 = vpop.f32.mrb[0].mxu0
  %v5670 = vpop.f32.mrb[0].mxu0
  %v5671 = vadd.f32 %v5519, %v5670
  %v5672 = vpop.f32.mrb[0].mxu0
  %5673 = vmatprep.mubr.bf16.mxu0 0
  %5674 = vmatmul.mubr.bf16.gmra.mrb[0].mxu0 %v5597
  %v5675 = vpop.f32.mrb[0].mxu0
  %v5676 = vadd.f32 %v5524, %v5675
  %v5677 = vpop.f32.mrb[0].mxu0
  %v5678 = vpop.f32.mrb[0].mxu0
  %v5679 = vadd.f32 %v5529, %v5678
  %v5680 = vpop.f32.mrb[0].mxu0
  %5681 = vmatprep.mubr.bf16.mxu0 0
  %5682 = vmatmul.mubr.bf16.gmra.mrb[0].mxu0 %v5598
  %v5683 = vpop.f32.mrb[0].mxu0
  %v5684 = vadd.f32 %v5534, %v5683
  %v5685 = vpop.f32.mrb[0].mxu0
  %v5686 = vpop.f32.mrb[0].mxu0
  %v5687 = vadd.f32 %v5539, %v5686
  %v5688 = vpop.f32.mrb[0].mxu0
  %5689 = vmatprep.mubr.bf16.mxu0 0
  %5690 = vmatmul.mubr.bf16.gmra.mrb[0].mxu0 %v5599
  %v5691 = vpop.f32.mrb[0].mxu0
  %v5692 = vadd.f32 %v5544, %v5691
  %v5693 = vpop.f32.mrb[0].mxu0
  %v5694 = vpop.f32.mrb[0].mxu0
  %v5695 = vadd.f32 %v5549, %v5694
  %v5696 = vpop.f32.mrb[0].mxu0
  %5697 = vmatprep.mubr.bf16.mxu0 0
  %5698 = vmatmul.mubr.bf16.gmra.mrb[0].mxu0 %v5600
  %v5699 = vpop.f32.mrb[0].mxu0
  %v5700 = vadd.f32 %v5554, %v5699
  %v5701 = vpop.f32.mrb[0].mxu0
  %v5702 = vpop.f32.mrb[0].mxu0
  %v5703 = vadd.f32 %v5559, %v5702
  %v5704 = vpop.f32.mrb[0].mxu0
  %5705 = vdwg.mxu0
  %vm5706 = vcmp.ge.f32.partialorder %v5644, 0.0
  %vm5707 = vcmp.ge.f32.partialorder %v5647, 0.0
  %vm5708 = vcmp.ge.f32.partialorder %v5652, 0.0
  %vm5709 = vcmp.ge.f32.partialorder %v5655, 0.0
  %vm5710 = vcmp.ge.f32.partialorder %v5660, 0.0
  %vm5711 = vcmp.ge.f32.partialorder %v5663, 0.0
  %vm5712 = vcmp.ge.f32.partialorder %v5668, 0.0
  %vm5713 = vcmp.ge.f32.partialorder %v5671, 0.0
  %vm5714 = vcmp.ge.f32.partialorder %v5676, 0.0
  %vm5715 = vcmp.ge.f32.partialorder %v5679, 0.0
  %vm5716 = vcmp.ge.f32.partialorder %v5684, 0.0
  %vm5717 = vcmp.ge.f32.partialorder %v5687, 0.0
  %vm5718 = vcmp.ge.f32.partialorder %v5692, 0.0
  %vm5719 = vcmp.ge.f32.partialorder %v5695, 0.0
  %vm5720 = vcmp.ge.f32.partialorder %v5700, 0.0
  %vm5721 = vcmp.ge.f32.partialorder %v5703, 0.0
  %v5722 = vmul.f32 %v5644, 0.01
  %v5723 = vmul.f32 %v5647, 0.01
  %v5724 = vmul.f32 %v5652, 0.01
  %v5725 = vmul.f32 %v5655, 0.01
  %v5726 = vmul.f32 %v5660, 0.01
  %v5727 = vmul.f32 %v5663, 0.01
  %v5728 = vmul.f32 %v5668, 0.01
  %v5729 = vmul.f32 %v5671, 0.01
  %v5730 = vmul.f32 %v5676, 0.01
  %v5731 = vmul.f32 %v5679, 0.01
  %v5732 = vmul.f32 %v5684, 0.01
  %v5733 = vmul.f32 %v5687, 0.01
  %v5734 = vmul.f32 %v5692, 0.01
  %v5735 = vmul.f32 %v5695, 0.01
  %v5736 = vmul.f32 %v5700, 0.01
  %v5737 = vmul.f32 %v5703, 0.01
  %v5738 = vsel %vm5706, %v5644, %v5722
  %v5739 = vsel %vm5707, %v5647, %v5723
  %v5740 = vsel %vm5708, %v5652, %v5724
  %v5741 = vsel %vm5709, %v5655, %v5725
  %v5742 = vsel %vm5710, %v5660, %v5726
  %v5743 = vsel %vm5711, %v5663, %v5727
  %v5744 = vsel %vm5712, %v5668, %v5728
  %v5745 = vsel %vm5713, %v5671, %v5729
  %v5746 = vsel %vm5714, %v5676, %v5730
  %v5747 = vsel %vm5715, %v5679, %v5731
  %v5748 = vsel %vm5716, %v5684, %v5732
  %v5749 = vsel %vm5717, %v5687, %v5733
  %v5750 = vsel %vm5718, %v5692, %v5734
  %v5751 = vsel %vm5719, %v5695, %v5735
  %v5752 = vsel %vm5720, %v5700, %v5736
  %v5753 = vsel %vm5721, %v5703, %v5737
  %v5754 = vsel %vm1459, %v5738, 0.0
  %5755 = vadd.xlane.f32.xlu0 %v5754
  %v5756 = vpop.xlane.xlu0 %5755
  %v5757 = vsel %vm1459, %v5739, 0.0
  %5758 = vadd.xlane.f32.xlu0 %v5757
  %v5759 = vpop.xlane.xlu0 %5758
  %v5760 = vsel %vm1459, %v5740, 0.0
  %5761 = vadd.xlane.f32.xlu0 %v5760
  %v5762 = vpop.xlane.xlu0 %5761
  %v5763 = vsel %vm1459, %v5741, 0.0
  %5764 = vadd.xlane.f32.xlu0 %v5763
  %v5765 = vpop.xlane.xlu0 %5764
  %v5766 = vsel %vm1459, %v5742, 0.0
  %5767 = vadd.xlane.f32.xlu0 %v5766
  %v5768 = vpop.xlane.xlu0 %5767
  %v5769 = vsel %vm1459, %v5743, 0.0
  %5770 = vadd.xlane.f32.xlu0 %v5769
  %v5771 = vpop.xlane.xlu0 %5770
  %v5772 = vsel %vm1459, %v5744, 0.0
  %5773 = vadd.xlane.f32.xlu0 %v5772
  %v5774 = vpop.xlane.xlu0 %5773
  %v5775 = vsel %vm1459, %v5745, 0.0
  %5776 = vadd.xlane.f32.xlu0 %v5775
  %v5777 = vpop.xlane.xlu0 %5776
  %v5778 = vsel %vm1459, %v5746, 0.0
  %5779 = vadd.xlane.f32.xlu0 %v5778
  %v5780 = vpop.xlane.xlu0 %5779
  %v5781 = vsel %vm1459, %v5747, 0.0
  %5782 = vadd.xlane.f32.xlu0 %v5781
  %v5783 = vpop.xlane.xlu0 %5782
  %v5784 = vsel %vm1459, %v5748, 0.0
  %5785 = vadd.xlane.f32.xlu0 %v5784
  %v5786 = vpop.xlane.xlu0 %5785
  %v5787 = vsel %vm1459, %v5749, 0.0
  %5788 = vadd.xlane.f32.xlu0 %v5787
  %v5789 = vpop.xlane.xlu0 %5788
  %v5790 = vsel %vm1459, %v5750, 0.0
  %5791 = vadd.xlane.f32.xlu0 %v5790
  %v5792 = vpop.xlane.xlu0 %5791
  %v5793 = vsel %vm1459, %v5751, 0.0
  %5794 = vadd.xlane.f32.xlu0 %v5793
  %v5795 = vpop.xlane.xlu0 %5794
  %v5796 = vsel %vm1459, %v5752, 0.0
  %5797 = vadd.xlane.f32.xlu0 %v5796
  %v5798 = vpop.xlane.xlu0 %5797
  %v5799 = vsel %vm1459, %v5753, 0.0
  %5800 = vadd.xlane.f32.xlu0 %v5799
  %v5801 = vpop.xlane.xlu0 %5800
  %v5802 = vadd.f32 %v5756, %v5768
  %v5803 = vadd.f32 %v5759, %v5771
  %v5804 = vadd.f32 %v5762, %v5774
  %v5805 = vadd.f32 %v5765, %v5777
  %v5806 = vadd.f32 %v5802, %v5780
  %v5807 = vadd.f32 %v5803, %v5783
  %v5808 = vadd.f32 %v5804, %v5786
  %v5809 = vadd.f32 %v5805, %v5789
  %v5810 = vadd.f32 %v5806, %v5792
  %v5811 = vadd.f32 %v5807, %v5795
  %v5812 = vadd.f32 %v5808, %v5798
  %v5813 = vadd.f32 %v5809, %v5801
  %v5814 = vmul.f32 %v5810, %v483
  %v5815 = vmul.f32 %v5811, %v483
  %v5816 = vmul.f32 %v5812, %v483
  %v5817 = vmul.f32 %v5813, %v483
  %5819 = vset.pattern.permute.xlu0 0
  %5820 = vperm.xlu0 %5819, %v5814
  %v5821 = vpop.permute.xlu0 %5820
  %5824 = vset.pattern.permute.xlu0 0
  %5825 = vperm.xlu0 %5824, %v5815
  %v5826 = vpop.permute.xlu0 %5825
  %5829 = vset.pattern.permute.xlu0 0
  %5830 = vperm.xlu0 %5829, %v5816
  %v5831 = vpop.permute.xlu0 %5830
  %5834 = vset.pattern.permute.xlu0 0
  %5835 = vperm.xlu0 %5834, %v5817
  %v5836 = vpop.permute.xlu0 %5835
  %v5838 = vsub.f32 %v5738, %v5821
  %v5839 = vsub.f32 %v5739, %v5826
  %v5840 = vsub.f32 %v5740, %v5831
  %v5841 = vsub.f32 %v5741, %v5836
  %v5842 = vsub.f32 %v5742, %v5821
  %v5843 = vsub.f32 %v5743, %v5826
  %v5844 = vsub.f32 %v5744, %v5831
  %v5845 = vsub.f32 %v5745, %v5836
  %v5846 = vsub.f32 %v5746, %v5821
  %v5847 = vsub.f32 %v5747, %v5826
  %v5848 = vsub.f32 %v5748, %v5831
  %v5849 = vsub.f32 %v5749, %v5836
  %v5850 = vsub.f32 %v5750, %v5821
  %v5851 = vsub.f32 %v5751, %v5826
  %v5852 = vsub.f32 %v5752, %v5831
  %v5853 = vsub.f32 %v5753, %v5836
  %v5854 = vmul.f32 %v5838, %v5838
  %v5855 = vmul.f32 %v5839, %v5839
  %v5856 = vmul.f32 %v5840, %v5840
  %v5857 = vmul.f32 %v5841, %v5841
  %v5858 = vmul.f32 %v5842, %v5842
  %v5859 = vmul.f32 %v5843, %v5843
  %v5860 = vmul.f32 %v5844, %v5844
  %v5861 = vmul.f32 %v5845, %v5845
  %v5862 = vmul.f32 %v5846, %v5846
  %v5863 = vmul.f32 %v5847, %v5847
  %v5864 = vmul.f32 %v5848, %v5848
  %v5865 = vmul.f32 %v5849, %v5849
  %v5866 = vmul.f32 %v5850, %v5850
  %v5867 = vmul.f32 %v5851, %v5851
  %v5868 = vmul.f32 %v5852, %v5852
  %v5869 = vmul.f32 %v5853, %v5853
  %v5870 = vsel %vm1459, %v5854, 0.0
  %5871 = vadd.xlane.f32.xlu0 %v5870
  %v5872 = vpop.xlane.xlu0 %5871
  %v5873 = vsel %vm1459, %v5855, 0.0
  %5874 = vadd.xlane.f32.xlu0 %v5873
  %v5875 = vpop.xlane.xlu0 %5874
  %v5876 = vsel %vm1459, %v5856, 0.0
  %5877 = vadd.xlane.f32.xlu0 %v5876
  %v5878 = vpop.xlane.xlu0 %5877
  %v5879 = vsel %vm1459, %v5857, 0.0
  %5880 = vadd.xlane.f32.xlu0 %v5879
  %v5881 = vpop.xlane.xlu0 %5880
  %v5882 = vsel %vm1459, %v5858, 0.0
  %5883 = vadd.xlane.f32.xlu0 %v5882
  %v5884 = vpop.xlane.xlu0 %5883
  %v5885 = vsel %vm1459, %v5859, 0.0
  %5886 = vadd.xlane.f32.xlu0 %v5885
  %v5887 = vpop.xlane.xlu0 %5886
  %v5888 = vsel %vm1459, %v5860, 0.0
  %5889 = vadd.xlane.f32.xlu0 %v5888
  %v5890 = vpop.xlane.xlu0 %5889
  %v5891 = vsel %vm1459, %v5861, 0.0
  %5892 = vadd.xlane.f32.xlu0 %v5891
  %v5893 = vpop.xlane.xlu0 %5892
  %v5894 = vsel %vm1459, %v5862, 0.0
  %5895 = vadd.xlane.f32.xlu0 %v5894
  %v5896 = vpop.xlane.xlu0 %5895
  %v5897 = vsel %vm1459, %v5863, 0.0
  %5898 = vadd.xlane.f32.xlu0 %v5897
  %v5899 = vpop.xlane.xlu0 %5898
  %v5900 = vsel %vm1459, %v5864, 0.0
  %5901 = vadd.xlane.f32.xlu0 %v5900
  %v5902 = vpop.xlane.xlu0 %5901
  %v5903 = vsel %vm1459, %v5865, 0.0
  %5904 = vadd.xlane.f32.xlu0 %v5903
  %v5905 = vpop.xlane.xlu0 %5904
  %v5906 = vsel %vm1459, %v5866, 0.0
  %5907 = vadd.xlane.f32.xlu0 %v5906
  %v5908 = vpop.xlane.xlu0 %5907
  %v5909 = vsel %vm1459, %v5867, 0.0
  %5910 = vadd.xlane.f32.xlu0 %v5909
  %v5911 = vpop.xlane.xlu0 %5910
  %v5912 = vsel %vm1459, %v5868, 0.0
  %5913 = vadd.xlane.f32.xlu0 %v5912
  %v5914 = vpop.xlane.xlu0 %5913
  %v5915 = vsel %vm1459, %v5869, 0.0
  %5916 = vadd.xlane.f32.xlu0 %v5915
  %v5917 = vpop.xlane.xlu0 %5916
  %v5918 = vadd.f32 %v5872, %v5884
  %v5919 = vadd.f32 %v5875, %v5887
  %v5920 = vadd.f32 %v5878, %v5890
  %v5921 = vadd.f32 %v5881, %v5893
  %v5922 = vadd.f32 %v5918, %v5896
  %v5923 = vadd.f32 %v5919, %v5899
  %v5924 = vadd.f32 %v5920, %v5902
  %v5925 = vadd.f32 %v5921, %v5905
  %v5926 = vadd.f32 %v5922, %v5908
  %v5927 = vadd.f32 %v5923, %v5911
  %v5928 = vadd.f32 %v5924, %v5914
  %v5929 = vadd.f32 %v5925, %v5917
  %v5930 = vmul.f32 %v5926, %v483
  %v5931 = vmul.f32 %v5927, %v483
  %v5932 = vmul.f32 %v5928, %v483
  %v5933 = vmul.f32 %v5929, %v483
  %v5934 = vld [vmem:[%s39] sm:$0xff]
  %v5935 = vld [vmem:[%s39 + $0x8] sm:$0xff]
  %v5936 = vld [vmem:[%s39 + $0x10] sm:$0xff]
  %v5937 = vld [vmem:[%s39 + $0x18] sm:$0xff]
  %v5938 = vadd.f32 %v5930, 1e-05
  %v5939 = vadd.f32 %v5931, 1e-05
  %v5940 = vadd.f32 %v5932, 1e-05
  %v5941 = vadd.f32 %v5933, 1e-05
  %v5942 = vrsqrt.pop %v5938
  %v5943 = vrsqrt.pop %v5939
  %v5944 = vrsqrt.pop %v5940
  %v5945 = vrsqrt.pop %v5941
  %v5946 = vmul.f32 %v5934, %v5942
  %v5947 = vmul.f32 %v5935, %v5943
  %v5948 = vmul.f32 %v5936, %v5944
  %v5949 = vmul.f32 %v5937, %v5945
  %v5950 = vld [vmem:[%s41] sm:$0xff]
  %v5951 = vld [vmem:[%s41 + $0x8] sm:$0xff]
  %v5952 = vld [vmem:[%s41 + $0x10] sm:$0xff]
  %v5953 = vld [vmem:[%s41 + $0x18] sm:$0xff]
  %v5954 = vmul.f32 %v5814, %v5946
  %v5955 = vmul.f32 %v5815, %v5947
  %v5956 = vmul.f32 %v5816, %v5948
  %v5957 = vmul.f32 %v5817, %v5949
  %v5958 = vsub.f32 %v5950, %v5954
  %v5959 = vsub.f32 %v5951, %v5955
  %v5960 = vsub.f32 %v5952, %v5956
  %v5961 = vsub.f32 %v5953, %v5957
  %5963 = vset.pattern.permute.xlu0 0
  %5964 = vperm.xlu0 %5963, %v5946
  %v5965 = vpop.permute.xlu0 %5964
  %5968 = vset.pattern.permute.xlu0 0
  %5969 = vperm.xlu0 %5968, %v5947
  %v5970 = vpop.permute.xlu0 %5969
  %5973 = vset.pattern.permute.xlu0 0
  %5974 = vperm.xlu0 %5973, %v5948
  %v5975 = vpop.permute.xlu0 %5974
  %5978 = vset.pattern.permute.xlu0 0
  %5979 = vperm.xlu0 %5978, %v5949
  %v5980 = vpop.permute.xlu0 %5979
  %v5982 = vmul.f32 %v5738, %v5965
  %v5983 = vmul.f32 %v5739, %v5970
  %v5984 = vmul.f32 %v5740, %v5975
  %v5985 = vmul.f32 %v5741, %v5980
  %v5986 = vmul.f32 %v5742, %v5965
  %v5987 = vmul.f32 %v5743, %v5970
  %v5988 = vmul.f32 %v5744, %v5975
  %v5989 = vmul.f32 %v5745, %v5980
  %v5990 = vmul.f32 %v5746, %v5965
  %v5991 = vmul.f32 %v5747, %v5970
  %v5992 = vmul.f32 %v5748, %v5975
  %v5993 = vmul.f32 %v5749, %v5980
  %v5994 = vmul.f32 %v5750, %v5965
  %v5995 = vmul.f32 %v5751, %v5970
  %v5996 = vmul.f32 %v5752, %v5975
  %v5997 = vmul.f32 %v5753, %v5980
  %5999 = vset.pattern.permute.xlu0 0
  %6000 = vperm.xlu0 %5999, %v5958
  %v6001 = vpop.permute.xlu0 %6000
  %6004 = vset.pattern.permute.xlu0 0
  %6005 = vperm.xlu0 %6004, %v5959
  %v6006 = vpop.permute.xlu0 %6005
  %6009 = vset.pattern.permute.xlu0 0
  %6010 = vperm.xlu0 %6009, %v5960
  %v6011 = vpop.permute.xlu0 %6010
  %6014 = vset.pattern.permute.xlu0 0
  %6015 = vperm.xlu0 %6014, %v5961
  %v6016 = vpop.permute.xlu0 %6015
  %v6018 = vadd.f32 %v5982, %v6001
  %v6019 = vadd.f32 %v5983, %v6006
  %v6020 = vadd.f32 %v5984, %v6011
  %v6021 = vadd.f32 %v5985, %v6016
  %v6022 = vadd.f32 %v5986, %v6001
  %v6023 = vadd.f32 %v5987, %v6006
  %v6024 = vadd.f32 %v5988, %v6011
  %v6025 = vadd.f32 %v5989, %v6016
  %v6026 = vadd.f32 %v5990, %v6001
  %v6027 = vadd.f32 %v5991, %v6006
  %v6028 = vadd.f32 %v5992, %v6011
  %v6029 = vadd.f32 %v5993, %v6016
  %v6030 = vadd.f32 %v5994, %v6001
  %v6031 = vadd.f32 %v5995, %v6006
  %v6032 = vadd.f32 %v5996, %v6011
  %v6033 = vadd.f32 %v5997, %v6016
  %v6034 = vld [vmem:[%s43] sm:$0xf]
  %v6035 = vld [vmem:[%s43 + $0x4] sm:$0xf]
  %v6036 = vld [vmem:[%s43 + $0x8] sm:$0xf]
  %v6037 = vld [vmem:[%s43 + $0xc] sm:$0xf]
  %v6038 = vpack.c.bf16 %v6019, %v6018
  %v6039 = vpack.c.bf16 %v6021, %v6020
  %v6040 = vpack.c.bf16 %v6023, %v6022
  %v6041 = vpack.c.bf16 %v6025, %v6024
  %v6042 = vpack.c.bf16 %v6027, %v6026
  %v6043 = vpack.c.bf16 %v6029, %v6028
  %v6044 = vpack.c.bf16 %v6031, %v6030
  %v6045 = vpack.c.bf16 %v6033, %v6032
  %v6046 = vld [vmem:[%s45] sm:$0xff]
  %v6047 = vld [vmem:[%s45 + $0x8] sm:$0xff]
  %v6048 = vld [vmem:[%s45 + $0x10] sm:$0xff]
  %v6049 = vld [vmem:[%s45 + $0x18] sm:$0xff]
  %6051 = vset.pattern.permute.xlu0 0
  %6052 = vperm.xlu0 %6051, %v6046
  %v6053 = vpop.permute.xlu0 %6052
  %6056 = vset.pattern.permute.xlu0 0
  %6057 = vperm.xlu0 %6056, %v6047
  %v6058 = vpop.permute.xlu0 %6057
  %6061 = vset.pattern.permute.xlu0 0
  %6062 = vperm.xlu0 %6061, %v6048
  %v6063 = vpop.permute.xlu0 %6062
  %6066 = vset.pattern.permute.xlu0 0
  %6067 = vperm.xlu0 %6066, %v6049
  %v6068 = vpop.permute.xlu0 %6067
  %v6074 = vunpack.c.l.b16 %v6034
  %v6075 = vunpack.c.l.b16 %v6035
  %v6076 = vunpack.c.l.b16 %v6036
  %v6077 = vunpack.c.l.b16 %v6037
  %v6078 = vpack.c.b16 %v6075, %v6074
  %v6079 = vpack.c.b16 %v6077, %v6076
  %6082 = vmatprep.subr.bf16.mxu0 0
  %6083 = vmatpush1.bf16.msra.mxu0 %v6038
  %6084 = vmatprep.subr.bf16.mxu0 0
  %6085 = vmatpush1.bf16.msra.mxu0 %v6039
  %6086 = vmatprep.subr.bf16.mxu0 0
  %6087 = vmatpush1.bf16.msra.mxu0 %v6040
  %6088 = vmatprep.subr.bf16.mxu0 0
  %6089 = vmatpush1.bf16.msra.mxu0 %v6041
  %6090 = vmatprep.subr.bf16.mxu0 0
  %6091 = vmatpush1.bf16.msra.mxu0 %v6042
  %6092 = vmatprep.subr.bf16.mxu0 0
  %6093 = vmatpush1.bf16.msra.mxu0 %v6043
  %6094 = vmatprep.subr.bf16.mxu0 0
  %6095 = vmatpush1.bf16.msra.mxu0 %v6044
  %6096 = vmatprep.subr.bf16.mxu0 0
  %6097 = vmatpush1.bf16.msra.mxu0 %v6045
  %6098 = vmatprep.subr.bf16.mxu0 0
  %6099 = vmatpush1.bf16.msra.mxu0 0
  %6100 = vmatprep.subr.bf16.mxu0 0
  %6101 = vmatpush1.bf16.msra.mxu0 0
  %6102 = vmatprep.subr.bf16.mxu0 0
  %6103 = vmatpush1.bf16.msra.mxu0 0
  %6104 = vmatprep.subr.bf16.mxu0 0
  %6105 = vmatpush1.bf16.msra.mxu0 0
  %6106 = vmatprep.subr.bf16.mxu0 0
  %6107 = vmatpush1.bf16.msra.mxu0 0
  %6108 = vmatprep.subr.bf16.mxu0 0
  %6109 = vmatpush1.bf16.msra.mxu0 0
  %6110 = vmatprep.subr.bf16.mxu0 0
  %6111 = vmatpush1.bf16.msra.mxu0 0
  %6112 = vmatprep.subr.bf16.mxu0 0
  %6113 = vmatpush1.bf16.msra.mxu0 0
  %6114 = vmatprep.mubr.bf16.mxu0 0
  %6115 = vmatmul.mubr.bf16.gmra.mrb[0].mxu0 %v6078
  %v6116 = vpop.f32.mrb[0].mxu0
  %v6117 = vadd.f32 %v6053, %v6116
  %v6118 = vpop.f32.mrb[0].mxu0
  %v6119 = vpop.f32.mrb[0].mxu0
  %v6120 = vadd.f32 %v6058, %v6119
  %v6121 = vpop.f32.mrb[0].mxu0
  %6122 = vmatprep.mubr.bf16.mxu0 0
  %6123 = vmatmul.mubr.bf16.gmra.mrb[0].mxu0 %v6079
  %v6124 = vpop.f32.mrb[0].mxu0
  %v6125 = vadd.f32 %v6063, %v6124
  %v6126 = vpop.f32.mrb[0].mxu0
  %v6127 = vpop.f32.mrb[0].mxu0
  %v6128 = vadd.f32 %v6068, %v6127
  %v6129 = vpop.f32.mrb[0].mxu0
  %6130 = vdwg.mxu0
  %vm6131 = vcmp.ge.f32.partialorder %v6117, 0.0
  %vm6132 = vcmp.ge.f32.partialorder %v6120, 0.0
  %vm6133 = vcmp.ge.f32.partialorder %v6125, 0.0
  %vm6134 = vcmp.ge.f32.partialorder %v6128, 0.0
  %v6135 = vmul.f32 %v6117, 0.01
  %v6136 = vmul.f32 %v6120, 0.01
  %v6137 = vmul.f32 %v6125, 0.01
  %v6138 = vmul.f32 %v6128, 0.01
  %v6139 = vsel %vm6131, %v6117, %v6135
  %v6140 = vsel %vm6132, %v6120, %v6136
  %v6141 = vsel %vm6133, %v6125, %v6137
  %v6142 = vsel %vm6134, %v6128, %v6138
  %v6143 = vsel %vm1459, %v6139, 0.0
  %6144 = vadd.xlane.f32.xlu0 %v6143
  %v6145 = vpop.xlane.xlu0 %6144
  %v6146 = vsel %vm1459, %v6140, 0.0
  %6147 = vadd.xlane.f32.xlu0 %v6146
  %v6148 = vpop.xlane.xlu0 %6147
  %v6149 = vsel %vm1459, %v6141, 0.0
  %6150 = vadd.xlane.f32.xlu0 %v6149
  %v6151 = vpop.xlane.xlu0 %6150
  %v6152 = vsel %vm1459, %v6142, 0.0
  %6153 = vadd.xlane.f32.xlu0 %v6152
  %v6154 = vpop.xlane.xlu0 %6153
  %v6155 = vmul.f32 %v6145, %v1861
  %v6156 = vmul.f32 %v6148, %v1861
  %v6157 = vmul.f32 %v6151, %v1861
  %v6158 = vmul.f32 %v6154, %v1861
  %v6159 = vsub.f32 %v6139, %v6155
  %v6160 = vsub.f32 %v6140, %v6156
  %v6161 = vsub.f32 %v6141, %v6157
  %v6162 = vsub.f32 %v6142, %v6158
  %v6163 = vmul.f32 %v6159, %v6159
  %v6164 = vmul.f32 %v6160, %v6160
  %v6165 = vmul.f32 %v6161, %v6161
  %v6166 = vmul.f32 %v6162, %v6162
  %v6167 = vsel %vm1459, %v6163, 0.0
  %6168 = vadd.xlane.f32.xlu0 %v6167
  %v6169 = vpop.xlane.xlu0 %6168
  %v6170 = vsel %vm1459, %v6164, 0.0
  %6171 = vadd.xlane.f32.xlu0 %v6170
  %v6172 = vpop.xlane.xlu0 %6171
  %v6173 = vsel %vm1459, %v6165, 0.0
  %6174 = vadd.xlane.f32.xlu0 %v6173
  %v6175 = vpop.xlane.xlu0 %6174
  %v6176 = vsel %vm1459, %v6166, 0.0
  %6177 = vadd.xlane.f32.xlu0 %v6176
  %v6178 = vpop.xlane.xlu0 %6177
  %v6179 = vmul.f32 %v6169, %v1861
  %v6180 = vmul.f32 %v6172, %v1861
  %v6181 = vmul.f32 %v6175, %v1861
  %v6182 = vmul.f32 %v6178, %v1861
  %v6183 = vld [vmem:[%s47] sm:$0xff]
  %v6184 = vld [vmem:[%s47 + $0x8] sm:$0xff]
  %v6185 = vld [vmem:[%s47 + $0x10] sm:$0xff]
  %v6186 = vld [vmem:[%s47 + $0x18] sm:$0xff]
  %v6187 = vadd.f32 %v6179, 1e-05
  %v6188 = vadd.f32 %v6180, 1e-05
  %v6189 = vadd.f32 %v6181, 1e-05
  %v6190 = vadd.f32 %v6182, 1e-05
  %v6191 = vrsqrt.pop %v6187
  %v6192 = vrsqrt.pop %v6188
  %v6193 = vrsqrt.pop %v6189
  %v6194 = vrsqrt.pop %v6190
  %v6195 = vmul.f32 %v6183, %v6191
  %v6196 = vmul.f32 %v6184, %v6192
  %v6197 = vmul.f32 %v6185, %v6193
  %v6198 = vmul.f32 %v6186, %v6194
  %v6199 = vld [vmem:[%s49] sm:$0xff]
  %v6200 = vld [vmem:[%s49 + $0x8] sm:$0xff]
  %v6201 = vld [vmem:[%s49 + $0x10] sm:$0xff]
  %v6202 = vld [vmem:[%s49 + $0x18] sm:$0xff]
  %v6203 = vmul.f32 %v6155, %v6195
  %v6204 = vmul.f32 %v6156, %v6196
  %v6205 = vmul.f32 %v6157, %v6197
  %v6206 = vmul.f32 %v6158, %v6198
  %v6207 = vsub.f32 %v6199, %v6203
  %v6208 = vsub.f32 %v6200, %v6204
  %v6209 = vsub.f32 %v6201, %v6205
  %v6210 = vsub.f32 %v6202, %v6206
  %v6211 = vsel %vm459, %v6139, 0.0
  %6212 = vadd.xlane.f32.xlu0 %v6211
  %v6213 = vpop.xlane.xlu0 %6212
  %v6214 = vsel %vm459, %v6140, 0.0
  %6215 = vadd.xlane.f32.xlu0 %v6214
  %v6216 = vpop.xlane.xlu0 %6215
  %v6217 = vsel %vm459, %v6141, 0.0
  %6218 = vadd.xlane.f32.xlu0 %v6217
  %v6219 = vpop.xlane.xlu0 %6218
  %v6220 = vsel %vm459, %v6142, 0.0
  %6221 = vadd.xlane.f32.xlu0 %v6220
  %v6222 = vpop.xlane.xlu0 %6221
  %v6223 = vmul.f32 %v6213, %v1930
  %v6224 = vmul.f32 %v6216, %v1930
  %v6225 = vmul.f32 %v6219, %v1930
  %v6226 = vmul.f32 %v6222, %v1930
  %v6227 = vmul.f32 %v6223, %v6195
  %v6228 = vmul.f32 %v6224, %v6196
  %v6229 = vmul.f32 %v6225, %v6197
  %v6230 = vmul.f32 %v6226, %v6198
  %v6231 = vadd.f32 %v6227, %v6207
  %v6232 = vadd.f32 %v6228, %v6208
  %v6233 = vadd.f32 %v6229, %v6209
  %v6234 = vadd.f32 %v6230, %v6210
  %6239 = vrot.lane.b32.xlu0 %v6139, 71
  %v6240 = vpop.permute.xlu0 %6239
  %6241 = vrot.lane.b32.xlu0 %v6140, 71
  %v6242 = vpop.permute.xlu0 %6241
  %6243 = vrot.lane.b32.xlu0 %v6141, 71
  %v6244 = vpop.permute.xlu0 %6243
  %6245 = vrot.lane.b32.xlu0 %v6142, 71
  %v6246 = vpop.permute.xlu0 %6245
  %v6251 = vsel %vm459, %v6240, 0.0
  %6252 = vadd.xlane.f32.xlu0 %v6251
  %v6253 = vpop.xlane.xlu0 %6252
  %v6254 = vsel %vm459, %v6242, 0.0
  %6255 = vadd.xlane.f32.xlu0 %v6254
  %v6256 = vpop.xlane.xlu0 %6255
  %v6257 = vsel %vm459, %v6244, 0.0
  %6258 = vadd.xlane.f32.xlu0 %v6257
  %v6259 = vpop.xlane.xlu0 %6258
  %v6260 = vsel %vm459, %v6246, 0.0
  %6261 = vadd.xlane.f32.xlu0 %v6260
  %v6262 = vpop.xlane.xlu0 %6261
  %v6263 = vmul.f32 %v6253, %v1930
  %v6264 = vmul.f32 %v6256, %v1930
  %v6265 = vmul.f32 %v6259, %v1930
  %v6266 = vmul.f32 %v6262, %v1930
  %v6267 = vmul.f32 %v6263, %v6195
  %v6268 = vmul.f32 %v6264, %v6196
  %v6269 = vmul.f32 %v6265, %v6197
  %v6270 = vmul.f32 %v6266, %v6198
  %v6271 = vadd.f32 %v6267, %v6207
  %v6272 = vadd.f32 %v6268, %v6208
  %v6273 = vadd.f32 %v6269, %v6209
  %v6274 = vadd.f32 %v6270, %v6210
  %6291 = vrot.lane.b32.xlu0 %v6018, 71
  %v6292 = vpop.permute.xlu0 %6291
  %6293 = vrot.lane.b32.xlu0 %v6019, 71
  %v6294 = vpop.permute.xlu0 %6293
  %6295 = vrot.lane.b32.xlu0 %v6020, 71
  %v6296 = vpop.permute.xlu0 %6295
  %6297 = vrot.lane.b32.xlu0 %v6021, 71
  %v6298 = vpop.permute.xlu0 %6297
  %6299 = vrot.lane.b32.xlu0 %v6022, 71
  %v6300 = vpop.permute.xlu0 %6299
  %6301 = vrot.lane.b32.xlu0 %v6023, 71
  %v6302 = vpop.permute.xlu0 %6301
  %6303 = vrot.lane.b32.xlu0 %v6024, 71
  %v6304 = vpop.permute.xlu0 %6303
  %6305 = vrot.lane.b32.xlu0 %v6025, 71
  %v6306 = vpop.permute.xlu0 %6305
  %6307 = vrot.lane.b32.xlu0 %v6026, 71
  %v6308 = vpop.permute.xlu0 %6307
  %6309 = vrot.lane.b32.xlu0 %v6027, 71
  %v6310 = vpop.permute.xlu0 %6309
  %6311 = vrot.lane.b32.xlu0 %v6028, 71
  %v6312 = vpop.permute.xlu0 %6311
  %6313 = vrot.lane.b32.xlu0 %v6029, 71
  %v6314 = vpop.permute.xlu0 %6313
  %6315 = vrot.lane.b32.xlu0 %v6030, 71
  %v6316 = vpop.permute.xlu0 %6315
  %6317 = vrot.lane.b32.xlu0 %v6031, 71
  %v6318 = vpop.permute.xlu0 %6317
  %6319 = vrot.lane.b32.xlu0 %v6032, 71
  %v6320 = vpop.permute.xlu0 %6319
  %6321 = vrot.lane.b32.xlu0 %v6033, 71
  %v6322 = vpop.permute.xlu0 %6321
  %6323 = vrot.lane.b32.xlu0 %v6018, 2
  %v6324 = vpop.permute.xlu0 %6323
  %6325 = vrot.lane.b32.xlu0 %v6019, 2
  %v6326 = vpop.permute.xlu0 %6325
  %6327 = vrot.lane.b32.xlu0 %v6020, 2
  %v6328 = vpop.permute.xlu0 %6327
  %6329 = vrot.lane.b32.xlu0 %v6021, 2
  %v6330 = vpop.permute.xlu0 %6329
  %6331 = vrot.lane.b32.xlu0 %v6022, 2
  %v6332 = vpop.permute.xlu0 %6331
  %6333 = vrot.lane.b32.xlu0 %v6023, 2
  %v6334 = vpop.permute.xlu0 %6333
  %6335 = vrot.lane.b32.xlu0 %v6024, 2
  %v6336 = vpop.permute.xlu0 %6335
  %6337 = vrot.lane.b32.xlu0 %v6025, 2
  %v6338 = vpop.permute.xlu0 %6337
  %6339 = vrot.lane.b32.xlu0 %v6026, 2
  %v6340 = vpop.permute.xlu0 %6339
  %6341 = vrot.lane.b32.xlu0 %v6027, 2
  %v6342 = vpop.permute.xlu0 %6341
  %6343 = vrot.lane.b32.xlu0 %v6028, 2
  %v6344 = vpop.permute.xlu0 %6343
  %6345 = vrot.lane.b32.xlu0 %v6029, 2
  %v6346 = vpop.permute.xlu0 %6345
  %6347 = vrot.lane.b32.xlu0 %v6030, 2
  %v6348 = vpop.permute.xlu0 %6347
  %6349 = vrot.lane.b32.xlu0 %v6031, 2
  %v6350 = vpop.permute.xlu0 %6349
  %6351 = vrot.lane.b32.xlu0 %v6032, 2
  %v6352 = vpop.permute.xlu0 %6351
  %6353 = vrot.lane.b32.xlu0 %v6033, 2
  %v6354 = vpop.permute.xlu0 %6353
  %6355 = vrot.lane.b32.xlu0 %v6292, 2
  %v6356 = vpop.permute.xlu0 %6355
  %6357 = vrot.lane.b32.xlu0 %v6294, 2
  %v6358 = vpop.permute.xlu0 %6357
  %6359 = vrot.lane.b32.xlu0 %v6296, 2
  %v6360 = vpop.permute.xlu0 %6359
  %6361 = vrot.lane.b32.xlu0 %v6298, 2
  %v6362 = vpop.permute.xlu0 %6361
  %6363 = vrot.lane.b32.xlu0 %v6300, 2
  %v6364 = vpop.permute.xlu0 %6363
  %6365 = vrot.lane.b32.xlu0 %v6302, 2
  %v6366 = vpop.permute.xlu0 %6365
  %6367 = vrot.lane.b32.xlu0 %v6304, 2
  %v6368 = vpop.permute.xlu0 %6367
  %6369 = vrot.lane.b32.xlu0 %v6306, 2
  %v6370 = vpop.permute.xlu0 %6369
  %6371 = vrot.lane.b32.xlu0 %v6308, 2
  %v6372 = vpop.permute.xlu0 %6371
  %6373 = vrot.lane.b32.xlu0 %v6310, 2
  %v6374 = vpop.permute.xlu0 %6373
  %6375 = vrot.lane.b32.xlu0 %v6312, 2
  %v6376 = vpop.permute.xlu0 %6375
  %6377 = vrot.lane.b32.xlu0 %v6314, 2
  %v6378 = vpop.permute.xlu0 %6377
  %6379 = vrot.lane.b32.xlu0 %v6316, 2
  %v6380 = vpop.permute.xlu0 %6379
  %6381 = vrot.lane.b32.xlu0 %v6318, 2
  %v6382 = vpop.permute.xlu0 %6381
  %6383 = vrot.lane.b32.xlu0 %v6320, 2
  %v6384 = vpop.permute.xlu0 %6383
  %6385 = vrot.lane.b32.xlu0 %v6322, 2
  %v6386 = vpop.permute.xlu0 %6385
  %vm6419 = vcmask 15360
  %v6420 = vsel %vm6419, 0.0, %v6324
  %v6421 = vsel %vm6419, 0.0, %v6326
  %v6422 = vsel %vm6419, 0.0, %v6328
  %v6423 = vsel %vm6419, 0.0, %v6330
  %v6424 = vsel %vm6419, 0.0, %v6332
  %v6425 = vsel %vm6419, 0.0, %v6334
  %v6426 = vsel %vm6419, 0.0, %v6336
  %v6427 = vsel %vm6419, 0.0, %v6338
  %v6428 = vsel %vm6419, 0.0, %v6340
  %v6429 = vsel %vm6419, 0.0, %v6342
  %v6430 = vsel %vm6419, 0.0, %v6344
  %v6431 = vsel %vm6419, 0.0, %v6346
  %v6432 = vsel %vm6419, 0.0, %v6348
  %v6433 = vsel %vm6419, 0.0, %v6350
  %v6434 = vsel %vm6419, 0.0, %v6352
  %v6435 = vsel %vm6419, 0.0, %v6354
  %v6436 = vsel %vm6419, 0.0, %v6356
  %v6437 = vsel %vm6419, 0.0, %v6358
  %v6438 = vsel %vm6419, 0.0, %v6360
  %v6439 = vsel %vm6419, 0.0, %v6362
  %v6440 = vsel %vm6419, 0.0, %v6364
  %v6441 = vsel %vm6419, 0.0, %v6366
  %v6442 = vsel %vm6419, 0.0, %v6368
  %v6443 = vsel %vm6419, 0.0, %v6370
  %v6444 = vsel %vm6419, 0.0, %v6372
  %v6445 = vsel %vm6419, 0.0, %v6374
  %v6446 = vsel %vm6419, 0.0, %v6376
  %v6447 = vsel %vm6419, 0.0, %v6378
  %v6448 = vsel %vm6419, 0.0, %v6380
  %v6449 = vsel %vm6419, 0.0, %v6382
  %v6450 = vsel %vm6419, 0.0, %v6384
  %v6451 = vsel %vm6419, 0.0, %v6386
  %vm6452 = vcmask 482304
  %v6453 = vsel %vm6452, %v6420, 0.0
  %v6454 = vsel %vm6452, %v6421, 0.0
  %v6455 = vsel %vm6452, %v6422, 0.0
  %v6456 = vsel %vm6452, %v6423, 0.0
  %v6457 = vsel %vm6452, %v6424, 0.0
  %v6458 = vsel %vm6452, %v6425, 0.0
  %v6459 = vsel %vm6452, %v6426, 0.0
  %v6460 = vsel %vm6452, %v6427, 0.0
  %v6461 = vsel %vm6452, %v6428, 0.0
  %v6462 = vsel %vm6452, %v6429, 0.0
  %v6463 = vsel %vm6452, %v6430, 0.0
  %v6464 = vsel %vm6452, %v6431, 0.0
  %v6465 = vsel %vm6452, %v6432, 0.0
  %v6466 = vsel %vm6452, %v6433, 0.0
  %v6467 = vsel %vm6452, %v6434, 0.0
  %v6468 = vsel %vm6452, %v6435, 0.0
  %v6469 = vsel %vm6452, %v6436, 0.0
  %v6470 = vsel %vm6452, %v6437, 0.0
  %v6471 = vsel %vm6452, %v6438, 0.0
  %v6472 = vsel %vm6452, %v6439, 0.0
  %v6473 = vsel %vm6452, %v6440, 0.0
  %v6474 = vsel %vm6452, %v6441, 0.0
  %v6475 = vsel %vm6452, %v6442, 0.0
  %v6476 = vsel %vm6452, %v6443, 0.0
  %v6477 = vsel %vm6452, %v6444, 0.0
  %v6478 = vsel %vm6452, %v6445, 0.0
  %v6479 = vsel %vm6452, %v6446, 0.0
  %v6480 = vsel %vm6452, %v6447, 0.0
  %v6481 = vsel %vm6452, %v6448, 0.0
  %v6482 = vsel %vm6452, %v6449, 0.0
  %v6483 = vsel %vm6452, %v6450, 0.0
  %v6484 = vsel %vm6452, %v6451, 0.0
  %v6485 = vld [vmem:[%s51] sm:$0xff]
  %v6486 = vld [vmem:[%s51 + $0x8] sm:$0xff]
  %v6487 = vld [vmem:[%s51 + $0x10] sm:$0xff]
  %v6488 = vld [vmem:[%s51 + $0x18] sm:$0xff]
  %v6489 = vld [vmem:[%s51 + $0x20] sm:$0xff]
  %v6490 = vld [vmem:[%s51 + $0x28] sm:$0xff]
  %v6491 = vld [vmem:[%s51 + $0x30] sm:$0xff]
  %v6492 = vld [vmem:[%s51 + $0x38] sm:$0xff]
  %v6493 = vld [vmem:[%s51 + $0x40] sm:$0xff]
  %v6494 = vld [vmem:[%s51 + $0x48] sm:$0xff]
  %v6495 = vld [vmem:[%s51 + $0x50] sm:$0xff]
  %v6496 = vld [vmem:[%s51 + $0x58] sm:$0xff]
  %v6497 = vld [vmem:[%s51 + $0x60] sm:$0xff]
  %v6498 = vld [vmem:[%s51 + $0x68] sm:$0xff]
  %v6499 = vld [vmem:[%s51 + $0x70] sm:$0xff]
  %v6500 = vld [vmem:[%s51 + $0x78] sm:$0xff]
  %v6501 = vld [vmem:[%s51 + $0x80] sm:$0xff]
  %v6502 = vld [vmem:[%s51 + $0x88] sm:$0xff]
  %v6503 = vld [vmem:[%s51 + $0x90] sm:$0xff]
  %v6504 = vld [vmem:[%s51 + $0x98] sm:$0xff]
  %v6505 = vld [vmem:[%s51 + $0xa0] sm:$0xff]
  %v6506 = vld [vmem:[%s51 + $0xa8] sm:$0xff]
  %v6507 = vld [vmem:[%s51 + $0xb0] sm:$0xff]
  %v6508 = vld [vmem:[%s51 + $0xb8] sm:$0xff]
  %v6509 = vld [vmem:[%s51 + $0xc0] sm:$0xff]
  %v6510 = vld [vmem:[%s51 + $0xc8] sm:$0xff]
  %v6511 = vld [vmem:[%s51 + $0xd0] sm:$0xff]
  %v6512 = vld [vmem:[%s51 + $0xd8] sm:$0xff]
  %v6513 = vld [vmem:[%s51 + $0xe0] sm:$0xff]
  %v6514 = vld [vmem:[%s51 + $0xe8] sm:$0xff]
  %v6515 = vld [vmem:[%s51 + $0xf0] sm:$0xff]
  %v6516 = vld [vmem:[%s51 + $0xf8] sm:$0xff]
  %v6517 = vld [vmem:[%s51 + $0x100] sm:$0xff]
  %v6518 = vld [vmem:[%s51 + $0x108] sm:$0xff]
  %v6519 = vld [vmem:[%s51 + $0x110] sm:$0xff]
  %v6520 = vld [vmem:[%s51 + $0x118] sm:$0xff]
  %v6521 = vld [vmem:[%s51 + $0x120] sm:$0xff]
  %v6522 = vld [vmem:[%s51 + $0x128] sm:$0xff]
  %v6523 = vld [vmem:[%s51 + $0x130] sm:$0xff]
  %v6524 = vld [vmem:[%s51 + $0x138] sm:$0xff]
  %v6525 = vld [vmem:[%s51 + $0x140] sm:$0xff]
  %v6526 = vld [vmem:[%s51 + $0x148] sm:$0xff]
  %v6527 = vld [vmem:[%s51 + $0x150] sm:$0xff]
  %v6528 = vld [vmem:[%s51 + $0x158] sm:$0xff]
  %v6529 = vld [vmem:[%s51 + $0x160] sm:$0xff]
  %v6530 = vld [vmem:[%s51 + $0x168] sm:$0xff]
  %v6531 = vld [vmem:[%s51 + $0x170] sm:$0xff]
  %v6532 = vld [vmem:[%s51 + $0x178] sm:$0xff]
  %v6533 = vld [vmem:[%s51 + $0x180] sm:$0xff]
  %v6534 = vld [vmem:[%s51 + $0x188] sm:$0xff]
  %v6535 = vld [vmem:[%s51 + $0x190] sm:$0xff]
  %v6536 = vld [vmem:[%s51 + $0x198] sm:$0xff]
  %v6537 = vld [vmem:[%s51 + $0x1a0] sm:$0xff]
  %v6538 = vld [vmem:[%s51 + $0x1a8] sm:$0xff]
  %v6539 = vld [vmem:[%s51 + $0x1b0] sm:$0xff]
  %v6540 = vld [vmem:[%s51 + $0x1b8] sm:$0xff]
  %v6541 = vld [vmem:[%s51 + $0x1c0] sm:$0xff]
  %v6542 = vld [vmem:[%s51 + $0x1c8] sm:$0xff]
  %v6543 = vld [vmem:[%s51 + $0x1d0] sm:$0xff]
  %v6544 = vld [vmem:[%s51 + $0x1d8] sm:$0xff]
  %v6545 = vld [vmem:[%s51 + $0x1e0] sm:$0xff]
  %v6546 = vld [vmem:[%s51 + $0x1e8] sm:$0xff]
  %v6547 = vld [vmem:[%s51 + $0x1f0] sm:$0xff]
  %v6548 = vld [vmem:[%s51 + $0x1f8] sm:$0xff]
  %v6549 = vld [vmem:[%s51 + $0x200] sm:$0xff]
  %v6550 = vld [vmem:[%s51 + $0x208] sm:$0xff]
  %v6551 = vld [vmem:[%s51 + $0x210] sm:$0xff]
  %v6552 = vld [vmem:[%s51 + $0x218] sm:$0xff]
  %v6553 = vld [vmem:[%s51 + $0x220] sm:$0xff]
  %v6554 = vld [vmem:[%s51 + $0x228] sm:$0xff]
  %v6555 = vld [vmem:[%s51 + $0x230] sm:$0xff]
  %v6556 = vld [vmem:[%s51 + $0x238] sm:$0xff]
  %v6557 = vld [vmem:[%s51 + $0x240] sm:$0xff]
  %v6558 = vld [vmem:[%s51 + $0x248] sm:$0xff]
  %v6559 = vld [vmem:[%s51 + $0x250] sm:$0xff]
  %v6560 = vld [vmem:[%s51 + $0x258] sm:$0xff]
  %v6561 = vld [vmem:[%s51 + $0x260] sm:$0xff]
  %v6562 = vld [vmem:[%s51 + $0x268] sm:$0xff]
  %v6563 = vld [vmem:[%s51 + $0x270] sm:$0xff]
  %v6564 = vld [vmem:[%s51 + $0x278] sm:$0xff]
  %6566 = vset.pattern.permute.xlu0 0
  %6567 = vperm.xlu0 %6566, %v6485
  %v6568 = vpop.permute.xlu0 %6567
  %6571 = vset.pattern.permute.xlu0 0
  %6572 = vperm.xlu0 %6571, %v6486
  %v6573 = vpop.permute.xlu0 %6572
  %6576 = vset.pattern.permute.xlu0 0
  %6577 = vperm.xlu0 %6576, %v6487
  %v6578 = vpop.permute.xlu0 %6577
  %6581 = vset.pattern.permute.xlu0 0
  %6582 = vperm.xlu0 %6581, %v6488
  %v6583 = vpop.permute.xlu0 %6582
  %6586 = vset.pattern.permute.xlu0 0
  %6587 = vperm.xlu0 %6586, %v6489
  %v6588 = vpop.permute.xlu0 %6587
  %6591 = vset.pattern.permute.xlu0 0
  %6592 = vperm.xlu0 %6591, %v6490
  %v6593 = vpop.permute.xlu0 %6592
  %6596 = vset.pattern.permute.xlu0 0
  %6597 = vperm.xlu0 %6596, %v6491
  %v6598 = vpop.permute.xlu0 %6597
  %6601 = vset.pattern.permute.xlu0 0
  %6602 = vperm.xlu0 %6601, %v6492
  %v6603 = vpop.permute.xlu0 %6602
  %6606 = vset.pattern.permute.xlu0 0
  %6607 = vperm.xlu0 %6606, %v6493
  %v6608 = vpop.permute.xlu0 %6607
  %6611 = vset.pattern.permute.xlu0 0
  %6612 = vperm.xlu0 %6611, %v6494
  %v6613 = vpop.permute.xlu0 %6612
  %6616 = vset.pattern.permute.xlu0 0
  %6617 = vperm.xlu0 %6616, %v6495
  %v6618 = vpop.permute.xlu0 %6617
  %6621 = vset.pattern.permute.xlu0 0
  %6622 = vperm.xlu0 %6621, %v6496
  %v6623 = vpop.permute.xlu0 %6622
  %6626 = vset.pattern.permute.xlu0 0
  %6627 = vperm.xlu0 %6626, %v6497
  %v6628 = vpop.permute.xlu0 %6627
  %6631 = vset.pattern.permute.xlu0 0
  %6632 = vperm.xlu0 %6631, %v6498
  %v6633 = vpop.permute.xlu0 %6632
  %6636 = vset.pattern.permute.xlu0 0
  %6637 = vperm.xlu0 %6636, %v6499
  %v6638 = vpop.permute.xlu0 %6637
  %6641 = vset.pattern.permute.xlu0 0
  %6642 = vperm.xlu0 %6641, %v6500
  %v6643 = vpop.permute.xlu0 %6642
  %v6645 = vmul.f32 %v6568, %v6453
  %v6646 = vmul.f32 %v6573, %v6454
  %v6647 = vmul.f32 %v6578, %v6455
  %v6648 = vmul.f32 %v6583, %v6456
  %v6649 = vmul.f32 %v6588, %v6457
  %v6650 = vmul.f32 %v6593, %v6458
  %v6651 = vmul.f32 %v6598, %v6459
  %v6652 = vmul.f32 %v6603, %v6460
  %v6653 = vmul.f32 %v6608, %v6461
  %v6654 = vmul.f32 %v6613, %v6462
  %v6655 = vmul.f32 %v6618, %v6463
  %v6656 = vmul.f32 %v6623, %v6464
  %v6657 = vmul.f32 %v6628, %v6465
  %v6658 = vmul.f32 %v6633, %v6466
  %v6659 = vmul.f32 %v6638, %v6467
  %v6660 = vmul.f32 %v6643, %v6468
  %v6661 = vmul.f32 %v6568, %v6469
  %v6662 = vmul.f32 %v6573, %v6470
  %v6663 = vmul.f32 %v6578, %v6471
  %v6664 = vmul.f32 %v6583, %v6472
  %v6665 = vmul.f32 %v6588, %v6473
  %v6666 = vmul.f32 %v6593, %v6474
  %v6667 = vmul.f32 %v6598, %v6475
  %v6668 = vmul.f32 %v6603, %v6476
  %v6669 = vmul.f32 %v6608, %v6477
  %v6670 = vmul.f32 %v6613, %v6478
  %v6671 = vmul.f32 %v6618, %v6479
  %v6672 = vmul.f32 %v6623, %v6480
  %v6673 = vmul.f32 %v6628, %v6481
  %v6674 = vmul.f32 %v6633, %v6482
  %v6675 = vmul.f32 %v6638, %v6483
  %v6676 = vmul.f32 %v6643, %v6484
  %v6677 = vadd.f32 %v6645, 0.0
  %v6678 = vadd.f32 %v6646, 0.0
  %v6679 = vadd.f32 %v6647, 0.0
  %v6680 = vadd.f32 %v6648, 0.0
  %v6681 = vadd.f32 %v6649, 0.0
  %v6682 = vadd.f32 %v6650, 0.0
  %v6683 = vadd.f32 %v6651, 0.0
  %v6684 = vadd.f32 %v6652, 0.0
  %v6685 = vadd.f32 %v6653, 0.0
  %v6686 = vadd.f32 %v6654, 0.0
  %v6687 = vadd.f32 %v6655, 0.0
  %v6688 = vadd.f32 %v6656, 0.0
  %v6689 = vadd.f32 %v6657, 0.0
  %v6690 = vadd.f32 %v6658, 0.0
  %v6691 = vadd.f32 %v6659, 0.0
  %v6692 = vadd.f32 %v6660, 0.0
  %v6693 = vadd.f32 %v6661, 0.0
  %v6694 = vadd.f32 %v6662, 0.0
  %v6695 = vadd.f32 %v6663, 0.0
  %v6696 = vadd.f32 %v6664, 0.0
  %v6697 = vadd.f32 %v6665, 0.0
  %v6698 = vadd.f32 %v6666, 0.0
  %v6699 = vadd.f32 %v6667, 0.0
  %v6700 = vadd.f32 %v6668, 0.0
  %v6701 = vadd.f32 %v6669, 0.0
  %v6702 = vadd.f32 %v6670, 0.0
  %v6703 = vadd.f32 %v6671, 0.0
  %v6704 = vadd.f32 %v6672, 0.0
  %v6705 = vadd.f32 %v6673, 0.0
  %v6706 = vadd.f32 %v6674, 0.0
  %v6707 = vadd.f32 %v6675, 0.0
  %v6708 = vadd.f32 %v6676, 0.0
  %6710 = vset.pattern.permute.xlu0 0
  %6711 = vperm.xlu0 %6710, %v6501
  %v6712 = vpop.permute.xlu0 %6711
  %6715 = vset.pattern.permute.xlu0 0
  %6716 = vperm.xlu0 %6715, %v6502
  %v6717 = vpop.permute.xlu0 %6716
  %6720 = vset.pattern.permute.xlu0 0
  %6721 = vperm.xlu0 %6720, %v6503
  %v6722 = vpop.permute.xlu0 %6721
  %6725 = vset.pattern.permute.xlu0 0
  %6726 = vperm.xlu0 %6725, %v6504
  %v6727 = vpop.permute.xlu0 %6726
  %6730 = vset.pattern.permute.xlu0 0
  %6731 = vperm.xlu0 %6730, %v6505
  %v6732 = vpop.permute.xlu0 %6731
  %6735 = vset.pattern.permute.xlu0 0
  %6736 = vperm.xlu0 %6735, %v6506
  %v6737 = vpop.permute.xlu0 %6736
  %6740 = vset.pattern.permute.xlu0 0
  %6741 = vperm.xlu0 %6740, %v6507
  %v6742 = vpop.permute.xlu0 %6741
  %6745 = vset.pattern.permute.xlu0 0
  %6746 = vperm.xlu0 %6745, %v6508
  %v6747 = vpop.permute.xlu0 %6746
  %6750 = vset.pattern.permute.xlu0 0
  %6751 = vperm.xlu0 %6750, %v6509
  %v6752 = vpop.permute.xlu0 %6751
  %6755 = vset.pattern.permute.xlu0 0
  %6756 = vperm.xlu0 %6755, %v6510
  %v6757 = vpop.permute.xlu0 %6756
  %6760 = vset.pattern.permute.xlu0 0
  %6761 = vperm.xlu0 %6760, %v6511
  %v6762 = vpop.permute.xlu0 %6761
  %6765 = vset.pattern.permute.xlu0 0
  %6766 = vperm.xlu0 %6765, %v6512
  %v6767 = vpop.permute.xlu0 %6766
  %6770 = vset.pattern.permute.xlu0 0
  %6771 = vperm.xlu0 %6770, %v6513
  %v6772 = vpop.permute.xlu0 %6771
  %6775 = vset.pattern.permute.xlu0 0
  %6776 = vperm.xlu0 %6775, %v6514
  %v6777 = vpop.permute.xlu0 %6776
  %6780 = vset.pattern.permute.xlu0 0
  %6781 = vperm.xlu0 %6780, %v6515
  %v6782 = vpop.permute.xlu0 %6781
  %6785 = vset.pattern.permute.xlu0 0
  %6786 = vperm.xlu0 %6785, %v6516
  %v6787 = vpop.permute.xlu0 %6786
  %v6789 = vmul.f32 %v6712, %v6453
  %v6790 = vmul.f32 %v6717, %v6454
  %v6791 = vmul.f32 %v6722, %v6455
  %v6792 = vmul.f32 %v6727, %v6456
  %v6793 = vmul.f32 %v6732, %v6457
  %v6794 = vmul.f32 %v6737, %v6458
  %v6795 = vmul.f32 %v6742, %v6459
  %v6796 = vmul.f32 %v6747, %v6460
  %v6797 = vmul.f32 %v6752, %v6461
  %v6798 = vmul.f32 %v6757, %v6462
  %v6799 = vmul.f32 %v6762, %v6463
  %v6800 = vmul.f32 %v6767, %v6464
  %v6801 = vmul.f32 %v6772, %v6465
  %v6802 = vmul.f32 %v6777, %v6466
  %v6803 = vmul.f32 %v6782, %v6467
  %v6804 = vmul.f32 %v6787, %v6468
  %v6805 = vmul.f32 %v6712, %v6469
  %v6806 = vmul.f32 %v6717, %v6470
  %v6807 = vmul.f32 %v6722, %v6471
  %v6808 = vmul.f32 %v6727, %v6472
  %v6809 = vmul.f32 %v6732, %v6473
  %v6810 = vmul.f32 %v6737, %v6474
  %v6811 = vmul.f32 %v6742, %v6475
  %v6812 = vmul.f32 %v6747, %v6476
  %v6813 = vmul.f32 %v6752, %v6477
  %v6814 = vmul.f32 %v6757, %v6478
  %v6815 = vmul.f32 %v6762, %v6479
  %v6816 = vmul.f32 %v6767, %v6480
  %v6817 = vmul.f32 %v6772, %v6481
  %v6818 = vmul.f32 %v6777, %v6482
  %v6819 = vmul.f32 %v6782, %v6483
  %v6820 = vmul.f32 %v6787, %v6484
  %6853 = vrot.lane.b32.xlu0 %v6789, 127
  %v6854 = vpop.permute.xlu0 %6853
  %6855 = vrot.lane.b32.xlu0 %v6790, 127
  %v6856 = vpop.permute.xlu0 %6855
  %6857 = vrot.lane.b32.xlu0 %v6791, 127
  %v6858 = vpop.permute.xlu0 %6857
  %6859 = vrot.lane.b32.xlu0 %v6792, 127
  %v6860 = vpop.permute.xlu0 %6859
  %6861 = vrot.lane.b32.xlu0 %v6793, 127
  %v6862 = vpop.permute.xlu0 %6861
  %6863 = vrot.lane.b32.xlu0 %v6794, 127
  %v6864 = vpop.permute.xlu0 %6863
  %6865 = vrot.lane.b32.xlu0 %v6795, 127
  %v6866 = vpop.permute.xlu0 %6865
  %6867 = vrot.lane.b32.xlu0 %v6796, 127
  %v6868 = vpop.permute.xlu0 %6867
  %6869 = vrot.lane.b32.xlu0 %v6797, 127
  %v6870 = vpop.permute.xlu0 %6869
  %6871 = vrot.lane.b32.xlu0 %v6798, 127
  %v6872 = vpop.permute.xlu0 %6871
  %6873 = vrot.lane.b32.xlu0 %v6799, 127
  %v6874 = vpop.permute.xlu0 %6873
  %6875 = vrot.lane.b32.xlu0 %v6800, 127
  %v6876 = vpop.permute.xlu0 %6875
  %6877 = vrot.lane.b32.xlu0 %v6801, 127
  %v6878 = vpop.permute.xlu0 %6877
  %6879 = vrot.lane.b32.xlu0 %v6802, 127
  %v6880 = vpop.permute.xlu0 %6879
  %6881 = vrot.lane.b32.xlu0 %v6803, 127
  %v6882 = vpop.permute.xlu0 %6881
  %6883 = vrot.lane.b32.xlu0 %v6804, 127
  %v6884 = vpop.permute.xlu0 %6883
  %6885 = vrot.lane.b32.xlu0 %v6805, 127
  %v6886 = vpop.permute.xlu0 %6885
  %6887 = vrot.lane.b32.xlu0 %v6806, 127
  %v6888 = vpop.permute.xlu0 %6887
  %6889 = vrot.lane.b32.xlu0 %v6807, 127
  %v6890 = vpop.permute.xlu0 %6889
  %6891 = vrot.lane.b32.xlu0 %v6808, 127
  %v6892 = vpop.permute.xlu0 %6891
  %6893 = vrot.lane.b32.xlu0 %v6809, 127
  %v6894 = vpop.permute.xlu0 %6893
  %6895 = vrot.lane.b32.xlu0 %v6810, 127
  %v6896 = vpop.permute.xlu0 %6895
  %6897 = vrot.lane.b32.xlu0 %v6811, 127
  %v6898 = vpop.permute.xlu0 %6897
  %6899 = vrot.lane.b32.xlu0 %v6812, 127
  %v6900 = vpop.permute.xlu0 %6899
  %6901 = vrot.lane.b32.xlu0 %v6813, 127
  %v6902 = vpop.permute.xlu0 %6901
  %6903 = vrot.lane.b32.xlu0 %v6814, 127
  %v6904 = vpop.permute.xlu0 %6903
  %6905 = vrot.lane.b32.xlu0 %v6815, 127
  %v6906 = vpop.permute.xlu0 %6905
  %6907 = vrot.lane.b32.xlu0 %v6816, 127
  %v6908 = vpop.permute.xlu0 %6907
  %6909 = vrot.lane.b32.xlu0 %v6817, 127
  %v6910 = vpop.permute.xlu0 %6909
  %6911 = vrot.lane.b32.xlu0 %v6818, 127
  %v6912 = vpop.permute.xlu0 %6911
  %6913 = vrot.lane.b32.xlu0 %v6819, 127
  %v6914 = vpop.permute.xlu0 %6913
  %6915 = vrot.lane.b32.xlu0 %v6820, 127
  %v6916 = vpop.permute.xlu0 %6915
  %v6949 = vadd.f32 %v6677, %v6854
  %v6950 = vadd.f32 %v6678, %v6856
  %v6951 = vadd.f32 %v6679, %v6858
  %v6952 = vadd.f32 %v6680, %v6860
  %v6953 = vadd.f32 %v6681, %v6862
  %v6954 = vadd.f32 %v6682, %v6864
  %v6955 = vadd.f32 %v6683, %v6866
  %v6956 = vadd.f32 %v6684, %v6868
  %v6957 = vadd.f32 %v6685, %v6870
  %v6958 = vadd.f32 %v6686, %v6872
  %v6959 = vadd.f32 %v6687, %v6874
  %v6960 = vadd.f32 %v6688, %v6876
  %v6961 = vadd.f32 %v6689, %v6878
  %v6962 = vadd.f32 %v6690, %v6880
  %v6963 = vadd.f32 %v6691, %v6882
  %v6964 = vadd.f32 %v6692, %v6884
  %v6965 = vadd.f32 %v6693, %v6886
  %v6966 = vadd.f32 %v6694, %v6888
  %v6967 = vadd.f32 %v6695, %v6890
  %v6968 = vadd.f32 %v6696, %v6892
  %v6969 = vadd.f32 %v6697, %v6894
  %v6970 = vadd.f32 %v6698, %v6896
  %v6971 = vadd.f32 %v6699, %v6898
  %v6972 = vadd.f32 %v6700, %v6900
  %v6973 = vadd.f32 %v6701, %v6902
  %v6974 = vadd.f32 %v6702, %v6904
  %v6975 = vadd.f32 %v6703, %v6906
  %v6976 = vadd.f32 %v6704, %v6908
  %v6977 = vadd.f32 %v6705, %v6910
  %v6978 = vadd.f32 %v6706, %v6912
  %v6979 = vadd.f32 %v6707, %v6914
  %v6980 = vadd.f32 %v6708, %v6916
  %6982 = vset.pattern.permute.xlu0 0
  %6983 = vperm.xlu0 %6982, %v6517
  %v6984 = vpop.permute.xlu0 %6983
  %6987 = vset.pattern.permute.xlu0 0
  %6988 = vperm.xlu0 %6987, %v6518
  %v6989 = vpop.permute.xlu0 %6988
  %6992 = vset.pattern.permute.xlu0 0
  %6993 = vperm.xlu0 %6992, %v6519
  %v6994 = vpop.permute.xlu0 %6993
  %6997 = vset.pattern.permute.xlu0 0
  %6998 = vperm.xlu0 %6997, %v6520
  %v6999 = vpop.permute.xlu0 %6998
  %7002 = vset.pattern.permute.xlu0 0
  %7003 = vperm.xlu0 %7002, %v6521
  %v7004 = vpop.permute.xlu0 %7003
  %7007 = vset.pattern.permute.xlu0 0
  %7008 = vperm.xlu0 %7007, %v6522
  %v7009 = vpop.permute.xlu0 %7008
  %7012 = vset.pattern.permute.xlu0 0
  %7013 = vperm.xlu0 %7012, %v6523
  %v7014 = vpop.permute.xlu0 %7013
  %7017 = vset.pattern.permute.xlu0 0
  %7018 = vperm.xlu0 %7017, %v6524
  %v7019 = vpop.permute.xlu0 %7018
  %7022 = vset.pattern.permute.xlu0 0
  %7023 = vperm.xlu0 %7022, %v6525
  %v7024 = vpop.permute.xlu0 %7023
  %7027 = vset.pattern.permute.xlu0 0
  %7028 = vperm.xlu0 %7027, %v6526
  %v7029 = vpop.permute.xlu0 %7028
  %7032 = vset.pattern.permute.xlu0 0
  %7033 = vperm.xlu0 %7032, %v6527
  %v7034 = vpop.permute.xlu0 %7033
  %7037 = vset.pattern.permute.xlu0 0
  %7038 = vperm.xlu0 %7037, %v6528
  %v7039 = vpop.permute.xlu0 %7038
  %7042 = vset.pattern.permute.xlu0 0
  %7043 = vperm.xlu0 %7042, %v6529
  %v7044 = vpop.permute.xlu0 %7043
  %7047 = vset.pattern.permute.xlu0 0
  %7048 = vperm.xlu0 %7047, %v6530
  %v7049 = vpop.permute.xlu0 %7048
  %7052 = vset.pattern.permute.xlu0 0
  %7053 = vperm.xlu0 %7052, %v6531
  %v7054 = vpop.permute.xlu0 %7053
  %7057 = vset.pattern.permute.xlu0 0
  %7058 = vperm.xlu0 %7057, %v6532
  %v7059 = vpop.permute.xlu0 %7058
  %v7061 = vmul.f32 %v6984, %v6453
  %v7062 = vmul.f32 %v6989, %v6454
  %v7063 = vmul.f32 %v6994, %v6455
  %v7064 = vmul.f32 %v6999, %v6456
  %v7065 = vmul.f32 %v7004, %v6457
  %v7066 = vmul.f32 %v7009, %v6458
  %v7067 = vmul.f32 %v7014, %v6459
  %v7068 = vmul.f32 %v7019, %v6460
  %v7069 = vmul.f32 %v7024, %v6461
  %v7070 = vmul.f32 %v7029, %v6462
  %v7071 = vmul.f32 %v7034, %v6463
  %v7072 = vmul.f32 %v7039, %v6464
  %v7073 = vmul.f32 %v7044, %v6465
  %v7074 = vmul.f32 %v7049, %v6466
  %v7075 = vmul.f32 %v7054, %v6467
  %v7076 = vmul.f32 %v7059, %v6468
  %v7077 = vmul.f32 %v6984, %v6469
  %v7078 = vmul.f32 %v6989, %v6470
  %v7079 = vmul.f32 %v6994, %v6471
  %v7080 = vmul.f32 %v6999, %v6472
  %v7081 = vmul.f32 %v7004, %v6473
  %v7082 = vmul.f32 %v7009, %v6474
  %v7083 = vmul.f32 %v7014, %v6475
  %v7084 = vmul.f32 %v7019, %v6476
  %v7085 = vmul.f32 %v7024, %v6477
  %v7086 = vmul.f32 %v7029, %v6478
  %v7087 = vmul.f32 %v7034, %v6479
  %v7088 = vmul.f32 %v7039, %v6480
  %v7089 = vmul.f32 %v7044, %v6481
  %v7090 = vmul.f32 %v7049, %v6482
  %v7091 = vmul.f32 %v7054, %v6483
  %v7092 = vmul.f32 %v7059, %v6484
  %7125 = vrot.lane.b32.xlu0 %v7061, 126
  %v7126 = vpop.permute.xlu0 %7125
  %7127 = vrot.lane.b32.xlu0 %v7062, 126
  %v7128 = vpop.permute.xlu0 %7127
  %7129 = vrot.lane.b32.xlu0 %v7063, 126
  %v7130 = vpop.permute.xlu0 %7129
  %7131 = vrot.lane.b32.xlu0 %v7064, 126
  %v7132 = vpop.permute.xlu0 %7131
  %7133 = vrot.lane.b32.xlu0 %v7065, 126
  %v7134 = vpop.permute.xlu0 %7133
  %7135 = vrot.lane.b32.xlu0 %v7066, 126
  %v7136 = vpop.permute.xlu0 %7135
  %7137 = vrot.lane.b32.xlu0 %v7067, 126
  %v7138 = vpop.permute.xlu0 %7137
  %7139 = vrot.lane.b32.xlu0 %v7068, 126
  %v7140 = vpop.permute.xlu0 %7139
  %7141 = vrot.lane.b32.xlu0 %v7069, 126
  %v7142 = vpop.permute.xlu0 %7141
  %7143 = vrot.lane.b32.xlu0 %v7070, 126
  %v7144 = vpop.permute.xlu0 %7143
  %7145 = vrot.lane.b32.xlu0 %v7071, 126
  %v7146 = vpop.permute.xlu0 %7145
  %7147 = vrot.lane.b32.xlu0 %v7072, 126
  %v7148 = vpop.permute.xlu0 %7147
  %7149 = vrot.lane.b32.xlu0 %v7073, 126
  %v7150 = vpop.permute.xlu0 %7149
  %7151 = vrot.lane.b32.xlu0 %v7074, 126
  %v7152 = vpop.permute.xlu0 %7151
  %7153 = vrot.lane.b32.xlu0 %v7075, 126
  %v7154 = vpop.permute.xlu0 %7153
  %7155 = vrot.lane.b32.xlu0 %v7076, 126
  %v7156 = vpop.permute.xlu0 %7155
  %7157 = vrot.lane.b32.xlu0 %v7077, 126
  %v7158 = vpop.permute.xlu0 %7157
  %7159 = vrot.lane.b32.xlu0 %v7078, 126
  %v7160 = vpop.permute.xlu0 %7159
  %7161 = vrot.lane.b32.xlu0 %v7079, 126
  %v7162 = vpop.permute.xlu0 %7161
  %7163 = vrot.lane.b32.xlu0 %v7080, 126
  %v7164 = vpop.permute.xlu0 %7163
  %7165 = vrot.lane.b32.xlu0 %v7081, 126
  %v7166 = vpop.permute.xlu0 %7165
  %7167 = vrot.lane.b32.xlu0 %v7082, 126
  %v7168 = vpop.permute.xlu0 %7167
  %7169 = vrot.lane.b32.xlu0 %v7083, 126
  %v7170 = vpop.permute.xlu0 %7169
  %7171 = vrot.lane.b32.xlu0 %v7084, 126
  %v7172 = vpop.permute.xlu0 %7171
  %7173 = vrot.lane.b32.xlu0 %v7085, 126
  %v7174 = vpop.permute.xlu0 %7173
  %7175 = vrot.lane.b32.xlu0 %v7086, 126
  %v7176 = vpop.permute.xlu0 %7175
  %7177 = vrot.lane.b32.xlu0 %v7087, 126
  %v7178 = vpop.permute.xlu0 %7177
  %7179 = vrot.lane.b32.xlu0 %v7088, 126
  %v7180 = vpop.permute.xlu0 %7179
  %7181 = vrot.lane.b32.xlu0 %v7089, 126
  %v7182 = vpop.permute.xlu0 %7181
  %7183 = vrot.lane.b32.xlu0 %v7090, 126
  %v7184 = vpop.permute.xlu0 %7183
  %7185 = vrot.lane.b32.xlu0 %v7091, 126
  %v7186 = vpop.permute.xlu0 %7185
  %7187 = vrot.lane.b32.xlu0 %v7092, 126
  %v7188 = vpop.permute.xlu0 %7187
  %v7221 = vadd.f32 %v6949, %v7126
  %v7222 = vadd.f32 %v6950, %v7128
  %v7223 = vadd.f32 %v6951, %v7130
  %v7224 = vadd.f32 %v6952, %v7132
  %v7225 = vadd.f32 %v6953, %v7134
  %v7226 = vadd.f32 %v6954, %v7136
  %v7227 = vadd.f32 %v6955, %v7138
  %v7228 = vadd.f32 %v6956, %v7140
  %v7229 = vadd.f32 %v6957, %v7142
  %v7230 = vadd.f32 %v6958, %v7144
  %v7231 = vadd.f32 %v6959, %v7146
  %v7232 = vadd.f32 %v6960, %v7148
  %v7233 = vadd.f32 %v6961, %v7150
  %v7234 = vadd.f32 %v6962, %v7152
  %v7235 = vadd.f32 %v6963, %v7154
  %v7236 = vadd.f32 %v6964, %v7156
  %v7237 = vadd.f32 %v6965, %v7158
  %v7238 = vadd.f32 %v6966, %v7160
  %v7239 = vadd.f32 %v6967, %v7162
  %v7240 = vadd.f32 %v6968, %v7164
  %v7241 = vadd.f32 %v6969, %v7166
  %v7242 = vadd.f32 %v6970, %v7168
  %v7243 = vadd.f32 %v6971, %v7170
  %v7244 = vadd.f32 %v6972, %v7172
  %v7245 = vadd.f32 %v6973, %v7174
  %v7246 = vadd.f32 %v6974, %v7176
  %v7247 = vadd.f32 %v6975, %v7178
  %v7248 = vadd.f32 %v6976, %v7180
  %v7249 = vadd.f32 %v6977, %v7182
  %v7250 = vadd.f32 %v6978, %v7184
  %v7251 = vadd.f32 %v6979, %v7186
  %v7252 = vadd.f32 %v6980, %v7188
  %7254 = vset.pattern.permute.xlu0 0
  %7255 = vperm.xlu0 %7254, %v6533
  %v7256 = vpop.permute.xlu0 %7255
  %7259 = vset.pattern.permute.xlu0 0
  %7260 = vperm.xlu0 %7259, %v6534
  %v7261 = vpop.permute.xlu0 %7260
  %7264 = vset.pattern.permute.xlu0 0
  %7265 = vperm.xlu0 %7264, %v6535
  %v7266 = vpop.permute.xlu0 %7265
  %7269 = vset.pattern.permute.xlu0 0
  %7270 = vperm.xlu0 %7269, %v6536
  %v7271 = vpop.permute.xlu0 %7270
  %7274 = vset.pattern.permute.xlu0 0
  %7275 = vperm.xlu0 %7274, %v6537
  %v7276 = vpop.permute.xlu0 %7275
  %7279 = vset.pattern.permute.xlu0 0
  %7280 = vperm.xlu0 %7279, %v6538
  %v7281 = vpop.permute.xlu0 %7280
  %7284 = vset.pattern.permute.xlu0 0
  %7285 = vperm.xlu0 %7284, %v6539
  %v7286 = vpop.permute.xlu0 %7285
  %7289 = vset.pattern.permute.xlu0 0
  %7290 = vperm.xlu0 %7289, %v6540
  %v7291 = vpop.permute.xlu0 %7290
  %7294 = vset.pattern.permute.xlu0 0
  %7295 = vperm.xlu0 %7294, %v6541
  %v7296 = vpop.permute.xlu0 %7295
  %7299 = vset.pattern.permute.xlu0 0
  %7300 = vperm.xlu0 %7299, %v6542
  %v7301 = vpop.permute.xlu0 %7300
  %7304 = vset.pattern.permute.xlu0 0
  %7305 = vperm.xlu0 %7304, %v6543
  %v7306 = vpop.permute.xlu0 %7305
  %7309 = vset.pattern.permute.xlu0 0
  %7310 = vperm.xlu0 %7309, %v6544
  %v7311 = vpop.permute.xlu0 %7310
  %7314 = vset.pattern.permute.xlu0 0
  %7315 = vperm.xlu0 %7314, %v6545
  %v7316 = vpop.permute.xlu0 %7315
  %7319 = vset.pattern.permute.xlu0 0
  %7320 = vperm.xlu0 %7319, %v6546
  %v7321 = vpop.permute.xlu0 %7320
  %7324 = vset.pattern.permute.xlu0 0
  %7325 = vperm.xlu0 %7324, %v6547
  %v7326 = vpop.permute.xlu0 %7325
  %7329 = vset.pattern.permute.xlu0 0
  %7330 = vperm.xlu0 %7329, %v6548
  %v7331 = vpop.permute.xlu0 %7330
  %v7333 = vmul.f32 %v7256, %v6453
  %v7334 = vmul.f32 %v7261, %v6454
  %v7335 = vmul.f32 %v7266, %v6455
  %v7336 = vmul.f32 %v7271, %v6456
  %v7337 = vmul.f32 %v7276, %v6457
  %v7338 = vmul.f32 %v7281, %v6458
  %v7339 = vmul.f32 %v7286, %v6459
  %v7340 = vmul.f32 %v7291, %v6460
  %v7341 = vmul.f32 %v7296, %v6461
  %v7342 = vmul.f32 %v7301, %v6462
  %v7343 = vmul.f32 %v7306, %v6463
  %v7344 = vmul.f32 %v7311, %v6464
  %v7345 = vmul.f32 %v7316, %v6465
  %v7346 = vmul.f32 %v7321, %v6466
  %v7347 = vmul.f32 %v7326, %v6467
  %v7348 = vmul.f32 %v7331, %v6468
  %v7349 = vmul.f32 %v7256, %v6469
  %v7350 = vmul.f32 %v7261, %v6470
  %v7351 = vmul.f32 %v7266, %v6471
  %v7352 = vmul.f32 %v7271, %v6472
  %v7353 = vmul.f32 %v7276, %v6473
  %v7354 = vmul.f32 %v7281, %v6474
  %v7355 = vmul.f32 %v7286, %v6475
  %v7356 = vmul.f32 %v7291, %v6476
  %v7357 = vmul.f32 %v7296, %v6477
  %v7358 = vmul.f32 %v7301, %v6478
  %v7359 = vmul.f32 %v7306, %v6479
  %v7360 = vmul.f32 %v7311, %v6480
  %v7361 = vmul.f32 %v7316, %v6481
  %v7362 = vmul.f32 %v7321, %v6482
  %v7363 = vmul.f32 %v7326, %v6483
  %v7364 = vmul.f32 %v7331, %v6484
  %7397 = vrot.lane.b32.xlu0 %v7333, 125
  %v7398 = vpop.permute.xlu0 %7397
  %7399 = vrot.lane.b32.xlu0 %v7334, 125
  %v7400 = vpop.permute.xlu0 %7399
  %7401 = vrot.lane.b32.xlu0 %v7335, 125
  %v7402 = vpop.permute.xlu0 %7401
  %7403 = vrot.lane.b32.xlu0 %v7336, 125
  %v7404 = vpop.permute.xlu0 %7403
  %7405 = vrot.lane.b32.xlu0 %v7337, 125
  %v7406 = vpop.permute.xlu0 %7405
  %7407 = vrot.lane.b32.xlu0 %v7338, 125
  %v7408 = vpop.permute.xlu0 %7407
  %7409 = vrot.lane.b32.xlu0 %v7339, 125
  %v7410 = vpop.permute.xlu0 %7409
  %7411 = vrot.lane.b32.xlu0 %v7340, 125
  %v7412 = vpop.permute.xlu0 %7411
  %7413 = vrot.lane.b32.xlu0 %v7341, 125
  %v7414 = vpop.permute.xlu0 %7413
  %7415 = vrot.lane.b32.xlu0 %v7342, 125
  %v7416 = vpop.permute.xlu0 %7415
  %7417 = vrot.lane.b32.xlu0 %v7343, 125
  %v7418 = vpop.permute.xlu0 %7417
  %7419 = vrot.lane.b32.xlu0 %v7344, 125
  %v7420 = vpop.permute.xlu0 %7419
  %7421 = vrot.lane.b32.xlu0 %v7345, 125
  %v7422 = vpop.permute.xlu0 %7421
  %7423 = vrot.lane.b32.xlu0 %v7346, 125
  %v7424 = vpop.permute.xlu0 %7423
  %7425 = vrot.lane.b32.xlu0 %v7347, 125
  %v7426 = vpop.permute.xlu0 %7425
  %7427 = vrot.lane.b32.xlu0 %v7348, 125
  %v7428 = vpop.permute.xlu0 %7427
  %7429 = vrot.lane.b32.xlu0 %v7349, 125
  %v7430 = vpop.permute.xlu0 %7429
  %7431 = vrot.lane.b32.xlu0 %v7350, 125
  %v7432 = vpop.permute.xlu0 %7431
  %7433 = vrot.lane.b32.xlu0 %v7351, 125
  %v7434 = vpop.permute.xlu0 %7433
  %7435 = vrot.lane.b32.xlu0 %v7352, 125
  %v7436 = vpop.permute.xlu0 %7435
  %7437 = vrot.lane.b32.xlu0 %v7353, 125
  %v7438 = vpop.permute.xlu0 %7437
  %7439 = vrot.lane.b32.xlu0 %v7354, 125
  %v7440 = vpop.permute.xlu0 %7439
  %7441 = vrot.lane.b32.xlu0 %v7355, 125
  %v7442 = vpop.permute.xlu0 %7441
  %7443 = vrot.lane.b32.xlu0 %v7356, 125
  %v7444 = vpop.permute.xlu0 %7443
  %7445 = vrot.lane.b32.xlu0 %v7357, 125
  %v7446 = vpop.permute.xlu0 %7445
  %7447 = vrot.lane.b32.xlu0 %v7358, 125
  %v7448 = vpop.permute.xlu0 %7447
  %7449 = vrot.lane.b32.xlu0 %v7359, 125
  %v7450 = vpop.permute.xlu0 %7449
  %7451 = vrot.lane.b32.xlu0 %v7360, 125
  %v7452 = vpop.permute.xlu0 %7451
  %7453 = vrot.lane.b32.xlu0 %v7361, 125
  %v7454 = vpop.permute.xlu0 %7453
  %7455 = vrot.lane.b32.xlu0 %v7362, 125
  %v7456 = vpop.permute.xlu0 %7455
  %7457 = vrot.lane.b32.xlu0 %v7363, 125
  %v7458 = vpop.permute.xlu0 %7457
  %7459 = vrot.lane.b32.xlu0 %v7364, 125
  %v7460 = vpop.permute.xlu0 %7459
  %v7493 = vadd.f32 %v7221, %v7398
  %v7494 = vadd.f32 %v7222, %v7400
  %v7495 = vadd.f32 %v7223, %v7402
  %v7496 = vadd.f32 %v7224, %v7404
  %v7497 = vadd.f32 %v7225, %v7406
  %v7498 = vadd.f32 %v7226, %v7408
  %v7499 = vadd.f32 %v7227, %v7410
  %v7500 = vadd.f32 %v7228, %v7412
  %v7501 = vadd.f32 %v7229, %v7414
  %v7502 = vadd.f32 %v7230, %v7416
  %v7503 = vadd.f32 %v7231, %v7418
  %v7504 = vadd.f32 %v7232, %v7420
  %v7505 = vadd.f32 %v7233, %v7422
  %v7506 = vadd.f32 %v7234, %v7424
  %v7507 = vadd.f32 %v7235, %v7426
  %v7508 = vadd.f32 %v7236, %v7428
  %v7509 = vadd.f32 %v7237, %v7430
  %v7510 = vadd.f32 %v7238, %v7432
  %v7511 = vadd.f32 %v7239, %v7434
  %v7512 = vadd.f32 %v7240, %v7436
  %v7513 = vadd.f32 %v7241, %v7438
  %v7514 = vadd.f32 %v7242, %v7440
  %v7515 = vadd.f32 %v7243, %v7442
  %v7516 = vadd.f32 %v7244, %v7444
  %v7517 = vadd.f32 %v7245, %v7446
  %v7518 = vadd.f32 %v7246, %v7448
  %v7519 = vadd.f32 %v7247, %v7450
  %v7520 = vadd.f32 %v7248, %v7452
  %v7521 = vadd.f32 %v7249, %v7454
  %v7522 = vadd.f32 %v7250, %v7456
  %v7523 = vadd.f32 %v7251, %v7458
  %v7524 = vadd.f32 %v7252, %v7460
  %7526 = vset.pattern.permute.xlu0 0
  %7527 = vperm.xlu0 %7526, %v6549
  %v7528 = vpop.permute.xlu0 %7527
  %7531 = vset.pattern.permute.xlu0 0
  %7532 = vperm.xlu0 %7531, %v6550
  %v7533 = vpop.permute.xlu0 %7532
  %7536 = vset.pattern.permute.xlu0 0
  %7537 = vperm.xlu0 %7536, %v6551
  %v7538 = vpop.permute.xlu0 %7537
  %7541 = vset.pattern.permute.xlu0 0
  %7542 = vperm.xlu0 %7541, %v6552
  %v7543 = vpop.permute.xlu0 %7542
  %7546 = vset.pattern.permute.xlu0 0
  %7547 = vperm.xlu0 %7546, %v6553
  %v7548 = vpop.permute.xlu0 %7547
  %7551 = vset.pattern.permute.xlu0 0
  %7552 = vperm.xlu0 %7551, %v6554
  %v7553 = vpop.permute.xlu0 %7552
  %7556 = vset.pattern.permute.xlu0 0
  %7557 = vperm.xlu0 %7556, %v6555
  %v7558 = vpop.permute.xlu0 %7557
  %7561 = vset.pattern.permute.xlu0 0
  %7562 = vperm.xlu0 %7561, %v6556
  %v7563 = vpop.permute.xlu0 %7562
  %7566 = vset.pattern.permute.xlu0 0
  %7567 = vperm.xlu0 %7566, %v6557
  %v7568 = vpop.permute.xlu0 %7567
  %7571 = vset.pattern.permute.xlu0 0
  %7572 = vperm.xlu0 %7571, %v6558
  %v7573 = vpop.permute.xlu0 %7572
  %7576 = vset.pattern.permute.xlu0 0
  %7577 = vperm.xlu0 %7576, %v6559
  %v7578 = vpop.permute.xlu0 %7577
  %7581 = vset.pattern.permute.xlu0 0
  %7582 = vperm.xlu0 %7581, %v6560
  %v7583 = vpop.permute.xlu0 %7582
  %7586 = vset.pattern.permute.xlu0 0
  %7587 = vperm.xlu0 %7586, %v6561
  %v7588 = vpop.permute.xlu0 %7587
  %7591 = vset.pattern.permute.xlu0 0
  %7592 = vperm.xlu0 %7591, %v6562
  %v7593 = vpop.permute.xlu0 %7592
  %7596 = vset.pattern.permute.xlu0 0
  %7597 = vperm.xlu0 %7596, %v6563
  %v7598 = vpop.permute.xlu0 %7597
  %7601 = vset.pattern.permute.xlu0 0
  %7602 = vperm.xlu0 %7601, %v6564
  %v7603 = vpop.permute.xlu0 %7602
  %v7605 = vmul.f32 %v7528, %v6453
  %v7606 = vmul.f32 %v7533, %v6454
  %v7607 = vmul.f32 %v7538, %v6455
  %v7608 = vmul.f32 %v7543, %v6456
  %v7609 = vmul.f32 %v7548, %v6457
  %v7610 = vmul.f32 %v7553, %v6458
  %v7611 = vmul.f32 %v7558, %v6459
  %v7612 = vmul.f32 %v7563, %v6460
  %v7613 = vmul.f32 %v7568, %v6461
  %v7614 = vmul.f32 %v7573, %v6462
  %v7615 = vmul.f32 %v7578, %v6463
  %v7616 = vmul.f32 %v7583, %v6464
  %v7617 = vmul.f32 %v7588, %v6465
  %v7618 = vmul.f32 %v7593, %v6466
  %v7619 = vmul.f32 %v7598, %v6467
  %v7620 = vmul.f32 %v7603, %v6468
  %v7621 = vmul.f32 %v7528, %v6469
  %v7622 = vmul.f32 %v7533, %v6470
  %v7623 = vmul.f32 %v7538, %v6471
  %v7624 = vmul.f32 %v7543, %v6472
  %v7625 = vmul.f32 %v7548, %v6473
  %v7626 = vmul.f32 %v7553, %v6474
  %v7627 = vmul.f32 %v7558, %v6475
  %v7628 = vmul.f32 %v7563, %v6476
  %v7629 = vmul.f32 %v7568, %v6477
  %v7630 = vmul.f32 %v7573, %v6478
  %v7631 = vmul.f32 %v7578, %v6479
  %v7632 = vmul.f32 %v7583, %v6480
  %v7633 = vmul.f32 %v7588, %v6481
  %v7634 = vmul.f32 %v7593, %v6482
  %v7635 = vmul.f32 %v7598, %v6483
  %v7636 = vmul.f32 %v7603, %v6484
  %7669 = vrot.lane.b32.xlu0 %v7605, 124
  %v7670 = vpop.permute.xlu0 %7669
  %7671 = vrot.lane.b32.xlu0 %v7606, 124
  %v7672 = vpop.permute.xlu0 %7671
  %7673 = vrot.lane.b32.xlu0 %v7607, 124
  %v7674 = vpop.permute.xlu0 %7673
  %7675 = vrot.lane.b32.xlu0 %v7608, 124
  %v7676 = vpop.permute.xlu0 %7675
  %7677 = vrot.lane.b32.xlu0 %v7609, 124
  %v7678 = vpop.permute.xlu0 %7677
  %7679 = vrot.lane.b32.xlu0 %v7610, 124
  %v7680 = vpop.permute.xlu0 %7679
  %7681 = vrot.lane.b32.xlu0 %v7611, 124
  %v7682 = vpop.permute.xlu0 %7681
  %7683 = vrot.lane.b32.xlu0 %v7612, 124
  %v7684 = vpop.permute.xlu0 %7683
  %7685 = vrot.lane.b32.xlu0 %v7613, 124
  %v7686 = vpop.permute.xlu0 %7685
  %7687 = vrot.lane.b32.xlu0 %v7614, 124
  %v7688 = vpop.permute.xlu0 %7687
  %7689 = vrot.lane.b32.xlu0 %v7615, 124
  %v7690 = vpop.permute.xlu0 %7689
  %7691 = vrot.lane.b32.xlu0 %v7616, 124
  %v7692 = vpop.permute.xlu0 %7691
  %7693 = vrot.lane.b32.xlu0 %v7617, 124
  %v7694 = vpop.permute.xlu0 %7693
  %7695 = vrot.lane.b32.xlu0 %v7618, 124
  %v7696 = vpop.permute.xlu0 %7695
  %7697 = vrot.lane.b32.xlu0 %v7619, 124
  %v7698 = vpop.permute.xlu0 %7697
  %7699 = vrot.lane.b32.xlu0 %v7620, 124
  %v7700 = vpop.permute.xlu0 %7699
  %7701 = vrot.lane.b32.xlu0 %v7621, 124
  %v7702 = vpop.permute.xlu0 %7701
  %7703 = vrot.lane.b32.xlu0 %v7622, 124
  %v7704 = vpop.permute.xlu0 %7703
  %7705 = vrot.lane.b32.xlu0 %v7623, 124
  %v7706 = vpop.permute.xlu0 %7705
  %7707 = vrot.lane.b32.xlu0 %v7624, 124
  %v7708 = vpop.permute.xlu0 %7707
  %7709 = vrot.lane.b32.xlu0 %v7625, 124
  %v7710 = vpop.permute.xlu0 %7709
  %7711 = vrot.lane.b32.xlu0 %v7626, 124
  %v7712 = vpop.permute.xlu0 %7711
  %7713 = vrot.lane.b32.xlu0 %v7627, 124
  %v7714 = vpop.permute.xlu0 %7713
  %7715 = vrot.lane.b32.xlu0 %v7628, 124
  %v7716 = vpop.permute.xlu0 %7715
  %7717 = vrot.lane.b32.xlu0 %v7629, 124
  %v7718 = vpop.permute.xlu0 %7717
  %7719 = vrot.lane.b32.xlu0 %v7630, 124
  %v7720 = vpop.permute.xlu0 %7719
  %7721 = vrot.lane.b32.xlu0 %v7631, 124
  %v7722 = vpop.permute.xlu0 %7721
  %7723 = vrot.lane.b32.xlu0 %v7632, 124
  %v7724 = vpop.permute.xlu0 %7723
  %7725 = vrot.lane.b32.xlu0 %v7633, 124
  %v7726 = vpop.permute.xlu0 %7725
  %7727 = vrot.lane.b32.xlu0 %v7634, 124
  %v7728 = vpop.permute.xlu0 %7727
  %7729 = vrot.lane.b32.xlu0 %v7635, 124
  %v7730 = vpop.permute.xlu0 %7729
  %7731 = vrot.lane.b32.xlu0 %v7636, 124
  %v7732 = vpop.permute.xlu0 %7731
  %v7765 = vadd.f32 %v7493, %v7670
  %v7766 = vadd.f32 %v7494, %v7672
  %v7767 = vadd.f32 %v7495, %v7674
  %v7768 = vadd.f32 %v7496, %v7676
  %v7769 = vadd.f32 %v7497, %v7678
  %v7770 = vadd.f32 %v7498, %v7680
  %v7771 = vadd.f32 %v7499, %v7682
  %v7772 = vadd.f32 %v7500, %v7684
  %v7773 = vadd.f32 %v7501, %v7686
  %v7774 = vadd.f32 %v7502, %v7688
  %v7775 = vadd.f32 %v7503, %v7690
  %v7776 = vadd.f32 %v7504, %v7692
  %v7777 = vadd.f32 %v7505, %v7694
  %v7778 = vadd.f32 %v7506, %v7696
  %v7779 = vadd.f32 %v7507, %v7698
  %v7780 = vadd.f32 %v7508, %v7700
  %v7781 = vadd.f32 %v7509, %v7702
  %v7782 = vadd.f32 %v7510, %v7704
  %v7783 = vadd.f32 %v7511, %v7706
  %v7784 = vadd.f32 %v7512, %v7708
  %v7785 = vadd.f32 %v7513, %v7710
  %v7786 = vadd.f32 %v7514, %v7712
  %v7787 = vadd.f32 %v7515, %v7714
  %v7788 = vadd.f32 %v7516, %v7716
  %v7789 = vadd.f32 %v7517, %v7718
  %v7790 = vadd.f32 %v7518, %v7720
  %v7791 = vadd.f32 %v7519, %v7722
  %v7792 = vadd.f32 %v7520, %v7724
  %v7793 = vadd.f32 %v7521, %v7726
  %v7794 = vadd.f32 %v7522, %v7728
  %v7795 = vadd.f32 %v7523, %v7730
  %v7796 = vadd.f32 %v7524, %v7732
  %v7797 = vld [vmem:[%s53] sm:$0xff]
  %v7798 = vld [vmem:[%s53 + $0x8] sm:$0xff]
  %v7799 = vld [vmem:[%s53 + $0x10] sm:$0xff]
  %v7800 = vld [vmem:[%s53 + $0x18] sm:$0xff]
  %v7801 = vld [vmem:[%s53 + $0x20] sm:$0xff]
  %v7802 = vld [vmem:[%s53 + $0x28] sm:$0xff]
  %v7803 = vld [vmem:[%s53 + $0x30] sm:$0xff]
  %v7804 = vld [vmem:[%s53 + $0x38] sm:$0xff]
  %v7805 = vld [vmem:[%s53 + $0x40] sm:$0xff]
  %v7806 = vld [vmem:[%s53 + $0x48] sm:$0xff]
  %v7807 = vld [vmem:[%s53 + $0x50] sm:$0xff]
  %v7808 = vld [vmem:[%s53 + $0x58] sm:$0xff]
  %v7809 = vld [vmem:[%s53 + $0x60] sm:$0xff]
  %v7810 = vld [vmem:[%s53 + $0x68] sm:$0xff]
  %v7811 = vld [vmem:[%s53 + $0x70] sm:$0xff]
  %v7812 = vld [vmem:[%s53 + $0x78] sm:$0xff]
  %7814 = vset.pattern.permute.xlu0 0
  %7815 = vperm.xlu0 %7814, %v7797
  %v7816 = vpop.permute.xlu0 %7815
  %7819 = vset.pattern.permute.xlu0 0
  %7820 = vperm.xlu0 %7819, %v7798
  %v7821 = vpop.permute.xlu0 %7820
  %7824 = vset.pattern.permute.xlu0 0
  %7825 = vperm.xlu0 %7824, %v7799
  %v7826 = vpop.permute.xlu0 %7825
  %7829 = vset.pattern.permute.xlu0 0
  %7830 = vperm.xlu0 %7829, %v7800
  %v7831 = vpop.permute.xlu0 %7830
  %7834 = vset.pattern.permute.xlu0 0
  %7835 = vperm.xlu0 %7834, %v7801
  %v7836 = vpop.permute.xlu0 %7835
  %7839 = vset.pattern.permute.xlu0 0
  %7840 = vperm.xlu0 %7839, %v7802
  %v7841 = vpop.permute.xlu0 %7840
  %7844 = vset.pattern.permute.xlu0 0
  %7845 = vperm.xlu0 %7844, %v7803
  %v7846 = vpop.permute.xlu0 %7845
  %7849 = vset.pattern.permute.xlu0 0
  %7850 = vperm.xlu0 %7849, %v7804
  %v7851 = vpop.permute.xlu0 %7850
  %7854 = vset.pattern.permute.xlu0 0
  %7855 = vperm.xlu0 %7854, %v7805
  %v7856 = vpop.permute.xlu0 %7855
  %7859 = vset.pattern.permute.xlu0 0
  %7860 = vperm.xlu0 %7859, %v7806
  %v7861 = vpop.permute.xlu0 %7860
  %7864 = vset.pattern.permute.xlu0 0
  %7865 = vperm.xlu0 %7864, %v7807
  %v7866 = vpop.permute.xlu0 %7865
  %7869 = vset.pattern.permute.xlu0 0
  %7870 = vperm.xlu0 %7869, %v7808
  %v7871 = vpop.permute.xlu0 %7870
  %7874 = vset.pattern.permute.xlu0 0
  %7875 = vperm.xlu0 %7874, %v7809
  %v7876 = vpop.permute.xlu0 %7875
  %7879 = vset.pattern.permute.xlu0 0
  %7880 = vperm.xlu0 %7879, %v7810
  %v7881 = vpop.permute.xlu0 %7880
  %7884 = vset.pattern.permute.xlu0 0
  %7885 = vperm.xlu0 %7884, %v7811
  %v7886 = vpop.permute.xlu0 %7885
  %7889 = vset.pattern.permute.xlu0 0
  %7890 = vperm.xlu0 %7889, %v7812
  %v7891 = vpop.permute.xlu0 %7890
  %v7893 = vadd.f32 %v7765, %v7816
  %v7894 = vadd.f32 %v7766, %v7821
  %v7895 = vadd.f32 %v7767, %v7826
  %v7896 = vadd.f32 %v7768, %v7831
  %v7897 = vadd.f32 %v7769, %v7836
  %v7898 = vadd.f32 %v7770, %v7841
  %v7899 = vadd.f32 %v7771, %v7846
  %v7900 = vadd.f32 %v7772, %v7851
  %v7901 = vadd.f32 %v7773, %v7856
  %v7902 = vadd.f32 %v7774, %v7861
  %v7903 = vadd.f32 %v7775, %v7866
  %v7904 = vadd.f32 %v7776, %v7871
  %v7905 = vadd.f32 %v7777, %v7876
  %v7906 = vadd.f32 %v7778, %v7881
  %v7907 = vadd.f32 %v7779, %v7886
  %v7908 = vadd.f32 %v7780, %v7891
  %v7909 = vadd.f32 %v7781, %v7816
  %v7910 = vadd.f32 %v7782, %v7821
  %v7911 = vadd.f32 %v7783, %v7826
  %v7912 = vadd.f32 %v7784, %v7831
  %v7913 = vadd.f32 %v7785, %v7836
  %v7914 = vadd.f32 %v7786, %v7841
  %v7915 = vadd.f32 %v7787, %v7846
  %v7916 = vadd.f32 %v7788, %v7851
  %v7917 = vadd.f32 %v7789, %v7856
  %v7918 = vadd.f32 %v7790, %v7861
  %v7919 = vadd.f32 %v7791, %v7866
  %v7920 = vadd.f32 %v7792, %v7871
  %v7921 = vadd.f32 %v7793, %v7876
  %v7922 = vadd.f32 %v7794, %v7881
  %v7923 = vadd.f32 %v7795, %v7886
  %v7924 = vadd.f32 %v7796, %v7891
  %7941 = vrot.lane.b32.xlu0 %v7909, 57
  %v7942 = vpop.permute.xlu0 %7941
  %7943 = vrot.lane.b32.xlu0 %v7910, 57
  %v7944 = vpop.permute.xlu0 %7943
  %7945 = vrot.lane.b32.xlu0 %v7911, 57
  %v7946 = vpop.permute.xlu0 %7945
  %7947 = vrot.lane.b32.xlu0 %v7912, 57
  %v7948 = vpop.permute.xlu0 %7947
  %7949 = vrot.lane.b32.xlu0 %v7913, 57
  %v7950 = vpop.permute.xlu0 %7949
  %7951 = vrot.lane.b32.xlu0 %v7914, 57
  %v7952 = vpop.permute.xlu0 %7951
  %7953 = vrot.lane.b32.xlu0 %v7915, 57
  %v7954 = vpop.permute.xlu0 %7953
  %7955 = vrot.lane.b32.xlu0 %v7916, 57
  %v7956 = vpop.permute.xlu0 %7955
  %7957 = vrot.lane.b32.xlu0 %v7917, 57
  %v7958 = vpop.permute.xlu0 %7957
  %7959 = vrot.lane.b32.xlu0 %v7918, 57
  %v7960 = vpop.permute.xlu0 %7959
  %7961 = vrot.lane.b32.xlu0 %v7919, 57
  %v7962 = vpop.permute.xlu0 %7961
  %7963 = vrot.lane.b32.xlu0 %v7920, 57
  %v7964 = vpop.permute.xlu0 %7963
  %7965 = vrot.lane.b32.xlu0 %v7921, 57
  %v7966 = vpop.permute.xlu0 %7965
  %7967 = vrot.lane.b32.xlu0 %v7922, 57
  %v7968 = vpop.permute.xlu0 %7967
  %7969 = vrot.lane.b32.xlu0 %v7923, 57
  %v7970 = vpop.permute.xlu0 %7969
  %7971 = vrot.lane.b32.xlu0 %v7924, 57
  %v7972 = vpop.permute.xlu0 %7971
  %v7989 = vsel %vm459, %v7893, %v7942
  %v7990 = vsel %vm459, %v7894, %v7944
  %v7991 = vsel %vm459, %v7895, %v7946
  %v7992 = vsel %vm459, %v7896, %v7948
  %v7993 = vsel %vm459, %v7897, %v7950
  %v7994 = vsel %vm459, %v7898, %v7952
  %v7995 = vsel %vm459, %v7899, %v7954
  %v7996 = vsel %vm459, %v7900, %v7956
  %v7997 = vsel %vm459, %v7901, %v7958
  %v7998 = vsel %vm459, %v7902, %v7960
  %v7999 = vsel %vm459, %v7903, %v7962
  %v8000 = vsel %vm459, %v7904, %v7964
  %v8001 = vsel %vm459, %v7905, %v7966
  %v8002 = vsel %vm459, %v7906, %v7968
  %v8003 = vsel %vm459, %v7907, %v7970
  %v8004 = vsel %vm459, %v7908, %v7972
  %v8005 = vld [vmem:[%s55] sm:$0xf]
  %v8006 = vld [vmem:[%s55 + $0x4] sm:$0xf]
  %v8007 = vld [vmem:[%s55 + $0x8] sm:$0xf]
  %v8008 = vld [vmem:[%s55 + $0xc] sm:$0xf]
  %v8009 = vld [vmem:[%s55 + $0x10] sm:$0xf]
  %v8010 = vld [vmem:[%s55 + $0x14] sm:$0xf]
  %v8011 = vld [vmem:[%s55 + $0x18] sm:$0xf]
  %v8012 = vld [vmem:[%s55 + $0x1c] sm:$0xf]
  %v8013 = vld [vmem:[%s55 + $0x20] sm:$0xf]
  %v8014 = vld [vmem:[%s55 + $0x24] sm:$0xf]
  %v8015 = vld [vmem:[%s55 + $0x28] sm:$0xf]
  %v8016 = vld [vmem:[%s55 + $0x2c] sm:$0xf]
  %v8017 = vld [vmem:[%s55 + $0x30] sm:$0xf]
  %v8018 = vld [vmem:[%s55 + $0x34] sm:$0xf]
  %v8019 = vld [vmem:[%s55 + $0x38] sm:$0xf]
  %v8020 = vld [vmem:[%s55 + $0x3c] sm:$0xf]
  %v8021 = vpack.c.bf16 %v7990, %v7989
  %v8022 = vpack.c.bf16 %v7992, %v7991
  %v8023 = vpack.c.bf16 %v7994, %v7993
  %v8024 = vpack.c.bf16 %v7996, %v7995
  %v8025 = vpack.c.bf16 %v7998, %v7997
  %v8026 = vpack.c.bf16 %v8000, %v7999
  %v8027 = vpack.c.bf16 %v8002, %v8001
  %v8028 = vpack.c.bf16 %v8004, %v8003
  %v8029 = vld [vmem:[%s57] sm:$0xff]
  %v8030 = vld [vmem:[%s57 + $0x8] sm:$0xff]
  %v8031 = vld [vmem:[%s57 + $0x10] sm:$0xff]
  %v8032 = vld [vmem:[%s57 + $0x18] sm:$0xff]
  %v8033 = vld [vmem:[%s57 + $0x20] sm:$0xff]
  %v8034 = vld [vmem:[%s57 + $0x28] sm:$0xff]
  %v8035 = vld [vmem:[%s57 + $0x30] sm:$0xff]
  %v8036 = vld [vmem:[%s57 + $0x38] sm:$0xff]
  %v8037 = vld [vmem:[%s57 + $0x40] sm:$0xff]
  %v8038 = vld [vmem:[%s57 + $0x48] sm:$0xff]
  %v8039 = vld [vmem:[%s57 + $0x50] sm:$0xff]
  %v8040 = vld [vmem:[%s57 + $0x58] sm:$0xff]
  %v8041 = vld [vmem:[%s57 + $0x60] sm:$0xff]
  %v8042 = vld [vmem:[%s57 + $0x68] sm:$0xff]
  %v8043 = vld [vmem:[%s57 + $0x70] sm:$0xff]
  %v8044 = vld [vmem:[%s57 + $0x78] sm:$0xff]
  %8046 = vset.pattern.permute.xlu0 0
  %8047 = vperm.xlu0 %8046, %v8029
  %v8048 = vpop.permute.xlu0 %8047
  %8051 = vset.pattern.permute.xlu0 0
  %8052 = vperm.xlu0 %8051, %v8030
  %v8053 = vpop.permute.xlu0 %8052
  %8056 = vset.pattern.permute.xlu0 0
  %8057 = vperm.xlu0 %8056, %v8031
  %v8058 = vpop.permute.xlu0 %8057
  %8061 = vset.pattern.permute.xlu0 0
  %8062 = vperm.xlu0 %8061, %v8032
  %v8063 = vpop.permute.xlu0 %8062
  %8066 = vset.pattern.permute.xlu0 0
  %8067 = vperm.xlu0 %8066, %v8033
  %v8068 = vpop.permute.xlu0 %8067
  %8071 = vset.pattern.permute.xlu0 0
  %8072 = vperm.xlu0 %8071, %v8034
  %v8073 = vpop.permute.xlu0 %8072
  %8076 = vset.pattern.permute.xlu0 0
  %8077 = vperm.xlu0 %8076, %v8035
  %v8078 = vpop.permute.xlu0 %8077
  %8081 = vset.pattern.permute.xlu0 0
  %8082 = vperm.xlu0 %8081, %v8036
  %v8083 = vpop.permute.xlu0 %8082
  %8086 = vset.pattern.permute.xlu0 0
  %8087 = vperm.xlu0 %8086, %v8037
  %v8088 = vpop.permute.xlu0 %8087
  %8091 = vset.pattern.permute.xlu0 0
  %8092 = vperm.xlu0 %8091, %v8038
  %v8093 = vpop.permute.xlu0 %8092
  %8096 = vset.pattern.permute.xlu0 0
  %8097 = vperm.xlu0 %8096, %v8039
  %v8098 = vpop.permute.xlu0 %8097
  %8101 = vset.pattern.permute.xlu0 0
  %8102 = vperm.xlu0 %8101, %v8040
  %v8103 = vpop.permute.xlu0 %8102
  %8106 = vset.pattern.permute.xlu0 0
  %8107 = vperm.xlu0 %8106, %v8041
  %v8108 = vpop.permute.xlu0 %8107
  %8111 = vset.pattern.permute.xlu0 0
  %8112 = vperm.xlu0 %8111, %v8042
  %v8113 = vpop.permute.xlu0 %8112
  %8116 = vset.pattern.permute.xlu0 0
  %8117 = vperm.xlu0 %8116, %v8043
  %v8118 = vpop.permute.xlu0 %8117
  %8121 = vset.pattern.permute.xlu0 0
  %8122 = vperm.xlu0 %8121, %v8044
  %v8123 = vpop.permute.xlu0 %8122
  %v8141 = vunpack.c.l.b16 %v8005
  %v8142 = vunpack.c.l.b16 %v8006
  %v8143 = vunpack.c.l.b16 %v8007
  %v8144 = vunpack.c.l.b16 %v8008
  %v8145 = vunpack.c.l.b16 %v8009
  %v8146 = vunpack.c.l.b16 %v8010
  %v8147 = vunpack.c.l.b16 %v8011
  %v8148 = vunpack.c.l.b16 %v8012
  %v8149 = vunpack.c.l.b16 %v8013
  %v8150 = vunpack.c.l.b16 %v8014
  %v8151 = vunpack.c.l.b16 %v8015
  %v8152 = vunpack.c.l.b16 %v8016
  %v8153 = vunpack.c.l.b16 %v8017
  %v8154 = vunpack.c.l.b16 %v8018
  %v8155 = vunpack.c.l.b16 %v8019
  %v8156 = vunpack.c.l.b16 %v8020
  %v8157 = vpack.c.b16 %v8142, %v8141
  %v8158 = vpack.c.b16 %v8144, %v8143
  %v8159 = vpack.c.b16 %v8146, %v8145
  %v8160 = vpack.c.b16 %v8148, %v8147
  %v8161 = vpack.c.b16 %v8150, %v8149
  %v8162 = vpack.c.b16 %v8152, %v8151
  %v8163 = vpack.c.b16 %v8154, %v8153
  %v8164 = vpack.c.b16 %v8156, %v8155
  %8173 = vmatprep.subr.bf16.mxu0 0
  %8174 = vmatpush1.bf16.msra.mxu0 %v8021
  %8175 = vmatprep.subr.bf16.mxu0 0
  %8176 = vmatpush1.bf16.msra.mxu0 %v8022
  %8177 = vmatprep.subr.bf16.mxu0 0
  %8178 = vmatpush1.bf16.msra.mxu0 %v8023
  %8179 = vmatprep.subr.bf16.mxu0 0
  %8180 = vmatpush1.bf16.msra.mxu0 %v8024
  %8181 = vmatprep.subr.bf16.mxu0 0
  %8182 = vmatpush1.bf16.msra.mxu0 %v8025
  %8183 = vmatprep.subr.bf16.mxu0 0
  %8184 = vmatpush1.bf16.msra.mxu0 %v8026
  %8185 = vmatprep.subr.bf16.mxu0 0
  %8186 = vmatpush1.bf16.msra.mxu0 %v8027
  %8187 = vmatprep.subr.bf16.mxu0 0
  %8188 = vmatpush1.bf16.msra.mxu0 %v8028
  %8189 = vmatprep.subr.bf16.mxu0 0
  %8190 = vmatpush1.bf16.msra.mxu0 0
  %8191 = vmatprep.subr.bf16.mxu0 0
  %8192 = vmatpush1.bf16.msra.mxu0 0
  %8193 = vmatprep.subr.bf16.mxu0 0
  %8194 = vmatpush1.bf16.msra.mxu0 0
  %8195 = vmatprep.subr.bf16.mxu0 0
  %8196 = vmatpush1.bf16.msra.mxu0 0
  %8197 = vmatprep.subr.bf16.mxu0 0
  %8198 = vmatpush1.bf16.msra.mxu0 0
  %8199 = vmatprep.subr.bf16.mxu0 0
  %8200 = vmatpush1.bf16.msra.mxu0 0
  %8201 = vmatprep.subr.bf16.mxu0 0
  %8202 = vmatpush1.bf16.msra.mxu0 0
  %8203 = vmatprep.subr.bf16.mxu0 0
  %8204 = vmatpush1.bf16.msra.mxu0 0
  %8205 = vmatprep.mubr.bf16.mxu0 0
  %8206 = vmatmul.mubr.bf16.gmra.mrb[0].mxu0 %v8157
  %v8207 = vpop.f32.mrb[0].mxu0
  %v8208 = vadd.f32 %v8048, %v8207
  %v8209 = vpop.f32.mrb[0].mxu0
  %v8210 = vpop.f32.mrb[0].mxu0
  %v8211 = vadd.f32 %v8053, %v8210
  %v8212 = vpop.f32.mrb[0].mxu0
  %8213 = vmatprep.mubr.bf16.mxu0 0
  %8214 = vmatmul.mubr.bf16.gmra.mrb[0].mxu0 %v8158
  %v8215 = vpop.f32.mrb[0].mxu0
  %v8216 = vadd.f32 %v8058, %v8215
  %v8217 = vpop.f32.mrb[0].mxu0
  %v8218 = vpop.f32.mrb[0].mxu0
  %v8219 = vadd.f32 %v8063, %v8218
  %v8220 = vpop.f32.mrb[0].mxu0
  %8221 = vmatprep.mubr.bf16.mxu0 0
  %8222 = vmatmul.mubr.bf16.gmra.mrb[0].mxu0 %v8159
  %v8223 = vpop.f32.mrb[0].mxu0
  %v8224 = vadd.f32 %v8068, %v8223
  %v8225 = vpop.f32.mrb[0].mxu0
  %v8226 = vpop.f32.mrb[0].mxu0
  %v8227 = vadd.f32 %v8073, %v8226
  %v8228 = vpop.f32.mrb[0].mxu0
  %8229 = vmatprep.mubr.bf16.mxu0 0
  %8230 = vmatmul.mubr.bf16.gmra.mrb[0].mxu0 %v8160
  %v8231 = vpop.f32.mrb[0].mxu0
  %v8232 = vadd.f32 %v8078, %v8231
  %v8233 = vpop.f32.mrb[0].mxu0
  %v8234 = vpop.f32.mrb[0].mxu0
  %v8235 = vadd.f32 %v8083, %v8234
  %v8236 = vpop.f32.mrb[0].mxu0
  %8237 = vmatprep.mubr.bf16.mxu0 0
  %8238 = vmatmul.mubr.bf16.gmra.mrb[0].mxu0 %v8161
  %v8239 = vpop.f32.mrb[0].mxu0
  %v8240 = vadd.f32 %v8088, %v8239
  %v8241 = vpop.f32.mrb[0].mxu0
  %v8242 = vpop.f32.mrb[0].mxu0
  %v8243 = vadd.f32 %v8093, %v8242
  %v8244 = vpop.f32.mrb[0].mxu0
  %8245 = vmatprep.mubr.bf16.mxu0 0
  %8246 = vmatmul.mubr.bf16.gmra.mrb[0].mxu0 %v8162
  %v8247 = vpop.f32.mrb[0].mxu0
  %v8248 = vadd.f32 %v8098, %v8247
  %v8249 = vpop.f32.mrb[0].mxu0
  %v8250 = vpop.f32.mrb[0].mxu0
  %v8251 = vadd.f32 %v8103, %v8250
  %v8252 = vpop.f32.mrb[0].mxu0
  %8253 = vmatprep.mubr.bf16.mxu0 0
  %8254 = vmatmul.mubr.bf16.gmra.mrb[0].mxu0 %v8163
  %v8255 = vpop.f32.mrb[0].mxu0
  %v8256 = vadd.f32 %v8108, %v8255
  %v8257 = vpop.f32.mrb[0].mxu0
  %v8258 = vpop.f32.mrb[0].mxu0
  %v8259 = vadd.f32 %v8113, %v8258
  %v8260 = vpop.f32.mrb[0].mxu0
  %8261 = vmatprep.mubr.bf16.mxu0 0
  %8262 = vmatmul.mubr.bf16.gmra.mrb[0].mxu0 %v8164
  %v8263 = vpop.f32.mrb[0].mxu0
  %v8264 = vadd.f32 %v8118, %v8263
  %v8265 = vpop.f32.mrb[0].mxu0
  %v8266 = vpop.f32.mrb[0].mxu0
  %v8267 = vadd.f32 %v8123, %v8266
  %v8268 = vpop.f32.mrb[0].mxu0
  %8269 = vdwg.mxu0
  %vm8270 = vcmp.ge.f32.partialorder %v8208, 0.0
  %vm8271 = vcmp.ge.f32.partialorder %v8211, 0.0
  %vm8272 = vcmp.ge.f32.partialorder %v8216, 0.0
  %vm8273 = vcmp.ge.f32.partialorder %v8219, 0.0
  %vm8274 = vcmp.ge.f32.partialorder %v8224, 0.0
  %vm8275 = vcmp.ge.f32.partialorder %v8227, 0.0
  %vm8276 = vcmp.ge.f32.partialorder %v8232, 0.0
  %vm8277 = vcmp.ge.f32.partialorder %v8235, 0.0
  %vm8278 = vcmp.ge.f32.partialorder %v8240, 0.0
  %vm8279 = vcmp.ge.f32.partialorder %v8243, 0.0
  %vm8280 = vcmp.ge.f32.partialorder %v8248, 0.0
  %vm8281 = vcmp.ge.f32.partialorder %v8251, 0.0
  %vm8282 = vcmp.ge.f32.partialorder %v8256, 0.0
  %vm8283 = vcmp.ge.f32.partialorder %v8259, 0.0
  %vm8284 = vcmp.ge.f32.partialorder %v8264, 0.0
  %vm8285 = vcmp.ge.f32.partialorder %v8267, 0.0
  %v8286 = vmul.f32 %v8208, 0.01
  %v8287 = vmul.f32 %v8211, 0.01
  %v8288 = vmul.f32 %v8216, 0.01
  %v8289 = vmul.f32 %v8219, 0.01
  %v8290 = vmul.f32 %v8224, 0.01
  %v8291 = vmul.f32 %v8227, 0.01
  %v8292 = vmul.f32 %v8232, 0.01
  %v8293 = vmul.f32 %v8235, 0.01
  %v8294 = vmul.f32 %v8240, 0.01
  %v8295 = vmul.f32 %v8243, 0.01
  %v8296 = vmul.f32 %v8248, 0.01
  %v8297 = vmul.f32 %v8251, 0.01
  %v8298 = vmul.f32 %v8256, 0.01
  %v8299 = vmul.f32 %v8259, 0.01
  %v8300 = vmul.f32 %v8264, 0.01
  %v8301 = vmul.f32 %v8267, 0.01
  %v8302 = vsel %vm8270, %v8208, %v8286
  %v8303 = vsel %vm8271, %v8211, %v8287
  %v8304 = vsel %vm8272, %v8216, %v8288
  %v8305 = vsel %vm8273, %v8219, %v8289
  %v8306 = vsel %vm8274, %v8224, %v8290
  %v8307 = vsel %vm8275, %v8227, %v8291
  %v8308 = vsel %vm8276, %v8232, %v8292
  %v8309 = vsel %vm8277, %v8235, %v8293
  %v8310 = vsel %vm8278, %v8240, %v8294
  %v8311 = vsel %vm8279, %v8243, %v8295
  %v8312 = vsel %vm8280, %v8248, %v8296
  %v8313 = vsel %vm8281, %v8251, %v8297
  %v8314 = vsel %vm8282, %v8256, %v8298
  %v8315 = vsel %vm8283, %v8259, %v8299
  %v8316 = vsel %vm8284, %v8264, %v8300
  %v8317 = vsel %vm8285, %v8267, %v8301
  %v8318 = vsel %vm1459, %v8302, 0.0
  %8319 = vadd.xlane.f32.xlu0 %v8318
  %v8320 = vpop.xlane.xlu0 %8319
  %v8321 = vsel %vm1459, %v8303, 0.0
  %8322 = vadd.xlane.f32.xlu0 %v8321
  %v8323 = vpop.xlane.xlu0 %8322
  %v8324 = vsel %vm1459, %v8304, 0.0
  %8325 = vadd.xlane.f32.xlu0 %v8324
  %v8326 = vpop.xlane.xlu0 %8325
  %v8327 = vsel %vm1459, %v8305, 0.0
  %8328 = vadd.xlane.f32.xlu0 %v8327
  %v8329 = vpop.xlane.xlu0 %8328
  %v8330 = vsel %vm1459, %v8306, 0.0
  %8331 = vadd.xlane.f32.xlu0 %v8330
  %v8332 = vpop.xlane.xlu0 %8331
  %v8333 = vsel %vm1459, %v8307, 0.0
  %8334 = vadd.xlane.f32.xlu0 %v8333
  %v8335 = vpop.xlane.xlu0 %8334
  %v8336 = vsel %vm1459, %v8308, 0.0
  %8337 = vadd.xlane.f32.xlu0 %v8336
  %v8338 = vpop.xlane.xlu0 %8337
  %v8339 = vsel %vm1459, %v8309, 0.0
  %8340 = vadd.xlane.f32.xlu0 %v8339
  %v8341 = vpop.xlane.xlu0 %8340
  %v8342 = vsel %vm1459, %v8310, 0.0
  %8343 = vadd.xlane.f32.xlu0 %v8342
  %v8344 = vpop.xlane.xlu0 %8343
  %v8345 = vsel %vm1459, %v8311, 0.0
  %8346 = vadd.xlane.f32.xlu0 %v8345
  %v8347 = vpop.xlane.xlu0 %8346
  %v8348 = vsel %vm1459, %v8312, 0.0
  %8349 = vadd.xlane.f32.xlu0 %v8348
  %v8350 = vpop.xlane.xlu0 %8349
  %v8351 = vsel %vm1459, %v8313, 0.0
  %8352 = vadd.xlane.f32.xlu0 %v8351
  %v8353 = vpop.xlane.xlu0 %8352
  %v8354 = vsel %vm1459, %v8314, 0.0
  %8355 = vadd.xlane.f32.xlu0 %v8354
  %v8356 = vpop.xlane.xlu0 %8355
  %v8357 = vsel %vm1459, %v8315, 0.0
  %8358 = vadd.xlane.f32.xlu0 %v8357
  %v8359 = vpop.xlane.xlu0 %8358
  %v8360 = vsel %vm1459, %v8316, 0.0
  %8361 = vadd.xlane.f32.xlu0 %v8360
  %v8362 = vpop.xlane.xlu0 %8361
  %v8363 = vsel %vm1459, %v8317, 0.0
  %8364 = vadd.xlane.f32.xlu0 %v8363
  %v8365 = vpop.xlane.xlu0 %8364
  %v8366 = vadd.f32 %v8320, %v8332
  %v8367 = vadd.f32 %v8323, %v8335
  %v8368 = vadd.f32 %v8326, %v8338
  %v8369 = vadd.f32 %v8329, %v8341
  %v8370 = vadd.f32 %v8366, %v8344
  %v8371 = vadd.f32 %v8367, %v8347
  %v8372 = vadd.f32 %v8368, %v8350
  %v8373 = vadd.f32 %v8369, %v8353
  %v8374 = vadd.f32 %v8370, %v8356
  %v8375 = vadd.f32 %v8371, %v8359
  %v8376 = vadd.f32 %v8372, %v8362
  %v8377 = vadd.f32 %v8373, %v8365
  %v8378 = vmul.f32 %v8374, %v483
  %v8379 = vmul.f32 %v8375, %v483
  %v8380 = vmul.f32 %v8376, %v483
  %v8381 = vmul.f32 %v8377, %v483
  %8383 = vset.pattern.permute.xlu0 0
  %8384 = vperm.xlu0 %8383, %v8378
  %v8385 = vpop.permute.xlu0 %8384
  %8388 = vset.pattern.permute.xlu0 0
  %8389 = vperm.xlu0 %8388, %v8379
  %v8390 = vpop.permute.xlu0 %8389
  %8393 = vset.pattern.permute.xlu0 0
  %8394 = vperm.xlu0 %8393, %v8380
  %v8395 = vpop.permute.xlu0 %8394
  %8398 = vset.pattern.permute.xlu0 0
  %8399 = vperm.xlu0 %8398, %v8381
  %v8400 = vpop.permute.xlu0 %8399
  %v8402 = vsub.f32 %v8302, %v8385
  %v8403 = vsub.f32 %v8303, %v8390
  %v8404 = vsub.f32 %v8304, %v8395
  %v8405 = vsub.f32 %v8305, %v8400
  %v8406 = vsub.f32 %v8306, %v8385
  %v8407 = vsub.f32 %v8307, %v8390
  %v8408 = vsub.f32 %v8308, %v8395
  %v8409 = vsub.f32 %v8309, %v8400
  %v8410 = vsub.f32 %v8310, %v8385
  %v8411 = vsub.f32 %v8311, %v8390
  %v8412 = vsub.f32 %v8312, %v8395
  %v8413 = vsub.f32 %v8313, %v8400
  %v8414 = vsub.f32 %v8314, %v8385
  %v8415 = vsub.f32 %v8315, %v8390
  %v8416 = vsub.f32 %v8316, %v8395
  %v8417 = vsub.f32 %v8317, %v8400
  %v8418 = vmul.f32 %v8402, %v8402
  %v8419 = vmul.f32 %v8403, %v8403
  %v8420 = vmul.f32 %v8404, %v8404
  %v8421 = vmul.f32 %v8405, %v8405
  %v8422 = vmul.f32 %v8406, %v8406
  %v8423 = vmul.f32 %v8407, %v8407
  %v8424 = vmul.f32 %v8408, %v8408
  %v8425 = vmul.f32 %v8409, %v8409
  %v8426 = vmul.f32 %v8410, %v8410
  %v8427 = vmul.f32 %v8411, %v8411
  %v8428 = vmul.f32 %v8412, %v8412
  %v8429 = vmul.f32 %v8413, %v8413
  %v8430 = vmul.f32 %v8414, %v8414
  %v8431 = vmul.f32 %v8415, %v8415
  %v8432 = vmul.f32 %v8416, %v8416
  %v8433 = vmul.f32 %v8417, %v8417
  %v8434 = vsel %vm1459, %v8418, 0.0
  %8435 = vadd.xlane.f32.xlu0 %v8434
  %v8436 = vpop.xlane.xlu0 %8435
  %v8437 = vsel %vm1459, %v8419, 0.0
  %8438 = vadd.xlane.f32.xlu0 %v8437
  %v8439 = vpop.xlane.xlu0 %8438
  %v8440 = vsel %vm1459, %v8420, 0.0
  %8441 = vadd.xlane.f32.xlu0 %v8440
  %v8442 = vpop.xlane.xlu0 %8441
  %v8443 = vsel %vm1459, %v8421, 0.0
  %8444 = vadd.xlane.f32.xlu0 %v8443
  %v8445 = vpop.xlane.xlu0 %8444
  %v8446 = vsel %vm1459, %v8422, 0.0
  %8447 = vadd.xlane.f32.xlu0 %v8446
  %v8448 = vpop.xlane.xlu0 %8447
  %v8449 = vsel %vm1459, %v8423, 0.0
  %8450 = vadd.xlane.f32.xlu0 %v8449
  %v8451 = vpop.xlane.xlu0 %8450
  %v8452 = vsel %vm1459, %v8424, 0.0
  %8453 = vadd.xlane.f32.xlu0 %v8452
  %v8454 = vpop.xlane.xlu0 %8453
  %v8455 = vsel %vm1459, %v8425, 0.0
  %8456 = vadd.xlane.f32.xlu0 %v8455
  %v8457 = vpop.xlane.xlu0 %8456
  %v8458 = vsel %vm1459, %v8426, 0.0
  %8459 = vadd.xlane.f32.xlu0 %v8458
  %v8460 = vpop.xlane.xlu0 %8459
  %v8461 = vsel %vm1459, %v8427, 0.0
  %8462 = vadd.xlane.f32.xlu0 %v8461
  %v8463 = vpop.xlane.xlu0 %8462
  %v8464 = vsel %vm1459, %v8428, 0.0
  %8465 = vadd.xlane.f32.xlu0 %v8464
  %v8466 = vpop.xlane.xlu0 %8465
  %v8467 = vsel %vm1459, %v8429, 0.0
  %8468 = vadd.xlane.f32.xlu0 %v8467
  %v8469 = vpop.xlane.xlu0 %8468
  %v8470 = vsel %vm1459, %v8430, 0.0
  %8471 = vadd.xlane.f32.xlu0 %v8470
  %v8472 = vpop.xlane.xlu0 %8471
  %v8473 = vsel %vm1459, %v8431, 0.0
  %8474 = vadd.xlane.f32.xlu0 %v8473
  %v8475 = vpop.xlane.xlu0 %8474
  %v8476 = vsel %vm1459, %v8432, 0.0
  %8477 = vadd.xlane.f32.xlu0 %v8476
  %v8478 = vpop.xlane.xlu0 %8477
  %v8479 = vsel %vm1459, %v8433, 0.0
  %8480 = vadd.xlane.f32.xlu0 %v8479
  %v8481 = vpop.xlane.xlu0 %8480
  %v8482 = vadd.f32 %v8436, %v8448
  %v8483 = vadd.f32 %v8439, %v8451
  %v8484 = vadd.f32 %v8442, %v8454
  %v8485 = vadd.f32 %v8445, %v8457
  %v8486 = vadd.f32 %v8482, %v8460
  %v8487 = vadd.f32 %v8483, %v8463
  %v8488 = vadd.f32 %v8484, %v8466
  %v8489 = vadd.f32 %v8485, %v8469
  %v8490 = vadd.f32 %v8486, %v8472
  %v8491 = vadd.f32 %v8487, %v8475
  %v8492 = vadd.f32 %v8488, %v8478
  %v8493 = vadd.f32 %v8489, %v8481
  %v8494 = vmul.f32 %v8490, %v483
  %v8495 = vmul.f32 %v8491, %v483
  %v8496 = vmul.f32 %v8492, %v483
  %v8497 = vmul.f32 %v8493, %v483
  %v8498 = vld [vmem:[%s59] sm:$0xff]
  %v8499 = vld [vmem:[%s59 + $0x8] sm:$0xff]
  %v8500 = vld [vmem:[%s59 + $0x10] sm:$0xff]
  %v8501 = vld [vmem:[%s59 + $0x18] sm:$0xff]
  %v8502 = vadd.f32 %v8494, 1e-05
  %v8503 = vadd.f32 %v8495, 1e-05
  %v8504 = vadd.f32 %v8496, 1e-05
  %v8505 = vadd.f32 %v8497, 1e-05
  %v8506 = vrsqrt.pop %v8502
  %v8507 = vrsqrt.pop %v8503
  %v8508 = vrsqrt.pop %v8504
  %v8509 = vrsqrt.pop %v8505
  %v8510 = vmul.f32 %v8498, %v8506
  %v8511 = vmul.f32 %v8499, %v8507
  %v8512 = vmul.f32 %v8500, %v8508
  %v8513 = vmul.f32 %v8501, %v8509
  %v8514 = vld [vmem:[%s61] sm:$0xff]
  %v8515 = vld [vmem:[%s61 + $0x8] sm:$0xff]
  %v8516 = vld [vmem:[%s61 + $0x10] sm:$0xff]
  %v8517 = vld [vmem:[%s61 + $0x18] sm:$0xff]
  %v8518 = vmul.f32 %v8378, %v8510
  %v8519 = vmul.f32 %v8379, %v8511
  %v8520 = vmul.f32 %v8380, %v8512
  %v8521 = vmul.f32 %v8381, %v8513
  %v8522 = vsub.f32 %v8514, %v8518
  %v8523 = vsub.f32 %v8515, %v8519
  %v8524 = vsub.f32 %v8516, %v8520
  %v8525 = vsub.f32 %v8517, %v8521
  %8527 = vset.pattern.permute.xlu0 0
  %8528 = vperm.xlu0 %8527, %v8510
  %v8529 = vpop.permute.xlu0 %8528
  %8532 = vset.pattern.permute.xlu0 0
  %8533 = vperm.xlu0 %8532, %v8511
  %v8534 = vpop.permute.xlu0 %8533
  %8537 = vset.pattern.permute.xlu0 0
  %8538 = vperm.xlu0 %8537, %v8512
  %v8539 = vpop.permute.xlu0 %8538
  %8542 = vset.pattern.permute.xlu0 0
  %8543 = vperm.xlu0 %8542, %v8513
  %v8544 = vpop.permute.xlu0 %8543
  %v8546 = vmul.f32 %v8302, %v8529
  %v8547 = vmul.f32 %v8303, %v8534
  %v8548 = vmul.f32 %v8304, %v8539
  %v8549 = vmul.f32 %v8305, %v8544
  %v8550 = vmul.f32 %v8306, %v8529
  %v8551 = vmul.f32 %v8307, %v8534
  %v8552 = vmul.f32 %v8308, %v8539
  %v8553 = vmul.f32 %v8309, %v8544
  %v8554 = vmul.f32 %v8310, %v8529
  %v8555 = vmul.f32 %v8311, %v8534
  %v8556 = vmul.f32 %v8312, %v8539
  %v8557 = vmul.f32 %v8313, %v8544
  %v8558 = vmul.f32 %v8314, %v8529
  %v8559 = vmul.f32 %v8315, %v8534
  %v8560 = vmul.f32 %v8316, %v8539
  %v8561 = vmul.f32 %v8317, %v8544
  %8563 = vset.pattern.permute.xlu0 0
  %8564 = vperm.xlu0 %8563, %v8522
  %v8565 = vpop.permute.xlu0 %8564
  %8568 = vset.pattern.permute.xlu0 0
  %8569 = vperm.xlu0 %8568, %v8523
  %v8570 = vpop.permute.xlu0 %8569
  %8573 = vset.pattern.permute.xlu0 0
  %8574 = vperm.xlu0 %8573, %v8524
  %v8575 = vpop.permute.xlu0 %8574
  %8578 = vset.pattern.permute.xlu0 0
  %8579 = vperm.xlu0 %8578, %v8525
  %v8580 = vpop.permute.xlu0 %8579
  %v8582 = vadd.f32 %v8546, %v8565
  %v8583 = vadd.f32 %v8547, %v8570
  %v8584 = vadd.f32 %v8548, %v8575
  %v8585 = vadd.f32 %v8549, %v8580
  %v8586 = vadd.f32 %v8550, %v8565
  %v8587 = vadd.f32 %v8551, %v8570
  %v8588 = vadd.f32 %v8552, %v8575
  %v8589 = vadd.f32 %v8553, %v8580
  %v8590 = vadd.f32 %v8554, %v8565
  %v8591 = vadd.f32 %v8555, %v8570
  %v8592 = vadd.f32 %v8556, %v8575
  %v8593 = vadd.f32 %v8557, %v8580
  %v8594 = vadd.f32 %v8558, %v8565
  %v8595 = vadd.f32 %v8559, %v8570
  %v8596 = vadd.f32 %v8560, %v8575
  %v8597 = vadd.f32 %v8561, %v8580
  %v8598 = vld [vmem:[%s63] sm:$0xf]
  %v8599 = vld [vmem:[%s63 + $0x4] sm:$0xf]
  %v8600 = vld [vmem:[%s63 + $0x8] sm:$0xf]
  %v8601 = vld [vmem:[%s63 + $0xc] sm:$0xf]
  %v8602 = vpack.c.bf16 %v8583, %v8582
  %v8603 = vpack.c.bf16 %v8585, %v8584
  %v8604 = vpack.c.bf16 %v8587, %v8586
  %v8605 = vpack.c.bf16 %v8589, %v8588
  %v8606 = vpack.c.bf16 %v8591, %v8590
  %v8607 = vpack.c.bf16 %v8593, %v8592
  %v8608 = vpack.c.bf16 %v8595, %v8594
  %v8609 = vpack.c.bf16 %v8597, %v8596
  %v8610 = vld [vmem:[%s65] sm:$0xff]
  %v8611 = vld [vmem:[%s65 + $0x8] sm:$0xff]
  %v8612 = vld [vmem:[%s65 + $0x10] sm:$0xff]
  %v8613 = vld [vmem:[%s65 + $0x18] sm:$0xff]
  %8615 = vset.pattern.permute.xlu0 0
  %8616 = vperm.xlu0 %8615, %v8610
  %v8617 = vpop.permute.xlu0 %8616
  %8620 = vset.pattern.permute.xlu0 0
  %8621 = vperm.xlu0 %8620, %v8611
  %v8622 = vpop.permute.xlu0 %8621
  %8625 = vset.pattern.permute.xlu0 0
  %8626 = vperm.xlu0 %8625, %v8612
  %v8627 = vpop.permute.xlu0 %8626
  %8630 = vset.pattern.permute.xlu0 0
  %8631 = vperm.xlu0 %8630, %v8613
  %v8632 = vpop.permute.xlu0 %8631
  %v8638 = vunpack.c.l.b16 %v8598
  %v8639 = vunpack.c.l.b16 %v8599
  %v8640 = vunpack.c.l.b16 %v8600
  %v8641 = vunpack.c.l.b16 %v8601
  %v8642 = vpack.c.b16 %v8639, %v8638
  %v8643 = vpack.c.b16 %v8641, %v8640
  %8646 = vmatprep.subr.bf16.mxu0 0
  %8647 = vmatpush1.bf16.msra.mxu0 %v8602
  %8648 = vmatprep.subr.bf16.mxu0 0
  %8649 = vmatpush1.bf16.msra.mxu0 %v8603
  %8650 = vmatprep.subr.bf16.mxu0 0
  %8651 = vmatpush1.bf16.msra.mxu0 %v8604
  %8652 = vmatprep.subr.bf16.mxu0 0
  %8653 = vmatpush1.bf16.msra.mxu0 %v8605
  %8654 = vmatprep.subr.bf16.mxu0 0
  %8655 = vmatpush1.bf16.msra.mxu0 %v8606
  %8656 = vmatprep.subr.bf16.mxu0 0
  %8657 = vmatpush1.bf16.msra.mxu0 %v8607
  %8658 = vmatprep.subr.bf16.mxu0 0
  %8659 = vmatpush1.bf16.msra.mxu0 %v8608
  %8660 = vmatprep.subr.bf16.mxu0 0
  %8661 = vmatpush1.bf16.msra.mxu0 %v8609
  %8662 = vmatprep.subr.bf16.mxu0 0
  %8663 = vmatpush1.bf16.msra.mxu0 0
  %8664 = vmatprep.subr.bf16.mxu0 0
  %8665 = vmatpush1.bf16.msra.mxu0 0
  %8666 = vmatprep.subr.bf16.mxu0 0
  %8667 = vmatpush1.bf16.msra.mxu0 0
  %8668 = vmatprep.subr.bf16.mxu0 0
  %8669 = vmatpush1.bf16.msra.mxu0 0
  %8670 = vmatprep.subr.bf16.mxu0 0
  %8671 = vmatpush1.bf16.msra.mxu0 0
  %8672 = vmatprep.subr.bf16.mxu0 0
  %8673 = vmatpush1.bf16.msra.mxu0 0
  %8674 = vmatprep.subr.bf16.mxu0 0
  %8675 = vmatpush1.bf16.msra.mxu0 0
  %8676 = vmatprep.subr.bf16.mxu0 0
  %8677 = vmatpush1.bf16.msra.mxu0 0
  %8678 = vmatprep.mubr.bf16.mxu0 0
  %8679 = vmatmul.mubr.bf16.gmra.mrb[0].mxu0 %v8642
  %v8680 = vpop.f32.mrb[0].mxu0
  %v8681 = vadd.f32 %v8617, %v8680
  %v8682 = vpop.f32.mrb[0].mxu0
  %v8683 = vpop.f32.mrb[0].mxu0
  %v8684 = vadd.f32 %v8622, %v8683
  %v8685 = vpop.f32.mrb[0].mxu0
  %8686 = vmatprep.mubr.bf16.mxu0 0
  %8687 = vmatmul.mubr.bf16.gmra.mrb[0].mxu0 %v8643
  %v8688 = vpop.f32.mrb[0].mxu0
  %v8689 = vadd.f32 %v8627, %v8688
  %v8690 = vpop.f32.mrb[0].mxu0
  %v8691 = vpop.f32.mrb[0].mxu0
  %v8692 = vadd.f32 %v8632, %v8691
  %v8693 = vpop.f32.mrb[0].mxu0
  %8694 = vdwg.mxu0
  %vm8695 = vcmp.ge.f32.partialorder %v8681, 0.0
  %vm8696 = vcmp.ge.f32.partialorder %v8684, 0.0
  %vm8697 = vcmp.ge.f32.partialorder %v8689, 0.0
  %vm8698 = vcmp.ge.f32.partialorder %v8692, 0.0
  %v8699 = vmul.f32 %v8681, 0.01
  %v8700 = vmul.f32 %v8684, 0.01
  %v8701 = vmul.f32 %v8689, 0.01
  %v8702 = vmul.f32 %v8692, 0.01
  %v8703 = vsel %vm8695, %v8681, %v8699
  %v8704 = vsel %vm8696, %v8684, %v8700
  %v8705 = vsel %vm8697, %v8689, %v8701
  %v8706 = vsel %vm8698, %v8692, %v8702
  %v8707 = vsel %vm1459, %v8703, 0.0
  %8708 = vadd.xlane.f32.xlu0 %v8707
  %v8709 = vpop.xlane.xlu0 %8708
  %v8710 = vsel %vm1459, %v8704, 0.0
  %8711 = vadd.xlane.f32.xlu0 %v8710
  %v8712 = vpop.xlane.xlu0 %8711
  %v8713 = vsel %vm1459, %v8705, 0.0
  %8714 = vadd.xlane.f32.xlu0 %v8713
  %v8715 = vpop.xlane.xlu0 %8714
  %v8716 = vsel %vm1459, %v8706, 0.0
  %8717 = vadd.xlane.f32.xlu0 %v8716
  %v8718 = vpop.xlane.xlu0 %8717
  %v8719 = vmul.f32 %v8709, %v1861
  %v8720 = vmul.f32 %v8712, %v1861
  %v8721 = vmul.f32 %v8715, %v1861
  %v8722 = vmul.f32 %v8718, %v1861
  %v8723 = vsub.f32 %v8703, %v8719
  %v8724 = vsub.f32 %v8704, %v8720
  %v8725 = vsub.f32 %v8705, %v8721
  %v8726 = vsub.f32 %v8706, %v8722
  %v8727 = vmul.f32 %v8723, %v8723
  %v8728 = vmul.f32 %v8724, %v8724
  %v8729 = vmul.f32 %v8725, %v8725
  %v8730 = vmul.f32 %v8726, %v8726
  %v8731 = vsel %vm1459, %v8727, 0.0
  %8732 = vadd.xlane.f32.xlu0 %v8731
  %v8733 = vpop.xlane.xlu0 %8732
  %v8734 = vsel %vm1459, %v8728, 0.0
  %8735 = vadd.xlane.f32.xlu0 %v8734
  %v8736 = vpop.xlane.xlu0 %8735
  %v8737 = vsel %vm1459, %v8729, 0.0
  %8738 = vadd.xlane.f32.xlu0 %v8737
  %v8739 = vpop.xlane.xlu0 %8738
  %v8740 = vsel %vm1459, %v8730, 0.0
  %8741 = vadd.xlane.f32.xlu0 %v8740
  %v8742 = vpop.xlane.xlu0 %8741
  %v8743 = vmul.f32 %v8733, %v1861
  %v8744 = vmul.f32 %v8736, %v1861
  %v8745 = vmul.f32 %v8739, %v1861
  %v8746 = vmul.f32 %v8742, %v1861
  %v8747 = vld [vmem:[%s67] sm:$0xff]
  %v8748 = vld [vmem:[%s67 + $0x8] sm:$0xff]
  %v8749 = vld [vmem:[%s67 + $0x10] sm:$0xff]
  %v8750 = vld [vmem:[%s67 + $0x18] sm:$0xff]
  %v8751 = vadd.f32 %v8743, 1e-05
  %v8752 = vadd.f32 %v8744, 1e-05
  %v8753 = vadd.f32 %v8745, 1e-05
  %v8754 = vadd.f32 %v8746, 1e-05
  %v8755 = vrsqrt.pop %v8751
  %v8756 = vrsqrt.pop %v8752
  %v8757 = vrsqrt.pop %v8753
  %v8758 = vrsqrt.pop %v8754
  %v8759 = vmul.f32 %v8747, %v8755
  %v8760 = vmul.f32 %v8748, %v8756
  %v8761 = vmul.f32 %v8749, %v8757
  %v8762 = vmul.f32 %v8750, %v8758
  %v8763 = vld [vmem:[%s69] sm:$0xff]
  %v8764 = vld [vmem:[%s69 + $0x8] sm:$0xff]
  %v8765 = vld [vmem:[%s69 + $0x10] sm:$0xff]
  %v8766 = vld [vmem:[%s69 + $0x18] sm:$0xff]
  %v8767 = vmul.f32 %v8719, %v8759
  %v8768 = vmul.f32 %v8720, %v8760
  %v8769 = vmul.f32 %v8721, %v8761
  %v8770 = vmul.f32 %v8722, %v8762
  %v8771 = vsub.f32 %v8763, %v8767
  %v8772 = vsub.f32 %v8764, %v8768
  %v8773 = vsub.f32 %v8765, %v8769
  %v8774 = vsub.f32 %v8766, %v8770
  %v8775 = vsel %vm459, %v8703, 0.0
  %8776 = vadd.xlane.f32.xlu0 %v8775
  %v8777 = vpop.xlane.xlu0 %8776
  %v8778 = vsel %vm459, %v8704, 0.0
  %8779 = vadd.xlane.f32.xlu0 %v8778
  %v8780 = vpop.xlane.xlu0 %8779
  %v8781 = vsel %vm459, %v8705, 0.0
  %8782 = vadd.xlane.f32.xlu0 %v8781
  %v8783 = vpop.xlane.xlu0 %8782
  %v8784 = vsel %vm459, %v8706, 0.0
  %8785 = vadd.xlane.f32.xlu0 %v8784
  %v8786 = vpop.xlane.xlu0 %8785
  %v8787 = vmul.f32 %v8777, %v1930
  %v8788 = vmul.f32 %v8780, %v1930
  %v8789 = vmul.f32 %v8783, %v1930
  %v8790 = vmul.f32 %v8786, %v1930
  %v8791 = vmul.f32 %v8787, %v8759
  %v8792 = vmul.f32 %v8788, %v8760
  %v8793 = vmul.f32 %v8789, %v8761
  %v8794 = vmul.f32 %v8790, %v8762
  %v8795 = vadd.f32 %v8791, %v8771
  %v8796 = vadd.f32 %v8792, %v8772
  %v8797 = vadd.f32 %v8793, %v8773
  %v8798 = vadd.f32 %v8794, %v8774
  %8803 = vrot.lane.b32.xlu0 %v8703, 71
  %v8804 = vpop.permute.xlu0 %8803
  %8805 = vrot.lane.b32.xlu0 %v8704, 71
  %v8806 = vpop.permute.xlu0 %8805
  %8807 = vrot.lane.b32.xlu0 %v8705, 71
  %v8808 = vpop.permute.xlu0 %8807
  %8809 = vrot.lane.b32.xlu0 %v8706, 71
  %v8810 = vpop.permute.xlu0 %8809
  %v8815 = vsel %vm459, %v8804, 0.0
  %8816 = vadd.xlane.f32.xlu0 %v8815
  %v8817 = vpop.xlane.xlu0 %8816
  %v8818 = vsel %vm459, %v8806, 0.0
  %8819 = vadd.xlane.f32.xlu0 %v8818
  %v8820 = vpop.xlane.xlu0 %8819
  %v8821 = vsel %vm459, %v8808, 0.0
  %8822 = vadd.xlane.f32.xlu0 %v8821
  %v8823 = vpop.xlane.xlu0 %8822
  %v8824 = vsel %vm459, %v8810, 0.0
  %8825 = vadd.xlane.f32.xlu0 %v8824
  %v8826 = vpop.xlane.xlu0 %8825
  %v8827 = vmul.f32 %v8817, %v1930
  %v8828 = vmul.f32 %v8820, %v1930
  %v8829 = vmul.f32 %v8823, %v1930
  %v8830 = vmul.f32 %v8826, %v1930
  %v8831 = vmul.f32 %v8827, %v8759
  %v8832 = vmul.f32 %v8828, %v8760
  %v8833 = vmul.f32 %v8829, %v8761
  %v8834 = vmul.f32 %v8830, %v8762
  %v8835 = vadd.f32 %v8831, %v8771
  %v8836 = vadd.f32 %v8832, %v8772
  %v8837 = vadd.f32 %v8833, %v8773
  %v8838 = vadd.f32 %v8834, %v8774
  %8851 = vrot.lane.b32.xlu0 %v1979, 1
  %v8852 = vpop.permute.xlu0 %8851
  %8853 = vrot.lane.b32.xlu0 %v1980, 1
  %v8854 = vpop.permute.xlu0 %8853
  %8855 = vrot.lane.b32.xlu0 %v1981, 1
  %v8856 = vpop.permute.xlu0 %8855
  %8857 = vrot.lane.b32.xlu0 %v1982, 1
  %v8858 = vpop.permute.xlu0 %8857
  %8859 = vrot.lane.b32.xlu0 %v6271, 1
  %v8860 = vpop.permute.xlu0 %8859
  %8861 = vrot.lane.b32.xlu0 %v6272, 1
  %v8862 = vpop.permute.xlu0 %8861
  %8863 = vrot.lane.b32.xlu0 %v6273, 1
  %v8864 = vpop.permute.xlu0 %8863
  %8865 = vrot.lane.b32.xlu0 %v6274, 1
  %v8866 = vpop.permute.xlu0 %8865
  %8867 = vrot.lane.b32.xlu0 %v8835, 1
  %v8868 = vpop.permute.xlu0 %8867
  %8869 = vrot.lane.b32.xlu0 %v8836, 1
  %v8870 = vpop.permute.xlu0 %8869
  %8871 = vrot.lane.b32.xlu0 %v8837, 1
  %v8872 = vpop.permute.xlu0 %8871
  %8873 = vrot.lane.b32.xlu0 %v8838, 1
  %v8874 = vpop.permute.xlu0 %8873
  %vm8887 = vcmask 7168
  %v8888 = vsel %vm8887, %v1939, %v8852
  %v8889 = vsel %vm8887, %v1940, %v8854
  %v8890 = vsel %vm8887, %v1941, %v8856
  %v8891 = vsel %vm8887, %v1942, %v8858
  %v8892 = vsel %vm8887, %v6231, %v8860
  %v8893 = vsel %vm8887, %v6232, %v8862
  %v8894 = vsel %vm8887, %v6233, %v8864
  %v8895 = vsel %vm8887, %v6234, %v8866
  %v8896 = vsel %vm8887, %v8795, %v8868
  %v8897 = vsel %vm8887, %v8796, %v8870
  %v8898 = vsel %vm8887, %v8797, %v8872
  %v8899 = vsel %vm8887, %v8798, %v8874
  %v8900 = vld [vmem:[%s71] sm:$0x7]
  %v8901 = vld [vmem:[%s73] sm:$0x7]
  %8903 = vset.pattern.permute.xlu0 0
  %8904 = vperm.xlu0 %8903, %v8901
  %v8905 = vpop.permute.xlu0 %8904
  %vm8907 = vcmask 785408
  %v8909 = vsel %vm8907, %v8900, 0
  %8911 = vmatprep.subr.mxu0 0.0
  %8912 = vmatpush1.msra.mxu0 %v8888
  %8913 = vmatprep.subr.mxu0 0.0
  %8914 = vmatpush1.msra.mxu0 %v8889
  %8915 = vmatprep.subr.mxu0 0.0
  %8916 = vmatpush1.msra.mxu0 %v8890
  %8917 = vmatprep.subr.mxu0 0.0
  %8918 = vmatpush1.msra.mxu0 %v8891
  %8919 = vmatprep.subr.mxu0 0.0
  %8920 = vmatpush1.msra.mxu0 %v8892
  %8921 = vmatprep.subr.mxu0 0.0
  %8922 = vmatpush1.msra.mxu0 %v8893
  %8923 = vmatprep.subr.mxu0 0.0
  %8924 = vmatpush1.msra.mxu0 %v8894
  %8925 = vmatprep.subr.mxu0 0.0
  %8926 = vmatpush1.msra.mxu0 %v8895
  %8927 = vmatprep.subr.mxu0 0.0
  %8928 = vmatpush1.msra.mxu0 %v8896
  %8929 = vmatprep.subr.mxu0 0.0
  %8930 = vmatpush1.msra.mxu0 %v8897
  %8931 = vmatprep.subr.mxu0 0.0
  %8932 = vmatpush1.msra.mxu0 %v8898
  %8933 = vmatprep.subr.mxu0 0.0
  %8934 = vmatpush1.msra.mxu0 %v8899
  %8935 = vmatprep.subr.mxu0 0.0
  %8936 = vmatpush1.msra.mxu0 0.0
  %8937 = vmatprep.subr.mxu0 0.0
  %8938 = vmatpush1.msra.mxu0 0.0
  %8939 = vmatprep.subr.mxu0 0.0
  %8940 = vmatpush1.msra.mxu0 0.0
  %8941 = vmatprep.subr.mxu0 0.0
  %8942 = vmatpush1.msra.mxu0 0.0
  %8943 = vmatprep.subr.mxu0 0.0
  %8944 = vmatpush1.msra.mxu0 0.0
  %8945 = vmatprep.subr.mxu0 0.0
  %8946 = vmatpush1.msra.mxu0 0.0
  %8947 = vmatprep.subr.mxu0 0.0
  %8948 = vmatpush1.msra.mxu0 0.0
  %8949 = vmatprep.subr.mxu0 0.0
  %8950 = vmatpush1.msra.mxu0 0.0
  %8951 = vmatprep.subr.mxu0 0.0
  %8952 = vmatpush1.msra.mxu0 0.0
  %8953 = vmatprep.subr.mxu0 0.0
  %8954 = vmatpush1.msra.mxu0 0.0
  %8955 = vmatprep.subr.mxu0 0.0
  %8956 = vmatpush1.msra.mxu0 0.0
  %8957 = vmatprep.subr.mxu0 0.0
  %8958 = vmatpush1.msra.mxu0 0.0
  %8959 = vmatprep.subr.mxu0 0.0
  %8960 = vmatpush1.msra.mxu0 0.0
  %8961 = vmatprep.subr.mxu0 0.0
  %8962 = vmatpush1.msra.mxu0 0.0
  %8963 = vmatprep.subr.mxu0 0.0
  %8964 = vmatpush1.msra.mxu0 0.0
  %8965 = vmatprep.subr.mxu0 0.0
  %8966 = vmatpush1.msra.mxu0 0.0
  %8967 = vmatprep.subr.mxu0 0.0
  %8968 = vmatpush1.msra.mxu0 0.0
  %8969 = vmatprep.subr.mxu0 0.0
  %8970 = vmatpush1.msra.mxu0 0.0
  %8971 = vmatprep.subr.mxu0 0.0
  %8972 = vmatpush1.msra.mxu0 0.0
  %8973 = vmatprep.subr.mxu0 0.0
  %8974 = vmatpush1.msra.mxu0 0.0
  %8975 = vmatprep.mubr.f32.mxu0 0.0
  %8976 = vmatmul.mubr.f32.gmra.mrb[0].mxu0 %v8909
  %v8977 = vpop.f32.mrb[0].mxu0
  %v8978 = vadd.f32 %v8905, %v8977
  %v8979 = vpop.f32.mrb[0].mxu0
  %8980 = vdwg.mxu0
  %vm8981 = vcmask 10240
  %8982 = vst.msk [vmem:[%s75] sm:$0x7] %vm8981, %v8978
  // Predicated region
  $region150: #{msnn_forward.1} parent=0 // pred_check
    _
  $region151: #{msnn_forward.1} parent=0 // pred_check_branch
    %8984 = sbr.rel (0) target = $region153
  $region152: #{msnn_forward.1} parent=0 // pred_region
    _
  $region153: #{msnn_forward.1} parent=0 // pred_fallthru
    _
  // Predicated region
  $region154: #{msnn_forward.1} parent=0 // pred_check
    _
  $region155: #{msnn_forward.1} parent=0 // pred_check_branch
    %8986 = sbr.rel (0) target = $region157
  $region156: #{msnn_forward.1} parent=0 // pred_region
    _
  $region157: #{msnn_forward.1} parent=0 // pred_fallthru
    _

</llo_original>
